<compile_context>
chip_gen: v6e
topology: v6e:2x2x1
jax: 0.10.0
libtpu: 0.0.40
codegen_flags: <defaults>
</compile_context>

<pallas_src>
import math

import jax
import jax.numpy as jnp
from jax.experimental import pallas as pl
from jax.experimental.pallas import tpu as pltpu


# -------------------------- exact GELU (erf-based) -------------------------- #
# Abramowitz & Stegun 7.1.26 erf approximation (|err| <= 1.5e-7): exp + poly
# only, so it lowers cleanly on Mosaic while matching PyTorch's exact-erf
# nn.GELU().  The divide goes to the EUP via approx reciprocal (free slot).
_ERF_P = 0.3275911
_ERF_A1 = 0.254829592
_ERF_A2 = -0.284496736
_ERF_A3 = 1.421413741
_ERF_A4 = -1.453152027
_ERF_A5 = 1.061405429
_INV_SQRT2 = 0.7071067811865476


def _erf_approx(x):
    ax = jnp.abs(x)
    t = pl.reciprocal(1.0 + _ERF_P * ax, approx=True)
    poly = t * (_ERF_A1 + t * (_ERF_A2 + t * (_ERF_A3 + t * (_ERF_A4 + t * _ERF_A5))))
    y = 1.0 - poly * jnp.exp(-ax * ax)
    return jnp.where(x >= 0.0, y, -y)


def _gelu_exact(x):
    return 0.5 * x * (1.0 + _erf_approx(x * _INV_SQRT2))


# ------------------------------ fused kernel -------------------------------- #

def _fused_ffn_kernel(x_ref, w1_ref, b1_ref, dw_ref, dwb_ref, w2_ref, b2_ref,
                      o_ref, pad_ref, h_ref):
    # x_ref   : (H, W, De)        f32, resident per batch
    # w1_ref  : (De, DFF)         bf16     b1_ref : (1, DFF) f32
    # dw_ref  : (9, DFF)          f32      dwb_ref: (1, DFF) f32
    # w2_ref  : (DFF, De)         bf16     b2_ref : (1, De)  f32
    # o_ref   : (R, W, De)        output band
    # pad_ref : (R+2, W+2, DFF)   f32 scratch (zero-padded linear1+GELU)
    # h_ref   : (R, W, DFF)       bf16 scratch (dwconv+GELU output)
    R, W, De = o_ref.shape
    DFF = pad_ref.shape[-1]
    band = pl.program_id(1)
    n_bands = pl.num_programs(1)
    row0 = pl.multiple_of(band * R, R)

    # ---- zero the scratch's 1-element halo border (replaces host jnp.pad) ----
    zrow = jnp.zeros((1, W + 2, DFF), jnp.float32)
    pad_ref[0:1, :, :] = zrow
    pad_ref[R + 1:R + 2, :, :] = zrow
    zcol = jnp.zeros((R + 2, 1, DFF), jnp.float32)
    pad_ref[:, 0:1, :] = zcol
    pad_ref[:, W + 1:W + 2, :] = zcol

    w1 = w1_ref[...]                       # (De, DFF) bf16
    b1 = b1_ref[...]                       # (1, DFF)  f32

    # ---- stage 1: 1x1 conv + bias + GELU on the band's interior rows --------
    xb = x_ref[pl.ds(row0, R), :, :].reshape(R * W, De).astype(jnp.bfloat16)
    y = jnp.dot(xb, w1, preferred_element_type=jnp.float32)
    y = _gelu_exact(y + b1)
    pad_ref[1:R + 1, 1:W + 1, :] = y.reshape(R, W, DFF)

    # ---- stage 1 on the 1-row halos (recomputed across adjacent bands) ------
    @pl.when(band > 0)
    def _():
        xt = x_ref[pl.ds(row0 - 1, 1), :, :].reshape(W, De).astype(jnp.bfloat16)
        yt = _gelu_exact(jnp.dot(xt, w1, preferred_element_type=jnp.float32) + b1)
        pad_ref[0:1, 1:W + 1, :] = yt.reshape(1, W, DFF)

    @pl.when(band < n_bands - 1)
    def _():
        xd = x_ref[pl.ds(row0 + R, 1), :, :].reshape(W, De).astype(jnp.bfloat16)
        yd = _gelu_exact(jnp.dot(xd, w1, preferred_element_type=jnp.float32) + b1)
        pad_ref[R + 1:R + 2, 1:W + 1, :] = yd.reshape(1, W, DFF)

    # ---- stage 2: 3x3 depthwise conv + bias + GELU, one output row at a time.
    # Per-row accumulator (W, DFF) stays in vregs -> no repeated VMEM
    # read-modify-write passes over a full-band accumulator.
    taps = dw_ref[...].astype(jnp.float32)       # (9, DFF)
    dwb = dwb_ref[...].astype(jnp.float32)       # (1, DFF)
    for i in range(R):
        acc = jnp.zeros((W, DFF), jnp.float32)
        for di in range(3):
            prow = pad_ref[i + di]               # (W+2, DFF), aligned row load
            for dj in range(3):
                # TODO(synk): pltpu.roll(prow, -dj, axis=0) would move the dj
                # shift onto the otherwise-idle XLU slot; plain slices kept for
                # lowering safety.
                acc = acc + prow[dj:dj + W, :] * taps[di * 3 + dj]
        h_ref[i] = _gelu_exact(acc + dwb).astype(h_ref.dtype)

    # ---- stage 3: second 1x1 conv + bias over the whole band (one matmul) ---
    h = h_ref[...].reshape(R * W, DFF)                       # bf16
    out = jnp.dot(h, w2_ref[...], preferred_element_type=jnp.float32)
    out = out + b2_ref[...].astype(jnp.float32)
    o_ref[...] = out.reshape(R, W, De).astype(o_ref.dtype)


# ------------------------------- wrapper ------------------------------------ #

def _pick_band_rows(H, W):
    """Largest divisor of H with rows*W <= ~128 (good MXU LHS, bounded scratch)."""
    target = max(1, 128 // max(W, 1))
    best = 1
    for r in range(1, H + 1):
        if H % r == 0 and r <= target:
            best = r
    return best


def _vmem_limit_bytes(need_bytes):
    cap = 64 * 1024 * 1024                       # conservative (v7x per-TC)
    try:
        cap = int(pltpu.get_tpu_info().vmem_capacity_bytes) or cap
    except Exception:
        pass
    lim = max(2 * need_bytes, 32 * 1024 * 1024)
    return int(min(lim, (cap * 3) // 4))


def conv_ffn_forward(params, x):
    """x: (B, H, W, d_embed) -> (B, H, W, d_embed). Dropout = identity (eval)."""
    B, H, W, De = x.shape
    DFF = params["w1"].shape[1]
    R = _pick_band_rows(H, W)
    n_bands = H // R

    # MXU operands in bf16 (halves weight DMA too); biases / dw taps stay f32.
    w1 = params["w1"].astype(jnp.bfloat16)
    w2 = params["w2"].astype(jnp.bfloat16)
    b1 = params["b1"].reshape(1, DFF).astype(jnp.float32)
    dw = params["dw_w"].astype(jnp.float32)
    dwb = params["dw_b"].reshape(1, DFF).astype(jnp.float32)
    b2 = params["b2"].reshape(1, De).astype(jnp.float32)

    isz = x.dtype.itemsize
    need = (2 * H * W * De * isz                  # resident input block (x2 buf)
            + 2 * R * W * De * isz                # output band (x2 buf)
            + 2 * 2 * (De * DFF + DFF * De)       # bf16 weights (x2 buf)
            + 2 * 4 * (11 * DFF + De)             # f32 taps + biases (x2 buf)
            + (R + 2) * (W + 2) * DFF * 4         # padded f32 scratch
            + R * W * DFF * 2)                    # bf16 dwconv-output scratch

    return pl.pallas_call(
        _fused_ffn_kernel,
        out_shape=jax.ShapeDtypeStruct((B, H, W, De), x.dtype),
        grid=(B, n_bands),
        in_specs=[
            pl.BlockSpec((None, H, W, De), lambda b, r: (b, 0, 0, 0)),  # x
            pl.BlockSpec((De, DFF), lambda b, r: (0, 0)),               # w1
            pl.BlockSpec((1, DFF), lambda b, r: (0, 0)),                # b1
            pl.BlockSpec((9, DFF), lambda b, r: (0, 0)),                # dw taps
            pl.BlockSpec((1, DFF), lambda b, r: (0, 0)),                # dw bias
            pl.BlockSpec((DFF, De), lambda b, r: (0, 0)),               # w2
            pl.BlockSpec((1, De), lambda b, r: (0, 0)),                 # b2
        ],
        out_specs=pl.BlockSpec((None, R, W, De), lambda b, r: (b, r, 0, 0)),
        scratch_shapes=[
            pltpu.VMEM((R + 2, W + 2, DFF), jnp.float32),  # padded linear1+GELU
            pltpu.VMEM((R, W, DFF), jnp.bfloat16),         # dwconv+GELU output
        ],
        compiler_params=pltpu.CompilerParams(
            dimension_semantics=("parallel", "parallel"),
            vmem_limit_bytes=_vmem_limit_bytes(need),
        ),
    )(x, w1, b1, dw, dwb, w2, b2)


# ----------------------------- parameter setup ------------------------------ #

def init_params(key, d_embed, d_ff):
    ks = jax.random.split(key, 6)

    def u(k, shape, fan_in):
        bound = 1.0 / math.sqrt(fan_in)
        return jax.random.uniform(k, shape, jnp.float32, -bound, bound)

    return {
        # first_fc_layer: Conv2d(d_embed, d_ff, 1) -> (d_embed, d_ff) matmul
        "w1": u(ks[0], (d_embed, d_ff), d_embed),
        "b1": u(ks[1], (d_ff,), d_embed),
        # depthwise_conv_layer: Conv2d(d_ff, d_ff, 3, padding=1, groups=d_ff)
        # stored as (9, d_ff): tap (di, dj) at row di*3+dj
        "dw_w": u(ks[2], (9, d_ff), 9),
        "dw_b": u(ks[3], (d_ff,), 9),
        # second_fc_layer: Conv2d(d_ff, d_embed, 1) -> (d_ff, d_embed) matmul
        "w2": u(ks[4], (d_ff, d_embed), d_ff),
        "b2": u(ks[5], (d_embed,), d_ff),
    }


# ------------------------------ pure-JAX reference --------------------------- #

def reference_forward(params, x):
    B, H, W, De = x.shape
    h = jnp.einsum("bhwc,cf->bhwf", x, params["w1"]) + params["b1"]
    h = jax.nn.gelu(h, approximate=False)
    hp = jnp.pad(h, ((0, 0), (1, 1), (1, 1), (0, 0)))
    acc = jnp.zeros_like(h)
    for di in range(3):
        for dj in range(3):
            acc = acc + hp[:, di:di + H, dj:dj + W, :] * params["dw_w"][di * 3 + dj]
    h = jax.nn.gelu(acc + params["dw_b"], approximate=False)
    return jnp.einsum("bhwf,fc->bhwc", h, params["w2"]) + params["b2"]


# ---------------------------------- main ------------------------------------ #

if __name__ == "__main__":
    B, H, W = 2, 16, 16
    d_embed, d_ff = 128, 256

    key = jax.random.PRNGKey(0)
    k_params, k_x = jax.random.split(key)

    params = init_params(k_params, d_embed, d_ff)
    x = jax.random.normal(k_x, (B, H, W, d_embed), jnp.float32)

    fwd = jax.jit(conv_ffn_forward)
    out = jax.block_until_ready(fwd(params, x))

    assert out.shape == (B, H, W, d_embed), out.shape
    assert bool(jnp.all(jnp.isfinite(out)))

    ref = jax.block_until_ready(reference_forward(params, x))
    max_err = float(jnp.max(jnp.abs(out - ref)))
    # bf16 MXU operands + approximate erf / EUP reciprocal -> relaxed tolerance.
    assert max_err < 3e-2, f"max abs err {max_err}"

    print("KERNEL_OK")
</pallas_src>

<mosaic_0001>
module attributes {stable_mosaic.version = 11 : i64} {
  func.func @_fused_ffn_kernel(%arg0: i32, %arg1: i32, %arg2: memref<1x16x16x128xf32, #tpu.memory_space<vmem>>, %arg3: memref<128x256xbf16, #tpu.memory_space<vmem>>, %arg4: memref<1x256xf32, #tpu.memory_space<vmem>>, %arg5: memref<9x256xf32, #tpu.memory_space<vmem>>, %arg6: memref<1x256xf32, #tpu.memory_space<vmem>>, %arg7: memref<256x128xbf16, #tpu.memory_space<vmem>>, %arg8: memref<1x128xf32, #tpu.memory_space<vmem>>, %arg9: memref<1x8x16x128xf32, #tpu.memory_space<vmem>>, %arg10: memref<10x18x256xf32, #tpu.memory_space<vmem>>, %arg11: memref<8x16x256xbf16, #tpu.memory_space<vmem>>) attributes {dimension_semantics = [#tpu.dimension_semantics<parallel>, #tpu.dimension_semantics<parallel>], iteration_bounds = array<i64: 2, 2>, scalar_prefetch = 0 : i64, scratch_operands = 2 : i64, tpu.core_type = #tpu.core_type<tc>, window_params = [{transform_indices = @transform_0, window_bounds = array<i64: 1, 16, 16, 128>}, {pipeline_mode = #tpu.pipeline_mode<synchronous>, transform_indices = @transform_1, window_bounds = array<i64: 128, 256>}, {pipeline_mode = #tpu.pipeline_mode<synchronous>, transform_indices = @transform_2, window_bounds = array<i64: 1, 256>}, {pipeline_mode = #tpu.pipeline_mode<synchronous>, transform_indices = @transform_3, window_bounds = array<i64: 9, 256>}, {pipeline_mode = #tpu.pipeline_mode<synchronous>, transform_indices = @transform_4, window_bounds = array<i64: 1, 256>}, {pipeline_mode = #tpu.pipeline_mode<synchronous>, transform_indices = @transform_5, window_bounds = array<i64: 256, 128>}, {pipeline_mode = #tpu.pipeline_mode<synchronous>, transform_indices = @transform_6, window_bounds = array<i64: 1, 128>}, {transform_indices = @transform_7, window_bounds = array<i64: 1, 8, 16, 128>}]} {
    %c8_i32 = arith.constant 8 : i32
    %0 = arith.muli %arg1, %c8_i32 : i32
    %1 = tpu.assume_multiple %0, 8 : i32
    %cst = arith.constant 0.000000e+00 : f32
    %2 = vector.broadcast %cst : f32 to vector<1x18x256xf32>
    %c0 = arith.constant 0 : index
    %c0_0 = arith.constant 0 : index
    %c0_1 = arith.constant 0 : index
    %3 = vector.load %arg10[%c0, %c0_0, %c0_1] : memref<10x18x256xf32, #tpu.memory_space<vmem>>, vector<1x18x256xf32>
    tpu.vector_store %arg10[%c0, %c0_0, %c0_1], %2 {strides = array<i32>} : memref<10x18x256xf32, #tpu.memory_space<vmem>>, vector<1x18x256xf32>,
    %c9 = arith.constant 9 : index
    %c0_2 = arith.constant 0 : index
    %c0_3 = arith.constant 0 : index
    %4 = vector.load %arg10[%c9, %c0_2, %c0_3] : memref<10x18x256xf32, #tpu.memory_space<vmem>>, vector<1x18x256xf32>
    tpu.vector_store %arg10[%c9, %c0_2, %c0_3], %2 {strides = array<i32>} : memref<10x18x256xf32, #tpu.memory_space<vmem>>, vector<1x18x256xf32>,
    %cst_4 = arith.constant 0.000000e+00 : f32
    %5 = vector.broadcast %cst_4 : f32 to vector<10x1x256xf32>
    %c0_5 = arith.constant 0 : index
    %c0_6 = arith.constant 0 : index
    %c0_7 = arith.constant 0 : index
    %6 = vector.load %arg10[%c0_5, %c0_6, %c0_7] : memref<10x18x256xf32, #tpu.memory_space<vmem>>, vector<10x1x256xf32>
    tpu.vector_store %arg10[%c0_5, %c0_6, %c0_7], %5 {strides = array<i32>} : memref<10x18x256xf32, #tpu.memory_space<vmem>>, vector<10x1x256xf32>,
    %c0_8 = arith.constant 0 : index
    %c17 = arith.constant 17 : index
    %c0_9 = arith.constant 0 : index
    %7 = vector.load %arg10[%c0_8, %c17, %c0_9] : memref<10x18x256xf32, #tpu.memory_space<vmem>>, vector<10x1x256xf32>
    tpu.vector_store %arg10[%c0_8, %c17, %c0_9], %5 {strides = array<i32>} : memref<10x18x256xf32, #tpu.memory_space<vmem>>, vector<10x1x256xf32>,
    %c0_10 = arith.constant 0 : index
    %c0_11 = arith.constant 0 : index
    %8 = vector.load %arg3[%c0_10, %c0_11] : memref<128x256xbf16, #tpu.memory_space<vmem>>, vector<128x256xbf16>
    %c0_12 = arith.constant 0 : index
    %c0_13 = arith.constant 0 : index
    %9 = vector.load %arg4[%c0_12, %c0_13] : memref<1x256xf32, #tpu.memory_space<vmem>>, vector<1x256xf32>
    %c0_14 = arith.constant 0 : index
    %10 = arith.index_cast %1 : i32 to index
    %c0_15 = arith.constant 0 : index
    %c0_16 = arith.constant 0 : index
    %11 = vector.load %arg2[%c0_14, %10, %c0_15, %c0_16] : memref<1x16x16x128xf32, #tpu.memory_space<vmem>>, vector<1x8x16x128xf32>
    %12 = vector.shape_cast %11 : vector<1x8x16x128xf32> to vector<8x16x128xf32>
    %13 = vector.shape_cast %12 : vector<8x16x128xf32> to vector<128x128xf32>
    %14 = arith.truncf %13 : vector<128x128xf32> to vector<128x128xbf16>
    %cst_17 = arith.constant dense<0.000000e+00> : vector<128x256xf32>
    %15 = tpu.matmul %14, %8, %cst_17 {dimension_numbers = #tpu.dot_dimension_numbers<[1], [0], [0], [1], [0, 0, 1, 1], [], []>} : vector<128x128xbf16>, vector<128x256xbf16>, vector<128x256xf32> -> vector<128x256xf32>
    %16 = vector.broadcast %9 : vector<1x256xf32> to vector<128x256xf32>
    %17 = arith.addf %15, %16 : vector<128x256xf32>
    %cst_18 = arith.constant 5.000000e-01 : f32
    %18 = vector.broadcast %cst_18 : f32 to vector<128x256xf32>
    %19 = arith.mulf %18, %17 : vector<128x256xf32>
    %cst_19 = arith.constant 0.707106769 : f32
    %20 = vector.broadcast %cst_19 : f32 to vector<128x256xf32>
    %21 = arith.mulf %17, %20 : vector<128x256xf32>
    %22 = math.absf %21 : vector<128x256xf32>
    %cst_20 = arith.constant 0.327591091 : f32
    %23 = vector.broadcast %cst_20 : f32 to vector<128x256xf32>
    %24 = arith.mulf %23, %22 : vector<128x256xf32>
    %cst_21 = arith.constant 1.000000e+00 : f32
    %25 = vector.broadcast %cst_21 : f32 to vector<128x256xf32>
    %26 = arith.addf %25, %24 : vector<128x256xf32>
    %27 = tpu.reciprocal %26 {approx = true} : vector<128x256xf32> -> vector<128x256xf32>
    %cst_22 = arith.constant 1.06140542 : f32
    %28 = vector.broadcast %cst_22 : f32 to vector<128x256xf32>
    %29 = arith.mulf %27, %28 : vector<128x256xf32>
    %cst_23 = arith.constant -1.45315206 : f32
    %30 = vector.broadcast %cst_23 : f32 to vector<128x256xf32>
    %31 = arith.addf %30, %29 : vector<128x256xf32>
    %32 = arith.mulf %27, %31 : vector<128x256xf32>
    %cst_24 = arith.constant 1.42141378 : f32
    %33 = vector.broadcast %cst_24 : f32 to vector<128x256xf32>
    %34 = arith.addf %33, %32 : vector<128x256xf32>
    %35 = arith.mulf %27, %34 : vector<128x256xf32>
    %cst_25 = arith.constant -0.284496725 : f32
    %36 = vector.broadcast %cst_25 : f32 to vector<128x256xf32>
    %37 = arith.addf %36, %35 : vector<128x256xf32>
    %38 = arith.mulf %27, %37 : vector<128x256xf32>
    %cst_26 = arith.constant 0.254829586 : f32
    %39 = vector.broadcast %cst_26 : f32 to vector<128x256xf32>
    %40 = arith.addf %39, %38 : vector<128x256xf32>
    %41 = arith.mulf %27, %40 : vector<128x256xf32>
    %cst_27 = arith.constant 0.000000e+00 : f32
    %42 = vector.broadcast %cst_27 : f32 to vector<128x256xf32>
    %43 = arith.subf %42, %22 : vector<128x256xf32>
    %44 = arith.mulf %43, %22 : vector<128x256xf32>
    %45 = math.exp %44 : vector<128x256xf32>
    %46 = arith.mulf %41, %45 : vector<128x256xf32>
    %cst_28 = arith.constant 1.000000e+00 : f32
    %47 = vector.broadcast %cst_28 : f32 to vector<128x256xf32>
    %48 = arith.subf %47, %46 : vector<128x256xf32>
    %cst_29 = arith.constant 0.000000e+00 : f32
    %49 = vector.broadcast %cst_29 : f32 to vector<128x256xf32>
    %50 = arith.cmpf oge, %21, %49 : vector<128x256xf32>
    %cst_30 = arith.constant 0.000000e+00 : f32
    %51 = vector.broadcast %cst_30 : f32 to vector<128x256xf32>
    %52 = arith.subf %51, %48 : vector<128x256xf32>
    %53 = arith.select %50, %48, %52 : vector<128x256xi1>, vector<128x256xf32>
    %cst_31 = arith.constant 1.000000e+00 : f32
    %54 = vector.broadcast %cst_31 : f32 to vector<128x256xf32>
    %55 = arith.addf %54, %53 : vector<128x256xf32>
    %56 = arith.mulf %19, %55 : vector<128x256xf32>
    %57 = vector.shape_cast %56 : vector<128x256xf32> to vector<8x16x256xf32>
    %c1 = arith.constant 1 : index
    %c1_32 = arith.constant 1 : index
    %c0_33 = arith.constant 0 : index
    %58 = vector.load %arg10[%c1, %c1_32, %c0_33] : memref<10x18x256xf32, #tpu.memory_space<vmem>>, vector<8x16x256xf32>
    tpu.vector_store %arg10[%c1, %c1_32, %c0_33], %57 {strides = array<i32>} : memref<10x18x256xf32, #tpu.memory_space<vmem>>, vector<8x16x256xf32>,
    %c0_i32 = arith.constant 0 : i32
    %59 = arith.cmpi sgt, %arg1, %c0_i32 : i32
    %60 = arith.extui %59 : i1 to i32
    %c0_i32_34 = arith.constant 0 : i32
    %61 = arith.cmpi ne, %60, %c0_i32_34 : i32
    scf.if %61 {
      %c1_i32_261 = arith.constant 1 : i32
      %998 = arith.subi %1, %c1_i32_261 : i32
      %c0_262 = arith.constant 0 : index
      %999 = arith.index_cast %998 : i32 to index
      %c0_263 = arith.constant 0 : index
      %c0_264 = arith.constant 0 : index
      %1000 = vector.load %arg2[%c0_262, %999, %c0_263, %c0_264] : memref<1x16x16x128xf32, #tpu.memory_space<vmem>>, vector<1x1x16x128xf32>
      %1001 = vector.shape_cast %1000 : vector<1x1x16x128xf32> to vector<1x16x128xf32>
      %1002 = vector.shape_cast %1001 : vector<1x16x128xf32> to vector<16x128xf32>
      %1003 = arith.truncf %1002 : vector<16x128xf32> to vector<16x128xbf16>
      %cst_265 = arith.constant dense<0.000000e+00> : vector<16x256xf32>
      %1004 = tpu.matmul %1003, %8, %cst_265 {dimension_numbers = #tpu.dot_dimension_numbers<[1], [0], [0], [1], [0, 0, 1, 1], [], []>} : vector<16x128xbf16>, vector<128x256xbf16>, vector<16x256xf32> -> vector<16x256xf32>
      %1005 = vector.broadcast %9 : vector<1x256xf32> to vector<16x256xf32>
      %1006 = arith.addf %1004, %1005 : vector<16x256xf32>
      %cst_266 = arith.constant 5.000000e-01 : f32
      %1007 = vector.broadcast %cst_266 : f32 to vector<16x256xf32>
      %1008 = arith.mulf %1007, %1006 : vector<16x256xf32>
      %cst_267 = arith.constant 0.707106769 : f32
      %1009 = vector.broadcast %cst_267 : f32 to vector<16x256xf32>
      %1010 = arith.mulf %1006, %1009 : vector<16x256xf32>
      %1011 = math.absf %1010 : vector<16x256xf32>
      %cst_268 = arith.constant 0.327591091 : f32
      %1012 = vector.broadcast %cst_268 : f32 to vector<16x256xf32>
      %1013 = arith.mulf %1012, %1011 : vector<16x256xf32>
      %cst_269 = arith.constant 1.000000e+00 : f32
      %1014 = vector.broadcast %cst_269 : f32 to vector<16x256xf32>
      %1015 = arith.addf %1014, %1013 : vector<16x256xf32>
      %1016 = tpu.reciprocal %1015 {approx = true} : vector<16x256xf32> -> vector<16x256xf32>
      %cst_270 = arith.constant 1.06140542 : f32
      %1017 = vector.broadcast %cst_270 : f32 to vector<16x256xf32>
      %1018 = arith.mulf %1016, %1017 : vector<16x256xf32>
      %cst_271 = arith.constant -1.45315206 : f32
      %1019 = vector.broadcast %cst_271 : f32 to vector<16x256xf32>
      %1020 = arith.addf %1019, %1018 : vector<16x256xf32>
      %1021 = arith.mulf %1016, %1020 : vector<16x256xf32>
      %cst_272 = arith.constant 1.42141378 : f32
      %1022 = vector.broadcast %cst_272 : f32 to vector<16x256xf32>
      %1023 = arith.addf %1022, %1021 : vector<16x256xf32>
      %1024 = arith.mulf %1016, %1023 : vector<16x256xf32>
      %cst_273 = arith.constant -0.284496725 : f32
      %1025 = vector.broadcast %cst_273 : f32 to vector<16x256xf32>
      %1026 = arith.addf %1025, %1024 : vector<16x256xf32>
      %1027 = arith.mulf %1016, %1026 : vector<16x256xf32>
      %cst_274 = arith.constant 0.254829586 : f32
      %1028 = vector.broadcast %cst_274 : f32 to vector<16x256xf32>
      %1029 = arith.addf %1028, %1027 : vector<16x256xf32>
      %1030 = arith.mulf %1016, %1029 : vector<16x256xf32>
      %cst_275 = arith.constant 0.000000e+00 : f32
      %1031 = vector.broadcast %cst_275 : f32 to vector<16x256xf32>
      %1032 = arith.subf %1031, %1011 : vector<16x256xf32>
      %1033 = arith.mulf %1032, %1011 : vector<16x256xf32>
      %1034 = math.exp %1033 : vector<16x256xf32>
      %1035 = arith.mulf %1030, %1034 : vector<16x256xf32>
      %cst_276 = arith.constant 1.000000e+00 : f32
      %1036 = vector.broadcast %cst_276 : f32 to vector<16x256xf32>
      %1037 = arith.subf %1036, %1035 : vector<16x256xf32>
      %cst_277 = arith.constant 0.000000e+00 : f32
      %1038 = vector.broadcast %cst_277 : f32 to vector<16x256xf32>
      %1039 = arith.cmpf oge, %1010, %1038 : vector<16x256xf32>
      %cst_278 = arith.constant 0.000000e+00 : f32
      %1040 = vector.broadcast %cst_278 : f32 to vector<16x256xf32>
      %1041 = arith.subf %1040, %1037 : vector<16x256xf32>
      %1042 = arith.select %1039, %1037, %1041 : vector<16x256xi1>, vector<16x256xf32>
      %cst_279 = arith.constant 1.000000e+00 : f32
      %1043 = vector.broadcast %cst_279 : f32 to vector<16x256xf32>
      %1044 = arith.addf %1043, %1042 : vector<16x256xf32>
      %1045 = arith.mulf %1008, %1044 : vector<16x256xf32>
      %1046 = vector.shape_cast %1045 : vector<16x256xf32> to vector<1x16x256xf32>
      %c0_280 = arith.constant 0 : index
      %c1_281 = arith.constant 1 : index
      %c0_282 = arith.constant 0 : index
      %1047 = vector.load %arg10[%c0_280, %c1_281, %c0_282] : memref<10x18x256xf32, #tpu.memory_space<vmem>>, vector<1x16x256xf32>
      tpu.vector_store %arg10[%c0_280, %c1_281, %c0_282], %1046 {strides = array<i32>} : memref<10x18x256xf32, #tpu.memory_space<vmem>>, vector<1x16x256xf32>,
    } else {
    }
    %c1_i32 = arith.constant 1 : i32
    %62 = arith.cmpi slt, %arg1, %c1_i32 : i32
    %63 = arith.extui %62 : i1 to i32
    %c0_i32_35 = arith.constant 0 : i32
    %64 = arith.cmpi ne, %63, %c0_i32_35 : i32
    scf.if %64 {
      %c8_i32_261 = arith.constant 8 : i32
      %998 = arith.addi %1, %c8_i32_261 : i32
      %c0_262 = arith.constant 0 : index
      %999 = arith.index_cast %998 : i32 to index
      %c0_263 = arith.constant 0 : index
      %c0_264 = arith.constant 0 : index
      %1000 = vector.load %arg2[%c0_262, %999, %c0_263, %c0_264] : memref<1x16x16x128xf32, #tpu.memory_space<vmem>>, vector<1x1x16x128xf32>
      %1001 = vector.shape_cast %1000 : vector<1x1x16x128xf32> to vector<1x16x128xf32>
      %1002 = vector.shape_cast %1001 : vector<1x16x128xf32> to vector<16x128xf32>
      %1003 = arith.truncf %1002 : vector<16x128xf32> to vector<16x128xbf16>
      %cst_265 = arith.constant dense<0.000000e+00> : vector<16x256xf32>
      %1004 = tpu.matmul %1003, %8, %cst_265 {dimension_numbers = #tpu.dot_dimension_numbers<[1], [0], [0], [1], [0, 0, 1, 1], [], []>} : vector<16x128xbf16>, vector<128x256xbf16>, vector<16x256xf32> -> vector<16x256xf32>
      %1005 = vector.broadcast %9 : vector<1x256xf32> to vector<16x256xf32>
      %1006 = arith.addf %1004, %1005 : vector<16x256xf32>
      %cst_266 = arith.constant 5.000000e-01 : f32
      %1007 = vector.broadcast %cst_266 : f32 to vector<16x256xf32>
      %1008 = arith.mulf %1007, %1006 : vector<16x256xf32>
      %cst_267 = arith.constant 0.707106769 : f32
      %1009 = vector.broadcast %cst_267 : f32 to vector<16x256xf32>
      %1010 = arith.mulf %1006, %1009 : vector<16x256xf32>
      %1011 = math.absf %1010 : vector<16x256xf32>
      %cst_268 = arith.constant 0.327591091 : f32
      %1012 = vector.broadcast %cst_268 : f32 to vector<16x256xf32>
      %1013 = arith.mulf %1012, %1011 : vector<16x256xf32>
      %cst_269 = arith.constant 1.000000e+00 : f32
      %1014 = vector.broadcast %cst_269 : f32 to vector<16x256xf32>
      %1015 = arith.addf %1014, %1013 : vector<16x256xf32>
      %1016 = tpu.reciprocal %1015 {approx = true} : vector<16x256xf32> -> vector<16x256xf32>
      %cst_270 = arith.constant 1.06140542 : f32
      %1017 = vector.broadcast %cst_270 : f32 to vector<16x256xf32>
      %1018 = arith.mulf %1016, %1017 : vector<16x256xf32>
      %cst_271 = arith.constant -1.45315206 : f32
      %1019 = vector.broadcast %cst_271 : f32 to vector<16x256xf32>
      %1020 = arith.addf %1019, %1018 : vector<16x256xf32>
      %1021 = arith.mulf %1016, %1020 : vector<16x256xf32>
      %cst_272 = arith.constant 1.42141378 : f32
      %1022 = vector.broadcast %cst_272 : f32 to vector<16x256xf32>
      %1023 = arith.addf %1022, %1021 : vector<16x256xf32>
      %1024 = arith.mulf %1016, %1023 : vector<16x256xf32>
      %cst_273 = arith.constant -0.284496725 : f32
      %1025 = vector.broadcast %cst_273 : f32 to vector<16x256xf32>
      %1026 = arith.addf %1025, %1024 : vector<16x256xf32>
      %1027 = arith.mulf %1016, %1026 : vector<16x256xf32>
      %cst_274 = arith.constant 0.254829586 : f32
      %1028 = vector.broadcast %cst_274 : f32 to vector<16x256xf32>
      %1029 = arith.addf %1028, %1027 : vector<16x256xf32>
      %1030 = arith.mulf %1016, %1029 : vector<16x256xf32>
      %cst_275 = arith.constant 0.000000e+00 : f32
      %1031 = vector.broadcast %cst_275 : f32 to vector<16x256xf32>
      %1032 = arith.subf %1031, %1011 : vector<16x256xf32>
      %1033 = arith.mulf %1032, %1011 : vector<16x256xf32>
      %1034 = math.exp %1033 : vector<16x256xf32>
      %1035 = arith.mulf %1030, %1034 : vector<16x256xf32>
      %cst_276 = arith.constant 1.000000e+00 : f32
      %1036 = vector.broadcast %cst_276 : f32 to vector<16x256xf32>
      %1037 = arith.subf %1036, %1035 : vector<16x256xf32>
      %cst_277 = arith.constant 0.000000e+00 : f32
      %1038 = vector.broadcast %cst_277 : f32 to vector<16x256xf32>
      %1039 = arith.cmpf oge, %1010, %1038 : vector<16x256xf32>
      %cst_278 = arith.constant 0.000000e+00 : f32
      %1040 = vector.broadcast %cst_278 : f32 to vector<16x256xf32>
      %1041 = arith.subf %1040, %1037 : vector<16x256xf32>
      %1042 = arith.select %1039, %1037, %1041 : vector<16x256xi1>, vector<16x256xf32>
      %cst_279 = arith.constant 1.000000e+00 : f32
      %1043 = vector.broadcast %cst_279 : f32 to vector<16x256xf32>
      %1044 = arith.addf %1043, %1042 : vector<16x256xf32>
      %1045 = arith.mulf %1008, %1044 : vector<16x256xf32>
      %1046 = vector.shape_cast %1045 : vector<16x256xf32> to vector<1x16x256xf32>
      %c9_280 = arith.constant 9 : index
      %c1_281 = arith.constant 1 : index
      %c0_282 = arith.constant 0 : index
      %1047 = vector.load %arg10[%c9_280, %c1_281, %c0_282] : memref<10x18x256xf32, #tpu.memory_space<vmem>>, vector<1x16x256xf32>
      tpu.vector_store %arg10[%c9_280, %c1_281, %c0_282], %1046 {strides = array<i32>} : memref<10x18x256xf32, #tpu.memory_space<vmem>>, vector<1x16x256xf32>,
    } else {
    }
    %c0_36 = arith.constant 0 : index
    %c0_37 = arith.constant 0 : index
    %65 = vector.load %arg5[%c0_36, %c0_37] : memref<9x256xf32, #tpu.memory_space<vmem>>, vector<9x256xf32>
    %c0_38 = arith.constant 0 : index
    %c0_39 = arith.constant 0 : index
    %66 = vector.load %arg6[%c0_38, %c0_39] : memref<1x256xf32, #tpu.memory_space<vmem>>, vector<1x256xf32>
    %cst_40 = arith.constant 0.000000e+00 : f32
    %67 = vector.broadcast %cst_40 : f32 to vector<16x256xf32>
    %c0_41 = arith.constant 0 : index
    %c0_42 = arith.constant 0 : index
    %c0_43 = arith.constant 0 : index
    %68 = vector.load %arg10[%c0_41, %c0_42, %c0_43] : memref<10x18x256xf32, #tpu.memory_space<vmem>>, vector<1x18x256xf32>
    %69 = vector.shape_cast %68 : vector<1x18x256xf32> to vector<18x256xf32>
    %70 = vector.extract_strided_slice %69 {offsets = [0, 0], sizes = [16, 256], strides = [1, 1]} : vector<18x256xf32> to vector<16x256xf32>
    %71 = vector.extract_strided_slice %65 {offsets = [0, 0], sizes = [1, 256], strides = [1, 1]} : vector<9x256xf32> to vector<1x256xf32>
    %72 = vector.shape_cast %71 : vector<1x256xf32> to vector<256xf32>
    %73 = vector.shape_cast %72 : vector<256xf32> to vector<1x256xf32>
    %74 = vector.broadcast %73 : vector<1x256xf32> to vector<16x256xf32>
    %75 = arith.mulf %70, %74 : vector<16x256xf32>
    %76 = arith.addf %67, %75 : vector<16x256xf32>
    %77 = vector.extract_strided_slice %69 {offsets = [1, 0], sizes = [16, 256], strides = [1, 1]} : vector<18x256xf32> to vector<16x256xf32>
    %78 = vector.extract_strided_slice %65 {offsets = [1, 0], sizes = [1, 256], strides = [1, 1]} : vector<9x256xf32> to vector<1x256xf32>
    %79 = vector.shape_cast %78 : vector<1x256xf32> to vector<256xf32>
    %80 = vector.shape_cast %79 : vector<256xf32> to vector<1x256xf32>
    %81 = vector.broadcast %80 : vector<1x256xf32> to vector<16x256xf32>
    %82 = arith.mulf %77, %81 : vector<16x256xf32>
    %83 = arith.addf %76, %82 : vector<16x256xf32>
    %84 = vector.extract_strided_slice %69 {offsets = [2, 0], sizes = [16, 256], strides = [1, 1]} : vector<18x256xf32> to vector<16x256xf32>
    %85 = vector.extract_strided_slice %65 {offsets = [2, 0], sizes = [1, 256], strides = [1, 1]} : vector<9x256xf32> to vector<1x256xf32>
    %86 = vector.shape_cast %85 : vector<1x256xf32> to vector<256xf32>
    %87 = vector.shape_cast %86 : vector<256xf32> to vector<1x256xf32>
    %88 = vector.broadcast %87 : vector<1x256xf32> to vector<16x256xf32>
    %89 = arith.mulf %84, %88 : vector<16x256xf32>
    %90 = arith.addf %83, %89 : vector<16x256xf32>
    %c1_44 = arith.constant 1 : index
    %c0_45 = arith.constant 0 : index
    %c0_46 = arith.constant 0 : index
    %91 = vector.load %arg10[%c1_44, %c0_45, %c0_46] : memref<10x18x256xf32, #tpu.memory_space<vmem>>, vector<1x18x256xf32>
    %92 = vector.shape_cast %91 : vector<1x18x256xf32> to vector<18x256xf32>
    %93 = vector.extract_strided_slice %92 {offsets = [0, 0], sizes = [16, 256], strides = [1, 1]} : vector<18x256xf32> to vector<16x256xf32>
    %94 = vector.extract_strided_slice %65 {offsets = [3, 0], sizes = [1, 256], strides = [1, 1]} : vector<9x256xf32> to vector<1x256xf32>
    %95 = vector.shape_cast %94 : vector<1x256xf32> to vector<256xf32>
    %96 = vector.shape_cast %95 : vector<256xf32> to vector<1x256xf32>
    %97 = vector.broadcast %96 : vector<1x256xf32> to vector<16x256xf32>
    %98 = arith.mulf %93, %97 : vector<16x256xf32>
    %99 = arith.addf %90, %98 : vector<16x256xf32>
    %100 = vector.extract_strided_slice %92 {offsets = [1, 0], sizes = [16, 256], strides = [1, 1]} : vector<18x256xf32> to vector<16x256xf32>
    %101 = vector.extract_strided_slice %65 {offsets = [4, 0], sizes = [1, 256], strides = [1, 1]} : vector<9x256xf32> to vector<1x256xf32>
    %102 = vector.shape_cast %101 : vector<1x256xf32> to vector<256xf32>
    %103 = vector.shape_cast %102 : vector<256xf32> to vector<1x256xf32>
    %104 = vector.broadcast %103 : vector<1x256xf32> to vector<16x256xf32>
    %105 = arith.mulf %100, %104 : vector<16x256xf32>
    %106 = arith.addf %99, %105 : vector<16x256xf32>
    %107 = vector.extract_strided_slice %92 {offsets = [2, 0], sizes = [16, 256], strides = [1, 1]} : vector<18x256xf32> to vector<16x256xf32>
    %108 = vector.extract_strided_slice %65 {offsets = [5, 0], sizes = [1, 256], strides = [1, 1]} : vector<9x256xf32> to vector<1x256xf32>
    %109 = vector.shape_cast %108 : vector<1x256xf32> to vector<256xf32>
    %110 = vector.shape_cast %109 : vector<256xf32> to vector<1x256xf32>
    %111 = vector.broadcast %110 : vector<1x256xf32> to vector<16x256xf32>
    %112 = arith.mulf %107, %111 : vector<16x256xf32>
    %113 = arith.addf %106, %112 : vector<16x256xf32>
    %c2 = arith.constant 2 : index
    %c0_47 = arith.constant 0 : index
    %c0_48 = arith.constant 0 : index
    %114 = vector.load %arg10[%c2, %c0_47, %c0_48] : memref<10x18x256xf32, #tpu.memory_space<vmem>>, vector<1x18x256xf32>
    %115 = vector.shape_cast %114 : vector<1x18x256xf32> to vector<18x256xf32>
    %116 = vector.extract_strided_slice %115 {offsets = [0, 0], sizes = [16, 256], strides = [1, 1]} : vector<18x256xf32> to vector<16x256xf32>
    %117 = vector.extract_strided_slice %65 {offsets = [6, 0], sizes = [1, 256], strides = [1, 1]} : vector<9x256xf32> to vector<1x256xf32>
    %118 = vector.shape_cast %117 : vector<1x256xf32> to vector<256xf32>
    %119 = vector.shape_cast %118 : vector<256xf32> to vector<1x256xf32>
    %120 = vector.broadcast %119 : vector<1x256xf32> to vector<16x256xf32>
    %121 = arith.mulf %116, %120 : vector<16x256xf32>
    %122 = arith.addf %113, %121 : vector<16x256xf32>
    %123 = vector.extract_strided_slice %115 {offsets = [1, 0], sizes = [16, 256], strides = [1, 1]} : vector<18x256xf32> to vector<16x256xf32>
    %124 = vector.extract_strided_slice %65 {offsets = [7, 0], sizes = [1, 256], strides = [1, 1]} : vector<9x256xf32> to vector<1x256xf32>
    %125 = vector.shape_cast %124 : vector<1x256xf32> to vector<256xf32>
    %126 = vector.shape_cast %125 : vector<256xf32> to vector<1x256xf32>
    %127 = vector.broadcast %126 : vector<1x256xf32> to vector<16x256xf32>
    %128 = arith.mulf %123, %127 : vector<16x256xf32>
    %129 = arith.addf %122, %128 : vector<16x256xf32>
    %130 = vector.extract_strided_slice %115 {offsets = [2, 0], sizes = [16, 256], strides = [1, 1]} : vector<18x256xf32> to vector<16x256xf32>
    %131 = vector.extract_strided_slice %65 {offsets = [8, 0], sizes = [1, 256], strides = [1, 1]} : vector<9x256xf32> to vector<1x256xf32>
    %132 = vector.shape_cast %131 : vector<1x256xf32> to vector<256xf32>
    %133 = vector.shape_cast %132 : vector<256xf32> to vector<1x256xf32>
    %134 = vector.broadcast %133 : vector<1x256xf32> to vector<16x256xf32>
    %135 = arith.mulf %130, %134 : vector<16x256xf32>
    %136 = arith.addf %129, %135 : vector<16x256xf32>
    %137 = vector.broadcast %66 : vector<1x256xf32> to vector<16x256xf32>
    %138 = arith.addf %136, %137 : vector<16x256xf32>
    %cst_49 = arith.constant 5.000000e-01 : f32
    %139 = vector.broadcast %cst_49 : f32 to vector<16x256xf32>
    %140 = arith.mulf %139, %138 : vector<16x256xf32>
    %cst_50 = arith.constant 0.707106769 : f32
    %141 = vector.broadcast %cst_50 : f32 to vector<16x256xf32>
    %142 = arith.mulf %138, %141 : vector<16x256xf32>
    %143 = math.absf %142 : vector<16x256xf32>
    %cst_51 = arith.constant 0.327591091 : f32
    %144 = vector.broadcast %cst_51 : f32 to vector<16x256xf32>
    %145 = arith.mulf %144, %143 : vector<16x256xf32>
    %cst_52 = arith.constant 1.000000e+00 : f32
    %146 = vector.broadcast %cst_52 : f32 to vector<16x256xf32>
    %147 = arith.addf %146, %145 : vector<16x256xf32>
    %148 = tpu.reciprocal %147 {approx = true} : vector<16x256xf32> -> vector<16x256xf32>
    %cst_53 = arith.constant 1.06140542 : f32
    %149 = vector.broadcast %cst_53 : f32 to vector<16x256xf32>
    %150 = arith.mulf %148, %149 : vector<16x256xf32>
    %cst_54 = arith.constant -1.45315206 : f32
    %151 = vector.broadcast %cst_54 : f32 to vector<16x256xf32>
    %152 = arith.addf %151, %150 : vector<16x256xf32>
    %153 = arith.mulf %148, %152 : vector<16x256xf32>
    %cst_55 = arith.constant 1.42141378 : f32
    %154 = vector.broadcast %cst_55 : f32 to vector<16x256xf32>
    %155 = arith.addf %154, %153 : vector<16x256xf32>
    %156 = arith.mulf %148, %155 : vector<16x256xf32>
    %cst_56 = arith.constant -0.284496725 : f32
    %157 = vector.broadcast %cst_56 : f32 to vector<16x256xf32>
    %158 = arith.addf %157, %156 : vector<16x256xf32>
    %159 = arith.mulf %148, %158 : vector<16x256xf32>
    %cst_57 = arith.constant 0.254829586 : f32
    %160 = vector.broadcast %cst_57 : f32 to vector<16x256xf32>
    %161 = arith.addf %160, %159 : vector<16x256xf32>
    %162 = arith.mulf %148, %161 : vector<16x256xf32>
    %cst_58 = arith.constant 0.000000e+00 : f32
    %163 = vector.broadcast %cst_58 : f32 to vector<16x256xf32>
    %164 = arith.subf %163, %143 : vector<16x256xf32>
    %165 = arith.mulf %164, %143 : vector<16x256xf32>
    %166 = math.exp %165 : vector<16x256xf32>
    %167 = arith.mulf %162, %166 : vector<16x256xf32>
    %cst_59 = arith.constant 1.000000e+00 : f32
    %168 = vector.broadcast %cst_59 : f32 to vector<16x256xf32>
    %169 = arith.subf %168, %167 : vector<16x256xf32>
    %cst_60 = arith.constant 0.000000e+00 : f32
    %170 = vector.broadcast %cst_60 : f32 to vector<16x256xf32>
    %171 = arith.cmpf oge, %142, %170 : vector<16x256xf32>
    %cst_61 = arith.constant 0.000000e+00 : f32
    %172 = vector.broadcast %cst_61 : f32 to vector<16x256xf32>
    %173 = arith.subf %172, %169 : vector<16x256xf32>
    %174 = arith.select %171, %169, %173 : vector<16x256xi1>, vector<16x256xf32>
    %cst_62 = arith.constant 1.000000e+00 : f32
    %175 = vector.broadcast %cst_62 : f32 to vector<16x256xf32>
    %176 = arith.addf %175, %174 : vector<16x256xf32>
    %177 = arith.mulf %140, %176 : vector<16x256xf32>
    %178 = arith.truncf %177 : vector<16x256xf32> to vector<16x256xbf16>
    %c0_63 = arith.constant 0 : index
    %c0_64 = arith.constant 0 : index
    %c0_65 = arith.constant 0 : index
    %179 = vector.load %arg11[%c0_63, %c0_64, %c0_65] : memref<8x16x256xbf16, #tpu.memory_space<vmem>>, vector<1x16x256xbf16>
    %180 = vector.shape_cast %179 : vector<1x16x256xbf16> to vector<16x256xbf16>
    %181 = vector.shape_cast %178 : vector<16x256xbf16> to vector<1x16x256xbf16>
    tpu.vector_store %arg11[%c0_63, %c0_64, %c0_65], %181 {strides = array<i32>} : memref<8x16x256xbf16, #tpu.memory_space<vmem>>, vector<1x16x256xbf16>,
    %cst_66 = arith.constant 0.000000e+00 : f32
    %182 = vector.broadcast %cst_66 : f32 to vector<16x256xf32>
    %c1_67 = arith.constant 1 : index
    %c0_68 = arith.constant 0 : index
    %c0_69 = arith.constant 0 : index
    %183 = vector.load %arg10[%c1_67, %c0_68, %c0_69] : memref<10x18x256xf32, #tpu.memory_space<vmem>>, vector<1x18x256xf32>
    %184 = vector.shape_cast %183 : vector<1x18x256xf32> to vector<18x256xf32>
    %185 = vector.extract_strided_slice %184 {offsets = [0, 0], sizes = [16, 256], strides = [1, 1]} : vector<18x256xf32> to vector<16x256xf32>
    %186 = vector.extract_strided_slice %65 {offsets = [0, 0], sizes = [1, 256], strides = [1, 1]} : vector<9x256xf32> to vector<1x256xf32>
    %187 = vector.shape_cast %186 : vector<1x256xf32> to vector<256xf32>
    %188 = vector.shape_cast %187 : vector<256xf32> to vector<1x256xf32>
    %189 = vector.broadcast %188 : vector<1x256xf32> to vector<16x256xf32>
    %190 = arith.mulf %185, %189 : vector<16x256xf32>
    %191 = arith.addf %182, %190 : vector<16x256xf32>
    %192 = vector.extract_strided_slice %184 {offsets = [1, 0], sizes = [16, 256], strides = [1, 1]} : vector<18x256xf32> to vector<16x256xf32>
    %193 = vector.extract_strided_slice %65 {offsets = [1, 0], sizes = [1, 256], strides = [1, 1]} : vector<9x256xf32> to vector<1x256xf32>
    %194 = vector.shape_cast %193 : vector<1x256xf32> to vector<256xf32>
    %195 = vector.shape_cast %194 : vector<256xf32> to vector<1x256xf32>
    %196 = vector.broadcast %195 : vector<1x256xf32> to vector<16x256xf32>
    %197 = arith.mulf %192, %196 : vector<16x256xf32>
    %198 = arith.addf %191, %197 : vector<16x256xf32>
    %199 = vector.extract_strided_slice %184 {offsets = [2, 0], sizes = [16, 256], strides = [1, 1]} : vector<18x256xf32> to vector<16x256xf32>
    %200 = vector.extract_strided_slice %65 {offsets = [2, 0], sizes = [1, 256], strides = [1, 1]} : vector<9x256xf32> to vector<1x256xf32>
    %201 = vector.shape_cast %200 : vector<1x256xf32> to vector<256xf32>
    %202 = vector.shape_cast %201 : vector<256xf32> to vector<1x256xf32>
    %203 = vector.broadcast %202 : vector<1x256xf32> to vector<16x256xf32>
    %204 = arith.mulf %199, %203 : vector<16x256xf32>
    %205 = arith.addf %198, %204 : vector<16x256xf32>
    %c2_70 = arith.constant 2 : index
    %c0_71 = arith.constant 0 : index
    %c0_72 = arith.constant 0 : index
    %206 = vector.load %arg10[%c2_70, %c0_71, %c0_72] : memref<10x18x256xf32, #tpu.memory_space<vmem>>, vector<1x18x256xf32>
    %207 = vector.shape_cast %206 : vector<1x18x256xf32> to vector<18x256xf32>
    %208 = vector.extract_strided_slice %207 {offsets = [0, 0], sizes = [16, 256], strides = [1, 1]} : vector<18x256xf32> to vector<16x256xf32>
    %209 = vector.extract_strided_slice %65 {offsets = [3, 0], sizes = [1, 256], strides = [1, 1]} : vector<9x256xf32> to vector<1x256xf32>
    %210 = vector.shape_cast %209 : vector<1x256xf32> to vector<256xf32>
    %211 = vector.shape_cast %210 : vector<256xf32> to vector<1x256xf32>
    %212 = vector.broadcast %211 : vector<1x256xf32> to vector<16x256xf32>
    %213 = arith.mulf %208, %212 : vector<16x256xf32>
    %214 = arith.addf %205, %213 : vector<16x256xf32>
    %215 = vector.extract_strided_slice %207 {offsets = [1, 0], sizes = [16, 256], strides = [1, 1]} : vector<18x256xf32> to vector<16x256xf32>
    %216 = vector.extract_strided_slice %65 {offsets = [4, 0], sizes = [1, 256], strides = [1, 1]} : vector<9x256xf32> to vector<1x256xf32>
    %217 = vector.shape_cast %216 : vector<1x256xf32> to vector<256xf32>
    %218 = vector.shape_cast %217 : vector<256xf32> to vector<1x256xf32>
    %219 = vector.broadcast %218 : vector<1x256xf32> to vector<16x256xf32>
    %220 = arith.mulf %215, %219 : vector<16x256xf32>
    %221 = arith.addf %214, %220 : vector<16x256xf32>
    %222 = vector.extract_strided_slice %207 {offsets = [2, 0], sizes = [16, 256], strides = [1, 1]} : vector<18x256xf32> to vector<16x256xf32>
    %223 = vector.extract_strided_slice %65 {offsets = [5, 0], sizes = [1, 256], strides = [1, 1]} : vector<9x256xf32> to vector<1x256xf32>
    %224 = vector.shape_cast %223 : vector<1x256xf32> to vector<256xf32>
    %225 = vector.shape_cast %224 : vector<256xf32> to vector<1x256xf32>
    %226 = vector.broadcast %225 : vector<1x256xf32> to vector<16x256xf32>
    %227 = arith.mulf %222, %226 : vector<16x256xf32>
    %228 = arith.addf %221, %227 : vector<16x256xf32>
    %c3 = arith.constant 3 : index
    %c0_73 = arith.constant 0 : index
    %c0_74 = arith.constant 0 : index
    %229 = vector.load %arg10[%c3, %c0_73, %c0_74] : memref<10x18x256xf32, #tpu.memory_space<vmem>>, vector<1x18x256xf32>
    %230 = vector.shape_cast %229 : vector<1x18x256xf32> to vector<18x256xf32>
    %231 = vector.extract_strided_slice %230 {offsets = [0, 0], sizes = [16, 256], strides = [1, 1]} : vector<18x256xf32> to vector<16x256xf32>
    %232 = vector.extract_strided_slice %65 {offsets = [6, 0], sizes = [1, 256], strides = [1, 1]} : vector<9x256xf32> to vector<1x256xf32>
    %233 = vector.shape_cast %232 : vector<1x256xf32> to vector<256xf32>
    %234 = vector.shape_cast %233 : vector<256xf32> to vector<1x256xf32>
    %235 = vector.broadcast %234 : vector<1x256xf32> to vector<16x256xf32>
    %236 = arith.mulf %231, %235 : vector<16x256xf32>
    %237 = arith.addf %228, %236 : vector<16x256xf32>
    %238 = vector.extract_strided_slice %230 {offsets = [1, 0], sizes = [16, 256], strides = [1, 1]} : vector<18x256xf32> to vector<16x256xf32>
    %239 = vector.extract_strided_slice %65 {offsets = [7, 0], sizes = [1, 256], strides = [1, 1]} : vector<9x256xf32> to vector<1x256xf32>
    %240 = vector.shape_cast %239 : vector<1x256xf32> to vector<256xf32>
    %241 = vector.shape_cast %240 : vector<256xf32> to vector<1x256xf32>
    %242 = vector.broadcast %241 : vector<1x256xf32> to vector<16x256xf32>
    %243 = arith.mulf %238, %242 : vector<16x256xf32>
    %244 = arith.addf %237, %243 : vector<16x256xf32>
    %245 = vector.extract_strided_slice %230 {offsets = [2, 0], sizes = [16, 256], strides = [1, 1]} : vector<18x256xf32> to vector<16x256xf32>
    %246 = vector.extract_strided_slice %65 {offsets = [8, 0], sizes = [1, 256], strides = [1, 1]} : vector<9x256xf32> to vector<1x256xf32>
    %247 = vector.shape_cast %246 : vector<1x256xf32> to vector<256xf32>
    %248 = vector.shape_cast %247 : vector<256xf32> to vector<1x256xf32>
    %249 = vector.broadcast %248 : vector<1x256xf32> to vector<16x256xf32>
    %250 = arith.mulf %245, %249 : vector<16x256xf32>
    %251 = arith.addf %244, %250 : vector<16x256xf32>
    %252 = vector.broadcast %66 : vector<1x256xf32> to vector<16x256xf32>
    %253 = arith.addf %251, %252 : vector<16x256xf32>
    %cst_75 = arith.constant 5.000000e-01 : f32
    %254 = vector.broadcast %cst_75 : f32 to vector<16x256xf32>
    %255 = arith.mulf %254, %253 : vector<16x256xf32>
    %cst_76 = arith.constant 0.707106769 : f32
    %256 = vector.broadcast %cst_76 : f32 to vector<16x256xf32>
    %257 = arith.mulf %253, %256 : vector<16x256xf32>
    %258 = math.absf %257 : vector<16x256xf32>
    %cst_77 = arith.constant 0.327591091 : f32
    %259 = vector.broadcast %cst_77 : f32 to vector<16x256xf32>
    %260 = arith.mulf %259, %258 : vector<16x256xf32>
    %cst_78 = arith.constant 1.000000e+00 : f32
    %261 = vector.broadcast %cst_78 : f32 to vector<16x256xf32>
    %262 = arith.addf %261, %260 : vector<16x256xf32>
    %263 = tpu.reciprocal %262 {approx = true} : vector<16x256xf32> -> vector<16x256xf32>
    %cst_79 = arith.constant 1.06140542 : f32
    %264 = vector.broadcast %cst_79 : f32 to vector<16x256xf32>
    %265 = arith.mulf %263, %264 : vector<16x256xf32>
    %cst_80 = arith.constant -1.45315206 : f32
    %266 = vector.broadcast %cst_80 : f32 to vector<16x256xf32>
    %267 = arith.addf %266, %265 : vector<16x256xf32>
    %268 = arith.mulf %263, %267 : vector<16x256xf32>
    %cst_81 = arith.constant 1.42141378 : f32
    %269 = vector.broadcast %cst_81 : f32 to vector<16x256xf32>
    %270 = arith.addf %269, %268 : vector<16x256xf32>
    %271 = arith.mulf %263, %270 : vector<16x256xf32>
    %cst_82 = arith.constant -0.284496725 : f32
    %272 = vector.broadcast %cst_82 : f32 to vector<16x256xf32>
    %273 = arith.addf %272, %271 : vector<16x256xf32>
    %274 = arith.mulf %263, %273 : vector<16x256xf32>
    %cst_83 = arith.constant 0.254829586 : f32
    %275 = vector.broadcast %cst_83 : f32 to vector<16x256xf32>
    %276 = arith.addf %275, %274 : vector<16x256xf32>
    %277 = arith.mulf %263, %276 : vector<16x256xf32>
    %cst_84 = arith.constant 0.000000e+00 : f32
    %278 = vector.broadcast %cst_84 : f32 to vector<16x256xf32>
    %279 = arith.subf %278, %258 : vector<16x256xf32>
    %280 = arith.mulf %279, %258 : vector<16x256xf32>
    %281 = math.exp %280 : vector<16x256xf32>
    %282 = arith.mulf %277, %281 : vector<16x256xf32>
    %cst_85 = arith.constant 1.000000e+00 : f32
    %283 = vector.broadcast %cst_85 : f32 to vector<16x256xf32>
    %284 = arith.subf %283, %282 : vector<16x256xf32>
    %cst_86 = arith.constant 0.000000e+00 : f32
    %285 = vector.broadcast %cst_86 : f32 to vector<16x256xf32>
    %286 = arith.cmpf oge, %257, %285 : vector<16x256xf32>
    %cst_87 = arith.constant 0.000000e+00 : f32
    %287 = vector.broadcast %cst_87 : f32 to vector<16x256xf32>
    %288 = arith.subf %287, %284 : vector<16x256xf32>
    %289 = arith.select %286, %284, %288 : vector<16x256xi1>, vector<16x256xf32>
    %cst_88 = arith.constant 1.000000e+00 : f32
    %290 = vector.broadcast %cst_88 : f32 to vector<16x256xf32>
    %291 = arith.addf %290, %289 : vector<16x256xf32>
    %292 = arith.mulf %255, %291 : vector<16x256xf32>
    %293 = arith.truncf %292 : vector<16x256xf32> to vector<16x256xbf16>
    %c1_89 = arith.constant 1 : index
    %c0_90 = arith.constant 0 : index
    %c0_91 = arith.constant 0 : index
    %294 = vector.load %arg11[%c1_89, %c0_90, %c0_91] : memref<8x16x256xbf16, #tpu.memory_space<vmem>>, vector<1x16x256xbf16>
    %295 = vector.shape_cast %294 : vector<1x16x256xbf16> to vector<16x256xbf16>
    %296 = vector.shape_cast %293 : vector<16x256xbf16> to vector<1x16x256xbf16>
    tpu.vector_store %arg11[%c1_89, %c0_90, %c0_91], %296 {strides = array<i32>} : memref<8x16x256xbf16, #tpu.memory_space<vmem>>, vector<1x16x256xbf16>,
    %cst_92 = arith.constant 0.000000e+00 : f32
    %297 = vector.broadcast %cst_92 : f32 to vector<16x256xf32>
    %c2_93 = arith.constant 2 : index
    %c0_94 = arith.constant 0 : index
    %c0_95 = arith.constant 0 : index
    %298 = vector.load %arg10[%c2_93, %c0_94, %c0_95] : memref<10x18x256xf32, #tpu.memory_space<vmem>>, vector<1x18x256xf32>
    %299 = vector.shape_cast %298 : vector<1x18x256xf32> to vector<18x256xf32>
    %300 = vector.extract_strided_slice %299 {offsets = [0, 0], sizes = [16, 256], strides = [1, 1]} : vector<18x256xf32> to vector<16x256xf32>
    %301 = vector.extract_strided_slice %65 {offsets = [0, 0], sizes = [1, 256], strides = [1, 1]} : vector<9x256xf32> to vector<1x256xf32>
    %302 = vector.shape_cast %301 : vector<1x256xf32> to vector<256xf32>
    %303 = vector.shape_cast %302 : vector<256xf32> to vector<1x256xf32>
    %304 = vector.broadcast %303 : vector<1x256xf32> to vector<16x256xf32>
    %305 = arith.mulf %300, %304 : vector<16x256xf32>
    %306 = arith.addf %297, %305 : vector<16x256xf32>
    %307 = vector.extract_strided_slice %299 {offsets = [1, 0], sizes = [16, 256], strides = [1, 1]} : vector<18x256xf32> to vector<16x256xf32>
    %308 = vector.extract_strided_slice %65 {offsets = [1, 0], sizes = [1, 256], strides = [1, 1]} : vector<9x256xf32> to vector<1x256xf32>
    %309 = vector.shape_cast %308 : vector<1x256xf32> to vector<256xf32>
    %310 = vector.shape_cast %309 : vector<256xf32> to vector<1x256xf32>
    %311 = vector.broadcast %310 : vector<1x256xf32> to vector<16x256xf32>
    %312 = arith.mulf %307, %311 : vector<16x256xf32>
    %313 = arith.addf %306, %312 : vector<16x256xf32>
    %314 = vector.extract_strided_slice %299 {offsets = [2, 0], sizes = [16, 256], strides = [1, 1]} : vector<18x256xf32> to vector<16x256xf32>
    %315 = vector.extract_strided_slice %65 {offsets = [2, 0], sizes = [1, 256], strides = [1, 1]} : vector<9x256xf32> to vector<1x256xf32>
    %316 = vector.shape_cast %315 : vector<1x256xf32> to vector<256xf32>
    %317 = vector.shape_cast %316 : vector<256xf32> to vector<1x256xf32>
    %318 = vector.broadcast %317 : vector<1x256xf32> to vector<16x256xf32>
    %319 = arith.mulf %314, %318 : vector<16x256xf32>
    %320 = arith.addf %313, %319 : vector<16x256xf32>
    %c3_96 = arith.constant 3 : index
    %c0_97 = arith.constant 0 : index
    %c0_98 = arith.constant 0 : index
    %321 = vector.load %arg10[%c3_96, %c0_97, %c0_98] : memref<10x18x256xf32, #tpu.memory_space<vmem>>, vector<1x18x256xf32>
    %322 = vector.shape_cast %321 : vector<1x18x256xf32> to vector<18x256xf32>
    %323 = vector.extract_strided_slice %322 {offsets = [0, 0], sizes = [16, 256], strides = [1, 1]} : vector<18x256xf32> to vector<16x256xf32>
    %324 = vector.extract_strided_slice %65 {offsets = [3, 0], sizes = [1, 256], strides = [1, 1]} : vector<9x256xf32> to vector<1x256xf32>
    %325 = vector.shape_cast %324 : vector<1x256xf32> to vector<256xf32>
    %326 = vector.shape_cast %325 : vector<256xf32> to vector<1x256xf32>
    %327 = vector.broadcast %326 : vector<1x256xf32> to vector<16x256xf32>
    %328 = arith.mulf %323, %327 : vector<16x256xf32>
    %329 = arith.addf %320, %328 : vector<16x256xf32>
    %330 = vector.extract_strided_slice %322 {offsets = [1, 0], sizes = [16, 256], strides = [1, 1]} : vector<18x256xf32> to vector<16x256xf32>
    %331 = vector.extract_strided_slice %65 {offsets = [4, 0], sizes = [1, 256], strides = [1, 1]} : vector<9x256xf32> to vector<1x256xf32>
    %332 = vector.shape_cast %331 : vector<1x256xf32> to vector<256xf32>
    %333 = vector.shape_cast %332 : vector<256xf32> to vector<1x256xf32>
    %334 = vector.broadcast %333 : vector<1x256xf32> to vector<16x256xf32>
    %335 = arith.mulf %330, %334 : vector<16x256xf32>
    %336 = arith.addf %329, %335 : vector<16x256xf32>
    %337 = vector.extract_strided_slice %322 {offsets = [2, 0], sizes = [16, 256], strides = [1, 1]} : vector<18x256xf32> to vector<16x256xf32>
    %338 = vector.extract_strided_slice %65 {offsets = [5, 0], sizes = [1, 256], strides = [1, 1]} : vector<9x256xf32> to vector<1x256xf32>
    %339 = vector.shape_cast %338 : vector<1x256xf32> to vector<256xf32>
    %340 = vector.shape_cast %339 : vector<256xf32> to vector<1x256xf32>
    %341 = vector.broadcast %340 : vector<1x256xf32> to vector<16x256xf32>
    %342 = arith.mulf %337, %341 : vector<16x256xf32>
    %343 = arith.addf %336, %342 : vector<16x256xf32>
    %c4 = arith.constant 4 : index
    %c0_99 = arith.constant 0 : index
    %c0_100 = arith.constant 0 : index
    %344 = vector.load %arg10[%c4, %c0_99, %c0_100] : memref<10x18x256xf32, #tpu.memory_space<vmem>>, vector<1x18x256xf32>
    %345 = vector.shape_cast %344 : vector<1x18x256xf32> to vector<18x256xf32>
    %346 = vector.extract_strided_slice %345 {offsets = [0, 0], sizes = [16, 256], strides = [1, 1]} : vector<18x256xf32> to vector<16x256xf32>
    %347 = vector.extract_strided_slice %65 {offsets = [6, 0], sizes = [1, 256], strides = [1, 1]} : vector<9x256xf32> to vector<1x256xf32>
    %348 = vector.shape_cast %347 : vector<1x256xf32> to vector<256xf32>
    %349 = vector.shape_cast %348 : vector<256xf32> to vector<1x256xf32>
    %350 = vector.broadcast %349 : vector<1x256xf32> to vector<16x256xf32>
    %351 = arith.mulf %346, %350 : vector<16x256xf32>
    %352 = arith.addf %343, %351 : vector<16x256xf32>
    %353 = vector.extract_strided_slice %345 {offsets = [1, 0], sizes = [16, 256], strides = [1, 1]} : vector<18x256xf32> to vector<16x256xf32>
    %354 = vector.extract_strided_slice %65 {offsets = [7, 0], sizes = [1, 256], strides = [1, 1]} : vector<9x256xf32> to vector<1x256xf32>
    %355 = vector.shape_cast %354 : vector<1x256xf32> to vector<256xf32>
    %356 = vector.shape_cast %355 : vector<256xf32> to vector<1x256xf32>
    %357 = vector.broadcast %356 : vector<1x256xf32> to vector<16x256xf32>
    %358 = arith.mulf %353, %357 : vector<16x256xf32>
    %359 = arith.addf %352, %358 : vector<16x256xf32>
    %360 = vector.extract_strided_slice %345 {offsets = [2, 0], sizes = [16, 256], strides = [1, 1]} : vector<18x256xf32> to vector<16x256xf32>
    %361 = vector.extract_strided_slice %65 {offsets = [8, 0], sizes = [1, 256], strides = [1, 1]} : vector<9x256xf32> to vector<1x256xf32>
    %362 = vector.shape_cast %361 : vector<1x256xf32> to vector<256xf32>
    %363 = vector.shape_cast %362 : vector<256xf32> to vector<1x256xf32>
    %364 = vector.broadcast %363 : vector<1x256xf32> to vector<16x256xf32>
    %365 = arith.mulf %360, %364 : vector<16x256xf32>
    %366 = arith.addf %359, %365 : vector<16x256xf32>
    %367 = vector.broadcast %66 : vector<1x256xf32> to vector<16x256xf32>
    %368 = arith.addf %366, %367 : vector<16x256xf32>
    %cst_101 = arith.constant 5.000000e-01 : f32
    %369 = vector.broadcast %cst_101 : f32 to vector<16x256xf32>
    %370 = arith.mulf %369, %368 : vector<16x256xf32>
    %cst_102 = arith.constant 0.707106769 : f32
    %371 = vector.broadcast %cst_102 : f32 to vector<16x256xf32>
    %372 = arith.mulf %368, %371 : vector<16x256xf32>
    %373 = math.absf %372 : vector<16x256xf32>
    %cst_103 = arith.constant 0.327591091 : f32
    %374 = vector.broadcast %cst_103 : f32 to vector<16x256xf32>
    %375 = arith.mulf %374, %373 : vector<16x256xf32>
    %cst_104 = arith.constant 1.000000e+00 : f32
    %376 = vector.broadcast %cst_104 : f32 to vector<16x256xf32>
    %377 = arith.addf %376, %375 : vector<16x256xf32>
    %378 = tpu.reciprocal %377 {approx = true} : vector<16x256xf32> -> vector<16x256xf32>
    %cst_105 = arith.constant 1.06140542 : f32
    %379 = vector.broadcast %cst_105 : f32 to vector<16x256xf32>
    %380 = arith.mulf %378, %379 : vector<16x256xf32>
    %cst_106 = arith.constant -1.45315206 : f32
    %381 = vector.broadcast %cst_106 : f32 to vector<16x256xf32>
    %382 = arith.addf %381, %380 : vector<16x256xf32>
    %383 = arith.mulf %378, %382 : vector<16x256xf32>
    %cst_107 = arith.constant 1.42141378 : f32
    %384 = vector.broadcast %cst_107 : f32 to vector<16x256xf32>
    %385 = arith.addf %384, %383 : vector<16x256xf32>
    %386 = arith.mulf %378, %385 : vector<16x256xf32>
    %cst_108 = arith.constant -0.284496725 : f32
    %387 = vector.broadcast %cst_108 : f32 to vector<16x256xf32>
    %388 = arith.addf %387, %386 : vector<16x256xf32>
    %389 = arith.mulf %378, %388 : vector<16x256xf32>
    %cst_109 = arith.constant 0.254829586 : f32
    %390 = vector.broadcast %cst_109 : f32 to vector<16x256xf32>
    %391 = arith.addf %390, %389 : vector<16x256xf32>
    %392 = arith.mulf %378, %391 : vector<16x256xf32>
    %cst_110 = arith.constant 0.000000e+00 : f32
    %393 = vector.broadcast %cst_110 : f32 to vector<16x256xf32>
    %394 = arith.subf %393, %373 : vector<16x256xf32>
    %395 = arith.mulf %394, %373 : vector<16x256xf32>
    %396 = math.exp %395 : vector<16x256xf32>
    %397 = arith.mulf %392, %396 : vector<16x256xf32>
    %cst_111 = arith.constant 1.000000e+00 : f32
    %398 = vector.broadcast %cst_111 : f32 to vector<16x256xf32>
    %399 = arith.subf %398, %397 : vector<16x256xf32>
    %cst_112 = arith.constant 0.000000e+00 : f32
    %400 = vector.broadcast %cst_112 : f32 to vector<16x256xf32>
    %401 = arith.cmpf oge, %372, %400 : vector<16x256xf32>
    %cst_113 = arith.constant 0.000000e+00 : f32
    %402 = vector.broadcast %cst_113 : f32 to vector<16x256xf32>
    %403 = arith.subf %402, %399 : vector<16x256xf32>
    %404 = arith.select %401, %399, %403 : vector<16x256xi1>, vector<16x256xf32>
    %cst_114 = arith.constant 1.000000e+00 : f32
    %405 = vector.broadcast %cst_114 : f32 to vector<16x256xf32>
    %406 = arith.addf %405, %404 : vector<16x256xf32>
    %407 = arith.mulf %370, %406 : vector<16x256xf32>
    %408 = arith.truncf %407 : vector<16x256xf32> to vector<16x256xbf16>
    %c2_115 = arith.constant 2 : index
    %c0_116 = arith.constant 0 : index
    %c0_117 = arith.constant 0 : index
    %409 = vector.load %arg11[%c2_115, %c0_116, %c0_117] : memref<8x16x256xbf16, #tpu.memory_space<vmem>>, vector<1x16x256xbf16>
    %410 = vector.shape_cast %409 : vector<1x16x256xbf16> to vector<16x256xbf16>
    %411 = vector.shape_cast %408 : vector<16x256xbf16> to vector<1x16x256xbf16>
    tpu.vector_store %arg11[%c2_115, %c0_116, %c0_117], %411 {strides = array<i32>} : memref<8x16x256xbf16, #tpu.memory_space<vmem>>, vector<1x16x256xbf16>,
    %cst_118 = arith.constant 0.000000e+00 : f32
    %412 = vector.broadcast %cst_118 : f32 to vector<16x256xf32>
    %c3_119 = arith.constant 3 : index
    %c0_120 = arith.constant 0 : index
    %c0_121 = arith.constant 0 : index
    %413 = vector.load %arg10[%c3_119, %c0_120, %c0_121] : memref<10x18x256xf32, #tpu.memory_space<vmem>>, vector<1x18x256xf32>
    %414 = vector.shape_cast %413 : vector<1x18x256xf32> to vector<18x256xf32>
    %415 = vector.extract_strided_slice %414 {offsets = [0, 0], sizes = [16, 256], strides = [1, 1]} : vector<18x256xf32> to vector<16x256xf32>
    %416 = vector.extract_strided_slice %65 {offsets = [0, 0], sizes = [1, 256], strides = [1, 1]} : vector<9x256xf32> to vector<1x256xf32>
    %417 = vector.shape_cast %416 : vector<1x256xf32> to vector<256xf32>
    %418 = vector.shape_cast %417 : vector<256xf32> to vector<1x256xf32>
    %419 = vector.broadcast %418 : vector<1x256xf32> to vector<16x256xf32>
    %420 = arith.mulf %415, %419 : vector<16x256xf32>
    %421 = arith.addf %412, %420 : vector<16x256xf32>
    %422 = vector.extract_strided_slice %414 {offsets = [1, 0], sizes = [16, 256], strides = [1, 1]} : vector<18x256xf32> to vector<16x256xf32>
    %423 = vector.extract_strided_slice %65 {offsets = [1, 0], sizes = [1, 256], strides = [1, 1]} : vector<9x256xf32> to vector<1x256xf32>
    %424 = vector.shape_cast %423 : vector<1x256xf32> to vector<256xf32>
    %425 = vector.shape_cast %424 : vector<256xf32> to vector<1x256xf32>
    %426 = vector.broadcast %425 : vector<1x256xf32> to vector<16x256xf32>
    %427 = arith.mulf %422, %426 : vector<16x256xf32>
    %428 = arith.addf %421, %427 : vector<16x256xf32>
    %429 = vector.extract_strided_slice %414 {offsets = [2, 0], sizes = [16, 256], strides = [1, 1]} : vector<18x256xf32> to vector<16x256xf32>
    %430 = vector.extract_strided_slice %65 {offsets = [2, 0], sizes = [1, 256], strides = [1, 1]} : vector<9x256xf32> to vector<1x256xf32>
    %431 = vector.shape_cast %430 : vector<1x256xf32> to vector<256xf32>
    %432 = vector.shape_cast %431 : vector<256xf32> to vector<1x256xf32>
    %433 = vector.broadcast %432 : vector<1x256xf32> to vector<16x256xf32>
    %434 = arith.mulf %429, %433 : vector<16x256xf32>
    %435 = arith.addf %428, %434 : vector<16x256xf32>
    %c4_122 = arith.constant 4 : index
    %c0_123 = arith.constant 0 : index
    %c0_124 = arith.constant 0 : index
    %436 = vector.load %arg10[%c4_122, %c0_123, %c0_124] : memref<10x18x256xf32, #tpu.memory_space<vmem>>, vector<1x18x256xf32>
    %437 = vector.shape_cast %436 : vector<1x18x256xf32> to vector<18x256xf32>
    %438 = vector.extract_strided_slice %437 {offsets = [0, 0], sizes = [16, 256], strides = [1, 1]} : vector<18x256xf32> to vector<16x256xf32>
    %439 = vector.extract_strided_slice %65 {offsets = [3, 0], sizes = [1, 256], strides = [1, 1]} : vector<9x256xf32> to vector<1x256xf32>
    %440 = vector.shape_cast %439 : vector<1x256xf32> to vector<256xf32>
    %441 = vector.shape_cast %440 : vector<256xf32> to vector<1x256xf32>
    %442 = vector.broadcast %441 : vector<1x256xf32> to vector<16x256xf32>
    %443 = arith.mulf %438, %442 : vector<16x256xf32>
    %444 = arith.addf %435, %443 : vector<16x256xf32>
    %445 = vector.extract_strided_slice %437 {offsets = [1, 0], sizes = [16, 256], strides = [1, 1]} : vector<18x256xf32> to vector<16x256xf32>
    %446 = vector.extract_strided_slice %65 {offsets = [4, 0], sizes = [1, 256], strides = [1, 1]} : vector<9x256xf32> to vector<1x256xf32>
    %447 = vector.shape_cast %446 : vector<1x256xf32> to vector<256xf32>
    %448 = vector.shape_cast %447 : vector<256xf32> to vector<1x256xf32>
    %449 = vector.broadcast %448 : vector<1x256xf32> to vector<16x256xf32>
    %450 = arith.mulf %445, %449 : vector<16x256xf32>
    %451 = arith.addf %444, %450 : vector<16x256xf32>
    %452 = vector.extract_strided_slice %437 {offsets = [2, 0], sizes = [16, 256], strides = [1, 1]} : vector<18x256xf32> to vector<16x256xf32>
    %453 = vector.extract_strided_slice %65 {offsets = [5, 0], sizes = [1, 256], strides = [1, 1]} : vector<9x256xf32> to vector<1x256xf32>
    %454 = vector.shape_cast %453 : vector<1x256xf32> to vector<256xf32>
    %455 = vector.shape_cast %454 : vector<256xf32> to vector<1x256xf32>
    %456 = vector.broadcast %455 : vector<1x256xf32> to vector<16x256xf32>
    %457 = arith.mulf %452, %456 : vector<16x256xf32>
    %458 = arith.addf %451, %457 : vector<16x256xf32>
    %c5 = arith.constant 5 : index
    %c0_125 = arith.constant 0 : index
    %c0_126 = arith.constant 0 : index
    %459 = vector.load %arg10[%c5, %c0_125, %c0_126] : memref<10x18x256xf32, #tpu.memory_space<vmem>>, vector<1x18x256xf32>
    %460 = vector.shape_cast %459 : vector<1x18x256xf32> to vector<18x256xf32>
    %461 = vector.extract_strided_slice %460 {offsets = [0, 0], sizes = [16, 256], strides = [1, 1]} : vector<18x256xf32> to vector<16x256xf32>
    %462 = vector.extract_strided_slice %65 {offsets = [6, 0], sizes = [1, 256], strides = [1, 1]} : vector<9x256xf32> to vector<1x256xf32>
    %463 = vector.shape_cast %462 : vector<1x256xf32> to vector<256xf32>
    %464 = vector.shape_cast %463 : vector<256xf32> to vector<1x256xf32>
    %465 = vector.broadcast %464 : vector<1x256xf32> to vector<16x256xf32>
    %466 = arith.mulf %461, %465 : vector<16x256xf32>
    %467 = arith.addf %458, %466 : vector<16x256xf32>
    %468 = vector.extract_strided_slice %460 {offsets = [1, 0], sizes = [16, 256], strides = [1, 1]} : vector<18x256xf32> to vector<16x256xf32>
    %469 = vector.extract_strided_slice %65 {offsets = [7, 0], sizes = [1, 256], strides = [1, 1]} : vector<9x256xf32> to vector<1x256xf32>
    %470 = vector.shape_cast %469 : vector<1x256xf32> to vector<256xf32>
    %471 = vector.shape_cast %470 : vector<256xf32> to vector<1x256xf32>
    %472 = vector.broadcast %471 : vector<1x256xf32> to vector<16x256xf32>
    %473 = arith.mulf %468, %472 : vector<16x256xf32>
    %474 = arith.addf %467, %473 : vector<16x256xf32>
    %475 = vector.extract_strided_slice %460 {offsets = [2, 0], sizes = [16, 256], strides = [1, 1]} : vector<18x256xf32> to vector<16x256xf32>
    %476 = vector.extract_strided_slice %65 {offsets = [8, 0], sizes = [1, 256], strides = [1, 1]} : vector<9x256xf32> to vector<1x256xf32>
    %477 = vector.shape_cast %476 : vector<1x256xf32> to vector<256xf32>
    %478 = vector.shape_cast %477 : vector<256xf32> to vector<1x256xf32>
    %479 = vector.broadcast %478 : vector<1x256xf32> to vector<16x256xf32>
    %480 = arith.mulf %475, %479 : vector<16x256xf32>
    %481 = arith.addf %474, %480 : vector<16x256xf32>
    %482 = vector.broadcast %66 : vector<1x256xf32> to vector<16x256xf32>
    %483 = arith.addf %481, %482 : vector<16x256xf32>
    %cst_127 = arith.constant 5.000000e-01 : f32
    %484 = vector.broadcast %cst_127 : f32 to vector<16x256xf32>
    %485 = arith.mulf %484, %483 : vector<16x256xf32>
    %cst_128 = arith.constant 0.707106769 : f32
    %486 = vector.broadcast %cst_128 : f32 to vector<16x256xf32>
    %487 = arith.mulf %483, %486 : vector<16x256xf32>
    %488 = math.absf %487 : vector<16x256xf32>
    %cst_129 = arith.constant 0.327591091 : f32
    %489 = vector.broadcast %cst_129 : f32 to vector<16x256xf32>
    %490 = arith.mulf %489, %488 : vector<16x256xf32>
    %cst_130 = arith.constant 1.000000e+00 : f32
    %491 = vector.broadcast %cst_130 : f32 to vector<16x256xf32>
    %492 = arith.addf %491, %490 : vector<16x256xf32>
    %493 = tpu.reciprocal %492 {approx = true} : vector<16x256xf32> -> vector<16x256xf32>
    %cst_131 = arith.constant 1.06140542 : f32
    %494 = vector.broadcast %cst_131 : f32 to vector<16x256xf32>
    %495 = arith.mulf %493, %494 : vector<16x256xf32>
    %cst_132 = arith.constant -1.45315206 : f32
    %496 = vector.broadcast %cst_132 : f32 to vector<16x256xf32>
    %497 = arith.addf %496, %495 : vector<16x256xf32>
    %498 = arith.mulf %493, %497 : vector<16x256xf32>
    %cst_133 = arith.constant 1.42141378 : f32
    %499 = vector.broadcast %cst_133 : f32 to vector<16x256xf32>
    %500 = arith.addf %499, %498 : vector<16x256xf32>
    %501 = arith.mulf %493, %500 : vector<16x256xf32>
    %cst_134 = arith.constant -0.284496725 : f32
    %502 = vector.broadcast %cst_134 : f32 to vector<16x256xf32>
    %503 = arith.addf %502, %501 : vector<16x256xf32>
    %504 = arith.mulf %493, %503 : vector<16x256xf32>
    %cst_135 = arith.constant 0.254829586 : f32
    %505 = vector.broadcast %cst_135 : f32 to vector<16x256xf32>
    %506 = arith.addf %505, %504 : vector<16x256xf32>
    %507 = arith.mulf %493, %506 : vector<16x256xf32>
    %cst_136 = arith.constant 0.000000e+00 : f32
    %508 = vector.broadcast %cst_136 : f32 to vector<16x256xf32>
    %509 = arith.subf %508, %488 : vector<16x256xf32>
    %510 = arith.mulf %509, %488 : vector<16x256xf32>
    %511 = math.exp %510 : vector<16x256xf32>
    %512 = arith.mulf %507, %511 : vector<16x256xf32>
    %cst_137 = arith.constant 1.000000e+00 : f32
    %513 = vector.broadcast %cst_137 : f32 to vector<16x256xf32>
    %514 = arith.subf %513, %512 : vector<16x256xf32>
    %cst_138 = arith.constant 0.000000e+00 : f32
    %515 = vector.broadcast %cst_138 : f32 to vector<16x256xf32>
    %516 = arith.cmpf oge, %487, %515 : vector<16x256xf32>
    %cst_139 = arith.constant 0.000000e+00 : f32
    %517 = vector.broadcast %cst_139 : f32 to vector<16x256xf32>
    %518 = arith.subf %517, %514 : vector<16x256xf32>
    %519 = arith.select %516, %514, %518 : vector<16x256xi1>, vector<16x256xf32>
    %cst_140 = arith.constant 1.000000e+00 : f32
    %520 = vector.broadcast %cst_140 : f32 to vector<16x256xf32>
    %521 = arith.addf %520, %519 : vector<16x256xf32>
    %522 = arith.mulf %485, %521 : vector<16x256xf32>
    %523 = arith.truncf %522 : vector<16x256xf32> to vector<16x256xbf16>
    %c3_141 = arith.constant 3 : index
    %c0_142 = arith.constant 0 : index
    %c0_143 = arith.constant 0 : index
    %524 = vector.load %arg11[%c3_141, %c0_142, %c0_143] : memref<8x16x256xbf16, #tpu.memory_space<vmem>>, vector<1x16x256xbf16>
    %525 = vector.shape_cast %524 : vector<1x16x256xbf16> to vector<16x256xbf16>
    %526 = vector.shape_cast %523 : vector<16x256xbf16> to vector<1x16x256xbf16>
    tpu.vector_store %arg11[%c3_141, %c0_142, %c0_143], %526 {strides = array<i32>} : memref<8x16x256xbf16, #tpu.memory_space<vmem>>, vector<1x16x256xbf16>,
    %cst_144 = arith.constant 0.000000e+00 : f32
    %527 = vector.broadcast %cst_144 : f32 to vector<16x256xf32>
    %c4_145 = arith.constant 4 : index
    %c0_146 = arith.constant 0 : index
    %c0_147 = arith.constant 0 : index
    %528 = vector.load %arg10[%c4_145, %c0_146, %c0_147] : memref<10x18x256xf32, #tpu.memory_space<vmem>>, vector<1x18x256xf32>
    %529 = vector.shape_cast %528 : vector<1x18x256xf32> to vector<18x256xf32>
    %530 = vector.extract_strided_slice %529 {offsets = [0, 0], sizes = [16, 256], strides = [1, 1]} : vector<18x256xf32> to vector<16x256xf32>
    %531 = vector.extract_strided_slice %65 {offsets = [0, 0], sizes = [1, 256], strides = [1, 1]} : vector<9x256xf32> to vector<1x256xf32>
    %532 = vector.shape_cast %531 : vector<1x256xf32> to vector<256xf32>
    %533 = vector.shape_cast %532 : vector<256xf32> to vector<1x256xf32>
    %534 = vector.broadcast %533 : vector<1x256xf32> to vector<16x256xf32>
    %535 = arith.mulf %530, %534 : vector<16x256xf32>
    %536 = arith.addf %527, %535 : vector<16x256xf32>
    %537 = vector.extract_strided_slice %529 {offsets = [1, 0], sizes = [16, 256], strides = [1, 1]} : vector<18x256xf32> to vector<16x256xf32>
    %538 = vector.extract_strided_slice %65 {offsets = [1, 0], sizes = [1, 256], strides = [1, 1]} : vector<9x256xf32> to vector<1x256xf32>
    %539 = vector.shape_cast %538 : vector<1x256xf32> to vector<256xf32>
    %540 = vector.shape_cast %539 : vector<256xf32> to vector<1x256xf32>
    %541 = vector.broadcast %540 : vector<1x256xf32> to vector<16x256xf32>
    %542 = arith.mulf %537, %541 : vector<16x256xf32>
    %543 = arith.addf %536, %542 : vector<16x256xf32>
    %544 = vector.extract_strided_slice %529 {offsets = [2, 0], sizes = [16, 256], strides = [1, 1]} : vector<18x256xf32> to vector<16x256xf32>
    %545 = vector.extract_strided_slice %65 {offsets = [2, 0], sizes = [1, 256], strides = [1, 1]} : vector<9x256xf32> to vector<1x256xf32>
    %546 = vector.shape_cast %545 : vector<1x256xf32> to vector<256xf32>
    %547 = vector.shape_cast %546 : vector<256xf32> to vector<1x256xf32>
    %548 = vector.broadcast %547 : vector<1x256xf32> to vector<16x256xf32>
    %549 = arith.mulf %544, %548 : vector<16x256xf32>
    %550 = arith.addf %543, %549 : vector<16x256xf32>
    %c5_148 = arith.constant 5 : index
    %c0_149 = arith.constant 0 : index
    %c0_150 = arith.constant 0 : index
    %551 = vector.load %arg10[%c5_148, %c0_149, %c0_150] : memref<10x18x256xf32, #tpu.memory_space<vmem>>, vector<1x18x256xf32>
    %552 = vector.shape_cast %551 : vector<1x18x256xf32> to vector<18x256xf32>
    %553 = vector.extract_strided_slice %552 {offsets = [0, 0], sizes = [16, 256], strides = [1, 1]} : vector<18x256xf32> to vector<16x256xf32>
    %554 = vector.extract_strided_slice %65 {offsets = [3, 0], sizes = [1, 256], strides = [1, 1]} : vector<9x256xf32> to vector<1x256xf32>
    %555 = vector.shape_cast %554 : vector<1x256xf32> to vector<256xf32>
    %556 = vector.shape_cast %555 : vector<256xf32> to vector<1x256xf32>
    %557 = vector.broadcast %556 : vector<1x256xf32> to vector<16x256xf32>
    %558 = arith.mulf %553, %557 : vector<16x256xf32>
    %559 = arith.addf %550, %558 : vector<16x256xf32>
    %560 = vector.extract_strided_slice %552 {offsets = [1, 0], sizes = [16, 256], strides = [1, 1]} : vector<18x256xf32> to vector<16x256xf32>
    %561 = vector.extract_strided_slice %65 {offsets = [4, 0], sizes = [1, 256], strides = [1, 1]} : vector<9x256xf32> to vector<1x256xf32>
    %562 = vector.shape_cast %561 : vector<1x256xf32> to vector<256xf32>
    %563 = vector.shape_cast %562 : vector<256xf32> to vector<1x256xf32>
    %564 = vector.broadcast %563 : vector<1x256xf32> to vector<16x256xf32>
    %565 = arith.mulf %560, %564 : vector<16x256xf32>
    %566 = arith.addf %559, %565 : vector<16x256xf32>
    %567 = vector.extract_strided_slice %552 {offsets = [2, 0], sizes = [16, 256], strides = [1, 1]} : vector<18x256xf32> to vector<16x256xf32>
    %568 = vector.extract_strided_slice %65 {offsets = [5, 0], sizes = [1, 256], strides = [1, 1]} : vector<9x256xf32> to vector<1x256xf32>
    %569 = vector.shape_cast %568 : vector<1x256xf32> to vector<256xf32>
    %570 = vector.shape_cast %569 : vector<256xf32> to vector<1x256xf32>
    %571 = vector.broadcast %570 : vector<1x256xf32> to vector<16x256xf32>
    %572 = arith.mulf %567, %571 : vector<16x256xf32>
    %573 = arith.addf %566, %572 : vector<16x256xf32>
    %c6 = arith.constant 6 : index
    %c0_151 = arith.constant 0 : index
    %c0_152 = arith.constant 0 : index
    %574 = vector.load %arg10[%c6, %c0_151, %c0_152] : memref<10x18x256xf32, #tpu.memory_space<vmem>>, vector<1x18x256xf32>
    %575 = vector.shape_cast %574 : vector<1x18x256xf32> to vector<18x256xf32>
    %576 = vector.extract_strided_slice %575 {offsets = [0, 0], sizes = [16, 256], strides = [1, 1]} : vector<18x256xf32> to vector<16x256xf32>
    %577 = vector.extract_strided_slice %65 {offsets = [6, 0], sizes = [1, 256], strides = [1, 1]} : vector<9x256xf32> to vector<1x256xf32>
    %578 = vector.shape_cast %577 : vector<1x256xf32> to vector<256xf32>
    %579 = vector.shape_cast %578 : vector<256xf32> to vector<1x256xf32>
    %580 = vector.broadcast %579 : vector<1x256xf32> to vector<16x256xf32>
    %581 = arith.mulf %576, %580 : vector<16x256xf32>
    %582 = arith.addf %573, %581 : vector<16x256xf32>
    %583 = vector.extract_strided_slice %575 {offsets = [1, 0], sizes = [16, 256], strides = [1, 1]} : vector<18x256xf32> to vector<16x256xf32>
    %584 = vector.extract_strided_slice %65 {offsets = [7, 0], sizes = [1, 256], strides = [1, 1]} : vector<9x256xf32> to vector<1x256xf32>
    %585 = vector.shape_cast %584 : vector<1x256xf32> to vector<256xf32>
    %586 = vector.shape_cast %585 : vector<256xf32> to vector<1x256xf32>
    %587 = vector.broadcast %586 : vector<1x256xf32> to vector<16x256xf32>
    %588 = arith.mulf %583, %587 : vector<16x256xf32>
    %589 = arith.addf %582, %588 : vector<16x256xf32>
    %590 = vector.extract_strided_slice %575 {offsets = [2, 0], sizes = [16, 256], strides = [1, 1]} : vector<18x256xf32> to vector<16x256xf32>
    %591 = vector.extract_strided_slice %65 {offsets = [8, 0], sizes = [1, 256], strides = [1, 1]} : vector<9x256xf32> to vector<1x256xf32>
    %592 = vector.shape_cast %591 : vector<1x256xf32> to vector<256xf32>
    %593 = vector.shape_cast %592 : vector<256xf32> to vector<1x256xf32>
    %594 = vector.broadcast %593 : vector<1x256xf32> to vector<16x256xf32>
    %595 = arith.mulf %590, %594 : vector<16x256xf32>
    %596 = arith.addf %589, %595 : vector<16x256xf32>
    %597 = vector.broadcast %66 : vector<1x256xf32> to vector<16x256xf32>
    %598 = arith.addf %596, %597 : vector<16x256xf32>
    %cst_153 = arith.constant 5.000000e-01 : f32
    %599 = vector.broadcast %cst_153 : f32 to vector<16x256xf32>
    %600 = arith.mulf %599, %598 : vector<16x256xf32>
    %cst_154 = arith.constant 0.707106769 : f32
    %601 = vector.broadcast %cst_154 : f32 to vector<16x256xf32>
    %602 = arith.mulf %598, %601 : vector<16x256xf32>
    %603 = math.absf %602 : vector<16x256xf32>
    %cst_155 = arith.constant 0.327591091 : f32
    %604 = vector.broadcast %cst_155 : f32 to vector<16x256xf32>
    %605 = arith.mulf %604, %603 : vector<16x256xf32>
    %cst_156 = arith.constant 1.000000e+00 : f32
    %606 = vector.broadcast %cst_156 : f32 to vector<16x256xf32>
    %607 = arith.addf %606, %605 : vector<16x256xf32>
    %608 = tpu.reciprocal %607 {approx = true} : vector<16x256xf32> -> vector<16x256xf32>
    %cst_157 = arith.constant 1.06140542 : f32
    %609 = vector.broadcast %cst_157 : f32 to vector<16x256xf32>
    %610 = arith.mulf %608, %609 : vector<16x256xf32>
    %cst_158 = arith.constant -1.45315206 : f32
    %611 = vector.broadcast %cst_158 : f32 to vector<16x256xf32>
    %612 = arith.addf %611, %610 : vector<16x256xf32>
    %613 = arith.mulf %608, %612 : vector<16x256xf32>
    %cst_159 = arith.constant 1.42141378 : f32
    %614 = vector.broadcast %cst_159 : f32 to vector<16x256xf32>
    %615 = arith.addf %614, %613 : vector<16x256xf32>
    %616 = arith.mulf %608, %615 : vector<16x256xf32>
    %cst_160 = arith.constant -0.284496725 : f32
    %617 = vector.broadcast %cst_160 : f32 to vector<16x256xf32>
    %618 = arith.addf %617, %616 : vector<16x256xf32>
    %619 = arith.mulf %608, %618 : vector<16x256xf32>
    %cst_161 = arith.constant 0.254829586 : f32
    %620 = vector.broadcast %cst_161 : f32 to vector<16x256xf32>
    %621 = arith.addf %620, %619 : vector<16x256xf32>
    %622 = arith.mulf %608, %621 : vector<16x256xf32>
    %cst_162 = arith.constant 0.000000e+00 : f32
    %623 = vector.broadcast %cst_162 : f32 to vector<16x256xf32>
    %624 = arith.subf %623, %603 : vector<16x256xf32>
    %625 = arith.mulf %624, %603 : vector<16x256xf32>
    %626 = math.exp %625 : vector<16x256xf32>
    %627 = arith.mulf %622, %626 : vector<16x256xf32>
    %cst_163 = arith.constant 1.000000e+00 : f32
    %628 = vector.broadcast %cst_163 : f32 to vector<16x256xf32>
    %629 = arith.subf %628, %627 : vector<16x256xf32>
    %cst_164 = arith.constant 0.000000e+00 : f32
    %630 = vector.broadcast %cst_164 : f32 to vector<16x256xf32>
    %631 = arith.cmpf oge, %602, %630 : vector<16x256xf32>
    %cst_165 = arith.constant 0.000000e+00 : f32
    %632 = vector.broadcast %cst_165 : f32 to vector<16x256xf32>
    %633 = arith.subf %632, %629 : vector<16x256xf32>
    %634 = arith.select %631, %629, %633 : vector<16x256xi1>, vector<16x256xf32>
    %cst_166 = arith.constant 1.000000e+00 : f32
    %635 = vector.broadcast %cst_166 : f32 to vector<16x256xf32>
    %636 = arith.addf %635, %634 : vector<16x256xf32>
    %637 = arith.mulf %600, %636 : vector<16x256xf32>
    %638 = arith.truncf %637 : vector<16x256xf32> to vector<16x256xbf16>
    %c4_167 = arith.constant 4 : index
    %c0_168 = arith.constant 0 : index
    %c0_169 = arith.constant 0 : index
    %639 = vector.load %arg11[%c4_167, %c0_168, %c0_169] : memref<8x16x256xbf16, #tpu.memory_space<vmem>>, vector<1x16x256xbf16>
    %640 = vector.shape_cast %639 : vector<1x16x256xbf16> to vector<16x256xbf16>
    %641 = vector.shape_cast %638 : vector<16x256xbf16> to vector<1x16x256xbf16>
    tpu.vector_store %arg11[%c4_167, %c0_168, %c0_169], %641 {strides = array<i32>} : memref<8x16x256xbf16, #tpu.memory_space<vmem>>, vector<1x16x256xbf16>,
    %cst_170 = arith.constant 0.000000e+00 : f32
    %642 = vector.broadcast %cst_170 : f32 to vector<16x256xf32>
    %c5_171 = arith.constant 5 : index
    %c0_172 = arith.constant 0 : index
    %c0_173 = arith.constant 0 : index
    %643 = vector.load %arg10[%c5_171, %c0_172, %c0_173] : memref<10x18x256xf32, #tpu.memory_space<vmem>>, vector<1x18x256xf32>
    %644 = vector.shape_cast %643 : vector<1x18x256xf32> to vector<18x256xf32>
    %645 = vector.extract_strided_slice %644 {offsets = [0, 0], sizes = [16, 256], strides = [1, 1]} : vector<18x256xf32> to vector<16x256xf32>
    %646 = vector.extract_strided_slice %65 {offsets = [0, 0], sizes = [1, 256], strides = [1, 1]} : vector<9x256xf32> to vector<1x256xf32>
    %647 = vector.shape_cast %646 : vector<1x256xf32> to vector<256xf32>
    %648 = vector.shape_cast %647 : vector<256xf32> to vector<1x256xf32>
    %649 = vector.broadcast %648 : vector<1x256xf32> to vector<16x256xf32>
    %650 = arith.mulf %645, %649 : vector<16x256xf32>
    %651 = arith.addf %642, %650 : vector<16x256xf32>
    %652 = vector.extract_strided_slice %644 {offsets = [1, 0], sizes = [16, 256], strides = [1, 1]} : vector<18x256xf32> to vector<16x256xf32>
    %653 = vector.extract_strided_slice %65 {offsets = [1, 0], sizes = [1, 256], strides = [1, 1]} : vector<9x256xf32> to vector<1x256xf32>
    %654 = vector.shape_cast %653 : vector<1x256xf32> to vector<256xf32>
    %655 = vector.shape_cast %654 : vector<256xf32> to vector<1x256xf32>
    %656 = vector.broadcast %655 : vector<1x256xf32> to vector<16x256xf32>
    %657 = arith.mulf %652, %656 : vector<16x256xf32>
    %658 = arith.addf %651, %657 : vector<16x256xf32>
    %659 = vector.extract_strided_slice %644 {offsets = [2, 0], sizes = [16, 256], strides = [1, 1]} : vector<18x256xf32> to vector<16x256xf32>
    %660 = vector.extract_strided_slice %65 {offsets = [2, 0], sizes = [1, 256], strides = [1, 1]} : vector<9x256xf32> to vector<1x256xf32>
    %661 = vector.shape_cast %660 : vector<1x256xf32> to vector<256xf32>
    %662 = vector.shape_cast %661 : vector<256xf32> to vector<1x256xf32>
    %663 = vector.broadcast %662 : vector<1x256xf32> to vector<16x256xf32>
    %664 = arith.mulf %659, %663 : vector<16x256xf32>
    %665 = arith.addf %658, %664 : vector<16x256xf32>
    %c6_174 = arith.constant 6 : index
    %c0_175 = arith.constant 0 : index
    %c0_176 = arith.constant 0 : index
    %666 = vector.load %arg10[%c6_174, %c0_175, %c0_176] : memref<10x18x256xf32, #tpu.memory_space<vmem>>, vector<1x18x256xf32>
    %667 = vector.shape_cast %666 : vector<1x18x256xf32> to vector<18x256xf32>
    %668 = vector.extract_strided_slice %667 {offsets = [0, 0], sizes = [16, 256], strides = [1, 1]} : vector<18x256xf32> to vector<16x256xf32>
    %669 = vector.extract_strided_slice %65 {offsets = [3, 0], sizes = [1, 256], strides = [1, 1]} : vector<9x256xf32> to vector<1x256xf32>
    %670 = vector.shape_cast %669 : vector<1x256xf32> to vector<256xf32>
    %671 = vector.shape_cast %670 : vector<256xf32> to vector<1x256xf32>
    %672 = vector.broadcast %671 : vector<1x256xf32> to vector<16x256xf32>
    %673 = arith.mulf %668, %672 : vector<16x256xf32>
    %674 = arith.addf %665, %673 : vector<16x256xf32>
    %675 = vector.extract_strided_slice %667 {offsets = [1, 0], sizes = [16, 256], strides = [1, 1]} : vector<18x256xf32> to vector<16x256xf32>
    %676 = vector.extract_strided_slice %65 {offsets = [4, 0], sizes = [1, 256], strides = [1, 1]} : vector<9x256xf32> to vector<1x256xf32>
    %677 = vector.shape_cast %676 : vector<1x256xf32> to vector<256xf32>
    %678 = vector.shape_cast %677 : vector<256xf32> to vector<1x256xf32>
    %679 = vector.broadcast %678 : vector<1x256xf32> to vector<16x256xf32>
    %680 = arith.mulf %675, %679 : vector<16x256xf32>
    %681 = arith.addf %674, %680 : vector<16x256xf32>
    %682 = vector.extract_strided_slice %667 {offsets = [2, 0], sizes = [16, 256], strides = [1, 1]} : vector<18x256xf32> to vector<16x256xf32>
    %683 = vector.extract_strided_slice %65 {offsets = [5, 0], sizes = [1, 256], strides = [1, 1]} : vector<9x256xf32> to vector<1x256xf32>
    %684 = vector.shape_cast %683 : vector<1x256xf32> to vector<256xf32>
    %685 = vector.shape_cast %684 : vector<256xf32> to vector<1x256xf32>
    %686 = vector.broadcast %685 : vector<1x256xf32> to vector<16x256xf32>
    %687 = arith.mulf %682, %686 : vector<16x256xf32>
    %688 = arith.addf %681, %687 : vector<16x256xf32>
    %c7 = arith.constant 7 : index
    %c0_177 = arith.constant 0 : index
    %c0_178 = arith.constant 0 : index
    %689 = vector.load %arg10[%c7, %c0_177, %c0_178] : memref<10x18x256xf32, #tpu.memory_space<vmem>>, vector<1x18x256xf32>
    %690 = vector.shape_cast %689 : vector<1x18x256xf32> to vector<18x256xf32>
    %691 = vector.extract_strided_slice %690 {offsets = [0, 0], sizes = [16, 256], strides = [1, 1]} : vector<18x256xf32> to vector<16x256xf32>
    %692 = vector.extract_strided_slice %65 {offsets = [6, 0], sizes = [1, 256], strides = [1, 1]} : vector<9x256xf32> to vector<1x256xf32>
    %693 = vector.shape_cast %692 : vector<1x256xf32> to vector<256xf32>
    %694 = vector.shape_cast %693 : vector<256xf32> to vector<1x256xf32>
    %695 = vector.broadcast %694 : vector<1x256xf32> to vector<16x256xf32>
    %696 = arith.mulf %691, %695 : vector<16x256xf32>
    %697 = arith.addf %688, %696 : vector<16x256xf32>
    %698 = vector.extract_strided_slice %690 {offsets = [1, 0], sizes = [16, 256], strides = [1, 1]} : vector<18x256xf32> to vector<16x256xf32>
    %699 = vector.extract_strided_slice %65 {offsets = [7, 0], sizes = [1, 256], strides = [1, 1]} : vector<9x256xf32> to vector<1x256xf32>
    %700 = vector.shape_cast %699 : vector<1x256xf32> to vector<256xf32>
    %701 = vector.shape_cast %700 : vector<256xf32> to vector<1x256xf32>
    %702 = vector.broadcast %701 : vector<1x256xf32> to vector<16x256xf32>
    %703 = arith.mulf %698, %702 : vector<16x256xf32>
    %704 = arith.addf %697, %703 : vector<16x256xf32>
    %705 = vector.extract_strided_slice %690 {offsets = [2, 0], sizes = [16, 256], strides = [1, 1]} : vector<18x256xf32> to vector<16x256xf32>
    %706 = vector.extract_strided_slice %65 {offsets = [8, 0], sizes = [1, 256], strides = [1, 1]} : vector<9x256xf32> to vector<1x256xf32>
    %707 = vector.shape_cast %706 : vector<1x256xf32> to vector<256xf32>
    %708 = vector.shape_cast %707 : vector<256xf32> to vector<1x256xf32>
    %709 = vector.broadcast %708 : vector<1x256xf32> to vector<16x256xf32>
    %710 = arith.mulf %705, %709 : vector<16x256xf32>
    %711 = arith.addf %704, %710 : vector<16x256xf32>
    %712 = vector.broadcast %66 : vector<1x256xf32> to vector<16x256xf32>
    %713 = arith.addf %711, %712 : vector<16x256xf32>
    %cst_179 = arith.constant 5.000000e-01 : f32
    %714 = vector.broadcast %cst_179 : f32 to vector<16x256xf32>
    %715 = arith.mulf %714, %713 : vector<16x256xf32>
    %cst_180 = arith.constant 0.707106769 : f32
    %716 = vector.broadcast %cst_180 : f32 to vector<16x256xf32>
    %717 = arith.mulf %713, %716 : vector<16x256xf32>
    %718 = math.absf %717 : vector<16x256xf32>
    %cst_181 = arith.constant 0.327591091 : f32
    %719 = vector.broadcast %cst_181 : f32 to vector<16x256xf32>
    %720 = arith.mulf %719, %718 : vector<16x256xf32>
    %cst_182 = arith.constant 1.000000e+00 : f32
    %721 = vector.broadcast %cst_182 : f32 to vector<16x256xf32>
    %722 = arith.addf %721, %720 : vector<16x256xf32>
    %723 = tpu.reciprocal %722 {approx = true} : vector<16x256xf32> -> vector<16x256xf32>
    %cst_183 = arith.constant 1.06140542 : f32
    %724 = vector.broadcast %cst_183 : f32 to vector<16x256xf32>
    %725 = arith.mulf %723, %724 : vector<16x256xf32>
    %cst_184 = arith.constant -1.45315206 : f32
    %726 = vector.broadcast %cst_184 : f32 to vector<16x256xf32>
    %727 = arith.addf %726, %725 : vector<16x256xf32>
    %728 = arith.mulf %723, %727 : vector<16x256xf32>
    %cst_185 = arith.constant 1.42141378 : f32
    %729 = vector.broadcast %cst_185 : f32 to vector<16x256xf32>
    %730 = arith.addf %729, %728 : vector<16x256xf32>
    %731 = arith.mulf %723, %730 : vector<16x256xf32>
    %cst_186 = arith.constant -0.284496725 : f32
    %732 = vector.broadcast %cst_186 : f32 to vector<16x256xf32>
    %733 = arith.addf %732, %731 : vector<16x256xf32>
    %734 = arith.mulf %723, %733 : vector<16x256xf32>
    %cst_187 = arith.constant 0.254829586 : f32
    %735 = vector.broadcast %cst_187 : f32 to vector<16x256xf32>
    %736 = arith.addf %735, %734 : vector<16x256xf32>
    %737 = arith.mulf %723, %736 : vector<16x256xf32>
    %cst_188 = arith.constant 0.000000e+00 : f32
    %738 = vector.broadcast %cst_188 : f32 to vector<16x256xf32>
    %739 = arith.subf %738, %718 : vector<16x256xf32>
    %740 = arith.mulf %739, %718 : vector<16x256xf32>
    %741 = math.exp %740 : vector<16x256xf32>
    %742 = arith.mulf %737, %741 : vector<16x256xf32>
    %cst_189 = arith.constant 1.000000e+00 : f32
    %743 = vector.broadcast %cst_189 : f32 to vector<16x256xf32>
    %744 = arith.subf %743, %742 : vector<16x256xf32>
    %cst_190 = arith.constant 0.000000e+00 : f32
    %745 = vector.broadcast %cst_190 : f32 to vector<16x256xf32>
    %746 = arith.cmpf oge, %717, %745 : vector<16x256xf32>
    %cst_191 = arith.constant 0.000000e+00 : f32
    %747 = vector.broadcast %cst_191 : f32 to vector<16x256xf32>
    %748 = arith.subf %747, %744 : vector<16x256xf32>
    %749 = arith.select %746, %744, %748 : vector<16x256xi1>, vector<16x256xf32>
    %cst_192 = arith.constant 1.000000e+00 : f32
    %750 = vector.broadcast %cst_192 : f32 to vector<16x256xf32>
    %751 = arith.addf %750, %749 : vector<16x256xf32>
    %752 = arith.mulf %715, %751 : vector<16x256xf32>
    %753 = arith.truncf %752 : vector<16x256xf32> to vector<16x256xbf16>
    %c5_193 = arith.constant 5 : index
    %c0_194 = arith.constant 0 : index
    %c0_195 = arith.constant 0 : index
    %754 = vector.load %arg11[%c5_193, %c0_194, %c0_195] : memref<8x16x256xbf16, #tpu.memory_space<vmem>>, vector<1x16x256xbf16>
    %755 = vector.shape_cast %754 : vector<1x16x256xbf16> to vector<16x256xbf16>
    %756 = vector.shape_cast %753 : vector<16x256xbf16> to vector<1x16x256xbf16>
    tpu.vector_store %arg11[%c5_193, %c0_194, %c0_195], %756 {strides = array<i32>} : memref<8x16x256xbf16, #tpu.memory_space<vmem>>, vector<1x16x256xbf16>,
    %cst_196 = arith.constant 0.000000e+00 : f32
    %757 = vector.broadcast %cst_196 : f32 to vector<16x256xf32>
    %c6_197 = arith.constant 6 : index
    %c0_198 = arith.constant 0 : index
    %c0_199 = arith.constant 0 : index
    %758 = vector.load %arg10[%c6_197, %c0_198, %c0_199] : memref<10x18x256xf32, #tpu.memory_space<vmem>>, vector<1x18x256xf32>
    %759 = vector.shape_cast %758 : vector<1x18x256xf32> to vector<18x256xf32>
    %760 = vector.extract_strided_slice %759 {offsets = [0, 0], sizes = [16, 256], strides = [1, 1]} : vector<18x256xf32> to vector<16x256xf32>
    %761 = vector.extract_strided_slice %65 {offsets = [0, 0], sizes = [1, 256], strides = [1, 1]} : vector<9x256xf32> to vector<1x256xf32>
    %762 = vector.shape_cast %761 : vector<1x256xf32> to vector<256xf32>
    %763 = vector.shape_cast %762 : vector<256xf32> to vector<1x256xf32>
    %764 = vector.broadcast %763 : vector<1x256xf32> to vector<16x256xf32>
    %765 = arith.mulf %760, %764 : vector<16x256xf32>
    %766 = arith.addf %757, %765 : vector<16x256xf32>
    %767 = vector.extract_strided_slice %759 {offsets = [1, 0], sizes = [16, 256], strides = [1, 1]} : vector<18x256xf32> to vector<16x256xf32>
    %768 = vector.extract_strided_slice %65 {offsets = [1, 0], sizes = [1, 256], strides = [1, 1]} : vector<9x256xf32> to vector<1x256xf32>
    %769 = vector.shape_cast %768 : vector<1x256xf32> to vector<256xf32>
    %770 = vector.shape_cast %769 : vector<256xf32> to vector<1x256xf32>
    %771 = vector.broadcast %770 : vector<1x256xf32> to vector<16x256xf32>
    %772 = arith.mulf %767, %771 : vector<16x256xf32>
    %773 = arith.addf %766, %772 : vector<16x256xf32>
    %774 = vector.extract_strided_slice %759 {offsets = [2, 0], sizes = [16, 256], strides = [1, 1]} : vector<18x256xf32> to vector<16x256xf32>
    %775 = vector.extract_strided_slice %65 {offsets = [2, 0], sizes = [1, 256], strides = [1, 1]} : vector<9x256xf32> to vector<1x256xf32>
    %776 = vector.shape_cast %775 : vector<1x256xf32> to vector<256xf32>
    %777 = vector.shape_cast %776 : vector<256xf32> to vector<1x256xf32>
    %778 = vector.broadcast %777 : vector<1x256xf32> to vector<16x256xf32>
    %779 = arith.mulf %774, %778 : vector<16x256xf32>
    %780 = arith.addf %773, %779 : vector<16x256xf32>
    %c7_200 = arith.constant 7 : index
    %c0_201 = arith.constant 0 : index
    %c0_202 = arith.constant 0 : index
    %781 = vector.load %arg10[%c7_200, %c0_201, %c0_202] : memref<10x18x256xf32, #tpu.memory_space<vmem>>, vector<1x18x256xf32>
    %782 = vector.shape_cast %781 : vector<1x18x256xf32> to vector<18x256xf32>
    %783 = vector.extract_strided_slice %782 {offsets = [0, 0], sizes = [16, 256], strides = [1, 1]} : vector<18x256xf32> to vector<16x256xf32>
    %784 = vector.extract_strided_slice %65 {offsets = [3, 0], sizes = [1, 256], strides = [1, 1]} : vector<9x256xf32> to vector<1x256xf32>
    %785 = vector.shape_cast %784 : vector<1x256xf32> to vector<256xf32>
    %786 = vector.shape_cast %785 : vector<256xf32> to vector<1x256xf32>
    %787 = vector.broadcast %786 : vector<1x256xf32> to vector<16x256xf32>
    %788 = arith.mulf %783, %787 : vector<16x256xf32>
    %789 = arith.addf %780, %788 : vector<16x256xf32>
    %790 = vector.extract_strided_slice %782 {offsets = [1, 0], sizes = [16, 256], strides = [1, 1]} : vector<18x256xf32> to vector<16x256xf32>
    %791 = vector.extract_strided_slice %65 {offsets = [4, 0], sizes = [1, 256], strides = [1, 1]} : vector<9x256xf32> to vector<1x256xf32>
    %792 = vector.shape_cast %791 : vector<1x256xf32> to vector<256xf32>
    %793 = vector.shape_cast %792 : vector<256xf32> to vector<1x256xf32>
    %794 = vector.broadcast %793 : vector<1x256xf32> to vector<16x256xf32>
    %795 = arith.mulf %790, %794 : vector<16x256xf32>
    %796 = arith.addf %789, %795 : vector<16x256xf32>
    %797 = vector.extract_strided_slice %782 {offsets = [2, 0], sizes = [16, 256], strides = [1, 1]} : vector<18x256xf32> to vector<16x256xf32>
    %798 = vector.extract_strided_slice %65 {offsets = [5, 0], sizes = [1, 256], strides = [1, 1]} : vector<9x256xf32> to vector<1x256xf32>
    %799 = vector.shape_cast %798 : vector<1x256xf32> to vector<256xf32>
    %800 = vector.shape_cast %799 : vector<256xf32> to vector<1x256xf32>
    %801 = vector.broadcast %800 : vector<1x256xf32> to vector<16x256xf32>
    %802 = arith.mulf %797, %801 : vector<16x256xf32>
    %803 = arith.addf %796, %802 : vector<16x256xf32>
    %c8 = arith.constant 8 : index
    %c0_203 = arith.constant 0 : index
    %c0_204 = arith.constant 0 : index
    %804 = vector.load %arg10[%c8, %c0_203, %c0_204] : memref<10x18x256xf32, #tpu.memory_space<vmem>>, vector<1x18x256xf32>
    %805 = vector.shape_cast %804 : vector<1x18x256xf32> to vector<18x256xf32>
    %806 = vector.extract_strided_slice %805 {offsets = [0, 0], sizes = [16, 256], strides = [1, 1]} : vector<18x256xf32> to vector<16x256xf32>
    %807 = vector.extract_strided_slice %65 {offsets = [6, 0], sizes = [1, 256], strides = [1, 1]} : vector<9x256xf32> to vector<1x256xf32>
    %808 = vector.shape_cast %807 : vector<1x256xf32> to vector<256xf32>
    %809 = vector.shape_cast %808 : vector<256xf32> to vector<1x256xf32>
    %810 = vector.broadcast %809 : vector<1x256xf32> to vector<16x256xf32>
    %811 = arith.mulf %806, %810 : vector<16x256xf32>
    %812 = arith.addf %803, %811 : vector<16x256xf32>
    %813 = vector.extract_strided_slice %805 {offsets = [1, 0], sizes = [16, 256], strides = [1, 1]} : vector<18x256xf32> to vector<16x256xf32>
    %814 = vector.extract_strided_slice %65 {offsets = [7, 0], sizes = [1, 256], strides = [1, 1]} : vector<9x256xf32> to vector<1x256xf32>
    %815 = vector.shape_cast %814 : vector<1x256xf32> to vector<256xf32>
    %816 = vector.shape_cast %815 : vector<256xf32> to vector<1x256xf32>
    %817 = vector.broadcast %816 : vector<1x256xf32> to vector<16x256xf32>
    %818 = arith.mulf %813, %817 : vector<16x256xf32>
    %819 = arith.addf %812, %818 : vector<16x256xf32>
    %820 = vector.extract_strided_slice %805 {offsets = [2, 0], sizes = [16, 256], strides = [1, 1]} : vector<18x256xf32> to vector<16x256xf32>
    %821 = vector.extract_strided_slice %65 {offsets = [8, 0], sizes = [1, 256], strides = [1, 1]} : vector<9x256xf32> to vector<1x256xf32>
    %822 = vector.shape_cast %821 : vector<1x256xf32> to vector<256xf32>
    %823 = vector.shape_cast %822 : vector<256xf32> to vector<1x256xf32>
    %824 = vector.broadcast %823 : vector<1x256xf32> to vector<16x256xf32>
    %825 = arith.mulf %820, %824 : vector<16x256xf32>
    %826 = arith.addf %819, %825 : vector<16x256xf32>
    %827 = vector.broadcast %66 : vector<1x256xf32> to vector<16x256xf32>
    %828 = arith.addf %826, %827 : vector<16x256xf32>
    %cst_205 = arith.constant 5.000000e-01 : f32
    %829 = vector.broadcast %cst_205 : f32 to vector<16x256xf32>
    %830 = arith.mulf %829, %828 : vector<16x256xf32>
    %cst_206 = arith.constant 0.707106769 : f32
    %831 = vector.broadcast %cst_206 : f32 to vector<16x256xf32>
    %832 = arith.mulf %828, %831 : vector<16x256xf32>
    %833 = math.absf %832 : vector<16x256xf32>
    %cst_207 = arith.constant 0.327591091 : f32
    %834 = vector.broadcast %cst_207 : f32 to vector<16x256xf32>
    %835 = arith.mulf %834, %833 : vector<16x256xf32>
    %cst_208 = arith.constant 1.000000e+00 : f32
    %836 = vector.broadcast %cst_208 : f32 to vector<16x256xf32>
    %837 = arith.addf %836, %835 : vector<16x256xf32>
    %838 = tpu.reciprocal %837 {approx = true} : vector<16x256xf32> -> vector<16x256xf32>
    %cst_209 = arith.constant 1.06140542 : f32
    %839 = vector.broadcast %cst_209 : f32 to vector<16x256xf32>
    %840 = arith.mulf %838, %839 : vector<16x256xf32>
    %cst_210 = arith.constant -1.45315206 : f32
    %841 = vector.broadcast %cst_210 : f32 to vector<16x256xf32>
    %842 = arith.addf %841, %840 : vector<16x256xf32>
    %843 = arith.mulf %838, %842 : vector<16x256xf32>
    %cst_211 = arith.constant 1.42141378 : f32
    %844 = vector.broadcast %cst_211 : f32 to vector<16x256xf32>
    %845 = arith.addf %844, %843 : vector<16x256xf32>
    %846 = arith.mulf %838, %845 : vector<16x256xf32>
    %cst_212 = arith.constant -0.284496725 : f32
    %847 = vector.broadcast %cst_212 : f32 to vector<16x256xf32>
    %848 = arith.addf %847, %846 : vector<16x256xf32>
    %849 = arith.mulf %838, %848 : vector<16x256xf32>
    %cst_213 = arith.constant 0.254829586 : f32
    %850 = vector.broadcast %cst_213 : f32 to vector<16x256xf32>
    %851 = arith.addf %850, %849 : vector<16x256xf32>
    %852 = arith.mulf %838, %851 : vector<16x256xf32>
    %cst_214 = arith.constant 0.000000e+00 : f32
    %853 = vector.broadcast %cst_214 : f32 to vector<16x256xf32>
    %854 = arith.subf %853, %833 : vector<16x256xf32>
    %855 = arith.mulf %854, %833 : vector<16x256xf32>
    %856 = math.exp %855 : vector<16x256xf32>
    %857 = arith.mulf %852, %856 : vector<16x256xf32>
    %cst_215 = arith.constant 1.000000e+00 : f32
    %858 = vector.broadcast %cst_215 : f32 to vector<16x256xf32>
    %859 = arith.subf %858, %857 : vector<16x256xf32>
    %cst_216 = arith.constant 0.000000e+00 : f32
    %860 = vector.broadcast %cst_216 : f32 to vector<16x256xf32>
    %861 = arith.cmpf oge, %832, %860 : vector<16x256xf32>
    %cst_217 = arith.constant 0.000000e+00 : f32
    %862 = vector.broadcast %cst_217 : f32 to vector<16x256xf32>
    %863 = arith.subf %862, %859 : vector<16x256xf32>
    %864 = arith.select %861, %859, %863 : vector<16x256xi1>, vector<16x256xf32>
    %cst_218 = arith.constant 1.000000e+00 : f32
    %865 = vector.broadcast %cst_218 : f32 to vector<16x256xf32>
    %866 = arith.addf %865, %864 : vector<16x256xf32>
    %867 = arith.mulf %830, %866 : vector<16x256xf32>
    %868 = arith.truncf %867 : vector<16x256xf32> to vector<16x256xbf16>
    %c6_219 = arith.constant 6 : index
    %c0_220 = arith.constant 0 : index
    %c0_221 = arith.constant 0 : index
    %869 = vector.load %arg11[%c6_219, %c0_220, %c0_221] : memref<8x16x256xbf16, #tpu.memory_space<vmem>>, vector<1x16x256xbf16>
    %870 = vector.shape_cast %869 : vector<1x16x256xbf16> to vector<16x256xbf16>
    %871 = vector.shape_cast %868 : vector<16x256xbf16> to vector<1x16x256xbf16>
    tpu.vector_store %arg11[%c6_219, %c0_220, %c0_221], %871 {strides = array<i32>} : memref<8x16x256xbf16, #tpu.memory_space<vmem>>, vector<1x16x256xbf16>,
    %cst_222 = arith.constant 0.000000e+00 : f32
    %872 = vector.broadcast %cst_222 : f32 to vector<16x256xf32>
    %c7_223 = arith.constant 7 : index
    %c0_224 = arith.constant 0 : index
    %c0_225 = arith.constant 0 : index
    %873 = vector.load %arg10[%c7_223, %c0_224, %c0_225] : memref<10x18x256xf32, #tpu.memory_space<vmem>>, vector<1x18x256xf32>
    %874 = vector.shape_cast %873 : vector<1x18x256xf32> to vector<18x256xf32>
    %875 = vector.extract_strided_slice %874 {offsets = [0, 0], sizes = [16, 256], strides = [1, 1]} : vector<18x256xf32> to vector<16x256xf32>
    %876 = vector.extract_strided_slice %65 {offsets = [0, 0], sizes = [1, 256], strides = [1, 1]} : vector<9x256xf32> to vector<1x256xf32>
    %877 = vector.shape_cast %876 : vector<1x256xf32> to vector<256xf32>
    %878 = vector.shape_cast %877 : vector<256xf32> to vector<1x256xf32>
    %879 = vector.broadcast %878 : vector<1x256xf32> to vector<16x256xf32>
    %880 = arith.mulf %875, %879 : vector<16x256xf32>
    %881 = arith.addf %872, %880 : vector<16x256xf32>
    %882 = vector.extract_strided_slice %874 {offsets = [1, 0], sizes = [16, 256], strides = [1, 1]} : vector<18x256xf32> to vector<16x256xf32>
    %883 = vector.extract_strided_slice %65 {offsets = [1, 0], sizes = [1, 256], strides = [1, 1]} : vector<9x256xf32> to vector<1x256xf32>
    %884 = vector.shape_cast %883 : vector<1x256xf32> to vector<256xf32>
    %885 = vector.shape_cast %884 : vector<256xf32> to vector<1x256xf32>
    %886 = vector.broadcast %885 : vector<1x256xf32> to vector<16x256xf32>
    %887 = arith.mulf %882, %886 : vector<16x256xf32>
    %888 = arith.addf %881, %887 : vector<16x256xf32>
    %889 = vector.extract_strided_slice %874 {offsets = [2, 0], sizes = [16, 256], strides = [1, 1]} : vector<18x256xf32> to vector<16x256xf32>
    %890 = vector.extract_strided_slice %65 {offsets = [2, 0], sizes = [1, 256], strides = [1, 1]} : vector<9x256xf32> to vector<1x256xf32>
    %891 = vector.shape_cast %890 : vector<1x256xf32> to vector<256xf32>
    %892 = vector.shape_cast %891 : vector<256xf32> to vector<1x256xf32>
    %893 = vector.broadcast %892 : vector<1x256xf32> to vector<16x256xf32>
    %894 = arith.mulf %889, %893 : vector<16x256xf32>
    %895 = arith.addf %888, %894 : vector<16x256xf32>
    %c8_226 = arith.constant 8 : index
    %c0_227 = arith.constant 0 : index
    %c0_228 = arith.constant 0 : index
    %896 = vector.load %arg10[%c8_226, %c0_227, %c0_228] : memref<10x18x256xf32, #tpu.memory_space<vmem>>, vector<1x18x256xf32>
    %897 = vector.shape_cast %896 : vector<1x18x256xf32> to vector<18x256xf32>
    %898 = vector.extract_strided_slice %897 {offsets = [0, 0], sizes = [16, 256], strides = [1, 1]} : vector<18x256xf32> to vector<16x256xf32>
    %899 = vector.extract_strided_slice %65 {offsets = [3, 0], sizes = [1, 256], strides = [1, 1]} : vector<9x256xf32> to vector<1x256xf32>
    %900 = vector.shape_cast %899 : vector<1x256xf32> to vector<256xf32>
    %901 = vector.shape_cast %900 : vector<256xf32> to vector<1x256xf32>
    %902 = vector.broadcast %901 : vector<1x256xf32> to vector<16x256xf32>
    %903 = arith.mulf %898, %902 : vector<16x256xf32>
    %904 = arith.addf %895, %903 : vector<16x256xf32>
    %905 = vector.extract_strided_slice %897 {offsets = [1, 0], sizes = [16, 256], strides = [1, 1]} : vector<18x256xf32> to vector<16x256xf32>
    %906 = vector.extract_strided_slice %65 {offsets = [4, 0], sizes = [1, 256], strides = [1, 1]} : vector<9x256xf32> to vector<1x256xf32>
    %907 = vector.shape_cast %906 : vector<1x256xf32> to vector<256xf32>
    %908 = vector.shape_cast %907 : vector<256xf32> to vector<1x256xf32>
    %909 = vector.broadcast %908 : vector<1x256xf32> to vector<16x256xf32>
    %910 = arith.mulf %905, %909 : vector<16x256xf32>
    %911 = arith.addf %904, %910 : vector<16x256xf32>
    %912 = vector.extract_strided_slice %897 {offsets = [2, 0], sizes = [16, 256], strides = [1, 1]} : vector<18x256xf32> to vector<16x256xf32>
    %913 = vector.extract_strided_slice %65 {offsets = [5, 0], sizes = [1, 256], strides = [1, 1]} : vector<9x256xf32> to vector<1x256xf32>
    %914 = vector.shape_cast %913 : vector<1x256xf32> to vector<256xf32>
    %915 = vector.shape_cast %914 : vector<256xf32> to vector<1x256xf32>
    %916 = vector.broadcast %915 : vector<1x256xf32> to vector<16x256xf32>
    %917 = arith.mulf %912, %916 : vector<16x256xf32>
    %918 = arith.addf %911, %917 : vector<16x256xf32>
    %c9_229 = arith.constant 9 : index
    %c0_230 = arith.constant 0 : index
    %c0_231 = arith.constant 0 : index
    %919 = vector.load %arg10[%c9_229, %c0_230, %c0_231] : memref<10x18x256xf32, #tpu.memory_space<vmem>>, vector<1x18x256xf32>
    %920 = vector.shape_cast %919 : vector<1x18x256xf32> to vector<18x256xf32>
    %921 = vector.extract_strided_slice %920 {offsets = [0, 0], sizes = [16, 256], strides = [1, 1]} : vector<18x256xf32> to vector<16x256xf32>
    %922 = vector.extract_strided_slice %65 {offsets = [6, 0], sizes = [1, 256], strides = [1, 1]} : vector<9x256xf32> to vector<1x256xf32>
    %923 = vector.shape_cast %922 : vector<1x256xf32> to vector<256xf32>
    %924 = vector.shape_cast %923 : vector<256xf32> to vector<1x256xf32>
    %925 = vector.broadcast %924 : vector<1x256xf32> to vector<16x256xf32>
    %926 = arith.mulf %921, %925 : vector<16x256xf32>
    %927 = arith.addf %918, %926 : vector<16x256xf32>
    %928 = vector.extract_strided_slice %920 {offsets = [1, 0], sizes = [16, 256], strides = [1, 1]} : vector<18x256xf32> to vector<16x256xf32>
    %929 = vector.extract_strided_slice %65 {offsets = [7, 0], sizes = [1, 256], strides = [1, 1]} : vector<9x256xf32> to vector<1x256xf32>
    %930 = vector.shape_cast %929 : vector<1x256xf32> to vector<256xf32>
    %931 = vector.shape_cast %930 : vector<256xf32> to vector<1x256xf32>
    %932 = vector.broadcast %931 : vector<1x256xf32> to vector<16x256xf32>
    %933 = arith.mulf %928, %932 : vector<16x256xf32>
    %934 = arith.addf %927, %933 : vector<16x256xf32>
    %935 = vector.extract_strided_slice %920 {offsets = [2, 0], sizes = [16, 256], strides = [1, 1]} : vector<18x256xf32> to vector<16x256xf32>
    %936 = vector.extract_strided_slice %65 {offsets = [8, 0], sizes = [1, 256], strides = [1, 1]} : vector<9x256xf32> to vector<1x256xf32>
    %937 = vector.shape_cast %936 : vector<1x256xf32> to vector<256xf32>
    %938 = vector.shape_cast %937 : vector<256xf32> to vector<1x256xf32>
    %939 = vector.broadcast %938 : vector<1x256xf32> to vector<16x256xf32>
    %940 = arith.mulf %935, %939 : vector<16x256xf32>
    %941 = arith.addf %934, %940 : vector<16x256xf32>
    %942 = vector.broadcast %66 : vector<1x256xf32> to vector<16x256xf32>
    %943 = arith.addf %941, %942 : vector<16x256xf32>
    %cst_232 = arith.constant 5.000000e-01 : f32
    %944 = vector.broadcast %cst_232 : f32 to vector<16x256xf32>
    %945 = arith.mulf %944, %943 : vector<16x256xf32>
    %cst_233 = arith.constant 0.707106769 : f32
    %946 = vector.broadcast %cst_233 : f32 to vector<16x256xf32>
    %947 = arith.mulf %943, %946 : vector<16x256xf32>
    %948 = math.absf %947 : vector<16x256xf32>
    %cst_234 = arith.constant 0.327591091 : f32
    %949 = vector.broadcast %cst_234 : f32 to vector<16x256xf32>
    %950 = arith.mulf %949, %948 : vector<16x256xf32>
    %cst_235 = arith.constant 1.000000e+00 : f32
    %951 = vector.broadcast %cst_235 : f32 to vector<16x256xf32>
    %952 = arith.addf %951, %950 : vector<16x256xf32>
    %953 = tpu.reciprocal %952 {approx = true} : vector<16x256xf32> -> vector<16x256xf32>
    %cst_236 = arith.constant 1.06140542 : f32
    %954 = vector.broadcast %cst_236 : f32 to vector<16x256xf32>
    %955 = arith.mulf %953, %954 : vector<16x256xf32>
    %cst_237 = arith.constant -1.45315206 : f32
    %956 = vector.broadcast %cst_237 : f32 to vector<16x256xf32>
    %957 = arith.addf %956, %955 : vector<16x256xf32>
    %958 = arith.mulf %953, %957 : vector<16x256xf32>
    %cst_238 = arith.constant 1.42141378 : f32
    %959 = vector.broadcast %cst_238 : f32 to vector<16x256xf32>
    %960 = arith.addf %959, %958 : vector<16x256xf32>
    %961 = arith.mulf %953, %960 : vector<16x256xf32>
    %cst_239 = arith.constant -0.284496725 : f32
    %962 = vector.broadcast %cst_239 : f32 to vector<16x256xf32>
    %963 = arith.addf %962, %961 : vector<16x256xf32>
    %964 = arith.mulf %953, %963 : vector<16x256xf32>
    %cst_240 = arith.constant 0.254829586 : f32
    %965 = vector.broadcast %cst_240 : f32 to vector<16x256xf32>
    %966 = arith.addf %965, %964 : vector<16x256xf32>
    %967 = arith.mulf %953, %966 : vector<16x256xf32>
    %cst_241 = arith.constant 0.000000e+00 : f32
    %968 = vector.broadcast %cst_241 : f32 to vector<16x256xf32>
    %969 = arith.subf %968, %948 : vector<16x256xf32>
    %970 = arith.mulf %969, %948 : vector<16x256xf32>
    %971 = math.exp %970 : vector<16x256xf32>
    %972 = arith.mulf %967, %971 : vector<16x256xf32>
    %cst_242 = arith.constant 1.000000e+00 : f32
    %973 = vector.broadcast %cst_242 : f32 to vector<16x256xf32>
    %974 = arith.subf %973, %972 : vector<16x256xf32>
    %cst_243 = arith.constant 0.000000e+00 : f32
    %975 = vector.broadcast %cst_243 : f32 to vector<16x256xf32>
    %976 = arith.cmpf oge, %947, %975 : vector<16x256xf32>
    %cst_244 = arith.constant 0.000000e+00 : f32
    %977 = vector.broadcast %cst_244 : f32 to vector<16x256xf32>
    %978 = arith.subf %977, %974 : vector<16x256xf32>
    %979 = arith.select %976, %974, %978 : vector<16x256xi1>, vector<16x256xf32>
    %cst_245 = arith.constant 1.000000e+00 : f32
    %980 = vector.broadcast %cst_245 : f32 to vector<16x256xf32>
    %981 = arith.addf %980, %979 : vector<16x256xf32>
    %982 = arith.mulf %945, %981 : vector<16x256xf32>
    %983 = arith.truncf %982 : vector<16x256xf32> to vector<16x256xbf16>
    %c7_246 = arith.constant 7 : index
    %c0_247 = arith.constant 0 : index
    %c0_248 = arith.constant 0 : index
    %984 = vector.load %arg11[%c7_246, %c0_247, %c0_248] : memref<8x16x256xbf16, #tpu.memory_space<vmem>>, vector<1x16x256xbf16>
    %985 = vector.shape_cast %984 : vector<1x16x256xbf16> to vector<16x256xbf16>
    %986 = vector.shape_cast %983 : vector<16x256xbf16> to vector<1x16x256xbf16>
    tpu.vector_store %arg11[%c7_246, %c0_247, %c0_248], %986 {strides = array<i32>} : memref<8x16x256xbf16, #tpu.memory_space<vmem>>, vector<1x16x256xbf16>,
    %c0_249 = arith.constant 0 : index
    %c0_250 = arith.constant 0 : index
    %c0_251 = arith.constant 0 : index
    %987 = vector.load %arg11[%c0_249, %c0_250, %c0_251] : memref<8x16x256xbf16, #tpu.memory_space<vmem>>, vector<8x16x256xbf16>
    %988 = vector.shape_cast %987 : vector<8x16x256xbf16> to vector<128x256xbf16>
    %c0_252 = arith.constant 0 : index
    %c0_253 = arith.constant 0 : index
    %989 = vector.load %arg7[%c0_252, %c0_253] : memref<256x128xbf16, #tpu.memory_space<vmem>>, vector<256x128xbf16>
    %cst_254 = arith.constant dense<0.000000e+00> : vector<128x128xf32>
    %990 = tpu.matmul %988, %989, %cst_254 {dimension_numbers = #tpu.dot_dimension_numbers<[1], [0], [0], [1], [0, 0, 1, 1], [], []>} : vector<128x256xbf16>, vector<256x128xbf16>, vector<128x128xf32> -> vector<128x128xf32>
    %c0_255 = arith.constant 0 : index
    %c0_256 = arith.constant 0 : index
    %991 = vector.load %arg8[%c0_255, %c0_256] : memref<1x128xf32, #tpu.memory_space<vmem>>, vector<1x128xf32>
    %992 = vector.broadcast %991 : vector<1x128xf32> to vector<128x128xf32>
    %993 = arith.addf %990, %992 : vector<128x128xf32>
    %994 = vector.shape_cast %993 : vector<128x128xf32> to vector<8x16x128xf32>
    %c0_257 = arith.constant 0 : index
    %c0_258 = arith.constant 0 : index
    %c0_259 = arith.constant 0 : index
    %c0_260 = arith.constant 0 : index
    %995 = vector.load %arg9[%c0_257, %c0_258, %c0_259, %c0_260] : memref<1x8x16x128xf32, #tpu.memory_space<vmem>>, vector<1x8x16x128xf32>
    %996 = vector.shape_cast %995 : vector<1x8x16x128xf32> to vector<8x16x128xf32>
    %997 = vector.shape_cast %994 : vector<8x16x128xf32> to vector<1x8x16x128xf32>
    tpu.vector_store %arg9[%c0_257, %c0_258, %c0_259, %c0_260], %997 {strides = array<i32>} : memref<1x8x16x128xf32, #tpu.memory_space<vmem>>, vector<1x8x16x128xf32>,
    return
  }
  func.func @transform_0(%arg0: i32, %arg1: i32) -> (i32, i32, i32, i32) {
    %c0_i32 = arith.constant 0 : i32
    %c0_i32_0 = arith.constant 0 : i32
    %c0_i32_1 = arith.constant 0 : i32
    %c0_i32_2 = arith.constant 0 : i32
    return %arg0, %c0_i32, %c0_i32_0, %c0_i32_1 : i32, i32, i32, i32
  }
  func.func @transform_1(%arg0: i32, %arg1: i32) -> (i32, i32) {
    %c0_i32 = arith.constant 0 : i32
    %c0_i32_0 = arith.constant 0 : i32
    %c0_i32_1 = arith.constant 0 : i32
    return %c0_i32, %c0_i32_0 : i32, i32
  }
  func.func @transform_2(%arg0: i32, %arg1: i32) -> (i32, i32) {
    %c0_i32 = arith.constant 0 : i32
    %c0_i32_0 = arith.constant 0 : i32
    %c0_i32_1 = arith.constant 0 : i32
    return %c0_i32, %c0_i32_0 : i32, i32
  }
  func.func @transform_3(%arg0: i32, %arg1: i32) -> (i32, i32) {
    %c0_i32 = arith.constant 0 : i32
    %c0_i32_0 = arith.constant 0 : i32
    %c0_i32_1 = arith.constant 0 : i32
    return %c0_i32, %c0_i32_0 : i32, i32
  }
  func.func @transform_4(%arg0: i32, %arg1: i32) -> (i32, i32) {
    %c0_i32 = arith.constant 0 : i32
    %c0_i32_0 = arith.constant 0 : i32
    %c0_i32_1 = arith.constant 0 : i32
    return %c0_i32, %c0_i32_0 : i32, i32
  }
  func.func @transform_5(%arg0: i32, %arg1: i32) -> (i32, i32) {
    %c0_i32 = arith.constant 0 : i32
    %c0_i32_0 = arith.constant 0 : i32
    %c0_i32_1 = arith.constant 0 : i32
    return %c0_i32, %c0_i32_0 : i32, i32
  }
  func.func @transform_6(%arg0: i32, %arg1: i32) -> (i32, i32) {
    %c0_i32 = arith.constant 0 : i32
    %c0_i32_0 = arith.constant 0 : i32
    %c0_i32_1 = arith.constant 0 : i32
    return %c0_i32, %c0_i32_0 : i32, i32
  }
  func.func @transform_7(%arg0: i32, %arg1: i32) -> (i32, i32, i32, i32) {
    %c0_i32 = arith.constant 0 : i32
    %c0_i32_0 = arith.constant 0 : i32
    %c0_i32_1 = arith.constant 0 : i32
    return %arg0, %arg1, %c0_i32, %c0_i32_0 : i32, i32, i32, i32
  }
}

</mosaic_0001>

<llo_original>
// kernel: conv_ffn_forward.1
$region0: #{conv_ffn_forward.1}
  #allocation0 [shape = 'u32[]', space=smem, size = 0x4, offset = 0x4, fixed_abs, tag = 'smem constant byte address 0x4 - core index']
  #allocation1 [shape = 'u32[144,128]{1,0:T(1,128)}', space=vmem, size = 0x12000, scoped, tag = 'internal scratch']
  #allocation2 [shape = 'f32[10,18,256]{2,1,0:T(8,128)}', space=vmem, size = 0x3c000, scoped, tag = 'scratch operand']
  #allocation3 [shape = 'bf16[8,16,256]{2,1,0:T(8,128)(2,1)}', space=vmem, size = 0x10000, scoped, tag = 'scratch operand']
  %s0 = inlined_call_operand.vmem [shape: f32[2,16,16,128], index: 0, kind: input, shape index: {}]
  %s1 = inlined_call_operand.vmem [shape: bf16[128,256], index: 1, kind: input, shape index: {}]
  %s2 = inlined_call_operand.vmem [shape: f32[1,256], index: 2, kind: input, shape index: {}]
  %s3 = inlined_call_operand.vmem [shape: f32[9,256], index: 3, kind: input, shape index: {}]
  %s4 = inlined_call_operand.vmem [shape: f32[1,256], index: 4, kind: input, shape index: {}]
  %s5 = inlined_call_operand.vmem [shape: bf16[256,128], index: 5, kind: input, shape index: {}]
  %s6 = inlined_call_operand.vmem [shape: f32[1,128], index: 6, kind: input, shape index: {}]
  %s7 = inlined_call_operand.hbm [shape: f32[2,16,16,128], index: 7, kind: output, shape index: {}]
  %s8 = sld [smem:[#allocation0]]
  $region69: #{conv_ffn_forward.1} parent=0
    _
  %s10 = ssub.s32 1, %s8
  %s11 = scalar_select 0, %s10, %s8
  $region1: #{conv_ffn_forward.1} parent=0
    #allocation4 [shape = 'u8[131072]{0}', space=vmem, size = 0x20000, scoped, tag = 'output window, operand 0']
    #allocation5 [shape = 's32[2]{0}', space=sflag, size = 0x8, scoped, tag = 'scoped memory for conv_ffn_forward.1']
    %12 = vsyncpa [#allocation5], 0
    %s13 = scalar_lea.sflag [#allocation5], 1
    %14 = vsyncpa %s13, 0
    loop: start=0, step=1, limit=6
    $region2: #{conv_ffn_forward.1} parent=1 // loop_pre_header
      _
    $region3: #{conv_ffn_forward.1} parent=1 // loop_header
      %s16 = sphi 0, %s20
      %p17 = scmp.ge.s32.totalorder %s16, 6
      %s23 = sphi 0, %s35
      %s24 = sphi 0, %s31
      %s25 = sphi 0, %s23
      %s26 = sphi 0, %s24
      %s27 = sphi 0, %s25
      %s28 = sphi 0, %s26
      %s38 = sphi 0, %s40
      %s41 = sphi 0, %s38
      %s42 = sphi 0, %s41
      %s58 = sphi 0, %s42
      %s62 = sphi 0, %s62
      %s64 = sphi 0, %s62
      %s65 = sphi 0, %s64
      %s79 = sphi 0, %s65
      %s83 = sphi 0, %s83
      %s85 = sphi 0, %s83
      %s86 = sphi 0, %s85
      %s100 = sphi 0, %s86
      %s104 = sphi 0, %s104
      %s106 = sphi 0, %s104
      %s107 = sphi 0, %s106
      %s121 = sphi 0, %s107
      %s125 = sphi 0, %s125
      %s127 = sphi 0, %s125
      %s128 = sphi 0, %s127
      %s142 = sphi 0, %s128
      %s146 = sphi 0, %s146
      %s148 = sphi 0, %s146
      %s149 = sphi 0, %s148
      %s163 = sphi 0, %s149
      %s167 = sphi 0, %s167
      %s169 = sphi 0, %s167
      %s170 = sphi 0, %s169
      %s184 = sphi 0, %s170
      %s192 = sphi 0, %s194
      %s195 = sphi 0, %s192
      %s196 = sphi 0, %s195
      %s212 = sphi 0, %s196
    $region4: #{conv_ffn_forward.1} parent=1 // loop_header_branch
      %19 = sbr.rel (%p17) target = $region8
    $region5: #{conv_ffn_forward.1} parent=1 // loop_body
      %s21 = ssub.s32 %s16, 1
      %s22 = ssub.s32 %s16, 2
      %s29 = sadd.s32 1, %s24
      %p30 = scmp.ge.s32.totalorder %s29, 2
      %s31 = scalar_select %p30, 0, %s29
      %s32 = sadd.s32 1, %s23
      %s33 = scalar_select %p30, %s32, %s23
      %p34 = scmp.ge.s32.totalorder %s33, 2
      %s35 = scalar_select %p34, 0, %s33
      %s36 = ssub.s32 %s23, %s35
      %p37 = scmp.eq.s32.totalorder %s36, 0
      %s39 = sadd.s32 %s38, 1
      %s40 = scalar_select %p37, %s38, %s39
      %p43 = pneg %p37
      %p44 = scmp.eq.s32.totalorder %s16, 3
      %p45 = por %p43, %p44
      %p46 = scmp.ne.s32.totalorder %s38, %s41
      %p47 = scmp.eq.s32.totalorder %s16, 0
      %p48 = por %p46, %p47
      %p49 = scmp.ne.s32.totalorder %s38, %s41
      %p50 = scmp.eq.s32.totalorder %s21, 3
      %p51 = por %p49, %p50
      %p52 = scmp.ne.s32.totalorder %s41, %s42
      %p53 = scmp.eq.s32.totalorder %s21, 0
      %p54 = por %p52, %p53
      %p55 = scmp.ne.s32.totalorder %s41, %s42
      %p56 = scmp.eq.s32.totalorder %s22, 3
      %p57 = por %p55, %p56
      %p59 = scmp.ne.s32.totalorder %s42, %s58
      %p60 = scmp.eq.s32.totalorder %s22, 0
      %p61 = por %p59, %p60
      %s63 = sadd.s32 %s62, 1
      %p66 = scmp.eq.s32.totalorder %s16, 3
      %p67 = scmp.ne.s32.totalorder %s62, %s64
      %p68 = scmp.eq.s32.totalorder %s16, 0
      %p69 = por %p67, %p68
      %p70 = scmp.ne.s32.totalorder %s62, %s64
      %p71 = scmp.eq.s32.totalorder %s21, 3
      %p72 = por %p70, %p71
      %p73 = scmp.ne.s32.totalorder %s64, %s65
      %p74 = scmp.eq.s32.totalorder %s21, 0
      %p75 = por %p73, %p74
      %p76 = scmp.ne.s32.totalorder %s64, %s65
      %p77 = scmp.eq.s32.totalorder %s22, 3
      %p78 = por %p76, %p77
      %p80 = scmp.ne.s32.totalorder %s65, %s79
      %p81 = scmp.eq.s32.totalorder %s22, 0
      %p82 = por %p80, %p81
      %s84 = sadd.s32 %s83, 1
      %p87 = scmp.eq.s32.totalorder %s16, 3
      %p88 = scmp.ne.s32.totalorder %s83, %s85
      %p89 = scmp.eq.s32.totalorder %s16, 0
      %p90 = por %p88, %p89
      %p91 = scmp.ne.s32.totalorder %s83, %s85
      %p92 = scmp.eq.s32.totalorder %s21, 3
      %p93 = por %p91, %p92
      %p94 = scmp.ne.s32.totalorder %s85, %s86
      %p95 = scmp.eq.s32.totalorder %s21, 0
      %p96 = por %p94, %p95
      %p97 = scmp.ne.s32.totalorder %s85, %s86
      %p98 = scmp.eq.s32.totalorder %s22, 3
      %p99 = por %p97, %p98
      %p101 = scmp.ne.s32.totalorder %s86, %s100
      %p102 = scmp.eq.s32.totalorder %s22, 0
      %p103 = por %p101, %p102
      %s105 = sadd.s32 %s104, 1
      %p108 = scmp.eq.s32.totalorder %s16, 3
      %p109 = scmp.ne.s32.totalorder %s104, %s106
      %p110 = scmp.eq.s32.totalorder %s16, 0
      %p111 = por %p109, %p110
      %p112 = scmp.ne.s32.totalorder %s104, %s106
      %p113 = scmp.eq.s32.totalorder %s21, 3
      %p114 = por %p112, %p113
      %p115 = scmp.ne.s32.totalorder %s106, %s107
      %p116 = scmp.eq.s32.totalorder %s21, 0
      %p117 = por %p115, %p116
      %p118 = scmp.ne.s32.totalorder %s106, %s107
      %p119 = scmp.eq.s32.totalorder %s22, 3
      %p120 = por %p118, %p119
      %p122 = scmp.ne.s32.totalorder %s107, %s121
      %p123 = scmp.eq.s32.totalorder %s22, 0
      %p124 = por %p122, %p123
      %s126 = sadd.s32 %s125, 1
      %p129 = scmp.eq.s32.totalorder %s16, 3
      %p130 = scmp.ne.s32.totalorder %s125, %s127
      %p131 = scmp.eq.s32.totalorder %s16, 0
      %p132 = por %p130, %p131
      %p133 = scmp.ne.s32.totalorder %s125, %s127
      %p134 = scmp.eq.s32.totalorder %s21, 3
      %p135 = por %p133, %p134
      %p136 = scmp.ne.s32.totalorder %s127, %s128
      %p137 = scmp.eq.s32.totalorder %s21, 0
      %p138 = por %p136, %p137
      %p139 = scmp.ne.s32.totalorder %s127, %s128
      %p140 = scmp.eq.s32.totalorder %s22, 3
      %p141 = por %p139, %p140
      %p143 = scmp.ne.s32.totalorder %s128, %s142
      %p144 = scmp.eq.s32.totalorder %s22, 0
      %p145 = por %p143, %p144
      %s147 = sadd.s32 %s146, 1
      %p150 = scmp.eq.s32.totalorder %s16, 3
      %p151 = scmp.ne.s32.totalorder %s146, %s148
      %p152 = scmp.eq.s32.totalorder %s16, 0
      %p153 = por %p151, %p152
      %p154 = scmp.ne.s32.totalorder %s146, %s148
      %p155 = scmp.eq.s32.totalorder %s21, 3
      %p156 = por %p154, %p155
      %p157 = scmp.ne.s32.totalorder %s148, %s149
      %p158 = scmp.eq.s32.totalorder %s21, 0
      %p159 = por %p157, %p158
      %p160 = scmp.ne.s32.totalorder %s148, %s149
      %p161 = scmp.eq.s32.totalorder %s22, 3
      %p162 = por %p160, %p161
      %p164 = scmp.ne.s32.totalorder %s149, %s163
      %p165 = scmp.eq.s32.totalorder %s22, 0
      %p166 = por %p164, %p165
      %s168 = sadd.s32 %s167, 1
      %p171 = scmp.eq.s32.totalorder %s16, 3
      %p172 = scmp.ne.s32.totalorder %s167, %s169
      %p173 = scmp.eq.s32.totalorder %s16, 0
      %p174 = por %p172, %p173
      %p175 = scmp.ne.s32.totalorder %s167, %s169
      %p176 = scmp.eq.s32.totalorder %s21, 3
      %p177 = por %p175, %p176
      %p178 = scmp.ne.s32.totalorder %s169, %s170
      %p179 = scmp.eq.s32.totalorder %s21, 0
      %p180 = por %p178, %p179
      %p181 = scmp.ne.s32.totalorder %s169, %s170
      %p182 = scmp.eq.s32.totalorder %s22, 3
      %p183 = por %p181, %p182
      %p185 = scmp.ne.s32.totalorder %s170, %s184
      %p186 = scmp.eq.s32.totalorder %s22, 0
      %p187 = por %p185, %p186
      %s188 = ssub.s32 %s23, %s35
      %s189 = ssub.s32 %s24, %s31
      %s190 = sor.u32 %s188, %s189
      %p191 = scmp.eq.s32.totalorder %s190, 0
      %s193 = sadd.s32 %s192, 1
      %s194 = scalar_select %p191, %s192, %s193
      %p197 = pneg %p191
      %p198 = scmp.eq.s32.totalorder %s16, 3
      %p199 = por %p197, %p198
      %p200 = scmp.ne.s32.totalorder %s192, %s195
      %p201 = scmp.eq.s32.totalorder %s16, 0
      %p202 = por %p200, %p201
      %p203 = scmp.ne.s32.totalorder %s192, %s195
      %p204 = scmp.eq.s32.totalorder %s21, 3
      %p205 = por %p203, %p204
      %p206 = scmp.ne.s32.totalorder %s195, %s196
      %p207 = scmp.eq.s32.totalorder %s21, 0
      %p208 = por %p206, %p207
      %p209 = scmp.ne.s32.totalorder %s195, %s196
      %p210 = scmp.eq.s32.totalorder %s22, 3
      %p211 = por %p209, %p210
      %p213 = scmp.ne.s32.totalorder %s196, %s212
      %p214 = scmp.eq.s32.totalorder %s22, 0
      %p215 = por %p213, %p214
      %p216 = scmp.le.s32.totalorder 1, %s16
      %p217 = scmp.lt.s32.totalorder %s16, 5
      %p218 = pnand %p216, %p217
      %p219 = pneg %p218
      // Predicated region
      $region9: #{conv_ffn_forward.1} parent=5 // pred_check
        _
      $region10: #{conv_ffn_forward.1} parent=5 // pred_check_branch
        %221 = sbr.rel (%p218) target = $region12
      $region11: #{conv_ffn_forward.1} parent=5 // pred_region
        %s222 = ssub.s32 %s16, 1
        // Predicated region
        $region13: #{conv_ffn_forward.1} parent=11 // pred_check
          %p223 = pneg %p75
        $region14: #{conv_ffn_forward.1} parent=11 // pred_check_branch
          %225 = sbr.rel (%p223) target = $region16
        $region15: #{conv_ffn_forward.1} parent=11 // pred_region
          _
        $region16: #{conv_ffn_forward.1} parent=11 // pred_fallthru
          _
        // Predicated region
        $region17: #{conv_ffn_forward.1} parent=11 // pred_check
          %p226 = pneg %p96
        $region18: #{conv_ffn_forward.1} parent=11 // pred_check_branch
          %228 = sbr.rel (%p226) target = $region20
        $region19: #{conv_ffn_forward.1} parent=11 // pred_region
          _
        $region20: #{conv_ffn_forward.1} parent=11 // pred_fallthru
          _
        // Predicated region
        $region21: #{conv_ffn_forward.1} parent=11 // pred_check
          %p229 = pneg %p117
        $region22: #{conv_ffn_forward.1} parent=11 // pred_check_branch
          %231 = sbr.rel (%p229) target = $region24
        $region23: #{conv_ffn_forward.1} parent=11 // pred_region
          _
        $region24: #{conv_ffn_forward.1} parent=11 // pred_fallthru
          _
        // Predicated region
        $region25: #{conv_ffn_forward.1} parent=11 // pred_check
          %p232 = pneg %p138
        $region26: #{conv_ffn_forward.1} parent=11 // pred_check_branch
          %234 = sbr.rel (%p232) target = $region28
        $region27: #{conv_ffn_forward.1} parent=11 // pred_region
          _
        $region28: #{conv_ffn_forward.1} parent=11 // pred_fallthru
          _
        // Predicated region
        $region29: #{conv_ffn_forward.1} parent=11 // pred_check
          %p235 = pneg %p159
        $region30: #{conv_ffn_forward.1} parent=11 // pred_check_branch
          %237 = sbr.rel (%p235) target = $region32
        $region31: #{conv_ffn_forward.1} parent=11 // pred_region
          _
        $region32: #{conv_ffn_forward.1} parent=11 // pred_fallthru
          _
        // Predicated region
        $region33: #{conv_ffn_forward.1} parent=11 // pred_check
          %p238 = pneg %p180
        $region34: #{conv_ffn_forward.1} parent=11 // pred_check_branch
          %240 = sbr.rel (%p238) target = $region36
        $region35: #{conv_ffn_forward.1} parent=11 // pred_region
          _
        $region36: #{conv_ffn_forward.1} parent=11 // pred_fallthru
          _
      $region12: #{conv_ffn_forward.1} parent=5 // pred_fallthru
        _
      %p241 = scmp.lt.s32.totalorder %s16, 4
      // Predicated region
      $region37: #{conv_ffn_forward.1} parent=5 // pred_check
        %p242 = pneg %p241
      $region38: #{conv_ffn_forward.1} parent=5 // pred_check_branch
        %244 = sbr.rel (%p242) target = $region40
      $region39: #{conv_ffn_forward.1} parent=5 // pred_region
        // Predicated region
        $region41: #{conv_ffn_forward.1} parent=39 // pred_check
          %p245 = pneg %p48
        $region42: #{conv_ffn_forward.1} parent=39 // pred_check_branch
          %247 = sbr.rel (%p245) target = $region44
        $region43: #{conv_ffn_forward.1} parent=39 // pred_region
          %p248 = scmp.lt.s32.totalorder %s23, 1
          %s249 = scalar_select %p248, %s23, 1
          %s250 = smul.addr %s249, 32
          %s251 = smul.addr %s250, 8
          %s252 = scalar_lea.vmem %s0, %s251
        $region44: #{conv_ffn_forward.1} parent=39 // pred_fallthru
          _
      $region40: #{conv_ffn_forward.1} parent=5 // pred_fallthru
        _
      %p253 = scmp.le.s32.totalorder 1, %s16
      %p254 = scmp.lt.s32.totalorder %s16, 5
      %p255 = pnand %p253, %p254
      %p256 = pneg %p255
      // Predicated region
      $region45: #{conv_ffn_forward.1} parent=5 // pred_check
        _
      $region46: #{conv_ffn_forward.1} parent=5 // pred_check_branch
        %258 = sbr.rel (%p255) target = $region48
      $region47: #{conv_ffn_forward.1} parent=5 // pred_region
        %s259 = ssub.s32 %s16, 1
        %p260 = scmp.lt.s32.totalorder %s25, 1
        %s261 = scalar_select %p260, %s25, 1
        %s262 = smul.addr %s261, 32
        %s263 = smul.addr %s262, 8
        %s264 = scalar_lea.vmem %s0, %s263
        %p265 = pneg %p54
        %p266 = pneg %p51
        %p267 = pneg %p75
        %p268 = pneg %p72
        %p269 = pneg %p96
        %p270 = pneg %p93
        %p271 = pneg %p117
        %p272 = pneg %p114
        %p273 = pneg %p138
        %p274 = pneg %p135
        %p275 = pneg %p159
        %p276 = pneg %p156
        %p277 = pneg %p180
        %p278 = pneg %p177
        %p279 = pneg %p208
        %p280 = pneg %p205
        %s281 = sand.u32 %s195, 1
        %s282 = scalar_lea.sflag [#allocation5], %s281
        %s283 = sand.u32 %s195, 1
        %s284 = smul.addr %s283, 128
        %s285 = scalar_lea.vmem [#allocation4], %s284
        %p286 = scmp.lt.s32.totalorder %s25, 1
        %s287 = scalar_select %p286, %s25, 1
        %s288 = smul.addr %s287, 32
        %s289 = smul.addr %s288, 8
        %s290 = scalar_lea.vmem %s0, %s289
        %s291 = smul.u32 8, %s26
        %s293 = smul.u32 %s26, 8
        %294 = vst [vmem:[#allocation2] sm:$0xff] 0.0
        %295 = vst [vmem:[#allocation2 + $0x8] sm:$0xff] 0.0
        %296 = vst [vmem:[#allocation2 + $0x10] sm:$0xff] 0.0
        %297 = vst [vmem:[#allocation2 + $0x18] sm:$0xff] 0.0
        %298 = vst [vmem:[#allocation2 + $0x20] sm:$0x3] 0.0
        %299 = vst [vmem:[#allocation2 + $0x28] sm:$0x3] 0.0
        %s300 = scalar_lea.vmem [#allocation2], 432
        %301 = vst [vmem:[%s300] sm:$0xff] 0.0
        %302 = vst [vmem:[%s300 + $0x8] sm:$0xff] 0.0
        %303 = vst [vmem:[%s300 + $0x10] sm:$0xff] 0.0
        %304 = vst [vmem:[%s300 + $0x18] sm:$0xff] 0.0
        %305 = vst [vmem:[%s300 + $0x20] sm:$0x3] 0.0
        %306 = vst [vmem:[%s300 + $0x28] sm:$0x3] 0.0
        %v307 = vlaneseq
        %vm308 = vcmp.ge.s32.totalorder %v307, 0
        %vm309 = vcmp.lt.s32.totalorder %v307, 256
        %vm310 = vmand %vm308, %vm309
        %311 = vst.msk [vmem:[#allocation2] ss:$8 sm:$0x3] %vm310, 0.0
        %312 = vst.msk [vmem:[#allocation2] ss:$8 sm:$0x0] %vm310, 0.0
        %s313 = scalar_lea.vmem [#allocation2], 48
        %314 = vst.msk [vmem:[%s313] ss:$8 sm:$0x3] %vm310, 0.0
        %315 = vst.msk [vmem:[%s313] ss:$8 sm:$0x0] %vm310, 0.0
        %s316 = scalar_lea.vmem [#allocation2], 96
        %317 = vst.msk [vmem:[%s316] ss:$8 sm:$0x3] %vm310, 0.0
        %318 = vst.msk [vmem:[%s316] ss:$8 sm:$0x0] %vm310, 0.0
        %s319 = scalar_lea.vmem [#allocation2], 144
        %320 = vst.msk [vmem:[%s319] ss:$8 sm:$0x3] %vm310, 0.0
        %321 = vst.msk [vmem:[%s319] ss:$8 sm:$0x0] %vm310, 0.0
        %s322 = scalar_lea.vmem [#allocation2], 192
        %323 = vst.msk [vmem:[%s322] ss:$8 sm:$0x3] %vm310, 0.0
        %324 = vst.msk [vmem:[%s322] ss:$8 sm:$0x0] %vm310, 0.0
        %s325 = scalar_lea.vmem [#allocation2], 240
        %326 = vst.msk [vmem:[%s325] ss:$8 sm:$0x3] %vm310, 0.0
        %327 = vst.msk [vmem:[%s325] ss:$8 sm:$0x0] %vm310, 0.0
        %s328 = scalar_lea.vmem [#allocation2], 288
        %329 = vst.msk [vmem:[%s328] ss:$8 sm:$0x3] %vm310, 0.0
        %330 = vst.msk [vmem:[%s328] ss:$8 sm:$0x0] %vm310, 0.0
        %s331 = scalar_lea.vmem [#allocation2], 336
        %332 = vst.msk [vmem:[%s331] ss:$8 sm:$0x3] %vm310, 0.0
        %333 = vst.msk [vmem:[%s331] ss:$8 sm:$0x0] %vm310, 0.0
        %s334 = scalar_lea.vmem [#allocation2], 384
        %335 = vst.msk [vmem:[%s334] ss:$8 sm:$0x3] %vm310, 0.0
        %336 = vst.msk [vmem:[%s334] ss:$8 sm:$0x0] %vm310, 0.0
        %s337 = scalar_lea.vmem [#allocation2], 432
        %338 = vst.msk [vmem:[%s337] ss:$8 sm:$0x3] %vm310, 0.0
        %339 = vst.msk [vmem:[%s337] ss:$8 sm:$0x0] %vm310, 0.0
        %s340 = scalar_lea.vmem [#allocation2], 33
        %341 = vst.msk [vmem:[%s340] ss:$8 sm:$0x3] %vm310, 0.0
        %342 = vst.msk [vmem:[%s340] ss:$8 sm:$0x0] %vm310, 0.0
        %s343 = scalar_lea.vmem [#allocation2], 81
        %344 = vst.msk [vmem:[%s343] ss:$8 sm:$0x3] %vm310, 0.0
        %345 = vst.msk [vmem:[%s343] ss:$8 sm:$0x0] %vm310, 0.0
        %s346 = scalar_lea.vmem [#allocation2], 129
        %347 = vst.msk [vmem:[%s346] ss:$8 sm:$0x3] %vm310, 0.0
        %348 = vst.msk [vmem:[%s346] ss:$8 sm:$0x0] %vm310, 0.0
        %s349 = scalar_lea.vmem [#allocation2], 177
        %350 = vst.msk [vmem:[%s349] ss:$8 sm:$0x3] %vm310, 0.0
        %351 = vst.msk [vmem:[%s349] ss:$8 sm:$0x0] %vm310, 0.0
        %s352 = scalar_lea.vmem [#allocation2], 225
        %353 = vst.msk [vmem:[%s352] ss:$8 sm:$0x3] %vm310, 0.0
        %354 = vst.msk [vmem:[%s352] ss:$8 sm:$0x0] %vm310, 0.0
        %s355 = scalar_lea.vmem [#allocation2], 273
        %356 = vst.msk [vmem:[%s355] ss:$8 sm:$0x3] %vm310, 0.0
        %357 = vst.msk [vmem:[%s355] ss:$8 sm:$0x0] %vm310, 0.0
        %s358 = scalar_lea.vmem [#allocation2], 321
        %359 = vst.msk [vmem:[%s358] ss:$8 sm:$0x3] %vm310, 0.0
        %360 = vst.msk [vmem:[%s358] ss:$8 sm:$0x0] %vm310, 0.0
        %s361 = scalar_lea.vmem [#allocation2], 369
        %362 = vst.msk [vmem:[%s361] ss:$8 sm:$0x3] %vm310, 0.0
        %363 = vst.msk [vmem:[%s361] ss:$8 sm:$0x0] %vm310, 0.0
        %s364 = scalar_lea.vmem [#allocation2], 417
        %365 = vst.msk [vmem:[%s364] ss:$8 sm:$0x3] %vm310, 0.0
        %366 = vst.msk [vmem:[%s364] ss:$8 sm:$0x0] %vm310, 0.0
        %s367 = scalar_lea.vmem [#allocation2], 465
        %368 = vst.msk [vmem:[%s367] ss:$8 sm:$0x3] %vm310, 0.0
        %369 = vst.msk [vmem:[%s367] ss:$8 sm:$0x0] %vm310, 0.0
        %v370 = vld [vmem:[%s1] sm:$0xff]
        %v371 = vld [vmem:[%s1 + $0x8] sm:$0xff]
        %v372 = vld [vmem:[%s1 + $0x10] sm:$0xff]
        %v373 = vld [vmem:[%s1 + $0x18] sm:$0xff]
        %v374 = vld [vmem:[%s1 + $0x20] sm:$0xff]
        %v375 = vld [vmem:[%s1 + $0x28] sm:$0xff]
        %v376 = vld [vmem:[%s1 + $0x30] sm:$0xff]
        %v377 = vld [vmem:[%s1 + $0x38] sm:$0xff]
        %v378 = vld [vmem:[%s1 + $0x40] sm:$0xff]
        %v379 = vld [vmem:[%s1 + $0x48] sm:$0xff]
        %v380 = vld [vmem:[%s1 + $0x50] sm:$0xff]
        %v381 = vld [vmem:[%s1 + $0x58] sm:$0xff]
        %v382 = vld [vmem:[%s1 + $0x60] sm:$0xff]
        %v383 = vld [vmem:[%s1 + $0x68] sm:$0xff]
        %v384 = vld [vmem:[%s1 + $0x70] sm:$0xff]
        %v385 = vld [vmem:[%s1 + $0x78] sm:$0xff]
        %v386 = vld [vmem:[%s2] sm:$0x3]
        %s387 = smul.u32 %s293, 16
        %s388 = scalar_lea.vmem %s290, %s387
        %v389 = vld [vmem:[%s388] sm:$0xff]
        %v390 = vld [vmem:[%s388 + $0x8] sm:$0xff]
        %v391 = vld [vmem:[%s388 + $0x10] sm:$0xff]
        %v392 = vld [vmem:[%s388 + $0x18] sm:$0xff]
        %v393 = vld [vmem:[%s388 + $0x20] sm:$0xff]
        %v394 = vld [vmem:[%s388 + $0x28] sm:$0xff]
        %v395 = vld [vmem:[%s388 + $0x30] sm:$0xff]
        %v396 = vld [vmem:[%s388 + $0x38] sm:$0xff]
        %v397 = vld [vmem:[%s388 + $0x40] sm:$0xff]
        %v398 = vld [vmem:[%s388 + $0x48] sm:$0xff]
        %v399 = vld [vmem:[%s388 + $0x50] sm:$0xff]
        %v400 = vld [vmem:[%s388 + $0x58] sm:$0xff]
        %v401 = vld [vmem:[%s388 + $0x60] sm:$0xff]
        %v402 = vld [vmem:[%s388 + $0x68] sm:$0xff]
        %v403 = vld [vmem:[%s388 + $0x70] sm:$0xff]
        %v404 = vld [vmem:[%s388 + $0x78] sm:$0xff]
        %v405 = vpack.c.bf16 %v390, %v389
        %v406 = vpack.c.bf16 %v392, %v391
        %v407 = vpack.c.bf16 %v394, %v393
        %v408 = vpack.c.bf16 %v396, %v395
        %v409 = vpack.c.bf16 %v398, %v397
        %v410 = vpack.c.bf16 %v400, %v399
        %v411 = vpack.c.bf16 %v402, %v401
        %v412 = vpack.c.bf16 %v404, %v403
        %v414 = vlaneseq
        %v415 = vshrl.u32 %v414, 7
        %v416 = vsub.s32 0, %v415
        %v417 = vrot.slane %v386, %v416
        %v418 = vlaneseq
        %v419 = vshrl.u32 %v418, 7
        %v420 = vsub.s32 1, %v419
        %v421 = vrot.slane %v386, %v420
        %v440 = vunpack.c.l.b16 %v370
        %v441 = vunpack.c.h.b16 %v370
        %v442 = vunpack.c.l.b16 %v371
        %v443 = vunpack.c.h.b16 %v371
        %v444 = vunpack.c.l.b16 %v372
        %v445 = vunpack.c.h.b16 %v372
        %v446 = vunpack.c.l.b16 %v373
        %v447 = vunpack.c.h.b16 %v373
        %v448 = vunpack.c.l.b16 %v374
        %v449 = vunpack.c.h.b16 %v374
        %v450 = vunpack.c.l.b16 %v375
        %v451 = vunpack.c.h.b16 %v375
        %v452 = vunpack.c.l.b16 %v376
        %v453 = vunpack.c.h.b16 %v376
        %v454 = vunpack.c.l.b16 %v377
        %v455 = vunpack.c.h.b16 %v377
        %v456 = vunpack.c.l.b16 %v378
        %v457 = vunpack.c.h.b16 %v378
        %v458 = vunpack.c.l.b16 %v379
        %v459 = vunpack.c.h.b16 %v379
        %v460 = vunpack.c.l.b16 %v380
        %v461 = vunpack.c.h.b16 %v380
        %v462 = vunpack.c.l.b16 %v381
        %v463 = vunpack.c.h.b16 %v381
        %v464 = vunpack.c.l.b16 %v382
        %v465 = vunpack.c.h.b16 %v382
        %v466 = vunpack.c.l.b16 %v383
        %v467 = vunpack.c.h.b16 %v383
        %v468 = vunpack.c.l.b16 %v384
        %v469 = vunpack.c.h.b16 %v384
        %v470 = vunpack.c.l.b16 %v385
        %v471 = vunpack.c.h.b16 %v385
        %v472 = vpack.c.b16 %v442, %v440
        %v473 = vpack.c.b16 %v443, %v441
        %v474 = vpack.c.b16 %v446, %v444
        %v475 = vpack.c.b16 %v447, %v445
        %v476 = vpack.c.b16 %v450, %v448
        %v477 = vpack.c.b16 %v451, %v449
        %v478 = vpack.c.b16 %v454, %v452
        %v479 = vpack.c.b16 %v455, %v453
        %v480 = vpack.c.b16 %v458, %v456
        %v481 = vpack.c.b16 %v459, %v457
        %v482 = vpack.c.b16 %v462, %v460
        %v483 = vpack.c.b16 %v463, %v461
        %v484 = vpack.c.b16 %v466, %v464
        %v485 = vpack.c.b16 %v467, %v465
        %v486 = vpack.c.b16 %v470, %v468
        %v487 = vpack.c.b16 %v471, %v469
        %504 = vmatprep.subr.bf16.mxu0 %v487
        %505 = vmatpush1.bf16.msra.mxu0 %v486
        %506 = vmatprep.subr.bf16.mxu0 %v485
        %507 = vmatpush1.bf16.msra.mxu0 %v484
        %508 = vmatprep.subr.bf16.mxu0 %v483
        %509 = vmatpush1.bf16.msra.mxu0 %v482
        %510 = vmatprep.subr.bf16.mxu0 %v481
        %511 = vmatpush1.bf16.msra.mxu0 %v480
        %512 = vmatprep.subr.bf16.mxu0 %v479
        %513 = vmatpush1.bf16.msra.mxu0 %v478
        %514 = vmatprep.subr.bf16.mxu0 %v477
        %515 = vmatpush1.bf16.msra.mxu0 %v476
        %516 = vmatprep.subr.bf16.mxu0 %v475
        %517 = vmatpush1.bf16.msra.mxu0 %v474
        %518 = vmatprep.subr.bf16.mxu0 %v473
        %519 = vmatpush1.bf16.msra.mxu0 %v472
        %520 = vmatprep.subr.bf16.mxu0 0
        %521 = vmatpush2.bf16.msra.mxu0 0
        %522 = vmatprep.subr.bf16.mxu0 0
        %523 = vmatpush2.bf16.msra.mxu0 0
        %524 = vmatprep.subr.bf16.mxu0 0
        %525 = vmatpush2.bf16.msra.mxu0 0
        %526 = vmatprep.subr.bf16.mxu0 0
        %527 = vmatpush2.bf16.msra.mxu0 0
        %528 = vmatprep.subr.bf16.mxu0 0
        %529 = vmatpush2.bf16.msra.mxu0 0
        %530 = vmatprep.subr.bf16.mxu0 0
        %531 = vmatpush2.bf16.msra.mxu0 0
        %532 = vmatprep.subr.bf16.mxu0 0
        %533 = vmatpush2.bf16.msra.mxu0 0
        %534 = vmatprep.subr.bf16.mxu0 0
        %535 = vmatpush2.bf16.msra.mxu0 0
        %536 = vmatprep.mubr.bf16.mxu0 0
        %537 = vmatmul.mubr.bf16.gmra.mxu0 %v405
        %v538 = vpop.f32.mrf.mxu0
        %v539 = vadd.f32 %v417, %v538
        %v540 = vpop.f32.mrf.mxu0
        %v541 = vadd.f32 %v421, %v540
        %v542 = vpop.f32.mrf.mxu0
        %v543 = vadd.f32 %v417, %v542
        %v544 = vpop.f32.mrf.mxu0
        %v545 = vadd.f32 %v421, %v544
        %546 = vmatprep.mubr.bf16.mxu0 0
        %547 = vmatmul.mubr.bf16.gmra.mxu0 %v406
        %v548 = vpop.f32.mrf.mxu0
        %v549 = vadd.f32 %v417, %v548
        %v550 = vpop.f32.mrf.mxu0
        %v551 = vadd.f32 %v421, %v550
        %v552 = vpop.f32.mrf.mxu0
        %v553 = vadd.f32 %v417, %v552
        %v554 = vpop.f32.mrf.mxu0
        %v555 = vadd.f32 %v421, %v554
        %556 = vmatprep.mubr.bf16.mxu0 0
        %557 = vmatmul.mubr.bf16.gmra.mxu0 %v407
        %v558 = vpop.f32.mrf.mxu0
        %v559 = vadd.f32 %v417, %v558
        %v560 = vpop.f32.mrf.mxu0
        %v561 = vadd.f32 %v421, %v560
        %v562 = vpop.f32.mrf.mxu0
        %v563 = vadd.f32 %v417, %v562
        %v564 = vpop.f32.mrf.mxu0
        %v565 = vadd.f32 %v421, %v564
        %566 = vmatprep.mubr.bf16.mxu0 0
        %567 = vmatmul.mubr.bf16.gmra.mxu0 %v408
        %v568 = vpop.f32.mrf.mxu0
        %v569 = vadd.f32 %v417, %v568
        %v570 = vpop.f32.mrf.mxu0
        %v571 = vadd.f32 %v421, %v570
        %v572 = vpop.f32.mrf.mxu0
        %v573 = vadd.f32 %v417, %v572
        %v574 = vpop.f32.mrf.mxu0
        %v575 = vadd.f32 %v421, %v574
        %576 = vmatprep.mubr.bf16.mxu0 0
        %577 = vmatmul.mubr.bf16.gmra.mxu0 %v409
        %v578 = vpop.f32.mrf.mxu0
        %v579 = vadd.f32 %v417, %v578
        %v580 = vpop.f32.mrf.mxu0
        %v581 = vadd.f32 %v421, %v580
        %v582 = vpop.f32.mrf.mxu0
        %v583 = vadd.f32 %v417, %v582
        %v584 = vpop.f32.mrf.mxu0
        %v585 = vadd.f32 %v421, %v584
        %586 = vmatprep.mubr.bf16.mxu0 0
        %587 = vmatmul.mubr.bf16.gmra.mxu0 %v410
        %v588 = vpop.f32.mrf.mxu0
        %v589 = vadd.f32 %v417, %v588
        %v590 = vpop.f32.mrf.mxu0
        %v591 = vadd.f32 %v421, %v590
        %v592 = vpop.f32.mrf.mxu0
        %v593 = vadd.f32 %v417, %v592
        %v594 = vpop.f32.mrf.mxu0
        %v595 = vadd.f32 %v421, %v594
        %596 = vmatprep.mubr.bf16.mxu0 0
        %597 = vmatmul.mubr.bf16.gmra.mxu0 %v411
        %v598 = vpop.f32.mrf.mxu0
        %v599 = vadd.f32 %v417, %v598
        %v600 = vpop.f32.mrf.mxu0
        %v601 = vadd.f32 %v421, %v600
        %v602 = vpop.f32.mrf.mxu0
        %v603 = vadd.f32 %v417, %v602
        %v604 = vpop.f32.mrf.mxu0
        %v605 = vadd.f32 %v421, %v604
        %606 = vmatprep.mubr.bf16.mxu0 0
        %607 = vmatmul.mubr.bf16.gmra.mxu0 %v412
        %v608 = vpop.f32.mrf.mxu0
        %v609 = vadd.f32 %v417, %v608
        %v610 = vpop.f32.mrf.mxu0
        %v611 = vadd.f32 %v421, %v610
        %v612 = vpop.f32.mrf.mxu0
        %v613 = vadd.f32 %v417, %v612
        %v614 = vpop.f32.mrf.mxu0
        %v615 = vadd.f32 %v421, %v614
        %616 = vdwg.mxu0
        %v617 = vmul.f32 %v539, 0.5
        %v618 = vmul.f32 %v541, 0.5
        %v619 = vmul.f32 %v543, 0.5
        %v620 = vmul.f32 %v545, 0.5
        %v621 = vmul.f32 %v549, 0.5
        %v622 = vmul.f32 %v551, 0.5
        %v623 = vmul.f32 %v553, 0.5
        %v624 = vmul.f32 %v555, 0.5
        %v625 = vmul.f32 %v559, 0.5
        %v626 = vmul.f32 %v561, 0.5
        %v627 = vmul.f32 %v563, 0.5
        %v628 = vmul.f32 %v565, 0.5
        %v629 = vmul.f32 %v569, 0.5
        %v630 = vmul.f32 %v571, 0.5
        %v631 = vmul.f32 %v573, 0.5
        %v632 = vmul.f32 %v575, 0.5
        %v633 = vmul.f32 %v579, 0.5
        %v634 = vmul.f32 %v581, 0.5
        %v635 = vmul.f32 %v583, 0.5
        %v636 = vmul.f32 %v585, 0.5
        %v637 = vmul.f32 %v589, 0.5
        %v638 = vmul.f32 %v591, 0.5
        %v639 = vmul.f32 %v593, 0.5
        %v640 = vmul.f32 %v595, 0.5
        %v641 = vmul.f32 %v599, 0.5
        %v642 = vmul.f32 %v601, 0.5
        %v643 = vmul.f32 %v603, 0.5
        %v644 = vmul.f32 %v605, 0.5
        %v645 = vmul.f32 %v609, 0.5
        %v646 = vmul.f32 %v611, 0.5
        %v647 = vmul.f32 %v613, 0.5
        %v648 = vmul.f32 %v615, 0.5
        %v649 = vmul.f32 %v539, 0.70710677
        %v650 = vmul.f32 %v541, 0.70710677
        %v651 = vmul.f32 %v543, 0.70710677
        %v652 = vmul.f32 %v545, 0.70710677
        %v653 = vmul.f32 %v549, 0.70710677
        %v654 = vmul.f32 %v551, 0.70710677
        %v655 = vmul.f32 %v553, 0.70710677
        %v656 = vmul.f32 %v555, 0.70710677
        %v657 = vmul.f32 %v559, 0.70710677
        %v658 = vmul.f32 %v561, 0.70710677
        %v659 = vmul.f32 %v563, 0.70710677
        %v660 = vmul.f32 %v565, 0.70710677
        %v661 = vmul.f32 %v569, 0.70710677
        %v662 = vmul.f32 %v571, 0.70710677
        %v663 = vmul.f32 %v573, 0.70710677
        %v664 = vmul.f32 %v575, 0.70710677
        %v665 = vmul.f32 %v579, 0.70710677
        %v666 = vmul.f32 %v581, 0.70710677
        %v667 = vmul.f32 %v583, 0.70710677
        %v668 = vmul.f32 %v585, 0.70710677
        %v669 = vmul.f32 %v589, 0.70710677
        %v670 = vmul.f32 %v591, 0.70710677
        %v671 = vmul.f32 %v593, 0.70710677
        %v672 = vmul.f32 %v595, 0.70710677
        %v673 = vmul.f32 %v599, 0.70710677
        %v674 = vmul.f32 %v601, 0.70710677
        %v675 = vmul.f32 %v603, 0.70710677
        %v676 = vmul.f32 %v605, 0.70710677
        %v677 = vmul.f32 %v609, 0.70710677
        %v678 = vmul.f32 %v611, 0.70710677
        %v679 = vmul.f32 %v613, 0.70710677
        %v680 = vmul.f32 %v615, 0.70710677
        %v681 = vand.u32 2147483647, %v649
        %v682 = vand.u32 2147483647, %v650
        %v683 = vand.u32 2147483647, %v651
        %v684 = vand.u32 2147483647, %v652
        %v685 = vand.u32 2147483647, %v653
        %v686 = vand.u32 2147483647, %v654
        %v687 = vand.u32 2147483647, %v655
        %v688 = vand.u32 2147483647, %v656
        %v689 = vand.u32 2147483647, %v657
        %v690 = vand.u32 2147483647, %v658
        %v691 = vand.u32 2147483647, %v659
        %v692 = vand.u32 2147483647, %v660
        %v693 = vand.u32 2147483647, %v661
        %v694 = vand.u32 2147483647, %v662
        %v695 = vand.u32 2147483647, %v663
        %v696 = vand.u32 2147483647, %v664
        %v697 = vand.u32 2147483647, %v665
        %v698 = vand.u32 2147483647, %v666
        %v699 = vand.u32 2147483647, %v667
        %v700 = vand.u32 2147483647, %v668
        %v701 = vand.u32 2147483647, %v669
        %v702 = vand.u32 2147483647, %v670
        %v703 = vand.u32 2147483647, %v671
        %v704 = vand.u32 2147483647, %v672
        %v705 = vand.u32 2147483647, %v673
        %v706 = vand.u32 2147483647, %v674
        %v707 = vand.u32 2147483647, %v675
        %v708 = vand.u32 2147483647, %v676
        %v709 = vand.u32 2147483647, %v677
        %v710 = vand.u32 2147483647, %v678
        %v711 = vand.u32 2147483647, %v679
        %v712 = vand.u32 2147483647, %v680
        %v713 = vmul.f32 %v681, 0.3275911
        %v714 = vmul.f32 %v682, 0.3275911
        %v715 = vmul.f32 %v683, 0.3275911
        %v716 = vmul.f32 %v684, 0.3275911
        %v717 = vmul.f32 %v685, 0.3275911
        %v718 = vmul.f32 %v686, 0.3275911
        %v719 = vmul.f32 %v687, 0.3275911
        %v720 = vmul.f32 %v688, 0.3275911
        %v721 = vmul.f32 %v689, 0.3275911
        %v722 = vmul.f32 %v690, 0.3275911
        %v723 = vmul.f32 %v691, 0.3275911
        %v724 = vmul.f32 %v692, 0.3275911
        %v725 = vmul.f32 %v693, 0.3275911
        %v726 = vmul.f32 %v694, 0.3275911
        %v727 = vmul.f32 %v695, 0.3275911
        %v728 = vmul.f32 %v696, 0.3275911
        %v729 = vmul.f32 %v697, 0.3275911
        %v730 = vmul.f32 %v698, 0.3275911
        %v731 = vmul.f32 %v699, 0.3275911
        %v732 = vmul.f32 %v700, 0.3275911
        %v733 = vmul.f32 %v701, 0.3275911
        %v734 = vmul.f32 %v702, 0.3275911
        %v735 = vmul.f32 %v703, 0.3275911
        %v736 = vmul.f32 %v704, 0.3275911
        %v737 = vmul.f32 %v705, 0.3275911
        %v738 = vmul.f32 %v706, 0.3275911
        %v739 = vmul.f32 %v707, 0.3275911
        %v740 = vmul.f32 %v708, 0.3275911
        %v741 = vmul.f32 %v709, 0.3275911
        %v742 = vmul.f32 %v710, 0.3275911
        %v743 = vmul.f32 %v711, 0.3275911
        %v744 = vmul.f32 %v712, 0.3275911
        %v745 = vadd.f32 %v713, 1.0
        %v746 = vadd.f32 %v714, 1.0
        %v747 = vadd.f32 %v715, 1.0
        %v748 = vadd.f32 %v716, 1.0
        %v749 = vadd.f32 %v717, 1.0
        %v750 = vadd.f32 %v718, 1.0
        %v751 = vadd.f32 %v719, 1.0
        %v752 = vadd.f32 %v720, 1.0
        %v753 = vadd.f32 %v721, 1.0
        %v754 = vadd.f32 %v722, 1.0
        %v755 = vadd.f32 %v723, 1.0
        %v756 = vadd.f32 %v724, 1.0
        %v757 = vadd.f32 %v725, 1.0
        %v758 = vadd.f32 %v726, 1.0
        %v759 = vadd.f32 %v727, 1.0
        %v760 = vadd.f32 %v728, 1.0
        %v761 = vadd.f32 %v729, 1.0
        %v762 = vadd.f32 %v730, 1.0
        %v763 = vadd.f32 %v731, 1.0
        %v764 = vadd.f32 %v732, 1.0
        %v765 = vadd.f32 %v733, 1.0
        %v766 = vadd.f32 %v734, 1.0
        %v767 = vadd.f32 %v735, 1.0
        %v768 = vadd.f32 %v736, 1.0
        %v769 = vadd.f32 %v737, 1.0
        %v770 = vadd.f32 %v738, 1.0
        %v771 = vadd.f32 %v739, 1.0
        %v772 = vadd.f32 %v740, 1.0
        %v773 = vadd.f32 %v741, 1.0
        %v774 = vadd.f32 %v742, 1.0
        %v775 = vadd.f32 %v743, 1.0
        %v776 = vadd.f32 %v744, 1.0
        %v777 = vrcp.pop %v745
        %v778 = vrcp.pop %v746
        %v779 = vrcp.pop %v747
        %v780 = vrcp.pop %v748
        %v781 = vrcp.pop %v749
        %v782 = vrcp.pop %v750
        %v783 = vrcp.pop %v751
        %v784 = vrcp.pop %v752
        %v785 = vrcp.pop %v753
        %v786 = vrcp.pop %v754
        %v787 = vrcp.pop %v755
        %v788 = vrcp.pop %v756
        %v789 = vrcp.pop %v757
        %v790 = vrcp.pop %v758
        %v791 = vrcp.pop %v759
        %v792 = vrcp.pop %v760
        %v793 = vrcp.pop %v761
        %v794 = vrcp.pop %v762
        %v795 = vrcp.pop %v763
        %v796 = vrcp.pop %v764
        %v797 = vrcp.pop %v765
        %v798 = vrcp.pop %v766
        %v799 = vrcp.pop %v767
        %v800 = vrcp.pop %v768
        %v801 = vrcp.pop %v769
        %v802 = vrcp.pop %v770
        %v803 = vrcp.pop %v771
        %v804 = vrcp.pop %v772
        %v805 = vrcp.pop %v773
        %v806 = vrcp.pop %v774
        %v807 = vrcp.pop %v775
        %v808 = vrcp.pop %v776
        %v809 = vmul.f32 %v777, 1.0614054
        %v810 = vmul.f32 %v778, 1.0614054
        %v811 = vmul.f32 %v779, 1.0614054
        %v812 = vmul.f32 %v780, 1.0614054
        %v813 = vmul.f32 %v781, 1.0614054
        %v814 = vmul.f32 %v782, 1.0614054
        %v815 = vmul.f32 %v783, 1.0614054
        %v816 = vmul.f32 %v784, 1.0614054
        %v817 = vmul.f32 %v785, 1.0614054
        %v818 = vmul.f32 %v786, 1.0614054
        %v819 = vmul.f32 %v787, 1.0614054
        %v820 = vmul.f32 %v788, 1.0614054
        %v821 = vmul.f32 %v789, 1.0614054
        %v822 = vmul.f32 %v790, 1.0614054
        %v823 = vmul.f32 %v791, 1.0614054
        %v824 = vmul.f32 %v792, 1.0614054
        %v825 = vmul.f32 %v793, 1.0614054
        %v826 = vmul.f32 %v794, 1.0614054
        %v827 = vmul.f32 %v795, 1.0614054
        %v828 = vmul.f32 %v796, 1.0614054
        %v829 = vmul.f32 %v797, 1.0614054
        %v830 = vmul.f32 %v798, 1.0614054
        %v831 = vmul.f32 %v799, 1.0614054
        %v832 = vmul.f32 %v800, 1.0614054
        %v833 = vmul.f32 %v801, 1.0614054
        %v834 = vmul.f32 %v802, 1.0614054
        %v835 = vmul.f32 %v803, 1.0614054
        %v836 = vmul.f32 %v804, 1.0614054
        %v837 = vmul.f32 %v805, 1.0614054
        %v838 = vmul.f32 %v806, 1.0614054
        %v839 = vmul.f32 %v807, 1.0614054
        %v840 = vmul.f32 %v808, 1.0614054
        %v841 = vadd.f32 %v809, -1.4531521
        %v842 = vadd.f32 %v810, -1.4531521
        %v843 = vadd.f32 %v811, -1.4531521
        %v844 = vadd.f32 %v812, -1.4531521
        %v845 = vadd.f32 %v813, -1.4531521
        %v846 = vadd.f32 %v814, -1.4531521
        %v847 = vadd.f32 %v815, -1.4531521
        %v848 = vadd.f32 %v816, -1.4531521
        %v849 = vadd.f32 %v817, -1.4531521
        %v850 = vadd.f32 %v818, -1.4531521
        %v851 = vadd.f32 %v819, -1.4531521
        %v852 = vadd.f32 %v820, -1.4531521
        %v853 = vadd.f32 %v821, -1.4531521
        %v854 = vadd.f32 %v822, -1.4531521
        %v855 = vadd.f32 %v823, -1.4531521
        %v856 = vadd.f32 %v824, -1.4531521
        %v857 = vadd.f32 %v825, -1.4531521
        %v858 = vadd.f32 %v826, -1.4531521
        %v859 = vadd.f32 %v827, -1.4531521
        %v860 = vadd.f32 %v828, -1.4531521
        %v861 = vadd.f32 %v829, -1.4531521
        %v862 = vadd.f32 %v830, -1.4531521
        %v863 = vadd.f32 %v831, -1.4531521
        %v864 = vadd.f32 %v832, -1.4531521
        %v865 = vadd.f32 %v833, -1.4531521
        %v866 = vadd.f32 %v834, -1.4531521
        %v867 = vadd.f32 %v835, -1.4531521
        %v868 = vadd.f32 %v836, -1.4531521
        %v869 = vadd.f32 %v837, -1.4531521
        %v870 = vadd.f32 %v838, -1.4531521
        %v871 = vadd.f32 %v839, -1.4531521
        %v872 = vadd.f32 %v840, -1.4531521
        %v873 = vmul.f32 %v777, %v841
        %v874 = vmul.f32 %v778, %v842
        %v875 = vmul.f32 %v779, %v843
        %v876 = vmul.f32 %v780, %v844
        %v877 = vmul.f32 %v781, %v845
        %v878 = vmul.f32 %v782, %v846
        %v879 = vmul.f32 %v783, %v847
        %v880 = vmul.f32 %v784, %v848
        %v881 = vmul.f32 %v785, %v849
        %v882 = vmul.f32 %v786, %v850
        %v883 = vmul.f32 %v787, %v851
        %v884 = vmul.f32 %v788, %v852
        %v885 = vmul.f32 %v789, %v853
        %v886 = vmul.f32 %v790, %v854
        %v887 = vmul.f32 %v791, %v855
        %v888 = vmul.f32 %v792, %v856
        %v889 = vmul.f32 %v793, %v857
        %v890 = vmul.f32 %v794, %v858
        %v891 = vmul.f32 %v795, %v859
        %v892 = vmul.f32 %v796, %v860
        %v893 = vmul.f32 %v797, %v861
        %v894 = vmul.f32 %v798, %v862
        %v895 = vmul.f32 %v799, %v863
        %v896 = vmul.f32 %v800, %v864
        %v897 = vmul.f32 %v801, %v865
        %v898 = vmul.f32 %v802, %v866
        %v899 = vmul.f32 %v803, %v867
        %v900 = vmul.f32 %v804, %v868
        %v901 = vmul.f32 %v805, %v869
        %v902 = vmul.f32 %v806, %v870
        %v903 = vmul.f32 %v807, %v871
        %v904 = vmul.f32 %v808, %v872
        %v905 = vadd.f32 %v873, 1.4214138
        %v906 = vadd.f32 %v874, 1.4214138
        %v907 = vadd.f32 %v875, 1.4214138
        %v908 = vadd.f32 %v876, 1.4214138
        %v909 = vadd.f32 %v877, 1.4214138
        %v910 = vadd.f32 %v878, 1.4214138
        %v911 = vadd.f32 %v879, 1.4214138
        %v912 = vadd.f32 %v880, 1.4214138
        %v913 = vadd.f32 %v881, 1.4214138
        %v914 = vadd.f32 %v882, 1.4214138
        %v915 = vadd.f32 %v883, 1.4214138
        %v916 = vadd.f32 %v884, 1.4214138
        %v917 = vadd.f32 %v885, 1.4214138
        %v918 = vadd.f32 %v886, 1.4214138
        %v919 = vadd.f32 %v887, 1.4214138
        %v920 = vadd.f32 %v888, 1.4214138
        %v921 = vadd.f32 %v889, 1.4214138
        %v922 = vadd.f32 %v890, 1.4214138
        %v923 = vadd.f32 %v891, 1.4214138
        %v924 = vadd.f32 %v892, 1.4214138
        %v925 = vadd.f32 %v893, 1.4214138
        %v926 = vadd.f32 %v894, 1.4214138
        %v927 = vadd.f32 %v895, 1.4214138
        %v928 = vadd.f32 %v896, 1.4214138
        %v929 = vadd.f32 %v897, 1.4214138
        %v930 = vadd.f32 %v898, 1.4214138
        %v931 = vadd.f32 %v899, 1.4214138
        %v932 = vadd.f32 %v900, 1.4214138
        %v933 = vadd.f32 %v901, 1.4214138
        %v934 = vadd.f32 %v902, 1.4214138
        %v935 = vadd.f32 %v903, 1.4214138
        %v936 = vadd.f32 %v904, 1.4214138
        %v937 = vmul.f32 %v777, %v905
        %v938 = vmul.f32 %v778, %v906
        %v939 = vmul.f32 %v779, %v907
        %v940 = vmul.f32 %v780, %v908
        %v941 = vmul.f32 %v781, %v909
        %v942 = vmul.f32 %v782, %v910
        %v943 = vmul.f32 %v783, %v911
        %v944 = vmul.f32 %v784, %v912
        %v945 = vmul.f32 %v785, %v913
        %v946 = vmul.f32 %v786, %v914
        %v947 = vmul.f32 %v787, %v915
        %v948 = vmul.f32 %v788, %v916
        %v949 = vmul.f32 %v789, %v917
        %v950 = vmul.f32 %v790, %v918
        %v951 = vmul.f32 %v791, %v919
        %v952 = vmul.f32 %v792, %v920
        %v953 = vmul.f32 %v793, %v921
        %v954 = vmul.f32 %v794, %v922
        %v955 = vmul.f32 %v795, %v923
        %v956 = vmul.f32 %v796, %v924
        %v957 = vmul.f32 %v797, %v925
        %v958 = vmul.f32 %v798, %v926
        %v959 = vmul.f32 %v799, %v927
        %v960 = vmul.f32 %v800, %v928
        %v961 = vmul.f32 %v801, %v929
        %v962 = vmul.f32 %v802, %v930
        %v963 = vmul.f32 %v803, %v931
        %v964 = vmul.f32 %v804, %v932
        %v965 = vmul.f32 %v805, %v933
        %v966 = vmul.f32 %v806, %v934
        %v967 = vmul.f32 %v807, %v935
        %v968 = vmul.f32 %v808, %v936
        %v969 = vadd.f32 %v937, -0.28449672
        %v970 = vadd.f32 %v938, -0.28449672
        %v971 = vadd.f32 %v939, -0.28449672
        %v972 = vadd.f32 %v940, -0.28449672
        %v973 = vadd.f32 %v941, -0.28449672
        %v974 = vadd.f32 %v942, -0.28449672
        %v975 = vadd.f32 %v943, -0.28449672
        %v976 = vadd.f32 %v944, -0.28449672
        %v977 = vadd.f32 %v945, -0.28449672
        %v978 = vadd.f32 %v946, -0.28449672
        %v979 = vadd.f32 %v947, -0.28449672
        %v980 = vadd.f32 %v948, -0.28449672
        %v981 = vadd.f32 %v949, -0.28449672
        %v982 = vadd.f32 %v950, -0.28449672
        %v983 = vadd.f32 %v951, -0.28449672
        %v984 = vadd.f32 %v952, -0.28449672
        %v985 = vadd.f32 %v953, -0.28449672
        %v986 = vadd.f32 %v954, -0.28449672
        %v987 = vadd.f32 %v955, -0.28449672
        %v988 = vadd.f32 %v956, -0.28449672
        %v989 = vadd.f32 %v957, -0.28449672
        %v990 = vadd.f32 %v958, -0.28449672
        %v991 = vadd.f32 %v959, -0.28449672
        %v992 = vadd.f32 %v960, -0.28449672
        %v993 = vadd.f32 %v961, -0.28449672
        %v994 = vadd.f32 %v962, -0.28449672
        %v995 = vadd.f32 %v963, -0.28449672
        %v996 = vadd.f32 %v964, -0.28449672
        %v997 = vadd.f32 %v965, -0.28449672
        %v998 = vadd.f32 %v966, -0.28449672
        %v999 = vadd.f32 %v967, -0.28449672
        %v1000 = vadd.f32 %v968, -0.28449672
        %v1001 = vmul.f32 %v777, %v969
        %v1002 = vmul.f32 %v778, %v970
        %v1003 = vmul.f32 %v779, %v971
        %v1004 = vmul.f32 %v780, %v972
        %v1005 = vmul.f32 %v781, %v973
        %v1006 = vmul.f32 %v782, %v974
        %v1007 = vmul.f32 %v783, %v975
        %v1008 = vmul.f32 %v784, %v976
        %v1009 = vmul.f32 %v785, %v977
        %v1010 = vmul.f32 %v786, %v978
        %v1011 = vmul.f32 %v787, %v979
        %v1012 = vmul.f32 %v788, %v980
        %v1013 = vmul.f32 %v789, %v981
        %v1014 = vmul.f32 %v790, %v982
        %v1015 = vmul.f32 %v791, %v983
        %v1016 = vmul.f32 %v792, %v984
        %v1017 = vmul.f32 %v793, %v985
        %v1018 = vmul.f32 %v794, %v986
        %v1019 = vmul.f32 %v795, %v987
        %v1020 = vmul.f32 %v796, %v988
        %v1021 = vmul.f32 %v797, %v989
        %v1022 = vmul.f32 %v798, %v990
        %v1023 = vmul.f32 %v799, %v991
        %v1024 = vmul.f32 %v800, %v992
        %v1025 = vmul.f32 %v801, %v993
        %v1026 = vmul.f32 %v802, %v994
        %v1027 = vmul.f32 %v803, %v995
        %v1028 = vmul.f32 %v804, %v996
        %v1029 = vmul.f32 %v805, %v997
        %v1030 = vmul.f32 %v806, %v998
        %v1031 = vmul.f32 %v807, %v999
        %v1032 = vmul.f32 %v808, %v1000
        %v1033 = vadd.f32 %v1001, 0.2548296
        %v1034 = vadd.f32 %v1002, 0.2548296
        %v1035 = vadd.f32 %v1003, 0.2548296
        %v1036 = vadd.f32 %v1004, 0.2548296
        %v1037 = vadd.f32 %v1005, 0.2548296
        %v1038 = vadd.f32 %v1006, 0.2548296
        %v1039 = vadd.f32 %v1007, 0.2548296
        %v1040 = vadd.f32 %v1008, 0.2548296
        %v1041 = vadd.f32 %v1009, 0.2548296
        %v1042 = vadd.f32 %v1010, 0.2548296
        %v1043 = vadd.f32 %v1011, 0.2548296
        %v1044 = vadd.f32 %v1012, 0.2548296
        %v1045 = vadd.f32 %v1013, 0.2548296
        %v1046 = vadd.f32 %v1014, 0.2548296
        %v1047 = vadd.f32 %v1015, 0.2548296
        %v1048 = vadd.f32 %v1016, 0.2548296
        %v1049 = vadd.f32 %v1017, 0.2548296
        %v1050 = vadd.f32 %v1018, 0.2548296
        %v1051 = vadd.f32 %v1019, 0.2548296
        %v1052 = vadd.f32 %v1020, 0.2548296
        %v1053 = vadd.f32 %v1021, 0.2548296
        %v1054 = vadd.f32 %v1022, 0.2548296
        %v1055 = vadd.f32 %v1023, 0.2548296
        %v1056 = vadd.f32 %v1024, 0.2548296
        %v1057 = vadd.f32 %v1025, 0.2548296
        %v1058 = vadd.f32 %v1026, 0.2548296
        %v1059 = vadd.f32 %v1027, 0.2548296
        %v1060 = vadd.f32 %v1028, 0.2548296
        %v1061 = vadd.f32 %v1029, 0.2548296
        %v1062 = vadd.f32 %v1030, 0.2548296
        %v1063 = vadd.f32 %v1031, 0.2548296
        %v1064 = vadd.f32 %v1032, 0.2548296
        %v1065 = vmul.f32 %v777, %v1033
        %v1066 = vmul.f32 %v778, %v1034
        %v1067 = vmul.f32 %v779, %v1035
        %v1068 = vmul.f32 %v780, %v1036
        %v1069 = vmul.f32 %v781, %v1037
        %v1070 = vmul.f32 %v782, %v1038
        %v1071 = vmul.f32 %v783, %v1039
        %v1072 = vmul.f32 %v784, %v1040
        %v1073 = vmul.f32 %v785, %v1041
        %v1074 = vmul.f32 %v786, %v1042
        %v1075 = vmul.f32 %v787, %v1043
        %v1076 = vmul.f32 %v788, %v1044
        %v1077 = vmul.f32 %v789, %v1045
        %v1078 = vmul.f32 %v790, %v1046
        %v1079 = vmul.f32 %v791, %v1047
        %v1080 = vmul.f32 %v792, %v1048
        %v1081 = vmul.f32 %v793, %v1049
        %v1082 = vmul.f32 %v794, %v1050
        %v1083 = vmul.f32 %v795, %v1051
        %v1084 = vmul.f32 %v796, %v1052
        %v1085 = vmul.f32 %v797, %v1053
        %v1086 = vmul.f32 %v798, %v1054
        %v1087 = vmul.f32 %v799, %v1055
        %v1088 = vmul.f32 %v800, %v1056
        %v1089 = vmul.f32 %v801, %v1057
        %v1090 = vmul.f32 %v802, %v1058
        %v1091 = vmul.f32 %v803, %v1059
        %v1092 = vmul.f32 %v804, %v1060
        %v1093 = vmul.f32 %v805, %v1061
        %v1094 = vmul.f32 %v806, %v1062
        %v1095 = vmul.f32 %v807, %v1063
        %v1096 = vmul.f32 %v808, %v1064
        %v1097 = vsub.f32 0.0, %v681
        %v1098 = vsub.f32 0.0, %v682
        %v1099 = vsub.f32 0.0, %v683
        %v1100 = vsub.f32 0.0, %v684
        %v1101 = vsub.f32 0.0, %v685
        %v1102 = vsub.f32 0.0, %v686
        %v1103 = vsub.f32 0.0, %v687
        %v1104 = vsub.f32 0.0, %v688
        %v1105 = vsub.f32 0.0, %v689
        %v1106 = vsub.f32 0.0, %v690
        %v1107 = vsub.f32 0.0, %v691
        %v1108 = vsub.f32 0.0, %v692
        %v1109 = vsub.f32 0.0, %v693
        %v1110 = vsub.f32 0.0, %v694
        %v1111 = vsub.f32 0.0, %v695
        %v1112 = vsub.f32 0.0, %v696
        %v1113 = vsub.f32 0.0, %v697
        %v1114 = vsub.f32 0.0, %v698
        %v1115 = vsub.f32 0.0, %v699
        %v1116 = vsub.f32 0.0, %v700
        %v1117 = vsub.f32 0.0, %v701
        %v1118 = vsub.f32 0.0, %v702
        %v1119 = vsub.f32 0.0, %v703
        %v1120 = vsub.f32 0.0, %v704
        %v1121 = vsub.f32 0.0, %v705
        %v1122 = vsub.f32 0.0, %v706
        %v1123 = vsub.f32 0.0, %v707
        %v1124 = vsub.f32 0.0, %v708
        %v1125 = vsub.f32 0.0, %v709
        %v1126 = vsub.f32 0.0, %v710
        %v1127 = vsub.f32 0.0, %v711
        %v1128 = vsub.f32 0.0, %v712
        %v1129 = vmul.f32 %v1097, %v681
        %v1130 = vmul.f32 %v1098, %v682
        %v1131 = vmul.f32 %v1099, %v683
        %v1132 = vmul.f32 %v1100, %v684
        %v1133 = vmul.f32 %v1101, %v685
        %v1134 = vmul.f32 %v1102, %v686
        %v1135 = vmul.f32 %v1103, %v687
        %v1136 = vmul.f32 %v1104, %v688
        %v1137 = vmul.f32 %v1105, %v689
        %v1138 = vmul.f32 %v1106, %v690
        %v1139 = vmul.f32 %v1107, %v691
        %v1140 = vmul.f32 %v1108, %v692
        %v1141 = vmul.f32 %v1109, %v693
        %v1142 = vmul.f32 %v1110, %v694
        %v1143 = vmul.f32 %v1111, %v695
        %v1144 = vmul.f32 %v1112, %v696
        %v1145 = vmul.f32 %v1113, %v697
        %v1146 = vmul.f32 %v1114, %v698
        %v1147 = vmul.f32 %v1115, %v699
        %v1148 = vmul.f32 %v1116, %v700
        %v1149 = vmul.f32 %v1117, %v701
        %v1150 = vmul.f32 %v1118, %v702
        %v1151 = vmul.f32 %v1119, %v703
        %v1152 = vmul.f32 %v1120, %v704
        %v1153 = vmul.f32 %v1121, %v705
        %v1154 = vmul.f32 %v1122, %v706
        %v1155 = vmul.f32 %v1123, %v707
        %v1156 = vmul.f32 %v1124, %v708
        %v1157 = vmul.f32 %v1125, %v709
        %v1158 = vmul.f32 %v1126, %v710
        %v1159 = vmul.f32 %v1127, %v711
        %v1160 = vmul.f32 %v1128, %v712
        %v1161 = vmul.f32 %v1129, 1.442695
        %v1162 = vpow.pop %v1161
        %v1163 = vmul.f32 %v1130, 1.442695
        %v1164 = vpow.pop %v1163
        %v1165 = vmul.f32 %v1131, 1.442695
        %v1166 = vpow.pop %v1165
        %v1167 = vmul.f32 %v1132, 1.442695
        %v1168 = vpow.pop %v1167
        %v1169 = vmul.f32 %v1133, 1.442695
        %v1170 = vpow.pop %v1169
        %v1171 = vmul.f32 %v1134, 1.442695
        %v1172 = vpow.pop %v1171
        %v1173 = vmul.f32 %v1135, 1.442695
        %v1174 = vpow.pop %v1173
        %v1175 = vmul.f32 %v1136, 1.442695
        %v1176 = vpow.pop %v1175
        %v1177 = vmul.f32 %v1137, 1.442695
        %v1178 = vpow.pop %v1177
        %v1179 = vmul.f32 %v1138, 1.442695
        %v1180 = vpow.pop %v1179
        %v1181 = vmul.f32 %v1139, 1.442695
        %v1182 = vpow.pop %v1181
        %v1183 = vmul.f32 %v1140, 1.442695
        %v1184 = vpow.pop %v1183
        %v1185 = vmul.f32 %v1141, 1.442695
        %v1186 = vpow.pop %v1185
        %v1187 = vmul.f32 %v1142, 1.442695
        %v1188 = vpow.pop %v1187
        %v1189 = vmul.f32 %v1143, 1.442695
        %v1190 = vpow.pop %v1189
        %v1191 = vmul.f32 %v1144, 1.442695
        %v1192 = vpow.pop %v1191
        %v1193 = vmul.f32 %v1145, 1.442695
        %v1194 = vpow.pop %v1193
        %v1195 = vmul.f32 %v1146, 1.442695
        %v1196 = vpow.pop %v1195
        %v1197 = vmul.f32 %v1147, 1.442695
        %v1198 = vpow.pop %v1197
        %v1199 = vmul.f32 %v1148, 1.442695
        %v1200 = vpow.pop %v1199
        %v1201 = vmul.f32 %v1149, 1.442695
        %v1202 = vpow.pop %v1201
        %v1203 = vmul.f32 %v1150, 1.442695
        %v1204 = vpow.pop %v1203
        %v1205 = vmul.f32 %v1151, 1.442695
        %v1206 = vpow.pop %v1205
        %v1207 = vmul.f32 %v1152, 1.442695
        %v1208 = vpow.pop %v1207
        %v1209 = vmul.f32 %v1153, 1.442695
        %v1210 = vpow.pop %v1209
        %v1211 = vmul.f32 %v1154, 1.442695
        %v1212 = vpow.pop %v1211
        %v1213 = vmul.f32 %v1155, 1.442695
        %v1214 = vpow.pop %v1213
        %v1215 = vmul.f32 %v1156, 1.442695
        %v1216 = vpow.pop %v1215
        %v1217 = vmul.f32 %v1157, 1.442695
        %v1218 = vpow.pop %v1217
        %v1219 = vmul.f32 %v1158, 1.442695
        %v1220 = vpow.pop %v1219
        %v1221 = vmul.f32 %v1159, 1.442695
        %v1222 = vpow.pop %v1221
        %v1223 = vmul.f32 %v1160, 1.442695
        %v1224 = vpow.pop %v1223
        %v1225 = vmul.f32 %v1065, %v1162
        %v1226 = vmul.f32 %v1066, %v1164
        %v1227 = vmul.f32 %v1067, %v1166
        %v1228 = vmul.f32 %v1068, %v1168
        %v1229 = vmul.f32 %v1069, %v1170
        %v1230 = vmul.f32 %v1070, %v1172
        %v1231 = vmul.f32 %v1071, %v1174
        %v1232 = vmul.f32 %v1072, %v1176
        %v1233 = vmul.f32 %v1073, %v1178
        %v1234 = vmul.f32 %v1074, %v1180
        %v1235 = vmul.f32 %v1075, %v1182
        %v1236 = vmul.f32 %v1076, %v1184
        %v1237 = vmul.f32 %v1077, %v1186
        %v1238 = vmul.f32 %v1078, %v1188
        %v1239 = vmul.f32 %v1079, %v1190
        %v1240 = vmul.f32 %v1080, %v1192
        %v1241 = vmul.f32 %v1081, %v1194
        %v1242 = vmul.f32 %v1082, %v1196
        %v1243 = vmul.f32 %v1083, %v1198
        %v1244 = vmul.f32 %v1084, %v1200
        %v1245 = vmul.f32 %v1085, %v1202
        %v1246 = vmul.f32 %v1086, %v1204
        %v1247 = vmul.f32 %v1087, %v1206
        %v1248 = vmul.f32 %v1088, %v1208
        %v1249 = vmul.f32 %v1089, %v1210
        %v1250 = vmul.f32 %v1090, %v1212
        %v1251 = vmul.f32 %v1091, %v1214
        %v1252 = vmul.f32 %v1092, %v1216
        %v1253 = vmul.f32 %v1093, %v1218
        %v1254 = vmul.f32 %v1094, %v1220
        %v1255 = vmul.f32 %v1095, %v1222
        %v1256 = vmul.f32 %v1096, %v1224
        %v1257 = vsub.f32 1.0, %v1225
        %v1258 = vsub.f32 1.0, %v1226
        %v1259 = vsub.f32 1.0, %v1227
        %v1260 = vsub.f32 1.0, %v1228
        %v1261 = vsub.f32 1.0, %v1229
        %v1262 = vsub.f32 1.0, %v1230
        %v1263 = vsub.f32 1.0, %v1231
        %v1264 = vsub.f32 1.0, %v1232
        %v1265 = vsub.f32 1.0, %v1233
        %v1266 = vsub.f32 1.0, %v1234
        %v1267 = vsub.f32 1.0, %v1235
        %v1268 = vsub.f32 1.0, %v1236
        %v1269 = vsub.f32 1.0, %v1237
        %v1270 = vsub.f32 1.0, %v1238
        %v1271 = vsub.f32 1.0, %v1239
        %v1272 = vsub.f32 1.0, %v1240
        %v1273 = vsub.f32 1.0, %v1241
        %v1274 = vsub.f32 1.0, %v1242
        %v1275 = vsub.f32 1.0, %v1243
        %v1276 = vsub.f32 1.0, %v1244
        %v1277 = vsub.f32 1.0, %v1245
        %v1278 = vsub.f32 1.0, %v1246
        %v1279 = vsub.f32 1.0, %v1247
        %v1280 = vsub.f32 1.0, %v1248
        %v1281 = vsub.f32 1.0, %v1249
        %v1282 = vsub.f32 1.0, %v1250
        %v1283 = vsub.f32 1.0, %v1251
        %v1284 = vsub.f32 1.0, %v1252
        %v1285 = vsub.f32 1.0, %v1253
        %v1286 = vsub.f32 1.0, %v1254
        %v1287 = vsub.f32 1.0, %v1255
        %v1288 = vsub.f32 1.0, %v1256
        %vm1289 = vcmp.ge.f32.partialorder %v649, 0.0
        %vm1290 = vcmp.ge.f32.partialorder %v650, 0.0
        %vm1291 = vcmp.ge.f32.partialorder %v651, 0.0
        %vm1292 = vcmp.ge.f32.partialorder %v652, 0.0
        %vm1293 = vcmp.ge.f32.partialorder %v653, 0.0
        %vm1294 = vcmp.ge.f32.partialorder %v654, 0.0
        %vm1295 = vcmp.ge.f32.partialorder %v655, 0.0
        %vm1296 = vcmp.ge.f32.partialorder %v656, 0.0
        %vm1297 = vcmp.ge.f32.partialorder %v657, 0.0
        %vm1298 = vcmp.ge.f32.partialorder %v658, 0.0
        %vm1299 = vcmp.ge.f32.partialorder %v659, 0.0
        %vm1300 = vcmp.ge.f32.partialorder %v660, 0.0
        %vm1301 = vcmp.ge.f32.partialorder %v661, 0.0
        %vm1302 = vcmp.ge.f32.partialorder %v662, 0.0
        %vm1303 = vcmp.ge.f32.partialorder %v663, 0.0
        %vm1304 = vcmp.ge.f32.partialorder %v664, 0.0
        %vm1305 = vcmp.ge.f32.partialorder %v665, 0.0
        %vm1306 = vcmp.ge.f32.partialorder %v666, 0.0
        %vm1307 = vcmp.ge.f32.partialorder %v667, 0.0
        %vm1308 = vcmp.ge.f32.partialorder %v668, 0.0
        %vm1309 = vcmp.ge.f32.partialorder %v669, 0.0
        %vm1310 = vcmp.ge.f32.partialorder %v670, 0.0
        %vm1311 = vcmp.ge.f32.partialorder %v671, 0.0
        %vm1312 = vcmp.ge.f32.partialorder %v672, 0.0
        %vm1313 = vcmp.ge.f32.partialorder %v673, 0.0
        %vm1314 = vcmp.ge.f32.partialorder %v674, 0.0
        %vm1315 = vcmp.ge.f32.partialorder %v675, 0.0
        %vm1316 = vcmp.ge.f32.partialorder %v676, 0.0
        %vm1317 = vcmp.ge.f32.partialorder %v677, 0.0
        %vm1318 = vcmp.ge.f32.partialorder %v678, 0.0
        %vm1319 = vcmp.ge.f32.partialorder %v679, 0.0
        %vm1320 = vcmp.ge.f32.partialorder %v680, 0.0
        %v1321 = vsub.f32 0.0, %v1257
        %v1322 = vsub.f32 0.0, %v1258
        %v1323 = vsub.f32 0.0, %v1259
        %v1324 = vsub.f32 0.0, %v1260
        %v1325 = vsub.f32 0.0, %v1261
        %v1326 = vsub.f32 0.0, %v1262
        %v1327 = vsub.f32 0.0, %v1263
        %v1328 = vsub.f32 0.0, %v1264
        %v1329 = vsub.f32 0.0, %v1265
        %v1330 = vsub.f32 0.0, %v1266
        %v1331 = vsub.f32 0.0, %v1267
        %v1332 = vsub.f32 0.0, %v1268
        %v1333 = vsub.f32 0.0, %v1269
        %v1334 = vsub.f32 0.0, %v1270
        %v1335 = vsub.f32 0.0, %v1271
        %v1336 = vsub.f32 0.0, %v1272
        %v1337 = vsub.f32 0.0, %v1273
        %v1338 = vsub.f32 0.0, %v1274
        %v1339 = vsub.f32 0.0, %v1275
        %v1340 = vsub.f32 0.0, %v1276
        %v1341 = vsub.f32 0.0, %v1277
        %v1342 = vsub.f32 0.0, %v1278
        %v1343 = vsub.f32 0.0, %v1279
        %v1344 = vsub.f32 0.0, %v1280
        %v1345 = vsub.f32 0.0, %v1281
        %v1346 = vsub.f32 0.0, %v1282
        %v1347 = vsub.f32 0.0, %v1283
        %v1348 = vsub.f32 0.0, %v1284
        %v1349 = vsub.f32 0.0, %v1285
        %v1350 = vsub.f32 0.0, %v1286
        %v1351 = vsub.f32 0.0, %v1287
        %v1352 = vsub.f32 0.0, %v1288
        %v1353 = vsel %vm1289, %v1257, %v1321
        %v1354 = vsel %vm1290, %v1258, %v1322
        %v1355 = vsel %vm1291, %v1259, %v1323
        %v1356 = vsel %vm1292, %v1260, %v1324
        %v1357 = vsel %vm1293, %v1261, %v1325
        %v1358 = vsel %vm1294, %v1262, %v1326
        %v1359 = vsel %vm1295, %v1263, %v1327
        %v1360 = vsel %vm1296, %v1264, %v1328
        %v1361 = vsel %vm1297, %v1265, %v1329
        %v1362 = vsel %vm1298, %v1266, %v1330
        %v1363 = vsel %vm1299, %v1267, %v1331
        %v1364 = vsel %vm1300, %v1268, %v1332
        %v1365 = vsel %vm1301, %v1269, %v1333
        %v1366 = vsel %vm1302, %v1270, %v1334
        %v1367 = vsel %vm1303, %v1271, %v1335
        %v1368 = vsel %vm1304, %v1272, %v1336
        %v1369 = vsel %vm1305, %v1273, %v1337
        %v1370 = vsel %vm1306, %v1274, %v1338
        %v1371 = vsel %vm1307, %v1275, %v1339
        %v1372 = vsel %vm1308, %v1276, %v1340
        %v1373 = vsel %vm1309, %v1277, %v1341
        %v1374 = vsel %vm1310, %v1278, %v1342
        %v1375 = vsel %vm1311, %v1279, %v1343
        %v1376 = vsel %vm1312, %v1280, %v1344
        %v1377 = vsel %vm1313, %v1281, %v1345
        %v1378 = vsel %vm1314, %v1282, %v1346
        %v1379 = vsel %vm1315, %v1283, %v1347
        %v1380 = vsel %vm1316, %v1284, %v1348
        %v1381 = vsel %vm1317, %v1285, %v1349
        %v1382 = vsel %vm1318, %v1286, %v1350
        %v1383 = vsel %vm1319, %v1287, %v1351
        %v1384 = vsel %vm1320, %v1288, %v1352
        %v1385 = vadd.f32 %v1353, 1.0
        %v1386 = vadd.f32 %v1354, 1.0
        %v1387 = vadd.f32 %v1355, 1.0
        %v1388 = vadd.f32 %v1356, 1.0
        %v1389 = vadd.f32 %v1357, 1.0
        %v1390 = vadd.f32 %v1358, 1.0
        %v1391 = vadd.f32 %v1359, 1.0
        %v1392 = vadd.f32 %v1360, 1.0
        %v1393 = vadd.f32 %v1361, 1.0
        %v1394 = vadd.f32 %v1362, 1.0
        %v1395 = vadd.f32 %v1363, 1.0
        %v1396 = vadd.f32 %v1364, 1.0
        %v1397 = vadd.f32 %v1365, 1.0
        %v1398 = vadd.f32 %v1366, 1.0
        %v1399 = vadd.f32 %v1367, 1.0
        %v1400 = vadd.f32 %v1368, 1.0
        %v1401 = vadd.f32 %v1369, 1.0
        %v1402 = vadd.f32 %v1370, 1.0
        %v1403 = vadd.f32 %v1371, 1.0
        %v1404 = vadd.f32 %v1372, 1.0
        %v1405 = vadd.f32 %v1373, 1.0
        %v1406 = vadd.f32 %v1374, 1.0
        %v1407 = vadd.f32 %v1375, 1.0
        %v1408 = vadd.f32 %v1376, 1.0
        %v1409 = vadd.f32 %v1377, 1.0
        %v1410 = vadd.f32 %v1378, 1.0
        %v1411 = vadd.f32 %v1379, 1.0
        %v1412 = vadd.f32 %v1380, 1.0
        %v1413 = vadd.f32 %v1381, 1.0
        %v1414 = vadd.f32 %v1382, 1.0
        %v1415 = vadd.f32 %v1383, 1.0
        %v1416 = vadd.f32 %v1384, 1.0
        %v1417 = vmul.f32 %v617, %v1385
        %v1418 = vmul.f32 %v618, %v1386
        %v1419 = vmul.f32 %v619, %v1387
        %v1420 = vmul.f32 %v620, %v1388
        %v1421 = vmul.f32 %v621, %v1389
        %v1422 = vmul.f32 %v622, %v1390
        %v1423 = vmul.f32 %v623, %v1391
        %v1424 = vmul.f32 %v624, %v1392
        %v1425 = vmul.f32 %v625, %v1393
        %v1426 = vmul.f32 %v626, %v1394
        %v1427 = vmul.f32 %v627, %v1395
        %v1428 = vmul.f32 %v628, %v1396
        %v1429 = vmul.f32 %v629, %v1397
        %v1430 = vmul.f32 %v630, %v1398
        %v1431 = vmul.f32 %v631, %v1399
        %v1432 = vmul.f32 %v632, %v1400
        %v1433 = vmul.f32 %v633, %v1401
        %v1434 = vmul.f32 %v634, %v1402
        %v1435 = vmul.f32 %v635, %v1403
        %v1436 = vmul.f32 %v636, %v1404
        %v1437 = vmul.f32 %v637, %v1405
        %v1438 = vmul.f32 %v638, %v1406
        %v1439 = vmul.f32 %v639, %v1407
        %v1440 = vmul.f32 %v640, %v1408
        %v1441 = vmul.f32 %v641, %v1409
        %v1442 = vmul.f32 %v642, %v1410
        %v1443 = vmul.f32 %v643, %v1411
        %v1444 = vmul.f32 %v644, %v1412
        %v1445 = vmul.f32 %v645, %v1413
        %v1446 = vmul.f32 %v646, %v1414
        %v1447 = vmul.f32 %v647, %v1415
        %v1448 = vmul.f32 %v648, %v1416
        %vm1481 = vcmask 1040384
        %v1482 = vrot.slane %v1417, 7
        %v1483 = vrot.slane %v1418, 7
        %v1484 = vrot.slane %v1419, 7
        %v1485 = vsel %vm1481, %v1482, %v1484
        %v1486 = vrot.slane %v1420, 7
        %v1487 = vsel %vm1481, %v1483, %v1486
        %v1488 = vrot.slane %v1421, 7
        %v1489 = vrot.slane %v1422, 7
        %v1490 = vrot.slane %v1423, 7
        %v1491 = vsel %vm1481, %v1488, %v1490
        %v1492 = vrot.slane %v1424, 7
        %v1493 = vsel %vm1481, %v1489, %v1492
        %v1494 = vrot.slane %v1425, 7
        %v1495 = vrot.slane %v1426, 7
        %v1496 = vrot.slane %v1427, 7
        %v1497 = vsel %vm1481, %v1494, %v1496
        %v1498 = vrot.slane %v1428, 7
        %v1499 = vsel %vm1481, %v1495, %v1498
        %v1500 = vrot.slane %v1429, 7
        %v1501 = vrot.slane %v1430, 7
        %v1502 = vrot.slane %v1431, 7
        %v1503 = vsel %vm1481, %v1500, %v1502
        %v1504 = vrot.slane %v1432, 7
        %v1505 = vsel %vm1481, %v1501, %v1504
        %v1506 = vrot.slane %v1433, 7
        %v1507 = vrot.slane %v1434, 7
        %v1508 = vrot.slane %v1435, 7
        %v1509 = vsel %vm1481, %v1506, %v1508
        %v1510 = vrot.slane %v1436, 7
        %v1511 = vsel %vm1481, %v1507, %v1510
        %v1512 = vrot.slane %v1437, 7
        %v1513 = vrot.slane %v1438, 7
        %v1514 = vrot.slane %v1439, 7
        %v1515 = vsel %vm1481, %v1512, %v1514
        %v1516 = vrot.slane %v1440, 7
        %v1517 = vsel %vm1481, %v1513, %v1516
        %v1518 = vrot.slane %v1441, 7
        %v1519 = vrot.slane %v1442, 7
        %v1520 = vrot.slane %v1443, 7
        %v1521 = vsel %vm1481, %v1518, %v1520
        %v1522 = vrot.slane %v1444, 7
        %v1523 = vsel %vm1481, %v1519, %v1522
        %v1524 = vrot.slane %v1445, 7
        %v1525 = vrot.slane %v1446, 7
        %v1526 = vrot.slane %v1447, 7
        %v1527 = vsel %vm1481, %v1524, %v1526
        %v1528 = vrot.slane %v1448, 7
        %v1529 = vsel %vm1481, %v1525, %v1528
        %s1578 = scalar_lea.vmem [#allocation2], 48
        %1579 = vst [vmem:[%s1578] sm:$0xfe] %v1482
        %1580 = vst [vmem:[%s1578 + $0x8] sm:$0xfe] %v1483
        %1581 = vst [vmem:[%s1578 + $0x10] sm:$0xff] %v1485
        %1582 = vst [vmem:[%s1578 + $0x18] sm:$0xff] %v1487
        %1583 = vst [vmem:[%s1578 + $0x20] sm:$0x1] %v1484
        %1584 = vst [vmem:[%s1578 + $0x28] sm:$0x1] %v1486
        %1585 = vst [vmem:[%s1578 + $0x30] sm:$0xfe] %v1488
        %1586 = vst [vmem:[%s1578 + $0x38] sm:$0xfe] %v1489
        %1587 = vst [vmem:[%s1578 + $0x40] sm:$0xff] %v1491
        %1588 = vst [vmem:[%s1578 + $0x48] sm:$0xff] %v1493
        %1589 = vst [vmem:[%s1578 + $0x50] sm:$0x1] %v1490
        %1590 = vst [vmem:[%s1578 + $0x58] sm:$0x1] %v1492
        %1591 = vst [vmem:[%s1578 + $0x60] sm:$0xfe] %v1494
        %1592 = vst [vmem:[%s1578 + $0x68] sm:$0xfe] %v1495
        %1593 = vst [vmem:[%s1578 + $0x70] sm:$0xff] %v1497
        %1594 = vst [vmem:[%s1578 + $0x78] sm:$0xff] %v1499
        %1595 = vst [vmem:[%s1578 + $0x80] sm:$0x1] %v1496
        %1596 = vst [vmem:[%s1578 + $0x88] sm:$0x1] %v1498
        %1597 = vst [vmem:[%s1578 + $0x90] sm:$0xfe] %v1500
        %1598 = vst [vmem:[%s1578 + $0x98] sm:$0xfe] %v1501
        %1599 = vst [vmem:[%s1578 + $0xa0] sm:$0xff] %v1503
        %1600 = vst [vmem:[%s1578 + $0xa8] sm:$0xff] %v1505
        %1601 = vst [vmem:[%s1578 + $0xb0] sm:$0x1] %v1502
        %1602 = vst [vmem:[%s1578 + $0xb8] sm:$0x1] %v1504
        %1603 = vst [vmem:[%s1578 + $0xc0] sm:$0xfe] %v1506
        %1604 = vst [vmem:[%s1578 + $0xc8] sm:$0xfe] %v1507
        %1605 = vst [vmem:[%s1578 + $0xd0] sm:$0xff] %v1509
        %1606 = vst [vmem:[%s1578 + $0xd8] sm:$0xff] %v1511
        %1607 = vst [vmem:[%s1578 + $0xe0] sm:$0x1] %v1508
        %1608 = vst [vmem:[%s1578 + $0xe8] sm:$0x1] %v1510
        %1609 = vst [vmem:[%s1578 + $0xf0] sm:$0xfe] %v1512
        %1610 = vst [vmem:[%s1578 + $0xf8] sm:$0xfe] %v1513
        %1611 = vst [vmem:[%s1578 + $0x100] sm:$0xff] %v1515
        %1612 = vst [vmem:[%s1578 + $0x108] sm:$0xff] %v1517
        %1613 = vst [vmem:[%s1578 + $0x110] sm:$0x1] %v1514
        %1614 = vst [vmem:[%s1578 + $0x118] sm:$0x1] %v1516
        %1615 = vst [vmem:[%s1578 + $0x120] sm:$0xfe] %v1518
        %1616 = vst [vmem:[%s1578 + $0x128] sm:$0xfe] %v1519
        %1617 = vst [vmem:[%s1578 + $0x130] sm:$0xff] %v1521
        %1618 = vst [vmem:[%s1578 + $0x138] sm:$0xff] %v1523
        %1619 = vst [vmem:[%s1578 + $0x140] sm:$0x1] %v1520
        %1620 = vst [vmem:[%s1578 + $0x148] sm:$0x1] %v1522
        %1621 = vst [vmem:[%s1578 + $0x150] sm:$0xfe] %v1524
        %1622 = vst [vmem:[%s1578 + $0x158] sm:$0xfe] %v1525
        %1623 = vst [vmem:[%s1578 + $0x160] sm:$0xff] %v1527
        %1624 = vst [vmem:[%s1578 + $0x168] sm:$0xff] %v1529
        %1625 = vst [vmem:[%s1578 + $0x170] sm:$0x1] %v1526
        %1626 = vst [vmem:[%s1578 + $0x178] sm:$0x1] %v1528
        %p1627 = scmp.gt.s32.totalorder %s26, 0
        // Predicated region
        $region49: #{conv_ffn_forward.1} parent=47 // pred_check
          %p1628 = pneg %p1627
        $region50: #{conv_ffn_forward.1} parent=47 // pred_check_branch
          %1630 = sbr.rel (%p1628) target = $region52
        $region51: #{conv_ffn_forward.1} parent=47 // pred_region
          %s1631 = ssub.s32 %s293, 1
          %s1632 = smul.u32 %s1631, 16
          %s1633 = scalar_lea.vmem %s290, %s1632
          %v1634 = vld [vmem:[%s1633] sm:$0xff]
          %v1635 = vld [vmem:[%s1633 + $0x8] sm:$0xff]
          %v1636 = vpack.c.bf16 %v1635, %v1634
          %1637 = vmatprep.subr.bf16.mxu0 %v487
          %1638 = vmatpush1.bf16.msra.mxu0 %v486
          %1639 = vmatprep.subr.bf16.mxu0 %v485
          %1640 = vmatpush1.bf16.msra.mxu0 %v484
          %1641 = vmatprep.subr.bf16.mxu0 %v483
          %1642 = vmatpush1.bf16.msra.mxu0 %v482
          %1643 = vmatprep.subr.bf16.mxu0 %v481
          %1644 = vmatpush1.bf16.msra.mxu0 %v480
          %1645 = vmatprep.subr.bf16.mxu0 %v479
          %1646 = vmatpush1.bf16.msra.mxu0 %v478
          %1647 = vmatprep.subr.bf16.mxu0 %v477
          %1648 = vmatpush1.bf16.msra.mxu0 %v476
          %1649 = vmatprep.subr.bf16.mxu0 %v475
          %1650 = vmatpush1.bf16.msra.mxu0 %v474
          %1651 = vmatprep.subr.bf16.mxu0 %v473
          %1652 = vmatpush1.bf16.msra.mxu0 %v472
          %1653 = vmatprep.subr.bf16.mxu0 0
          %1654 = vmatpush2.bf16.msra.mxu0 0
          %1655 = vmatprep.subr.bf16.mxu0 0
          %1656 = vmatpush2.bf16.msra.mxu0 0
          %1657 = vmatprep.subr.bf16.mxu0 0
          %1658 = vmatpush2.bf16.msra.mxu0 0
          %1659 = vmatprep.subr.bf16.mxu0 0
          %1660 = vmatpush2.bf16.msra.mxu0 0
          %1661 = vmatprep.subr.bf16.mxu0 0
          %1662 = vmatpush2.bf16.msra.mxu0 0
          %1663 = vmatprep.subr.bf16.mxu0 0
          %1664 = vmatpush2.bf16.msra.mxu0 0
          %1665 = vmatprep.subr.bf16.mxu0 0
          %1666 = vmatpush2.bf16.msra.mxu0 0
          %1667 = vmatprep.subr.bf16.mxu0 0
          %1668 = vmatpush2.bf16.msra.mxu0 0
          %1669 = vmatprep.mubr.bf16.mxu0 0
          %1670 = vmatmul.mubr.bf16.gmra.mxu0 %v1636
          %v1671 = vpop.f32.mrf.mxu0
          %v1672 = vadd.f32 %v417, %v1671
          %v1673 = vpop.f32.mrf.mxu0
          %v1674 = vadd.f32 %v421, %v1673
          %v1675 = vpop.f32.mrf.mxu0
          %v1676 = vadd.f32 %v417, %v1675
          %v1677 = vpop.f32.mrf.mxu0
          %v1678 = vadd.f32 %v421, %v1677
          %1679 = vdwg.mxu0
          %v1680 = vmul.f32 %v1672, 0.5
          %v1681 = vmul.f32 %v1674, 0.5
          %v1682 = vmul.f32 %v1676, 0.5
          %v1683 = vmul.f32 %v1678, 0.5
          %v1684 = vmul.f32 %v1672, 0.70710677
          %v1685 = vmul.f32 %v1674, 0.70710677
          %v1686 = vmul.f32 %v1676, 0.70710677
          %v1687 = vmul.f32 %v1678, 0.70710677
          %v1688 = vand.u32 2147483647, %v1684
          %v1689 = vand.u32 2147483647, %v1685
          %v1690 = vand.u32 2147483647, %v1686
          %v1691 = vand.u32 2147483647, %v1687
          %v1692 = vmul.f32 %v1688, 0.3275911
          %v1693 = vmul.f32 %v1689, 0.3275911
          %v1694 = vmul.f32 %v1690, 0.3275911
          %v1695 = vmul.f32 %v1691, 0.3275911
          %v1696 = vadd.f32 %v1692, 1.0
          %v1697 = vadd.f32 %v1693, 1.0
          %v1698 = vadd.f32 %v1694, 1.0
          %v1699 = vadd.f32 %v1695, 1.0
          %v1700 = vrcp.pop %v1696
          %v1701 = vrcp.pop %v1697
          %v1702 = vrcp.pop %v1698
          %v1703 = vrcp.pop %v1699
          %v1704 = vmul.f32 %v1700, 1.0614054
          %v1705 = vmul.f32 %v1701, 1.0614054
          %v1706 = vmul.f32 %v1702, 1.0614054
          %v1707 = vmul.f32 %v1703, 1.0614054
          %v1708 = vadd.f32 %v1704, -1.4531521
          %v1709 = vadd.f32 %v1705, -1.4531521
          %v1710 = vadd.f32 %v1706, -1.4531521
          %v1711 = vadd.f32 %v1707, -1.4531521
          %v1712 = vmul.f32 %v1700, %v1708
          %v1713 = vmul.f32 %v1701, %v1709
          %v1714 = vmul.f32 %v1702, %v1710
          %v1715 = vmul.f32 %v1703, %v1711
          %v1716 = vadd.f32 %v1712, 1.4214138
          %v1717 = vadd.f32 %v1713, 1.4214138
          %v1718 = vadd.f32 %v1714, 1.4214138
          %v1719 = vadd.f32 %v1715, 1.4214138
          %v1720 = vmul.f32 %v1700, %v1716
          %v1721 = vmul.f32 %v1701, %v1717
          %v1722 = vmul.f32 %v1702, %v1718
          %v1723 = vmul.f32 %v1703, %v1719
          %v1724 = vadd.f32 %v1720, -0.28449672
          %v1725 = vadd.f32 %v1721, -0.28449672
          %v1726 = vadd.f32 %v1722, -0.28449672
          %v1727 = vadd.f32 %v1723, -0.28449672
          %v1728 = vmul.f32 %v1700, %v1724
          %v1729 = vmul.f32 %v1701, %v1725
          %v1730 = vmul.f32 %v1702, %v1726
          %v1731 = vmul.f32 %v1703, %v1727
          %v1732 = vadd.f32 %v1728, 0.2548296
          %v1733 = vadd.f32 %v1729, 0.2548296
          %v1734 = vadd.f32 %v1730, 0.2548296
          %v1735 = vadd.f32 %v1731, 0.2548296
          %v1736 = vmul.f32 %v1700, %v1732
          %v1737 = vmul.f32 %v1701, %v1733
          %v1738 = vmul.f32 %v1702, %v1734
          %v1739 = vmul.f32 %v1703, %v1735
          %v1740 = vsub.f32 0.0, %v1688
          %v1741 = vsub.f32 0.0, %v1689
          %v1742 = vsub.f32 0.0, %v1690
          %v1743 = vsub.f32 0.0, %v1691
          %v1744 = vmul.f32 %v1740, %v1688
          %v1745 = vmul.f32 %v1741, %v1689
          %v1746 = vmul.f32 %v1742, %v1690
          %v1747 = vmul.f32 %v1743, %v1691
          %v1748 = vmul.f32 %v1744, 1.442695
          %v1749 = vpow.pop %v1748
          %v1750 = vmul.f32 %v1745, 1.442695
          %v1751 = vpow.pop %v1750
          %v1752 = vmul.f32 %v1746, 1.442695
          %v1753 = vpow.pop %v1752
          %v1754 = vmul.f32 %v1747, 1.442695
          %v1755 = vpow.pop %v1754
          %v1756 = vmul.f32 %v1736, %v1749
          %v1757 = vmul.f32 %v1737, %v1751
          %v1758 = vmul.f32 %v1738, %v1753
          %v1759 = vmul.f32 %v1739, %v1755
          %v1760 = vsub.f32 1.0, %v1756
          %v1761 = vsub.f32 1.0, %v1757
          %v1762 = vsub.f32 1.0, %v1758
          %v1763 = vsub.f32 1.0, %v1759
          %vm1764 = vcmp.ge.f32.partialorder %v1684, 0.0
          %vm1765 = vcmp.ge.f32.partialorder %v1685, 0.0
          %vm1766 = vcmp.ge.f32.partialorder %v1686, 0.0
          %vm1767 = vcmp.ge.f32.partialorder %v1687, 0.0
          %v1768 = vsub.f32 0.0, %v1760
          %v1769 = vsub.f32 0.0, %v1761
          %v1770 = vsub.f32 0.0, %v1762
          %v1771 = vsub.f32 0.0, %v1763
          %v1772 = vsel %vm1764, %v1760, %v1768
          %v1773 = vsel %vm1765, %v1761, %v1769
          %v1774 = vsel %vm1766, %v1762, %v1770
          %v1775 = vsel %vm1767, %v1763, %v1771
          %v1776 = vadd.f32 %v1772, 1.0
          %v1777 = vadd.f32 %v1773, 1.0
          %v1778 = vadd.f32 %v1774, 1.0
          %v1779 = vadd.f32 %v1775, 1.0
          %v1780 = vmul.f32 %v1680, %v1776
          %v1781 = vmul.f32 %v1681, %v1777
          %v1782 = vmul.f32 %v1682, %v1778
          %v1783 = vmul.f32 %v1683, %v1779
          %v1788 = vrot.slane %v1780, 7
          %v1789 = vrot.slane %v1781, 7
          %v1790 = vrot.slane %v1782, 7
          %v1791 = vsel %vm1481, %v1788, %v1790
          %v1792 = vrot.slane %v1783, 7
          %v1793 = vsel %vm1481, %v1789, %v1792
          %1800 = vst [vmem:[#allocation2] sm:$0xfe] %v1788
          %1801 = vst [vmem:[#allocation2 + $0x8] sm:$0xfe] %v1789
          %1802 = vst [vmem:[#allocation2 + $0x10] sm:$0xff] %v1791
          %1803 = vst [vmem:[#allocation2 + $0x18] sm:$0xff] %v1793
          %1804 = vst [vmem:[#allocation2 + $0x20] sm:$0x1] %v1790
          %1805 = vst [vmem:[#allocation2 + $0x28] sm:$0x1] %v1792
        $region52: #{conv_ffn_forward.1} parent=47 // pred_fallthru
          _
        %p1806 = scmp.lt.s32.totalorder %s26, 1
        // Predicated region
        $region53: #{conv_ffn_forward.1} parent=47 // pred_check
          %p1807 = pneg %p1806
        $region54: #{conv_ffn_forward.1} parent=47 // pred_check_branch
          %1809 = sbr.rel (%p1807) target = $region56
        $region55: #{conv_ffn_forward.1} parent=47 // pred_region
          %s1810 = sadd.s32 %s293, 8
          %s1811 = smul.u32 %s1810, 16
          %s1812 = scalar_lea.vmem %s290, %s1811
          %v1813 = vld [vmem:[%s1812] sm:$0xff]
          %v1814 = vld [vmem:[%s1812 + $0x8] sm:$0xff]
          %v1815 = vpack.c.bf16 %v1814, %v1813
          %1816 = vmatprep.subr.bf16.mxu0 %v487
          %1817 = vmatpush1.bf16.msra.mxu0 %v486
          %1818 = vmatprep.subr.bf16.mxu0 %v485
          %1819 = vmatpush1.bf16.msra.mxu0 %v484
          %1820 = vmatprep.subr.bf16.mxu0 %v483
          %1821 = vmatpush1.bf16.msra.mxu0 %v482
          %1822 = vmatprep.subr.bf16.mxu0 %v481
          %1823 = vmatpush1.bf16.msra.mxu0 %v480
          %1824 = vmatprep.subr.bf16.mxu0 %v479
          %1825 = vmatpush1.bf16.msra.mxu0 %v478
          %1826 = vmatprep.subr.bf16.mxu0 %v477
          %1827 = vmatpush1.bf16.msra.mxu0 %v476
          %1828 = vmatprep.subr.bf16.mxu0 %v475
          %1829 = vmatpush1.bf16.msra.mxu0 %v474
          %1830 = vmatprep.subr.bf16.mxu0 %v473
          %1831 = vmatpush1.bf16.msra.mxu0 %v472
          %1832 = vmatprep.subr.bf16.mxu0 0
          %1833 = vmatpush2.bf16.msra.mxu0 0
          %1834 = vmatprep.subr.bf16.mxu0 0
          %1835 = vmatpush2.bf16.msra.mxu0 0
          %1836 = vmatprep.subr.bf16.mxu0 0
          %1837 = vmatpush2.bf16.msra.mxu0 0
          %1838 = vmatprep.subr.bf16.mxu0 0
          %1839 = vmatpush2.bf16.msra.mxu0 0
          %1840 = vmatprep.subr.bf16.mxu0 0
          %1841 = vmatpush2.bf16.msra.mxu0 0
          %1842 = vmatprep.subr.bf16.mxu0 0
          %1843 = vmatpush2.bf16.msra.mxu0 0
          %1844 = vmatprep.subr.bf16.mxu0 0
          %1845 = vmatpush2.bf16.msra.mxu0 0
          %1846 = vmatprep.subr.bf16.mxu0 0
          %1847 = vmatpush2.bf16.msra.mxu0 0
          %1848 = vmatprep.mubr.bf16.mxu0 0
          %1849 = vmatmul.mubr.bf16.gmra.mxu0 %v1815
          %v1850 = vpop.f32.mrf.mxu0
          %v1851 = vadd.f32 %v417, %v1850
          %v1852 = vpop.f32.mrf.mxu0
          %v1853 = vadd.f32 %v421, %v1852
          %v1854 = vpop.f32.mrf.mxu0
          %v1855 = vadd.f32 %v417, %v1854
          %v1856 = vpop.f32.mrf.mxu0
          %v1857 = vadd.f32 %v421, %v1856
          %1858 = vdwg.mxu0
          %v1859 = vmul.f32 %v1851, 0.5
          %v1860 = vmul.f32 %v1853, 0.5
          %v1861 = vmul.f32 %v1855, 0.5
          %v1862 = vmul.f32 %v1857, 0.5
          %v1863 = vmul.f32 %v1851, 0.70710677
          %v1864 = vmul.f32 %v1853, 0.70710677
          %v1865 = vmul.f32 %v1855, 0.70710677
          %v1866 = vmul.f32 %v1857, 0.70710677
          %v1867 = vand.u32 2147483647, %v1863
          %v1868 = vand.u32 2147483647, %v1864
          %v1869 = vand.u32 2147483647, %v1865
          %v1870 = vand.u32 2147483647, %v1866
          %v1871 = vmul.f32 %v1867, 0.3275911
          %v1872 = vmul.f32 %v1868, 0.3275911
          %v1873 = vmul.f32 %v1869, 0.3275911
          %v1874 = vmul.f32 %v1870, 0.3275911
          %v1875 = vadd.f32 %v1871, 1.0
          %v1876 = vadd.f32 %v1872, 1.0
          %v1877 = vadd.f32 %v1873, 1.0
          %v1878 = vadd.f32 %v1874, 1.0
          %v1879 = vrcp.pop %v1875
          %v1880 = vrcp.pop %v1876
          %v1881 = vrcp.pop %v1877
          %v1882 = vrcp.pop %v1878
          %v1883 = vmul.f32 %v1879, 1.0614054
          %v1884 = vmul.f32 %v1880, 1.0614054
          %v1885 = vmul.f32 %v1881, 1.0614054
          %v1886 = vmul.f32 %v1882, 1.0614054
          %v1887 = vadd.f32 %v1883, -1.4531521
          %v1888 = vadd.f32 %v1884, -1.4531521
          %v1889 = vadd.f32 %v1885, -1.4531521
          %v1890 = vadd.f32 %v1886, -1.4531521
          %v1891 = vmul.f32 %v1879, %v1887
          %v1892 = vmul.f32 %v1880, %v1888
          %v1893 = vmul.f32 %v1881, %v1889
          %v1894 = vmul.f32 %v1882, %v1890
          %v1895 = vadd.f32 %v1891, 1.4214138
          %v1896 = vadd.f32 %v1892, 1.4214138
          %v1897 = vadd.f32 %v1893, 1.4214138
          %v1898 = vadd.f32 %v1894, 1.4214138
          %v1899 = vmul.f32 %v1879, %v1895
          %v1900 = vmul.f32 %v1880, %v1896
          %v1901 = vmul.f32 %v1881, %v1897
          %v1902 = vmul.f32 %v1882, %v1898
          %v1903 = vadd.f32 %v1899, -0.28449672
          %v1904 = vadd.f32 %v1900, -0.28449672
          %v1905 = vadd.f32 %v1901, -0.28449672
          %v1906 = vadd.f32 %v1902, -0.28449672
          %v1907 = vmul.f32 %v1879, %v1903
          %v1908 = vmul.f32 %v1880, %v1904
          %v1909 = vmul.f32 %v1881, %v1905
          %v1910 = vmul.f32 %v1882, %v1906
          %v1911 = vadd.f32 %v1907, 0.2548296
          %v1912 = vadd.f32 %v1908, 0.2548296
          %v1913 = vadd.f32 %v1909, 0.2548296
          %v1914 = vadd.f32 %v1910, 0.2548296
          %v1915 = vmul.f32 %v1879, %v1911
          %v1916 = vmul.f32 %v1880, %v1912
          %v1917 = vmul.f32 %v1881, %v1913
          %v1918 = vmul.f32 %v1882, %v1914
          %v1919 = vsub.f32 0.0, %v1867
          %v1920 = vsub.f32 0.0, %v1868
          %v1921 = vsub.f32 0.0, %v1869
          %v1922 = vsub.f32 0.0, %v1870
          %v1923 = vmul.f32 %v1919, %v1867
          %v1924 = vmul.f32 %v1920, %v1868
          %v1925 = vmul.f32 %v1921, %v1869
          %v1926 = vmul.f32 %v1922, %v1870
          %v1927 = vmul.f32 %v1923, 1.442695
          %v1928 = vpow.pop %v1927
          %v1929 = vmul.f32 %v1924, 1.442695
          %v1930 = vpow.pop %v1929
          %v1931 = vmul.f32 %v1925, 1.442695
          %v1932 = vpow.pop %v1931
          %v1933 = vmul.f32 %v1926, 1.442695
          %v1934 = vpow.pop %v1933
          %v1935 = vmul.f32 %v1915, %v1928
          %v1936 = vmul.f32 %v1916, %v1930
          %v1937 = vmul.f32 %v1917, %v1932
          %v1938 = vmul.f32 %v1918, %v1934
          %v1939 = vsub.f32 1.0, %v1935
          %v1940 = vsub.f32 1.0, %v1936
          %v1941 = vsub.f32 1.0, %v1937
          %v1942 = vsub.f32 1.0, %v1938
          %vm1943 = vcmp.ge.f32.partialorder %v1863, 0.0
          %vm1944 = vcmp.ge.f32.partialorder %v1864, 0.0
          %vm1945 = vcmp.ge.f32.partialorder %v1865, 0.0
          %vm1946 = vcmp.ge.f32.partialorder %v1866, 0.0
          %v1947 = vsub.f32 0.0, %v1939
          %v1948 = vsub.f32 0.0, %v1940
          %v1949 = vsub.f32 0.0, %v1941
          %v1950 = vsub.f32 0.0, %v1942
          %v1951 = vsel %vm1943, %v1939, %v1947
          %v1952 = vsel %vm1944, %v1940, %v1948
          %v1953 = vsel %vm1945, %v1941, %v1949
          %v1954 = vsel %vm1946, %v1942, %v1950
          %v1955 = vadd.f32 %v1951, 1.0
          %v1956 = vadd.f32 %v1952, 1.0
          %v1957 = vadd.f32 %v1953, 1.0
          %v1958 = vadd.f32 %v1954, 1.0
          %v1959 = vmul.f32 %v1859, %v1955
          %v1960 = vmul.f32 %v1860, %v1956
          %v1961 = vmul.f32 %v1861, %v1957
          %v1962 = vmul.f32 %v1862, %v1958
          %v1967 = vrot.slane %v1959, 7
          %v1968 = vrot.slane %v1960, 7
          %v1969 = vrot.slane %v1961, 7
          %v1970 = vsel %vm1481, %v1967, %v1969
          %v1971 = vrot.slane %v1962, 7
          %v1972 = vsel %vm1481, %v1968, %v1971
          %1979 = vst [vmem:[%s300] sm:$0xfe] %v1967
          %1980 = vst [vmem:[%s300 + $0x8] sm:$0xfe] %v1968
          %1981 = vst [vmem:[%s300 + $0x10] sm:$0xff] %v1970
          %1982 = vst [vmem:[%s300 + $0x18] sm:$0xff] %v1972
          %1983 = vst [vmem:[%s300 + $0x20] sm:$0x1] %v1969
          %1984 = vst [vmem:[%s300 + $0x28] sm:$0x1] %v1971
        $region56: #{conv_ffn_forward.1} parent=47 // pred_fallthru
          _
        %v1985 = vld [vmem:[%s3] sm:$0xff]
        %v1986 = vld [vmem:[%s3 + $0x8] sm:$0xff]
        %v1987 = vld [vmem:[%s3 + $0x10] sm:$0x1]
        %v1988 = vld [vmem:[%s3 + $0x18] sm:$0x1]
        %v1989 = vld [vmem:[%s4] sm:$0x3]
        %v1990 = vld [vmem:[#allocation2] sm:$0xff]
        %v1991 = vld [vmem:[#allocation2 + $0x8] sm:$0xff]
        %v1992 = vld [vmem:[#allocation2 + $0x10] sm:$0xff]
        %v1993 = vld [vmem:[#allocation2 + $0x18] sm:$0xff]
        %v1994 = vld [vmem:[#allocation2 + $0x20] sm:$0x3]
        %v1995 = vld [vmem:[#allocation2 + $0x28] sm:$0x3]
        %v1996 = vlaneseq
        %v1997 = vshrl.u32 %v1996, 7
        %v1998 = vsub.s32 0, %v1997
        %v1999 = vrot.slane %v1985, %v1998
        %v2000 = vlaneseq
        %v2001 = vshrl.u32 %v2000, 7
        %v2002 = vsub.s32 0, %v2001
        %v2003 = vrot.slane %v1986, %v2002
        %v2004 = vmul.f32 %v1990, %v1999
        %v2005 = vmul.f32 %v1991, %v2003
        %v2006 = vmul.f32 %v1992, %v1999
        %v2007 = vmul.f32 %v1993, %v2003
        %v2008 = vadd.f32 %v2004, 0.0
        %v2009 = vadd.f32 %v2005, 0.0
        %v2010 = vadd.f32 %v2006, 0.0
        %v2011 = vadd.f32 %v2007, 0.0
        %v2012 = vlaneseq
        %v2013 = vshrl.u32 %v2012, 7
        %v2014 = vsub.s32 1, %v2013
        %v2015 = vrot.slane %v1985, %v2014
        %v2016 = vlaneseq
        %v2017 = vshrl.u32 %v2016, 7
        %v2018 = vsub.s32 1, %v2017
        %v2019 = vrot.slane %v1986, %v2018
        %v2020 = vmul.f32 %v1990, %v2015
        %v2021 = vmul.f32 %v1991, %v2019
        %v2022 = vmul.f32 %v1992, %v2015
        %v2023 = vmul.f32 %v1993, %v2019
        %v2024 = vmul.f32 %v1994, %v2015
        %v2025 = vmul.f32 %v1995, %v2019
        %vm2032 = vcmask 1046528
        %v2033 = vrot.slane %v2020, 1
        %v2034 = vrot.slane %v2022, 1
        %v2035 = vsel %vm2032, %v2033, %v2034
        %v2036 = vrot.slane %v2021, 1
        %v2037 = vrot.slane %v2023, 1
        %v2038 = vsel %vm2032, %v2036, %v2037
        %v2039 = vrot.slane %v2024, 1
        %v2040 = vsel %vm2032, %v2034, %v2039
        %v2041 = vrot.slane %v2025, 1
        %v2042 = vsel %vm2032, %v2037, %v2041
        %v2047 = vadd.f32 %v2008, %v2035
        %v2048 = vadd.f32 %v2009, %v2038
        %v2049 = vadd.f32 %v2010, %v2040
        %v2050 = vadd.f32 %v2011, %v2042
        %v2051 = vlaneseq
        %v2052 = vshrl.u32 %v2051, 7
        %v2053 = vsub.s32 2, %v2052
        %v2054 = vrot.slane %v1985, %v2053
        %v2055 = vlaneseq
        %v2056 = vshrl.u32 %v2055, 7
        %v2057 = vsub.s32 2, %v2056
        %v2058 = vrot.slane %v1986, %v2057
        %v2059 = vmul.f32 %v1990, %v2054
        %v2060 = vmul.f32 %v1991, %v2058
        %v2061 = vmul.f32 %v1992, %v2054
        %v2062 = vmul.f32 %v1993, %v2058
        %v2063 = vmul.f32 %v1994, %v2054
        %v2064 = vmul.f32 %v1995, %v2058
        %vm2071 = vcmask 1045504
        %v2072 = vrot.slane %v2059, 2
        %v2073 = vrot.slane %v2061, 2
        %v2074 = vsel %vm2071, %v2072, %v2073
        %v2075 = vrot.slane %v2060, 2
        %v2076 = vrot.slane %v2062, 2
        %v2077 = vsel %vm2071, %v2075, %v2076
        %v2078 = vrot.slane %v2063, 2
        %v2079 = vsel %vm2071, %v2073, %v2078
        %v2080 = vrot.slane %v2064, 2
        %v2081 = vsel %vm2071, %v2076, %v2080
        %v2086 = vadd.f32 %v2047, %v2074
        %v2087 = vadd.f32 %v2048, %v2077
        %v2088 = vadd.f32 %v2049, %v2079
        %v2089 = vadd.f32 %v2050, %v2081
        %v2090 = vld [vmem:[%s1578] sm:$0xff]
        %v2091 = vld [vmem:[%s1578 + $0x8] sm:$0xff]
        %v2092 = vld [vmem:[%s1578 + $0x10] sm:$0xff]
        %v2093 = vld [vmem:[%s1578 + $0x18] sm:$0xff]
        %v2094 = vld [vmem:[%s1578 + $0x20] sm:$0x3]
        %v2095 = vld [vmem:[%s1578 + $0x28] sm:$0x3]
        %v2096 = vlaneseq
        %v2097 = vshrl.u32 %v2096, 7
        %v2098 = vsub.s32 3, %v2097
        %v2099 = vrot.slane %v1985, %v2098
        %v2100 = vlaneseq
        %v2101 = vshrl.u32 %v2100, 7
        %v2102 = vsub.s32 3, %v2101
        %v2103 = vrot.slane %v1986, %v2102
        %v2104 = vmul.f32 %v2090, %v2099
        %v2105 = vmul.f32 %v2091, %v2103
        %v2106 = vmul.f32 %v2092, %v2099
        %v2107 = vmul.f32 %v2093, %v2103
        %v2108 = vadd.f32 %v2086, %v2104
        %v2109 = vadd.f32 %v2087, %v2105
        %v2110 = vadd.f32 %v2088, %v2106
        %v2111 = vadd.f32 %v2089, %v2107
        %v2112 = vlaneseq
        %v2113 = vshrl.u32 %v2112, 7
        %v2114 = vsub.s32 4, %v2113
        %v2115 = vrot.slane %v1985, %v2114
        %v2116 = vlaneseq
        %v2117 = vshrl.u32 %v2116, 7
        %v2118 = vsub.s32 4, %v2117
        %v2119 = vrot.slane %v1986, %v2118
        %v2120 = vmul.f32 %v2090, %v2115
        %v2121 = vmul.f32 %v2091, %v2119
        %v2122 = vmul.f32 %v2092, %v2115
        %v2123 = vmul.f32 %v2093, %v2119
        %v2124 = vmul.f32 %v2094, %v2115
        %v2125 = vmul.f32 %v2095, %v2119
        %v2132 = vrot.slane %v2120, 1
        %v2133 = vrot.slane %v2122, 1
        %v2134 = vsel %vm2032, %v2132, %v2133
        %v2135 = vrot.slane %v2121, 1
        %v2136 = vrot.slane %v2123, 1
        %v2137 = vsel %vm2032, %v2135, %v2136
        %v2138 = vrot.slane %v2124, 1
        %v2139 = vsel %vm2032, %v2133, %v2138
        %v2140 = vrot.slane %v2125, 1
        %v2141 = vsel %vm2032, %v2136, %v2140
        %v2146 = vadd.f32 %v2108, %v2134
        %v2147 = vadd.f32 %v2109, %v2137
        %v2148 = vadd.f32 %v2110, %v2139
        %v2149 = vadd.f32 %v2111, %v2141
        %v2150 = vlaneseq
        %v2151 = vshrl.u32 %v2150, 7
        %v2152 = vsub.s32 5, %v2151
        %v2153 = vrot.slane %v1985, %v2152
        %v2154 = vlaneseq
        %v2155 = vshrl.u32 %v2154, 7
        %v2156 = vsub.s32 5, %v2155
        %v2157 = vrot.slane %v1986, %v2156
        %v2158 = vmul.f32 %v2090, %v2153
        %v2159 = vmul.f32 %v2091, %v2157
        %v2160 = vmul.f32 %v2092, %v2153
        %v2161 = vmul.f32 %v2093, %v2157
        %v2162 = vmul.f32 %v2094, %v2153
        %v2163 = vmul.f32 %v2095, %v2157
        %v2170 = vrot.slane %v2158, 2
        %v2171 = vrot.slane %v2160, 2
        %v2172 = vsel %vm2071, %v2170, %v2171
        %v2173 = vrot.slane %v2159, 2
        %v2174 = vrot.slane %v2161, 2
        %v2175 = vsel %vm2071, %v2173, %v2174
        %v2176 = vrot.slane %v2162, 2
        %v2177 = vsel %vm2071, %v2171, %v2176
        %v2178 = vrot.slane %v2163, 2
        %v2179 = vsel %vm2071, %v2174, %v2178
        %v2184 = vadd.f32 %v2146, %v2172
        %v2185 = vadd.f32 %v2147, %v2175
        %v2186 = vadd.f32 %v2148, %v2177
        %v2187 = vadd.f32 %v2149, %v2179
        %s2188 = scalar_lea.vmem [#allocation2], 96
        %v2189 = vld [vmem:[%s2188] sm:$0xff]
        %v2190 = vld [vmem:[%s2188 + $0x8] sm:$0xff]
        %v2191 = vld [vmem:[%s2188 + $0x10] sm:$0xff]
        %v2192 = vld [vmem:[%s2188 + $0x18] sm:$0xff]
        %v2193 = vld [vmem:[%s2188 + $0x20] sm:$0x3]
        %v2194 = vld [vmem:[%s2188 + $0x28] sm:$0x3]
        %v2195 = vlaneseq
        %v2196 = vshrl.u32 %v2195, 7
        %v2197 = vsub.s32 6, %v2196
        %v2198 = vrot.slane %v1985, %v2197
        %v2199 = vlaneseq
        %v2200 = vshrl.u32 %v2199, 7
        %v2201 = vsub.s32 6, %v2200
        %v2202 = vrot.slane %v1986, %v2201
        %v2203 = vmul.f32 %v2189, %v2198
        %v2204 = vmul.f32 %v2190, %v2202
        %v2205 = vmul.f32 %v2191, %v2198
        %v2206 = vmul.f32 %v2192, %v2202
        %v2207 = vadd.f32 %v2184, %v2203
        %v2208 = vadd.f32 %v2185, %v2204
        %v2209 = vadd.f32 %v2186, %v2205
        %v2210 = vadd.f32 %v2187, %v2206
        %v2211 = vlaneseq
        %v2212 = vshrl.u32 %v2211, 7
        %v2213 = vsub.s32 7, %v2212
        %v2214 = vrot.slane %v1985, %v2213
        %v2215 = vlaneseq
        %v2216 = vshrl.u32 %v2215, 7
        %v2217 = vsub.s32 7, %v2216
        %v2218 = vrot.slane %v1986, %v2217
        %v2219 = vmul.f32 %v2189, %v2214
        %v2220 = vmul.f32 %v2190, %v2218
        %v2221 = vmul.f32 %v2191, %v2214
        %v2222 = vmul.f32 %v2192, %v2218
        %v2223 = vmul.f32 %v2193, %v2214
        %v2224 = vmul.f32 %v2194, %v2218
        %v2231 = vrot.slane %v2219, 1
        %v2232 = vrot.slane %v2221, 1
        %v2233 = vsel %vm2032, %v2231, %v2232
        %v2234 = vrot.slane %v2220, 1
        %v2235 = vrot.slane %v2222, 1
        %v2236 = vsel %vm2032, %v2234, %v2235
        %v2237 = vrot.slane %v2223, 1
        %v2238 = vsel %vm2032, %v2232, %v2237
        %v2239 = vrot.slane %v2224, 1
        %v2240 = vsel %vm2032, %v2235, %v2239
        %v2245 = vadd.f32 %v2207, %v2233
        %v2246 = vadd.f32 %v2208, %v2236
        %v2247 = vadd.f32 %v2209, %v2238
        %v2248 = vadd.f32 %v2210, %v2240
        %v2249 = vlaneseq
        %v2250 = vshrl.u32 %v2249, 7
        %v2251 = vsub.s32 0, %v2250
        %v2252 = vrot.slane %v1987, %v2251
        %v2253 = vlaneseq
        %v2254 = vshrl.u32 %v2253, 7
        %v2255 = vsub.s32 0, %v2254
        %v2256 = vrot.slane %v1988, %v2255
        %v2257 = vmul.f32 %v2189, %v2252
        %v2258 = vmul.f32 %v2190, %v2256
        %v2259 = vmul.f32 %v2191, %v2252
        %v2260 = vmul.f32 %v2192, %v2256
        %v2261 = vmul.f32 %v2193, %v2252
        %v2262 = vmul.f32 %v2194, %v2256
        %v2269 = vrot.slane %v2257, 2
        %v2270 = vrot.slane %v2259, 2
        %v2271 = vsel %vm2071, %v2269, %v2270
        %v2272 = vrot.slane %v2258, 2
        %v2273 = vrot.slane %v2260, 2
        %v2274 = vsel %vm2071, %v2272, %v2273
        %v2275 = vrot.slane %v2261, 2
        %v2276 = vsel %vm2071, %v2270, %v2275
        %v2277 = vrot.slane %v2262, 2
        %v2278 = vsel %vm2071, %v2273, %v2277
        %v2283 = vadd.f32 %v2245, %v2271
        %v2284 = vadd.f32 %v2246, %v2274
        %v2285 = vadd.f32 %v2247, %v2276
        %v2286 = vadd.f32 %v2248, %v2278
        %v2288 = vlaneseq
        %v2289 = vshrl.u32 %v2288, 7
        %v2290 = vsub.s32 0, %v2289
        %v2291 = vrot.slane %v1989, %v2290
        %v2292 = vlaneseq
        %v2293 = vshrl.u32 %v2292, 7
        %v2294 = vsub.s32 1, %v2293
        %v2295 = vrot.slane %v1989, %v2294
        %v2298 = vadd.f32 %v2283, %v2291
        %v2299 = vadd.f32 %v2284, %v2295
        %v2300 = vadd.f32 %v2285, %v2291
        %v2301 = vadd.f32 %v2286, %v2295
        %v2302 = vmul.f32 %v2298, 0.5
        %v2303 = vmul.f32 %v2299, 0.5
        %v2304 = vmul.f32 %v2300, 0.5
        %v2305 = vmul.f32 %v2301, 0.5
        %v2306 = vmul.f32 %v2298, 0.70710677
        %v2307 = vmul.f32 %v2299, 0.70710677
        %v2308 = vmul.f32 %v2300, 0.70710677
        %v2309 = vmul.f32 %v2301, 0.70710677
        %v2310 = vand.u32 2147483647, %v2306
        %v2311 = vand.u32 2147483647, %v2307
        %v2312 = vand.u32 2147483647, %v2308
        %v2313 = vand.u32 2147483647, %v2309
        %v2314 = vmul.f32 %v2310, 0.3275911
        %v2315 = vmul.f32 %v2311, 0.3275911
        %v2316 = vmul.f32 %v2312, 0.3275911
        %v2317 = vmul.f32 %v2313, 0.3275911
        %v2318 = vadd.f32 %v2314, 1.0
        %v2319 = vadd.f32 %v2315, 1.0
        %v2320 = vadd.f32 %v2316, 1.0
        %v2321 = vadd.f32 %v2317, 1.0
        %v2322 = vrcp.pop %v2318
        %v2323 = vrcp.pop %v2319
        %v2324 = vrcp.pop %v2320
        %v2325 = vrcp.pop %v2321
        %v2326 = vmul.f32 %v2322, 1.0614054
        %v2327 = vmul.f32 %v2323, 1.0614054
        %v2328 = vmul.f32 %v2324, 1.0614054
        %v2329 = vmul.f32 %v2325, 1.0614054
        %v2330 = vadd.f32 %v2326, -1.4531521
        %v2331 = vadd.f32 %v2327, -1.4531521
        %v2332 = vadd.f32 %v2328, -1.4531521
        %v2333 = vadd.f32 %v2329, -1.4531521
        %v2334 = vmul.f32 %v2322, %v2330
        %v2335 = vmul.f32 %v2323, %v2331
        %v2336 = vmul.f32 %v2324, %v2332
        %v2337 = vmul.f32 %v2325, %v2333
        %v2338 = vadd.f32 %v2334, 1.4214138
        %v2339 = vadd.f32 %v2335, 1.4214138
        %v2340 = vadd.f32 %v2336, 1.4214138
        %v2341 = vadd.f32 %v2337, 1.4214138
        %v2342 = vmul.f32 %v2322, %v2338
        %v2343 = vmul.f32 %v2323, %v2339
        %v2344 = vmul.f32 %v2324, %v2340
        %v2345 = vmul.f32 %v2325, %v2341
        %v2346 = vadd.f32 %v2342, -0.28449672
        %v2347 = vadd.f32 %v2343, -0.28449672
        %v2348 = vadd.f32 %v2344, -0.28449672
        %v2349 = vadd.f32 %v2345, -0.28449672
        %v2350 = vmul.f32 %v2322, %v2346
        %v2351 = vmul.f32 %v2323, %v2347
        %v2352 = vmul.f32 %v2324, %v2348
        %v2353 = vmul.f32 %v2325, %v2349
        %v2354 = vadd.f32 %v2350, 0.2548296
        %v2355 = vadd.f32 %v2351, 0.2548296
        %v2356 = vadd.f32 %v2352, 0.2548296
        %v2357 = vadd.f32 %v2353, 0.2548296
        %v2358 = vmul.f32 %v2322, %v2354
        %v2359 = vmul.f32 %v2323, %v2355
        %v2360 = vmul.f32 %v2324, %v2356
        %v2361 = vmul.f32 %v2325, %v2357
        %v2362 = vsub.f32 0.0, %v2310
        %v2363 = vsub.f32 0.0, %v2311
        %v2364 = vsub.f32 0.0, %v2312
        %v2365 = vsub.f32 0.0, %v2313
        %v2366 = vmul.f32 %v2362, %v2310
        %v2367 = vmul.f32 %v2363, %v2311
        %v2368 = vmul.f32 %v2364, %v2312
        %v2369 = vmul.f32 %v2365, %v2313
        %v2370 = vmul.f32 %v2366, 1.442695
        %v2371 = vpow.pop %v2370
        %v2372 = vmul.f32 %v2367, 1.442695
        %v2373 = vpow.pop %v2372
        %v2374 = vmul.f32 %v2368, 1.442695
        %v2375 = vpow.pop %v2374
        %v2376 = vmul.f32 %v2369, 1.442695
        %v2377 = vpow.pop %v2376
        %v2378 = vmul.f32 %v2358, %v2371
        %v2379 = vmul.f32 %v2359, %v2373
        %v2380 = vmul.f32 %v2360, %v2375
        %v2381 = vmul.f32 %v2361, %v2377
        %v2382 = vsub.f32 1.0, %v2378
        %v2383 = vsub.f32 1.0, %v2379
        %v2384 = vsub.f32 1.0, %v2380
        %v2385 = vsub.f32 1.0, %v2381
        %vm2386 = vcmp.ge.f32.partialorder %v2306, 0.0
        %vm2387 = vcmp.ge.f32.partialorder %v2307, 0.0
        %vm2388 = vcmp.ge.f32.partialorder %v2308, 0.0
        %vm2389 = vcmp.ge.f32.partialorder %v2309, 0.0
        %v2390 = vsub.f32 0.0, %v2382
        %v2391 = vsub.f32 0.0, %v2383
        %v2392 = vsub.f32 0.0, %v2384
        %v2393 = vsub.f32 0.0, %v2385
        %v2394 = vsel %vm2386, %v2382, %v2390
        %v2395 = vsel %vm2387, %v2383, %v2391
        %v2396 = vsel %vm2388, %v2384, %v2392
        %v2397 = vsel %vm2389, %v2385, %v2393
        %v2398 = vadd.f32 %v2394, 1.0
        %v2399 = vadd.f32 %v2395, 1.0
        %v2400 = vadd.f32 %v2396, 1.0
        %v2401 = vadd.f32 %v2397, 1.0
        %v2402 = vmul.f32 %v2302, %v2398
        %v2403 = vmul.f32 %v2303, %v2399
        %v2404 = vmul.f32 %v2304, %v2400
        %v2405 = vmul.f32 %v2305, %v2401
        %v2406 = vpack.c.bf16 %v2404, %v2402
        %v2407 = vpack.c.bf16 %v2405, %v2403
        %v2410 = vunpack.c.l.b16 %v2406
        %v2411 = vunpack.c.l.b16 %v2407
        %v2412 = vunpack.c.h.b16 %v2406
        %v2413 = vunpack.c.h.b16 %v2407
        %v2414 = vpack.c.b16 %v2411, %v2410
        %v2415 = vpack.c.b16 %v2413, %v2412
        %2418 = vst [vmem:[#allocation3] sm:$0xff] %v2414
        %2419 = vst [vmem:[#allocation3 + $0x8] sm:$0xff] %v2415
        %v2420 = vld [vmem:[%s1578] sm:$0xff]
        %v2421 = vld [vmem:[%s1578 + $0x8] sm:$0xff]
        %v2422 = vld [vmem:[%s1578 + $0x10] sm:$0xff]
        %v2423 = vld [vmem:[%s1578 + $0x18] sm:$0xff]
        %v2424 = vld [vmem:[%s1578 + $0x20] sm:$0x3]
        %v2425 = vld [vmem:[%s1578 + $0x28] sm:$0x3]
        %v2426 = vmul.f32 %v2420, %v1999
        %v2427 = vmul.f32 %v2421, %v2003
        %v2428 = vmul.f32 %v2422, %v1999
        %v2429 = vmul.f32 %v2423, %v2003
        %v2430 = vadd.f32 %v2426, 0.0
        %v2431 = vadd.f32 %v2427, 0.0
        %v2432 = vadd.f32 %v2428, 0.0
        %v2433 = vadd.f32 %v2429, 0.0
        %v2434 = vmul.f32 %v2420, %v2015
        %v2435 = vmul.f32 %v2421, %v2019
        %v2436 = vmul.f32 %v2422, %v2015
        %v2437 = vmul.f32 %v2423, %v2019
        %v2438 = vmul.f32 %v2424, %v2015
        %v2439 = vmul.f32 %v2425, %v2019
        %v2446 = vrot.slane %v2434, 1
        %v2447 = vrot.slane %v2436, 1
        %v2448 = vsel %vm2032, %v2446, %v2447
        %v2449 = vrot.slane %v2435, 1
        %v2450 = vrot.slane %v2437, 1
        %v2451 = vsel %vm2032, %v2449, %v2450
        %v2452 = vrot.slane %v2438, 1
        %v2453 = vsel %vm2032, %v2447, %v2452
        %v2454 = vrot.slane %v2439, 1
        %v2455 = vsel %vm2032, %v2450, %v2454
        %v2460 = vadd.f32 %v2430, %v2448
        %v2461 = vadd.f32 %v2431, %v2451
        %v2462 = vadd.f32 %v2432, %v2453
        %v2463 = vadd.f32 %v2433, %v2455
        %v2464 = vmul.f32 %v2420, %v2054
        %v2465 = vmul.f32 %v2421, %v2058
        %v2466 = vmul.f32 %v2422, %v2054
        %v2467 = vmul.f32 %v2423, %v2058
        %v2468 = vmul.f32 %v2424, %v2054
        %v2469 = vmul.f32 %v2425, %v2058
        %v2476 = vrot.slane %v2464, 2
        %v2477 = vrot.slane %v2466, 2
        %v2478 = vsel %vm2071, %v2476, %v2477
        %v2479 = vrot.slane %v2465, 2
        %v2480 = vrot.slane %v2467, 2
        %v2481 = vsel %vm2071, %v2479, %v2480
        %v2482 = vrot.slane %v2468, 2
        %v2483 = vsel %vm2071, %v2477, %v2482
        %v2484 = vrot.slane %v2469, 2
        %v2485 = vsel %vm2071, %v2480, %v2484
        %v2490 = vadd.f32 %v2460, %v2478
        %v2491 = vadd.f32 %v2461, %v2481
        %v2492 = vadd.f32 %v2462, %v2483
        %v2493 = vadd.f32 %v2463, %v2485
        %v2494 = vld [vmem:[%s2188] sm:$0xff]
        %v2495 = vld [vmem:[%s2188 + $0x8] sm:$0xff]
        %v2496 = vld [vmem:[%s2188 + $0x10] sm:$0xff]
        %v2497 = vld [vmem:[%s2188 + $0x18] sm:$0xff]
        %v2498 = vld [vmem:[%s2188 + $0x20] sm:$0x3]
        %v2499 = vld [vmem:[%s2188 + $0x28] sm:$0x3]
        %v2500 = vmul.f32 %v2494, %v2099
        %v2501 = vmul.f32 %v2495, %v2103
        %v2502 = vmul.f32 %v2496, %v2099
        %v2503 = vmul.f32 %v2497, %v2103
        %v2504 = vadd.f32 %v2490, %v2500
        %v2505 = vadd.f32 %v2491, %v2501
        %v2506 = vadd.f32 %v2492, %v2502
        %v2507 = vadd.f32 %v2493, %v2503
        %v2508 = vmul.f32 %v2494, %v2115
        %v2509 = vmul.f32 %v2495, %v2119
        %v2510 = vmul.f32 %v2496, %v2115
        %v2511 = vmul.f32 %v2497, %v2119
        %v2512 = vmul.f32 %v2498, %v2115
        %v2513 = vmul.f32 %v2499, %v2119
        %v2520 = vrot.slane %v2508, 1
        %v2521 = vrot.slane %v2510, 1
        %v2522 = vsel %vm2032, %v2520, %v2521
        %v2523 = vrot.slane %v2509, 1
        %v2524 = vrot.slane %v2511, 1
        %v2525 = vsel %vm2032, %v2523, %v2524
        %v2526 = vrot.slane %v2512, 1
        %v2527 = vsel %vm2032, %v2521, %v2526
        %v2528 = vrot.slane %v2513, 1
        %v2529 = vsel %vm2032, %v2524, %v2528
        %v2534 = vadd.f32 %v2504, %v2522
        %v2535 = vadd.f32 %v2505, %v2525
        %v2536 = vadd.f32 %v2506, %v2527
        %v2537 = vadd.f32 %v2507, %v2529
        %v2538 = vmul.f32 %v2494, %v2153
        %v2539 = vmul.f32 %v2495, %v2157
        %v2540 = vmul.f32 %v2496, %v2153
        %v2541 = vmul.f32 %v2497, %v2157
        %v2542 = vmul.f32 %v2498, %v2153
        %v2543 = vmul.f32 %v2499, %v2157
        %v2550 = vrot.slane %v2538, 2
        %v2551 = vrot.slane %v2540, 2
        %v2552 = vsel %vm2071, %v2550, %v2551
        %v2553 = vrot.slane %v2539, 2
        %v2554 = vrot.slane %v2541, 2
        %v2555 = vsel %vm2071, %v2553, %v2554
        %v2556 = vrot.slane %v2542, 2
        %v2557 = vsel %vm2071, %v2551, %v2556
        %v2558 = vrot.slane %v2543, 2
        %v2559 = vsel %vm2071, %v2554, %v2558
        %v2564 = vadd.f32 %v2534, %v2552
        %v2565 = vadd.f32 %v2535, %v2555
        %v2566 = vadd.f32 %v2536, %v2557
        %v2567 = vadd.f32 %v2537, %v2559
        %s2568 = scalar_lea.vmem [#allocation2], 144
        %v2569 = vld [vmem:[%s2568] sm:$0xff]
        %v2570 = vld [vmem:[%s2568 + $0x8] sm:$0xff]
        %v2571 = vld [vmem:[%s2568 + $0x10] sm:$0xff]
        %v2572 = vld [vmem:[%s2568 + $0x18] sm:$0xff]
        %v2573 = vld [vmem:[%s2568 + $0x20] sm:$0x3]
        %v2574 = vld [vmem:[%s2568 + $0x28] sm:$0x3]
        %v2575 = vmul.f32 %v2569, %v2198
        %v2576 = vmul.f32 %v2570, %v2202
        %v2577 = vmul.f32 %v2571, %v2198
        %v2578 = vmul.f32 %v2572, %v2202
        %v2579 = vadd.f32 %v2564, %v2575
        %v2580 = vadd.f32 %v2565, %v2576
        %v2581 = vadd.f32 %v2566, %v2577
        %v2582 = vadd.f32 %v2567, %v2578
        %v2583 = vmul.f32 %v2569, %v2214
        %v2584 = vmul.f32 %v2570, %v2218
        %v2585 = vmul.f32 %v2571, %v2214
        %v2586 = vmul.f32 %v2572, %v2218
        %v2587 = vmul.f32 %v2573, %v2214
        %v2588 = vmul.f32 %v2574, %v2218
        %v2595 = vrot.slane %v2583, 1
        %v2596 = vrot.slane %v2585, 1
        %v2597 = vsel %vm2032, %v2595, %v2596
        %v2598 = vrot.slane %v2584, 1
        %v2599 = vrot.slane %v2586, 1
        %v2600 = vsel %vm2032, %v2598, %v2599
        %v2601 = vrot.slane %v2587, 1
        %v2602 = vsel %vm2032, %v2596, %v2601
        %v2603 = vrot.slane %v2588, 1
        %v2604 = vsel %vm2032, %v2599, %v2603
        %v2609 = vadd.f32 %v2579, %v2597
        %v2610 = vadd.f32 %v2580, %v2600
        %v2611 = vadd.f32 %v2581, %v2602
        %v2612 = vadd.f32 %v2582, %v2604
        %v2613 = vmul.f32 %v2569, %v2252
        %v2614 = vmul.f32 %v2570, %v2256
        %v2615 = vmul.f32 %v2571, %v2252
        %v2616 = vmul.f32 %v2572, %v2256
        %v2617 = vmul.f32 %v2573, %v2252
        %v2618 = vmul.f32 %v2574, %v2256
        %v2625 = vrot.slane %v2613, 2
        %v2626 = vrot.slane %v2615, 2
        %v2627 = vsel %vm2071, %v2625, %v2626
        %v2628 = vrot.slane %v2614, 2
        %v2629 = vrot.slane %v2616, 2
        %v2630 = vsel %vm2071, %v2628, %v2629
        %v2631 = vrot.slane %v2617, 2
        %v2632 = vsel %vm2071, %v2626, %v2631
        %v2633 = vrot.slane %v2618, 2
        %v2634 = vsel %vm2071, %v2629, %v2633
        %v2639 = vadd.f32 %v2609, %v2627
        %v2640 = vadd.f32 %v2610, %v2630
        %v2641 = vadd.f32 %v2611, %v2632
        %v2642 = vadd.f32 %v2612, %v2634
        %v2643 = vadd.f32 %v2639, %v2291
        %v2644 = vadd.f32 %v2640, %v2295
        %v2645 = vadd.f32 %v2641, %v2291
        %v2646 = vadd.f32 %v2642, %v2295
        %v2647 = vmul.f32 %v2643, 0.5
        %v2648 = vmul.f32 %v2644, 0.5
        %v2649 = vmul.f32 %v2645, 0.5
        %v2650 = vmul.f32 %v2646, 0.5
        %v2651 = vmul.f32 %v2643, 0.70710677
        %v2652 = vmul.f32 %v2644, 0.70710677
        %v2653 = vmul.f32 %v2645, 0.70710677
        %v2654 = vmul.f32 %v2646, 0.70710677
        %v2655 = vand.u32 2147483647, %v2651
        %v2656 = vand.u32 2147483647, %v2652
        %v2657 = vand.u32 2147483647, %v2653
        %v2658 = vand.u32 2147483647, %v2654
        %v2659 = vmul.f32 %v2655, 0.3275911
        %v2660 = vmul.f32 %v2656, 0.3275911
        %v2661 = vmul.f32 %v2657, 0.3275911
        %v2662 = vmul.f32 %v2658, 0.3275911
        %v2663 = vadd.f32 %v2659, 1.0
        %v2664 = vadd.f32 %v2660, 1.0
        %v2665 = vadd.f32 %v2661, 1.0
        %v2666 = vadd.f32 %v2662, 1.0
        %v2667 = vrcp.pop %v2663
        %v2668 = vrcp.pop %v2664
        %v2669 = vrcp.pop %v2665
        %v2670 = vrcp.pop %v2666
        %v2671 = vmul.f32 %v2667, 1.0614054
        %v2672 = vmul.f32 %v2668, 1.0614054
        %v2673 = vmul.f32 %v2669, 1.0614054
        %v2674 = vmul.f32 %v2670, 1.0614054
        %v2675 = vadd.f32 %v2671, -1.4531521
        %v2676 = vadd.f32 %v2672, -1.4531521
        %v2677 = vadd.f32 %v2673, -1.4531521
        %v2678 = vadd.f32 %v2674, -1.4531521
        %v2679 = vmul.f32 %v2667, %v2675
        %v2680 = vmul.f32 %v2668, %v2676
        %v2681 = vmul.f32 %v2669, %v2677
        %v2682 = vmul.f32 %v2670, %v2678
        %v2683 = vadd.f32 %v2679, 1.4214138
        %v2684 = vadd.f32 %v2680, 1.4214138
        %v2685 = vadd.f32 %v2681, 1.4214138
        %v2686 = vadd.f32 %v2682, 1.4214138
        %v2687 = vmul.f32 %v2667, %v2683
        %v2688 = vmul.f32 %v2668, %v2684
        %v2689 = vmul.f32 %v2669, %v2685
        %v2690 = vmul.f32 %v2670, %v2686
        %v2691 = vadd.f32 %v2687, -0.28449672
        %v2692 = vadd.f32 %v2688, -0.28449672
        %v2693 = vadd.f32 %v2689, -0.28449672
        %v2694 = vadd.f32 %v2690, -0.28449672
        %v2695 = vmul.f32 %v2667, %v2691
        %v2696 = vmul.f32 %v2668, %v2692
        %v2697 = vmul.f32 %v2669, %v2693
        %v2698 = vmul.f32 %v2670, %v2694
        %v2699 = vadd.f32 %v2695, 0.2548296
        %v2700 = vadd.f32 %v2696, 0.2548296
        %v2701 = vadd.f32 %v2697, 0.2548296
        %v2702 = vadd.f32 %v2698, 0.2548296
        %v2703 = vmul.f32 %v2667, %v2699
        %v2704 = vmul.f32 %v2668, %v2700
        %v2705 = vmul.f32 %v2669, %v2701
        %v2706 = vmul.f32 %v2670, %v2702
        %v2707 = vsub.f32 0.0, %v2655
        %v2708 = vsub.f32 0.0, %v2656
        %v2709 = vsub.f32 0.0, %v2657
        %v2710 = vsub.f32 0.0, %v2658
        %v2711 = vmul.f32 %v2707, %v2655
        %v2712 = vmul.f32 %v2708, %v2656
        %v2713 = vmul.f32 %v2709, %v2657
        %v2714 = vmul.f32 %v2710, %v2658
        %v2715 = vmul.f32 %v2711, 1.442695
        %v2716 = vpow.pop %v2715
        %v2717 = vmul.f32 %v2712, 1.442695
        %v2718 = vpow.pop %v2717
        %v2719 = vmul.f32 %v2713, 1.442695
        %v2720 = vpow.pop %v2719
        %v2721 = vmul.f32 %v2714, 1.442695
        %v2722 = vpow.pop %v2721
        %v2723 = vmul.f32 %v2703, %v2716
        %v2724 = vmul.f32 %v2704, %v2718
        %v2725 = vmul.f32 %v2705, %v2720
        %v2726 = vmul.f32 %v2706, %v2722
        %v2727 = vsub.f32 1.0, %v2723
        %v2728 = vsub.f32 1.0, %v2724
        %v2729 = vsub.f32 1.0, %v2725
        %v2730 = vsub.f32 1.0, %v2726
        %vm2731 = vcmp.ge.f32.partialorder %v2651, 0.0
        %vm2732 = vcmp.ge.f32.partialorder %v2652, 0.0
        %vm2733 = vcmp.ge.f32.partialorder %v2653, 0.0
        %vm2734 = vcmp.ge.f32.partialorder %v2654, 0.0
        %v2735 = vsub.f32 0.0, %v2727
        %v2736 = vsub.f32 0.0, %v2728
        %v2737 = vsub.f32 0.0, %v2729
        %v2738 = vsub.f32 0.0, %v2730
        %v2739 = vsel %vm2731, %v2727, %v2735
        %v2740 = vsel %vm2732, %v2728, %v2736
        %v2741 = vsel %vm2733, %v2729, %v2737
        %v2742 = vsel %vm2734, %v2730, %v2738
        %v2743 = vadd.f32 %v2739, 1.0
        %v2744 = vadd.f32 %v2740, 1.0
        %v2745 = vadd.f32 %v2741, 1.0
        %v2746 = vadd.f32 %v2742, 1.0
        %v2747 = vmul.f32 %v2647, %v2743
        %v2748 = vmul.f32 %v2648, %v2744
        %v2749 = vmul.f32 %v2649, %v2745
        %v2750 = vmul.f32 %v2650, %v2746
        %v2751 = vpack.c.bf16 %v2749, %v2747
        %v2752 = vpack.c.bf16 %v2750, %v2748
        %v2755 = vunpack.c.l.b16 %v2751
        %v2756 = vunpack.c.l.b16 %v2752
        %v2757 = vunpack.c.h.b16 %v2751
        %v2758 = vunpack.c.h.b16 %v2752
        %v2759 = vpack.c.b16 %v2756, %v2755
        %v2760 = vpack.c.b16 %v2758, %v2757
        %s2763 = scalar_lea.vmem [#allocation3], 16
        %2764 = vst [vmem:[%s2763] sm:$0xff] %v2759
        %2765 = vst [vmem:[%s2763 + $0x8] sm:$0xff] %v2760
        %v2766 = vld [vmem:[%s2188] sm:$0xff]
        %v2767 = vld [vmem:[%s2188 + $0x8] sm:$0xff]
        %v2768 = vld [vmem:[%s2188 + $0x10] sm:$0xff]
        %v2769 = vld [vmem:[%s2188 + $0x18] sm:$0xff]
        %v2770 = vld [vmem:[%s2188 + $0x20] sm:$0x3]
        %v2771 = vld [vmem:[%s2188 + $0x28] sm:$0x3]
        %v2772 = vmul.f32 %v2766, %v1999
        %v2773 = vmul.f32 %v2767, %v2003
        %v2774 = vmul.f32 %v2768, %v1999
        %v2775 = vmul.f32 %v2769, %v2003
        %v2776 = vadd.f32 %v2772, 0.0
        %v2777 = vadd.f32 %v2773, 0.0
        %v2778 = vadd.f32 %v2774, 0.0
        %v2779 = vadd.f32 %v2775, 0.0
        %v2780 = vmul.f32 %v2766, %v2015
        %v2781 = vmul.f32 %v2767, %v2019
        %v2782 = vmul.f32 %v2768, %v2015
        %v2783 = vmul.f32 %v2769, %v2019
        %v2784 = vmul.f32 %v2770, %v2015
        %v2785 = vmul.f32 %v2771, %v2019
        %v2792 = vrot.slane %v2780, 1
        %v2793 = vrot.slane %v2782, 1
        %v2794 = vsel %vm2032, %v2792, %v2793
        %v2795 = vrot.slane %v2781, 1
        %v2796 = vrot.slane %v2783, 1
        %v2797 = vsel %vm2032, %v2795, %v2796
        %v2798 = vrot.slane %v2784, 1
        %v2799 = vsel %vm2032, %v2793, %v2798
        %v2800 = vrot.slane %v2785, 1
        %v2801 = vsel %vm2032, %v2796, %v2800
        %v2806 = vadd.f32 %v2776, %v2794
        %v2807 = vadd.f32 %v2777, %v2797
        %v2808 = vadd.f32 %v2778, %v2799
        %v2809 = vadd.f32 %v2779, %v2801
        %v2810 = vmul.f32 %v2766, %v2054
        %v2811 = vmul.f32 %v2767, %v2058
        %v2812 = vmul.f32 %v2768, %v2054
        %v2813 = vmul.f32 %v2769, %v2058
        %v2814 = vmul.f32 %v2770, %v2054
        %v2815 = vmul.f32 %v2771, %v2058
        %v2822 = vrot.slane %v2810, 2
        %v2823 = vrot.slane %v2812, 2
        %v2824 = vsel %vm2071, %v2822, %v2823
        %v2825 = vrot.slane %v2811, 2
        %v2826 = vrot.slane %v2813, 2
        %v2827 = vsel %vm2071, %v2825, %v2826
        %v2828 = vrot.slane %v2814, 2
        %v2829 = vsel %vm2071, %v2823, %v2828
        %v2830 = vrot.slane %v2815, 2
        %v2831 = vsel %vm2071, %v2826, %v2830
        %v2836 = vadd.f32 %v2806, %v2824
        %v2837 = vadd.f32 %v2807, %v2827
        %v2838 = vadd.f32 %v2808, %v2829
        %v2839 = vadd.f32 %v2809, %v2831
        %v2840 = vld [vmem:[%s2568] sm:$0xff]
        %v2841 = vld [vmem:[%s2568 + $0x8] sm:$0xff]
        %v2842 = vld [vmem:[%s2568 + $0x10] sm:$0xff]
        %v2843 = vld [vmem:[%s2568 + $0x18] sm:$0xff]
        %v2844 = vld [vmem:[%s2568 + $0x20] sm:$0x3]
        %v2845 = vld [vmem:[%s2568 + $0x28] sm:$0x3]
        %v2846 = vmul.f32 %v2840, %v2099
        %v2847 = vmul.f32 %v2841, %v2103
        %v2848 = vmul.f32 %v2842, %v2099
        %v2849 = vmul.f32 %v2843, %v2103
        %v2850 = vadd.f32 %v2836, %v2846
        %v2851 = vadd.f32 %v2837, %v2847
        %v2852 = vadd.f32 %v2838, %v2848
        %v2853 = vadd.f32 %v2839, %v2849
        %v2854 = vmul.f32 %v2840, %v2115
        %v2855 = vmul.f32 %v2841, %v2119
        %v2856 = vmul.f32 %v2842, %v2115
        %v2857 = vmul.f32 %v2843, %v2119
        %v2858 = vmul.f32 %v2844, %v2115
        %v2859 = vmul.f32 %v2845, %v2119
        %v2866 = vrot.slane %v2854, 1
        %v2867 = vrot.slane %v2856, 1
        %v2868 = vsel %vm2032, %v2866, %v2867
        %v2869 = vrot.slane %v2855, 1
        %v2870 = vrot.slane %v2857, 1
        %v2871 = vsel %vm2032, %v2869, %v2870
        %v2872 = vrot.slane %v2858, 1
        %v2873 = vsel %vm2032, %v2867, %v2872
        %v2874 = vrot.slane %v2859, 1
        %v2875 = vsel %vm2032, %v2870, %v2874
        %v2880 = vadd.f32 %v2850, %v2868
        %v2881 = vadd.f32 %v2851, %v2871
        %v2882 = vadd.f32 %v2852, %v2873
        %v2883 = vadd.f32 %v2853, %v2875
        %v2884 = vmul.f32 %v2840, %v2153
        %v2885 = vmul.f32 %v2841, %v2157
        %v2886 = vmul.f32 %v2842, %v2153
        %v2887 = vmul.f32 %v2843, %v2157
        %v2888 = vmul.f32 %v2844, %v2153
        %v2889 = vmul.f32 %v2845, %v2157
        %v2896 = vrot.slane %v2884, 2
        %v2897 = vrot.slane %v2886, 2
        %v2898 = vsel %vm2071, %v2896, %v2897
        %v2899 = vrot.slane %v2885, 2
        %v2900 = vrot.slane %v2887, 2
        %v2901 = vsel %vm2071, %v2899, %v2900
        %v2902 = vrot.slane %v2888, 2
        %v2903 = vsel %vm2071, %v2897, %v2902
        %v2904 = vrot.slane %v2889, 2
        %v2905 = vsel %vm2071, %v2900, %v2904
        %v2910 = vadd.f32 %v2880, %v2898
        %v2911 = vadd.f32 %v2881, %v2901
        %v2912 = vadd.f32 %v2882, %v2903
        %v2913 = vadd.f32 %v2883, %v2905
        %s2914 = scalar_lea.vmem [#allocation2], 192
        %v2915 = vld [vmem:[%s2914] sm:$0xff]
        %v2916 = vld [vmem:[%s2914 + $0x8] sm:$0xff]
        %v2917 = vld [vmem:[%s2914 + $0x10] sm:$0xff]
        %v2918 = vld [vmem:[%s2914 + $0x18] sm:$0xff]
        %v2919 = vld [vmem:[%s2914 + $0x20] sm:$0x3]
        %v2920 = vld [vmem:[%s2914 + $0x28] sm:$0x3]
        %v2921 = vmul.f32 %v2915, %v2198
        %v2922 = vmul.f32 %v2916, %v2202
        %v2923 = vmul.f32 %v2917, %v2198
        %v2924 = vmul.f32 %v2918, %v2202
        %v2925 = vadd.f32 %v2910, %v2921
        %v2926 = vadd.f32 %v2911, %v2922
        %v2927 = vadd.f32 %v2912, %v2923
        %v2928 = vadd.f32 %v2913, %v2924
        %v2929 = vmul.f32 %v2915, %v2214
        %v2930 = vmul.f32 %v2916, %v2218
        %v2931 = vmul.f32 %v2917, %v2214
        %v2932 = vmul.f32 %v2918, %v2218
        %v2933 = vmul.f32 %v2919, %v2214
        %v2934 = vmul.f32 %v2920, %v2218
        %v2941 = vrot.slane %v2929, 1
        %v2942 = vrot.slane %v2931, 1
        %v2943 = vsel %vm2032, %v2941, %v2942
        %v2944 = vrot.slane %v2930, 1
        %v2945 = vrot.slane %v2932, 1
        %v2946 = vsel %vm2032, %v2944, %v2945
        %v2947 = vrot.slane %v2933, 1
        %v2948 = vsel %vm2032, %v2942, %v2947
        %v2949 = vrot.slane %v2934, 1
        %v2950 = vsel %vm2032, %v2945, %v2949
        %v2955 = vadd.f32 %v2925, %v2943
        %v2956 = vadd.f32 %v2926, %v2946
        %v2957 = vadd.f32 %v2927, %v2948
        %v2958 = vadd.f32 %v2928, %v2950
        %v2959 = vmul.f32 %v2915, %v2252
        %v2960 = vmul.f32 %v2916, %v2256
        %v2961 = vmul.f32 %v2917, %v2252
        %v2962 = vmul.f32 %v2918, %v2256
        %v2963 = vmul.f32 %v2919, %v2252
        %v2964 = vmul.f32 %v2920, %v2256
        %v2971 = vrot.slane %v2959, 2
        %v2972 = vrot.slane %v2961, 2
        %v2973 = vsel %vm2071, %v2971, %v2972
        %v2974 = vrot.slane %v2960, 2
        %v2975 = vrot.slane %v2962, 2
        %v2976 = vsel %vm2071, %v2974, %v2975
        %v2977 = vrot.slane %v2963, 2
        %v2978 = vsel %vm2071, %v2972, %v2977
        %v2979 = vrot.slane %v2964, 2
        %v2980 = vsel %vm2071, %v2975, %v2979
        %v2985 = vadd.f32 %v2955, %v2973
        %v2986 = vadd.f32 %v2956, %v2976
        %v2987 = vadd.f32 %v2957, %v2978
        %v2988 = vadd.f32 %v2958, %v2980
        %v2989 = vadd.f32 %v2985, %v2291
        %v2990 = vadd.f32 %v2986, %v2295
        %v2991 = vadd.f32 %v2987, %v2291
        %v2992 = vadd.f32 %v2988, %v2295
        %v2993 = vmul.f32 %v2989, 0.5
        %v2994 = vmul.f32 %v2990, 0.5
        %v2995 = vmul.f32 %v2991, 0.5
        %v2996 = vmul.f32 %v2992, 0.5
        %v2997 = vmul.f32 %v2989, 0.70710677
        %v2998 = vmul.f32 %v2990, 0.70710677
        %v2999 = vmul.f32 %v2991, 0.70710677
        %v3000 = vmul.f32 %v2992, 0.70710677
        %v3001 = vand.u32 2147483647, %v2997
        %v3002 = vand.u32 2147483647, %v2998
        %v3003 = vand.u32 2147483647, %v2999
        %v3004 = vand.u32 2147483647, %v3000
        %v3005 = vmul.f32 %v3001, 0.3275911
        %v3006 = vmul.f32 %v3002, 0.3275911
        %v3007 = vmul.f32 %v3003, 0.3275911
        %v3008 = vmul.f32 %v3004, 0.3275911
        %v3009 = vadd.f32 %v3005, 1.0
        %v3010 = vadd.f32 %v3006, 1.0
        %v3011 = vadd.f32 %v3007, 1.0
        %v3012 = vadd.f32 %v3008, 1.0
        %v3013 = vrcp.pop %v3009
        %v3014 = vrcp.pop %v3010
        %v3015 = vrcp.pop %v3011
        %v3016 = vrcp.pop %v3012
        %v3017 = vmul.f32 %v3013, 1.0614054
        %v3018 = vmul.f32 %v3014, 1.0614054
        %v3019 = vmul.f32 %v3015, 1.0614054
        %v3020 = vmul.f32 %v3016, 1.0614054
        %v3021 = vadd.f32 %v3017, -1.4531521
        %v3022 = vadd.f32 %v3018, -1.4531521
        %v3023 = vadd.f32 %v3019, -1.4531521
        %v3024 = vadd.f32 %v3020, -1.4531521
        %v3025 = vmul.f32 %v3013, %v3021
        %v3026 = vmul.f32 %v3014, %v3022
        %v3027 = vmul.f32 %v3015, %v3023
        %v3028 = vmul.f32 %v3016, %v3024
        %v3029 = vadd.f32 %v3025, 1.4214138
        %v3030 = vadd.f32 %v3026, 1.4214138
        %v3031 = vadd.f32 %v3027, 1.4214138
        %v3032 = vadd.f32 %v3028, 1.4214138
        %v3033 = vmul.f32 %v3013, %v3029
        %v3034 = vmul.f32 %v3014, %v3030
        %v3035 = vmul.f32 %v3015, %v3031
        %v3036 = vmul.f32 %v3016, %v3032
        %v3037 = vadd.f32 %v3033, -0.28449672
        %v3038 = vadd.f32 %v3034, -0.28449672
        %v3039 = vadd.f32 %v3035, -0.28449672
        %v3040 = vadd.f32 %v3036, -0.28449672
        %v3041 = vmul.f32 %v3013, %v3037
        %v3042 = vmul.f32 %v3014, %v3038
        %v3043 = vmul.f32 %v3015, %v3039
        %v3044 = vmul.f32 %v3016, %v3040
        %v3045 = vadd.f32 %v3041, 0.2548296
        %v3046 = vadd.f32 %v3042, 0.2548296
        %v3047 = vadd.f32 %v3043, 0.2548296
        %v3048 = vadd.f32 %v3044, 0.2548296
        %v3049 = vmul.f32 %v3013, %v3045
        %v3050 = vmul.f32 %v3014, %v3046
        %v3051 = vmul.f32 %v3015, %v3047
        %v3052 = vmul.f32 %v3016, %v3048
        %v3053 = vsub.f32 0.0, %v3001
        %v3054 = vsub.f32 0.0, %v3002
        %v3055 = vsub.f32 0.0, %v3003
        %v3056 = vsub.f32 0.0, %v3004
        %v3057 = vmul.f32 %v3053, %v3001
        %v3058 = vmul.f32 %v3054, %v3002
        %v3059 = vmul.f32 %v3055, %v3003
        %v3060 = vmul.f32 %v3056, %v3004
        %v3061 = vmul.f32 %v3057, 1.442695
        %v3062 = vpow.pop %v3061
        %v3063 = vmul.f32 %v3058, 1.442695
        %v3064 = vpow.pop %v3063
        %v3065 = vmul.f32 %v3059, 1.442695
        %v3066 = vpow.pop %v3065
        %v3067 = vmul.f32 %v3060, 1.442695
        %v3068 = vpow.pop %v3067
        %v3069 = vmul.f32 %v3049, %v3062
        %v3070 = vmul.f32 %v3050, %v3064
        %v3071 = vmul.f32 %v3051, %v3066
        %v3072 = vmul.f32 %v3052, %v3068
        %v3073 = vsub.f32 1.0, %v3069
        %v3074 = vsub.f32 1.0, %v3070
        %v3075 = vsub.f32 1.0, %v3071
        %v3076 = vsub.f32 1.0, %v3072
        %vm3077 = vcmp.ge.f32.partialorder %v2997, 0.0
        %vm3078 = vcmp.ge.f32.partialorder %v2998, 0.0
        %vm3079 = vcmp.ge.f32.partialorder %v2999, 0.0
        %vm3080 = vcmp.ge.f32.partialorder %v3000, 0.0
        %v3081 = vsub.f32 0.0, %v3073
        %v3082 = vsub.f32 0.0, %v3074
        %v3083 = vsub.f32 0.0, %v3075
        %v3084 = vsub.f32 0.0, %v3076
        %v3085 = vsel %vm3077, %v3073, %v3081
        %v3086 = vsel %vm3078, %v3074, %v3082
        %v3087 = vsel %vm3079, %v3075, %v3083
        %v3088 = vsel %vm3080, %v3076, %v3084
        %v3089 = vadd.f32 %v3085, 1.0
        %v3090 = vadd.f32 %v3086, 1.0
        %v3091 = vadd.f32 %v3087, 1.0
        %v3092 = vadd.f32 %v3088, 1.0
        %v3093 = vmul.f32 %v2993, %v3089
        %v3094 = vmul.f32 %v2994, %v3090
        %v3095 = vmul.f32 %v2995, %v3091
        %v3096 = vmul.f32 %v2996, %v3092
        %v3097 = vpack.c.bf16 %v3095, %v3093
        %v3098 = vpack.c.bf16 %v3096, %v3094
        %v3101 = vunpack.c.l.b16 %v3097
        %v3102 = vunpack.c.l.b16 %v3098
        %v3103 = vunpack.c.h.b16 %v3097
        %v3104 = vunpack.c.h.b16 %v3098
        %v3105 = vpack.c.b16 %v3102, %v3101
        %v3106 = vpack.c.b16 %v3104, %v3103
        %s3109 = scalar_lea.vmem [#allocation3], 32
        %3110 = vst [vmem:[%s3109] sm:$0xff] %v3105
        %3111 = vst [vmem:[%s3109 + $0x8] sm:$0xff] %v3106
        %v3112 = vld [vmem:[%s2568] sm:$0xff]
        %v3113 = vld [vmem:[%s2568 + $0x8] sm:$0xff]
        %v3114 = vld [vmem:[%s2568 + $0x10] sm:$0xff]
        %v3115 = vld [vmem:[%s2568 + $0x18] sm:$0xff]
        %v3116 = vld [vmem:[%s2568 + $0x20] sm:$0x3]
        %v3117 = vld [vmem:[%s2568 + $0x28] sm:$0x3]
        %v3118 = vmul.f32 %v3112, %v1999
        %v3119 = vmul.f32 %v3113, %v2003
        %v3120 = vmul.f32 %v3114, %v1999
        %v3121 = vmul.f32 %v3115, %v2003
        %v3122 = vadd.f32 %v3118, 0.0
        %v3123 = vadd.f32 %v3119, 0.0
        %v3124 = vadd.f32 %v3120, 0.0
        %v3125 = vadd.f32 %v3121, 0.0
        %v3126 = vmul.f32 %v3112, %v2015
        %v3127 = vmul.f32 %v3113, %v2019
        %v3128 = vmul.f32 %v3114, %v2015
        %v3129 = vmul.f32 %v3115, %v2019
        %v3130 = vmul.f32 %v3116, %v2015
        %v3131 = vmul.f32 %v3117, %v2019
        %v3138 = vrot.slane %v3126, 1
        %v3139 = vrot.slane %v3128, 1
        %v3140 = vsel %vm2032, %v3138, %v3139
        %v3141 = vrot.slane %v3127, 1
        %v3142 = vrot.slane %v3129, 1
        %v3143 = vsel %vm2032, %v3141, %v3142
        %v3144 = vrot.slane %v3130, 1
        %v3145 = vsel %vm2032, %v3139, %v3144
        %v3146 = vrot.slane %v3131, 1
        %v3147 = vsel %vm2032, %v3142, %v3146
        %v3152 = vadd.f32 %v3122, %v3140
        %v3153 = vadd.f32 %v3123, %v3143
        %v3154 = vadd.f32 %v3124, %v3145
        %v3155 = vadd.f32 %v3125, %v3147
        %v3156 = vmul.f32 %v3112, %v2054
        %v3157 = vmul.f32 %v3113, %v2058
        %v3158 = vmul.f32 %v3114, %v2054
        %v3159 = vmul.f32 %v3115, %v2058
        %v3160 = vmul.f32 %v3116, %v2054
        %v3161 = vmul.f32 %v3117, %v2058
        %v3168 = vrot.slane %v3156, 2
        %v3169 = vrot.slane %v3158, 2
        %v3170 = vsel %vm2071, %v3168, %v3169
        %v3171 = vrot.slane %v3157, 2
        %v3172 = vrot.slane %v3159, 2
        %v3173 = vsel %vm2071, %v3171, %v3172
        %v3174 = vrot.slane %v3160, 2
        %v3175 = vsel %vm2071, %v3169, %v3174
        %v3176 = vrot.slane %v3161, 2
        %v3177 = vsel %vm2071, %v3172, %v3176
        %v3182 = vadd.f32 %v3152, %v3170
        %v3183 = vadd.f32 %v3153, %v3173
        %v3184 = vadd.f32 %v3154, %v3175
        %v3185 = vadd.f32 %v3155, %v3177
        %v3186 = vld [vmem:[%s2914] sm:$0xff]
        %v3187 = vld [vmem:[%s2914 + $0x8] sm:$0xff]
        %v3188 = vld [vmem:[%s2914 + $0x10] sm:$0xff]
        %v3189 = vld [vmem:[%s2914 + $0x18] sm:$0xff]
        %v3190 = vld [vmem:[%s2914 + $0x20] sm:$0x3]
        %v3191 = vld [vmem:[%s2914 + $0x28] sm:$0x3]
        %v3192 = vmul.f32 %v3186, %v2099
        %v3193 = vmul.f32 %v3187, %v2103
        %v3194 = vmul.f32 %v3188, %v2099
        %v3195 = vmul.f32 %v3189, %v2103
        %v3196 = vadd.f32 %v3182, %v3192
        %v3197 = vadd.f32 %v3183, %v3193
        %v3198 = vadd.f32 %v3184, %v3194
        %v3199 = vadd.f32 %v3185, %v3195
        %v3200 = vmul.f32 %v3186, %v2115
        %v3201 = vmul.f32 %v3187, %v2119
        %v3202 = vmul.f32 %v3188, %v2115
        %v3203 = vmul.f32 %v3189, %v2119
        %v3204 = vmul.f32 %v3190, %v2115
        %v3205 = vmul.f32 %v3191, %v2119
        %v3212 = vrot.slane %v3200, 1
        %v3213 = vrot.slane %v3202, 1
        %v3214 = vsel %vm2032, %v3212, %v3213
        %v3215 = vrot.slane %v3201, 1
        %v3216 = vrot.slane %v3203, 1
        %v3217 = vsel %vm2032, %v3215, %v3216
        %v3218 = vrot.slane %v3204, 1
        %v3219 = vsel %vm2032, %v3213, %v3218
        %v3220 = vrot.slane %v3205, 1
        %v3221 = vsel %vm2032, %v3216, %v3220
        %v3226 = vadd.f32 %v3196, %v3214
        %v3227 = vadd.f32 %v3197, %v3217
        %v3228 = vadd.f32 %v3198, %v3219
        %v3229 = vadd.f32 %v3199, %v3221
        %v3230 = vmul.f32 %v3186, %v2153
        %v3231 = vmul.f32 %v3187, %v2157
        %v3232 = vmul.f32 %v3188, %v2153
        %v3233 = vmul.f32 %v3189, %v2157
        %v3234 = vmul.f32 %v3190, %v2153
        %v3235 = vmul.f32 %v3191, %v2157
        %v3242 = vrot.slane %v3230, 2
        %v3243 = vrot.slane %v3232, 2
        %v3244 = vsel %vm2071, %v3242, %v3243
        %v3245 = vrot.slane %v3231, 2
        %v3246 = vrot.slane %v3233, 2
        %v3247 = vsel %vm2071, %v3245, %v3246
        %v3248 = vrot.slane %v3234, 2
        %v3249 = vsel %vm2071, %v3243, %v3248
        %v3250 = vrot.slane %v3235, 2
        %v3251 = vsel %vm2071, %v3246, %v3250
        %v3256 = vadd.f32 %v3226, %v3244
        %v3257 = vadd.f32 %v3227, %v3247
        %v3258 = vadd.f32 %v3228, %v3249
        %v3259 = vadd.f32 %v3229, %v3251
        %s3260 = scalar_lea.vmem [#allocation2], 240
        %v3261 = vld [vmem:[%s3260] sm:$0xff]
        %v3262 = vld [vmem:[%s3260 + $0x8] sm:$0xff]
        %v3263 = vld [vmem:[%s3260 + $0x10] sm:$0xff]
        %v3264 = vld [vmem:[%s3260 + $0x18] sm:$0xff]
        %v3265 = vld [vmem:[%s3260 + $0x20] sm:$0x3]
        %v3266 = vld [vmem:[%s3260 + $0x28] sm:$0x3]
        %v3267 = vmul.f32 %v3261, %v2198
        %v3268 = vmul.f32 %v3262, %v2202
        %v3269 = vmul.f32 %v3263, %v2198
        %v3270 = vmul.f32 %v3264, %v2202
        %v3271 = vadd.f32 %v3256, %v3267
        %v3272 = vadd.f32 %v3257, %v3268
        %v3273 = vadd.f32 %v3258, %v3269
        %v3274 = vadd.f32 %v3259, %v3270
        %v3275 = vmul.f32 %v3261, %v2214
        %v3276 = vmul.f32 %v3262, %v2218
        %v3277 = vmul.f32 %v3263, %v2214
        %v3278 = vmul.f32 %v3264, %v2218
        %v3279 = vmul.f32 %v3265, %v2214
        %v3280 = vmul.f32 %v3266, %v2218
        %v3287 = vrot.slane %v3275, 1
        %v3288 = vrot.slane %v3277, 1
        %v3289 = vsel %vm2032, %v3287, %v3288
        %v3290 = vrot.slane %v3276, 1
        %v3291 = vrot.slane %v3278, 1
        %v3292 = vsel %vm2032, %v3290, %v3291
        %v3293 = vrot.slane %v3279, 1
        %v3294 = vsel %vm2032, %v3288, %v3293
        %v3295 = vrot.slane %v3280, 1
        %v3296 = vsel %vm2032, %v3291, %v3295
        %v3301 = vadd.f32 %v3271, %v3289
        %v3302 = vadd.f32 %v3272, %v3292
        %v3303 = vadd.f32 %v3273, %v3294
        %v3304 = vadd.f32 %v3274, %v3296
        %v3305 = vmul.f32 %v3261, %v2252
        %v3306 = vmul.f32 %v3262, %v2256
        %v3307 = vmul.f32 %v3263, %v2252
        %v3308 = vmul.f32 %v3264, %v2256
        %v3309 = vmul.f32 %v3265, %v2252
        %v3310 = vmul.f32 %v3266, %v2256
        %v3317 = vrot.slane %v3305, 2
        %v3318 = vrot.slane %v3307, 2
        %v3319 = vsel %vm2071, %v3317, %v3318
        %v3320 = vrot.slane %v3306, 2
        %v3321 = vrot.slane %v3308, 2
        %v3322 = vsel %vm2071, %v3320, %v3321
        %v3323 = vrot.slane %v3309, 2
        %v3324 = vsel %vm2071, %v3318, %v3323
        %v3325 = vrot.slane %v3310, 2
        %v3326 = vsel %vm2071, %v3321, %v3325
        %v3331 = vadd.f32 %v3301, %v3319
        %v3332 = vadd.f32 %v3302, %v3322
        %v3333 = vadd.f32 %v3303, %v3324
        %v3334 = vadd.f32 %v3304, %v3326
        %v3335 = vadd.f32 %v3331, %v2291
        %v3336 = vadd.f32 %v3332, %v2295
        %v3337 = vadd.f32 %v3333, %v2291
        %v3338 = vadd.f32 %v3334, %v2295
        %v3339 = vmul.f32 %v3335, 0.5
        %v3340 = vmul.f32 %v3336, 0.5
        %v3341 = vmul.f32 %v3337, 0.5
        %v3342 = vmul.f32 %v3338, 0.5
        %v3343 = vmul.f32 %v3335, 0.70710677
        %v3344 = vmul.f32 %v3336, 0.70710677
        %v3345 = vmul.f32 %v3337, 0.70710677
        %v3346 = vmul.f32 %v3338, 0.70710677
        %v3347 = vand.u32 2147483647, %v3343
        %v3348 = vand.u32 2147483647, %v3344
        %v3349 = vand.u32 2147483647, %v3345
        %v3350 = vand.u32 2147483647, %v3346
        %v3351 = vmul.f32 %v3347, 0.3275911
        %v3352 = vmul.f32 %v3348, 0.3275911
        %v3353 = vmul.f32 %v3349, 0.3275911
        %v3354 = vmul.f32 %v3350, 0.3275911
        %v3355 = vadd.f32 %v3351, 1.0
        %v3356 = vadd.f32 %v3352, 1.0
        %v3357 = vadd.f32 %v3353, 1.0
        %v3358 = vadd.f32 %v3354, 1.0
        %v3359 = vrcp.pop %v3355
        %v3360 = vrcp.pop %v3356
        %v3361 = vrcp.pop %v3357
        %v3362 = vrcp.pop %v3358
        %v3363 = vmul.f32 %v3359, 1.0614054
        %v3364 = vmul.f32 %v3360, 1.0614054
        %v3365 = vmul.f32 %v3361, 1.0614054
        %v3366 = vmul.f32 %v3362, 1.0614054
        %v3367 = vadd.f32 %v3363, -1.4531521
        %v3368 = vadd.f32 %v3364, -1.4531521
        %v3369 = vadd.f32 %v3365, -1.4531521
        %v3370 = vadd.f32 %v3366, -1.4531521
        %v3371 = vmul.f32 %v3359, %v3367
        %v3372 = vmul.f32 %v3360, %v3368
        %v3373 = vmul.f32 %v3361, %v3369
        %v3374 = vmul.f32 %v3362, %v3370
        %v3375 = vadd.f32 %v3371, 1.4214138
        %v3376 = vadd.f32 %v3372, 1.4214138
        %v3377 = vadd.f32 %v3373, 1.4214138
        %v3378 = vadd.f32 %v3374, 1.4214138
        %v3379 = vmul.f32 %v3359, %v3375
        %v3380 = vmul.f32 %v3360, %v3376
        %v3381 = vmul.f32 %v3361, %v3377
        %v3382 = vmul.f32 %v3362, %v3378
        %v3383 = vadd.f32 %v3379, -0.28449672
        %v3384 = vadd.f32 %v3380, -0.28449672
        %v3385 = vadd.f32 %v3381, -0.28449672
        %v3386 = vadd.f32 %v3382, -0.28449672
        %v3387 = vmul.f32 %v3359, %v3383
        %v3388 = vmul.f32 %v3360, %v3384
        %v3389 = vmul.f32 %v3361, %v3385
        %v3390 = vmul.f32 %v3362, %v3386
        %v3391 = vadd.f32 %v3387, 0.2548296
        %v3392 = vadd.f32 %v3388, 0.2548296
        %v3393 = vadd.f32 %v3389, 0.2548296
        %v3394 = vadd.f32 %v3390, 0.2548296
        %v3395 = vmul.f32 %v3359, %v3391
        %v3396 = vmul.f32 %v3360, %v3392
        %v3397 = vmul.f32 %v3361, %v3393
        %v3398 = vmul.f32 %v3362, %v3394
        %v3399 = vsub.f32 0.0, %v3347
        %v3400 = vsub.f32 0.0, %v3348
        %v3401 = vsub.f32 0.0, %v3349
        %v3402 = vsub.f32 0.0, %v3350
        %v3403 = vmul.f32 %v3399, %v3347
        %v3404 = vmul.f32 %v3400, %v3348
        %v3405 = vmul.f32 %v3401, %v3349
        %v3406 = vmul.f32 %v3402, %v3350
        %v3407 = vmul.f32 %v3403, 1.442695
        %v3408 = vpow.pop %v3407
        %v3409 = vmul.f32 %v3404, 1.442695
        %v3410 = vpow.pop %v3409
        %v3411 = vmul.f32 %v3405, 1.442695
        %v3412 = vpow.pop %v3411
        %v3413 = vmul.f32 %v3406, 1.442695
        %v3414 = vpow.pop %v3413
        %v3415 = vmul.f32 %v3395, %v3408
        %v3416 = vmul.f32 %v3396, %v3410
        %v3417 = vmul.f32 %v3397, %v3412
        %v3418 = vmul.f32 %v3398, %v3414
        %v3419 = vsub.f32 1.0, %v3415
        %v3420 = vsub.f32 1.0, %v3416
        %v3421 = vsub.f32 1.0, %v3417
        %v3422 = vsub.f32 1.0, %v3418
        %vm3423 = vcmp.ge.f32.partialorder %v3343, 0.0
        %vm3424 = vcmp.ge.f32.partialorder %v3344, 0.0
        %vm3425 = vcmp.ge.f32.partialorder %v3345, 0.0
        %vm3426 = vcmp.ge.f32.partialorder %v3346, 0.0
        %v3427 = vsub.f32 0.0, %v3419
        %v3428 = vsub.f32 0.0, %v3420
        %v3429 = vsub.f32 0.0, %v3421
        %v3430 = vsub.f32 0.0, %v3422
        %v3431 = vsel %vm3423, %v3419, %v3427
        %v3432 = vsel %vm3424, %v3420, %v3428
        %v3433 = vsel %vm3425, %v3421, %v3429
        %v3434 = vsel %vm3426, %v3422, %v3430
        %v3435 = vadd.f32 %v3431, 1.0
        %v3436 = vadd.f32 %v3432, 1.0
        %v3437 = vadd.f32 %v3433, 1.0
        %v3438 = vadd.f32 %v3434, 1.0
        %v3439 = vmul.f32 %v3339, %v3435
        %v3440 = vmul.f32 %v3340, %v3436
        %v3441 = vmul.f32 %v3341, %v3437
        %v3442 = vmul.f32 %v3342, %v3438
        %v3443 = vpack.c.bf16 %v3441, %v3439
        %v3444 = vpack.c.bf16 %v3442, %v3440
        %v3447 = vunpack.c.l.b16 %v3443
        %v3448 = vunpack.c.l.b16 %v3444
        %v3449 = vunpack.c.h.b16 %v3443
        %v3450 = vunpack.c.h.b16 %v3444
        %v3451 = vpack.c.b16 %v3448, %v3447
        %v3452 = vpack.c.b16 %v3450, %v3449
        %s3455 = scalar_lea.vmem [#allocation3], 48
        %3456 = vst [vmem:[%s3455] sm:$0xff] %v3451
        %3457 = vst [vmem:[%s3455 + $0x8] sm:$0xff] %v3452
        %v3458 = vld [vmem:[%s2914] sm:$0xff]
        %v3459 = vld [vmem:[%s2914 + $0x8] sm:$0xff]
        %v3460 = vld [vmem:[%s2914 + $0x10] sm:$0xff]
        %v3461 = vld [vmem:[%s2914 + $0x18] sm:$0xff]
        %v3462 = vld [vmem:[%s2914 + $0x20] sm:$0x3]
        %v3463 = vld [vmem:[%s2914 + $0x28] sm:$0x3]
        %v3464 = vmul.f32 %v3458, %v1999
        %v3465 = vmul.f32 %v3459, %v2003
        %v3466 = vmul.f32 %v3460, %v1999
        %v3467 = vmul.f32 %v3461, %v2003
        %v3468 = vadd.f32 %v3464, 0.0
        %v3469 = vadd.f32 %v3465, 0.0
        %v3470 = vadd.f32 %v3466, 0.0
        %v3471 = vadd.f32 %v3467, 0.0
        %v3472 = vmul.f32 %v3458, %v2015
        %v3473 = vmul.f32 %v3459, %v2019
        %v3474 = vmul.f32 %v3460, %v2015
        %v3475 = vmul.f32 %v3461, %v2019
        %v3476 = vmul.f32 %v3462, %v2015
        %v3477 = vmul.f32 %v3463, %v2019
        %v3484 = vrot.slane %v3472, 1
        %v3485 = vrot.slane %v3474, 1
        %v3486 = vsel %vm2032, %v3484, %v3485
        %v3487 = vrot.slane %v3473, 1
        %v3488 = vrot.slane %v3475, 1
        %v3489 = vsel %vm2032, %v3487, %v3488
        %v3490 = vrot.slane %v3476, 1
        %v3491 = vsel %vm2032, %v3485, %v3490
        %v3492 = vrot.slane %v3477, 1
        %v3493 = vsel %vm2032, %v3488, %v3492
        %v3498 = vadd.f32 %v3468, %v3486
        %v3499 = vadd.f32 %v3469, %v3489
        %v3500 = vadd.f32 %v3470, %v3491
        %v3501 = vadd.f32 %v3471, %v3493
        %v3502 = vmul.f32 %v3458, %v2054
        %v3503 = vmul.f32 %v3459, %v2058
        %v3504 = vmul.f32 %v3460, %v2054
        %v3505 = vmul.f32 %v3461, %v2058
        %v3506 = vmul.f32 %v3462, %v2054
        %v3507 = vmul.f32 %v3463, %v2058
        %v3514 = vrot.slane %v3502, 2
        %v3515 = vrot.slane %v3504, 2
        %v3516 = vsel %vm2071, %v3514, %v3515
        %v3517 = vrot.slane %v3503, 2
        %v3518 = vrot.slane %v3505, 2
        %v3519 = vsel %vm2071, %v3517, %v3518
        %v3520 = vrot.slane %v3506, 2
        %v3521 = vsel %vm2071, %v3515, %v3520
        %v3522 = vrot.slane %v3507, 2
        %v3523 = vsel %vm2071, %v3518, %v3522
        %v3528 = vadd.f32 %v3498, %v3516
        %v3529 = vadd.f32 %v3499, %v3519
        %v3530 = vadd.f32 %v3500, %v3521
        %v3531 = vadd.f32 %v3501, %v3523
        %v3532 = vld [vmem:[%s3260] sm:$0xff]
        %v3533 = vld [vmem:[%s3260 + $0x8] sm:$0xff]
        %v3534 = vld [vmem:[%s3260 + $0x10] sm:$0xff]
        %v3535 = vld [vmem:[%s3260 + $0x18] sm:$0xff]
        %v3536 = vld [vmem:[%s3260 + $0x20] sm:$0x3]
        %v3537 = vld [vmem:[%s3260 + $0x28] sm:$0x3]
        %v3538 = vmul.f32 %v3532, %v2099
        %v3539 = vmul.f32 %v3533, %v2103
        %v3540 = vmul.f32 %v3534, %v2099
        %v3541 = vmul.f32 %v3535, %v2103
        %v3542 = vadd.f32 %v3528, %v3538
        %v3543 = vadd.f32 %v3529, %v3539
        %v3544 = vadd.f32 %v3530, %v3540
        %v3545 = vadd.f32 %v3531, %v3541
        %v3546 = vmul.f32 %v3532, %v2115
        %v3547 = vmul.f32 %v3533, %v2119
        %v3548 = vmul.f32 %v3534, %v2115
        %v3549 = vmul.f32 %v3535, %v2119
        %v3550 = vmul.f32 %v3536, %v2115
        %v3551 = vmul.f32 %v3537, %v2119
        %v3558 = vrot.slane %v3546, 1
        %v3559 = vrot.slane %v3548, 1
        %v3560 = vsel %vm2032, %v3558, %v3559
        %v3561 = vrot.slane %v3547, 1
        %v3562 = vrot.slane %v3549, 1
        %v3563 = vsel %vm2032, %v3561, %v3562
        %v3564 = vrot.slane %v3550, 1
        %v3565 = vsel %vm2032, %v3559, %v3564
        %v3566 = vrot.slane %v3551, 1
        %v3567 = vsel %vm2032, %v3562, %v3566
        %v3572 = vadd.f32 %v3542, %v3560
        %v3573 = vadd.f32 %v3543, %v3563
        %v3574 = vadd.f32 %v3544, %v3565
        %v3575 = vadd.f32 %v3545, %v3567
        %v3576 = vmul.f32 %v3532, %v2153
        %v3577 = vmul.f32 %v3533, %v2157
        %v3578 = vmul.f32 %v3534, %v2153
        %v3579 = vmul.f32 %v3535, %v2157
        %v3580 = vmul.f32 %v3536, %v2153
        %v3581 = vmul.f32 %v3537, %v2157
        %v3588 = vrot.slane %v3576, 2
        %v3589 = vrot.slane %v3578, 2
        %v3590 = vsel %vm2071, %v3588, %v3589
        %v3591 = vrot.slane %v3577, 2
        %v3592 = vrot.slane %v3579, 2
        %v3593 = vsel %vm2071, %v3591, %v3592
        %v3594 = vrot.slane %v3580, 2
        %v3595 = vsel %vm2071, %v3589, %v3594
        %v3596 = vrot.slane %v3581, 2
        %v3597 = vsel %vm2071, %v3592, %v3596
        %v3602 = vadd.f32 %v3572, %v3590
        %v3603 = vadd.f32 %v3573, %v3593
        %v3604 = vadd.f32 %v3574, %v3595
        %v3605 = vadd.f32 %v3575, %v3597
        %s3606 = scalar_lea.vmem [#allocation2], 288
        %v3607 = vld [vmem:[%s3606] sm:$0xff]
        %v3608 = vld [vmem:[%s3606 + $0x8] sm:$0xff]
        %v3609 = vld [vmem:[%s3606 + $0x10] sm:$0xff]
        %v3610 = vld [vmem:[%s3606 + $0x18] sm:$0xff]
        %v3611 = vld [vmem:[%s3606 + $0x20] sm:$0x3]
        %v3612 = vld [vmem:[%s3606 + $0x28] sm:$0x3]
        %v3613 = vmul.f32 %v3607, %v2198
        %v3614 = vmul.f32 %v3608, %v2202
        %v3615 = vmul.f32 %v3609, %v2198
        %v3616 = vmul.f32 %v3610, %v2202
        %v3617 = vadd.f32 %v3602, %v3613
        %v3618 = vadd.f32 %v3603, %v3614
        %v3619 = vadd.f32 %v3604, %v3615
        %v3620 = vadd.f32 %v3605, %v3616
        %v3621 = vmul.f32 %v3607, %v2214
        %v3622 = vmul.f32 %v3608, %v2218
        %v3623 = vmul.f32 %v3609, %v2214
        %v3624 = vmul.f32 %v3610, %v2218
        %v3625 = vmul.f32 %v3611, %v2214
        %v3626 = vmul.f32 %v3612, %v2218
        %v3633 = vrot.slane %v3621, 1
        %v3634 = vrot.slane %v3623, 1
        %v3635 = vsel %vm2032, %v3633, %v3634
        %v3636 = vrot.slane %v3622, 1
        %v3637 = vrot.slane %v3624, 1
        %v3638 = vsel %vm2032, %v3636, %v3637
        %v3639 = vrot.slane %v3625, 1
        %v3640 = vsel %vm2032, %v3634, %v3639
        %v3641 = vrot.slane %v3626, 1
        %v3642 = vsel %vm2032, %v3637, %v3641
        %v3647 = vadd.f32 %v3617, %v3635
        %v3648 = vadd.f32 %v3618, %v3638
        %v3649 = vadd.f32 %v3619, %v3640
        %v3650 = vadd.f32 %v3620, %v3642
        %v3651 = vmul.f32 %v3607, %v2252
        %v3652 = vmul.f32 %v3608, %v2256
        %v3653 = vmul.f32 %v3609, %v2252
        %v3654 = vmul.f32 %v3610, %v2256
        %v3655 = vmul.f32 %v3611, %v2252
        %v3656 = vmul.f32 %v3612, %v2256
        %v3663 = vrot.slane %v3651, 2
        %v3664 = vrot.slane %v3653, 2
        %v3665 = vsel %vm2071, %v3663, %v3664
        %v3666 = vrot.slane %v3652, 2
        %v3667 = vrot.slane %v3654, 2
        %v3668 = vsel %vm2071, %v3666, %v3667
        %v3669 = vrot.slane %v3655, 2
        %v3670 = vsel %vm2071, %v3664, %v3669
        %v3671 = vrot.slane %v3656, 2
        %v3672 = vsel %vm2071, %v3667, %v3671
        %v3677 = vadd.f32 %v3647, %v3665
        %v3678 = vadd.f32 %v3648, %v3668
        %v3679 = vadd.f32 %v3649, %v3670
        %v3680 = vadd.f32 %v3650, %v3672
        %v3681 = vadd.f32 %v3677, %v2291
        %v3682 = vadd.f32 %v3678, %v2295
        %v3683 = vadd.f32 %v3679, %v2291
        %v3684 = vadd.f32 %v3680, %v2295
        %v3685 = vmul.f32 %v3681, 0.5
        %v3686 = vmul.f32 %v3682, 0.5
        %v3687 = vmul.f32 %v3683, 0.5
        %v3688 = vmul.f32 %v3684, 0.5
        %v3689 = vmul.f32 %v3681, 0.70710677
        %v3690 = vmul.f32 %v3682, 0.70710677
        %v3691 = vmul.f32 %v3683, 0.70710677
        %v3692 = vmul.f32 %v3684, 0.70710677
        %v3693 = vand.u32 2147483647, %v3689
        %v3694 = vand.u32 2147483647, %v3690
        %v3695 = vand.u32 2147483647, %v3691
        %v3696 = vand.u32 2147483647, %v3692
        %v3697 = vmul.f32 %v3693, 0.3275911
        %v3698 = vmul.f32 %v3694, 0.3275911
        %v3699 = vmul.f32 %v3695, 0.3275911
        %v3700 = vmul.f32 %v3696, 0.3275911
        %v3701 = vadd.f32 %v3697, 1.0
        %v3702 = vadd.f32 %v3698, 1.0
        %v3703 = vadd.f32 %v3699, 1.0
        %v3704 = vadd.f32 %v3700, 1.0
        %v3705 = vrcp.pop %v3701
        %v3706 = vrcp.pop %v3702
        %v3707 = vrcp.pop %v3703
        %v3708 = vrcp.pop %v3704
        %v3709 = vmul.f32 %v3705, 1.0614054
        %v3710 = vmul.f32 %v3706, 1.0614054
        %v3711 = vmul.f32 %v3707, 1.0614054
        %v3712 = vmul.f32 %v3708, 1.0614054
        %v3713 = vadd.f32 %v3709, -1.4531521
        %v3714 = vadd.f32 %v3710, -1.4531521
        %v3715 = vadd.f32 %v3711, -1.4531521
        %v3716 = vadd.f32 %v3712, -1.4531521
        %v3717 = vmul.f32 %v3705, %v3713
        %v3718 = vmul.f32 %v3706, %v3714
        %v3719 = vmul.f32 %v3707, %v3715
        %v3720 = vmul.f32 %v3708, %v3716
        %v3721 = vadd.f32 %v3717, 1.4214138
        %v3722 = vadd.f32 %v3718, 1.4214138
        %v3723 = vadd.f32 %v3719, 1.4214138
        %v3724 = vadd.f32 %v3720, 1.4214138
        %v3725 = vmul.f32 %v3705, %v3721
        %v3726 = vmul.f32 %v3706, %v3722
        %v3727 = vmul.f32 %v3707, %v3723
        %v3728 = vmul.f32 %v3708, %v3724
        %v3729 = vadd.f32 %v3725, -0.28449672
        %v3730 = vadd.f32 %v3726, -0.28449672
        %v3731 = vadd.f32 %v3727, -0.28449672
        %v3732 = vadd.f32 %v3728, -0.28449672
        %v3733 = vmul.f32 %v3705, %v3729
        %v3734 = vmul.f32 %v3706, %v3730
        %v3735 = vmul.f32 %v3707, %v3731
        %v3736 = vmul.f32 %v3708, %v3732
        %v3737 = vadd.f32 %v3733, 0.2548296
        %v3738 = vadd.f32 %v3734, 0.2548296
        %v3739 = vadd.f32 %v3735, 0.2548296
        %v3740 = vadd.f32 %v3736, 0.2548296
        %v3741 = vmul.f32 %v3705, %v3737
        %v3742 = vmul.f32 %v3706, %v3738
        %v3743 = vmul.f32 %v3707, %v3739
        %v3744 = vmul.f32 %v3708, %v3740
        %v3745 = vsub.f32 0.0, %v3693
        %v3746 = vsub.f32 0.0, %v3694
        %v3747 = vsub.f32 0.0, %v3695
        %v3748 = vsub.f32 0.0, %v3696
        %v3749 = vmul.f32 %v3745, %v3693
        %v3750 = vmul.f32 %v3746, %v3694
        %v3751 = vmul.f32 %v3747, %v3695
        %v3752 = vmul.f32 %v3748, %v3696
        %v3753 = vmul.f32 %v3749, 1.442695
        %v3754 = vpow.pop %v3753
        %v3755 = vmul.f32 %v3750, 1.442695
        %v3756 = vpow.pop %v3755
        %v3757 = vmul.f32 %v3751, 1.442695
        %v3758 = vpow.pop %v3757
        %v3759 = vmul.f32 %v3752, 1.442695
        %v3760 = vpow.pop %v3759
        %v3761 = vmul.f32 %v3741, %v3754
        %v3762 = vmul.f32 %v3742, %v3756
        %v3763 = vmul.f32 %v3743, %v3758
        %v3764 = vmul.f32 %v3744, %v3760
        %v3765 = vsub.f32 1.0, %v3761
        %v3766 = vsub.f32 1.0, %v3762
        %v3767 = vsub.f32 1.0, %v3763
        %v3768 = vsub.f32 1.0, %v3764
        %vm3769 = vcmp.ge.f32.partialorder %v3689, 0.0
        %vm3770 = vcmp.ge.f32.partialorder %v3690, 0.0
        %vm3771 = vcmp.ge.f32.partialorder %v3691, 0.0
        %vm3772 = vcmp.ge.f32.partialorder %v3692, 0.0
        %v3773 = vsub.f32 0.0, %v3765
        %v3774 = vsub.f32 0.0, %v3766
        %v3775 = vsub.f32 0.0, %v3767
        %v3776 = vsub.f32 0.0, %v3768
        %v3777 = vsel %vm3769, %v3765, %v3773
        %v3778 = vsel %vm3770, %v3766, %v3774
        %v3779 = vsel %vm3771, %v3767, %v3775
        %v3780 = vsel %vm3772, %v3768, %v3776
        %v3781 = vadd.f32 %v3777, 1.0
        %v3782 = vadd.f32 %v3778, 1.0
        %v3783 = vadd.f32 %v3779, 1.0
        %v3784 = vadd.f32 %v3780, 1.0
        %v3785 = vmul.f32 %v3685, %v3781
        %v3786 = vmul.f32 %v3686, %v3782
        %v3787 = vmul.f32 %v3687, %v3783
        %v3788 = vmul.f32 %v3688, %v3784
        %v3789 = vpack.c.bf16 %v3787, %v3785
        %v3790 = vpack.c.bf16 %v3788, %v3786
        %v3793 = vunpack.c.l.b16 %v3789
        %v3794 = vunpack.c.l.b16 %v3790
        %v3795 = vunpack.c.h.b16 %v3789
        %v3796 = vunpack.c.h.b16 %v3790
        %v3797 = vpack.c.b16 %v3794, %v3793
        %v3798 = vpack.c.b16 %v3796, %v3795
        %s3801 = scalar_lea.vmem [#allocation3], 64
        %3802 = vst [vmem:[%s3801] sm:$0xff] %v3797
        %3803 = vst [vmem:[%s3801 + $0x8] sm:$0xff] %v3798
        %v3804 = vld [vmem:[%s3260] sm:$0xff]
        %v3805 = vld [vmem:[%s3260 + $0x8] sm:$0xff]
        %v3806 = vld [vmem:[%s3260 + $0x10] sm:$0xff]
        %v3807 = vld [vmem:[%s3260 + $0x18] sm:$0xff]
        %v3808 = vld [vmem:[%s3260 + $0x20] sm:$0x3]
        %v3809 = vld [vmem:[%s3260 + $0x28] sm:$0x3]
        %v3810 = vmul.f32 %v3804, %v1999
        %v3811 = vmul.f32 %v3805, %v2003
        %v3812 = vmul.f32 %v3806, %v1999
        %v3813 = vmul.f32 %v3807, %v2003
        %v3814 = vadd.f32 %v3810, 0.0
        %v3815 = vadd.f32 %v3811, 0.0
        %v3816 = vadd.f32 %v3812, 0.0
        %v3817 = vadd.f32 %v3813, 0.0
        %v3818 = vmul.f32 %v3804, %v2015
        %v3819 = vmul.f32 %v3805, %v2019
        %v3820 = vmul.f32 %v3806, %v2015
        %v3821 = vmul.f32 %v3807, %v2019
        %v3822 = vmul.f32 %v3808, %v2015
        %v3823 = vmul.f32 %v3809, %v2019
        %v3830 = vrot.slane %v3818, 1
        %v3831 = vrot.slane %v3820, 1
        %v3832 = vsel %vm2032, %v3830, %v3831
        %v3833 = vrot.slane %v3819, 1
        %v3834 = vrot.slane %v3821, 1
        %v3835 = vsel %vm2032, %v3833, %v3834
        %v3836 = vrot.slane %v3822, 1
        %v3837 = vsel %vm2032, %v3831, %v3836
        %v3838 = vrot.slane %v3823, 1
        %v3839 = vsel %vm2032, %v3834, %v3838
        %v3844 = vadd.f32 %v3814, %v3832
        %v3845 = vadd.f32 %v3815, %v3835
        %v3846 = vadd.f32 %v3816, %v3837
        %v3847 = vadd.f32 %v3817, %v3839
        %v3848 = vmul.f32 %v3804, %v2054
        %v3849 = vmul.f32 %v3805, %v2058
        %v3850 = vmul.f32 %v3806, %v2054
        %v3851 = vmul.f32 %v3807, %v2058
        %v3852 = vmul.f32 %v3808, %v2054
        %v3853 = vmul.f32 %v3809, %v2058
        %v3860 = vrot.slane %v3848, 2
        %v3861 = vrot.slane %v3850, 2
        %v3862 = vsel %vm2071, %v3860, %v3861
        %v3863 = vrot.slane %v3849, 2
        %v3864 = vrot.slane %v3851, 2
        %v3865 = vsel %vm2071, %v3863, %v3864
        %v3866 = vrot.slane %v3852, 2
        %v3867 = vsel %vm2071, %v3861, %v3866
        %v3868 = vrot.slane %v3853, 2
        %v3869 = vsel %vm2071, %v3864, %v3868
        %v3874 = vadd.f32 %v3844, %v3862
        %v3875 = vadd.f32 %v3845, %v3865
        %v3876 = vadd.f32 %v3846, %v3867
        %v3877 = vadd.f32 %v3847, %v3869
        %v3878 = vld [vmem:[%s3606] sm:$0xff]
        %v3879 = vld [vmem:[%s3606 + $0x8] sm:$0xff]
        %v3880 = vld [vmem:[%s3606 + $0x10] sm:$0xff]
        %v3881 = vld [vmem:[%s3606 + $0x18] sm:$0xff]
        %v3882 = vld [vmem:[%s3606 + $0x20] sm:$0x3]
        %v3883 = vld [vmem:[%s3606 + $0x28] sm:$0x3]
        %v3884 = vmul.f32 %v3878, %v2099
        %v3885 = vmul.f32 %v3879, %v2103
        %v3886 = vmul.f32 %v3880, %v2099
        %v3887 = vmul.f32 %v3881, %v2103
        %v3888 = vadd.f32 %v3874, %v3884
        %v3889 = vadd.f32 %v3875, %v3885
        %v3890 = vadd.f32 %v3876, %v3886
        %v3891 = vadd.f32 %v3877, %v3887
        %v3892 = vmul.f32 %v3878, %v2115
        %v3893 = vmul.f32 %v3879, %v2119
        %v3894 = vmul.f32 %v3880, %v2115
        %v3895 = vmul.f32 %v3881, %v2119
        %v3896 = vmul.f32 %v3882, %v2115
        %v3897 = vmul.f32 %v3883, %v2119
        %v3904 = vrot.slane %v3892, 1
        %v3905 = vrot.slane %v3894, 1
        %v3906 = vsel %vm2032, %v3904, %v3905
        %v3907 = vrot.slane %v3893, 1
        %v3908 = vrot.slane %v3895, 1
        %v3909 = vsel %vm2032, %v3907, %v3908
        %v3910 = vrot.slane %v3896, 1
        %v3911 = vsel %vm2032, %v3905, %v3910
        %v3912 = vrot.slane %v3897, 1
        %v3913 = vsel %vm2032, %v3908, %v3912
        %v3918 = vadd.f32 %v3888, %v3906
        %v3919 = vadd.f32 %v3889, %v3909
        %v3920 = vadd.f32 %v3890, %v3911
        %v3921 = vadd.f32 %v3891, %v3913
        %v3922 = vmul.f32 %v3878, %v2153
        %v3923 = vmul.f32 %v3879, %v2157
        %v3924 = vmul.f32 %v3880, %v2153
        %v3925 = vmul.f32 %v3881, %v2157
        %v3926 = vmul.f32 %v3882, %v2153
        %v3927 = vmul.f32 %v3883, %v2157
        %v3934 = vrot.slane %v3922, 2
        %v3935 = vrot.slane %v3924, 2
        %v3936 = vsel %vm2071, %v3934, %v3935
        %v3937 = vrot.slane %v3923, 2
        %v3938 = vrot.slane %v3925, 2
        %v3939 = vsel %vm2071, %v3937, %v3938
        %v3940 = vrot.slane %v3926, 2
        %v3941 = vsel %vm2071, %v3935, %v3940
        %v3942 = vrot.slane %v3927, 2
        %v3943 = vsel %vm2071, %v3938, %v3942
        %v3948 = vadd.f32 %v3918, %v3936
        %v3949 = vadd.f32 %v3919, %v3939
        %v3950 = vadd.f32 %v3920, %v3941
        %v3951 = vadd.f32 %v3921, %v3943
        %s3952 = scalar_lea.vmem [#allocation2], 336
        %v3953 = vld [vmem:[%s3952] sm:$0xff]
        %v3954 = vld [vmem:[%s3952 + $0x8] sm:$0xff]
        %v3955 = vld [vmem:[%s3952 + $0x10] sm:$0xff]
        %v3956 = vld [vmem:[%s3952 + $0x18] sm:$0xff]
        %v3957 = vld [vmem:[%s3952 + $0x20] sm:$0x3]
        %v3958 = vld [vmem:[%s3952 + $0x28] sm:$0x3]
        %v3959 = vmul.f32 %v3953, %v2198
        %v3960 = vmul.f32 %v3954, %v2202
        %v3961 = vmul.f32 %v3955, %v2198
        %v3962 = vmul.f32 %v3956, %v2202
        %v3963 = vadd.f32 %v3948, %v3959
        %v3964 = vadd.f32 %v3949, %v3960
        %v3965 = vadd.f32 %v3950, %v3961
        %v3966 = vadd.f32 %v3951, %v3962
        %v3967 = vmul.f32 %v3953, %v2214
        %v3968 = vmul.f32 %v3954, %v2218
        %v3969 = vmul.f32 %v3955, %v2214
        %v3970 = vmul.f32 %v3956, %v2218
        %v3971 = vmul.f32 %v3957, %v2214
        %v3972 = vmul.f32 %v3958, %v2218
        %v3979 = vrot.slane %v3967, 1
        %v3980 = vrot.slane %v3969, 1
        %v3981 = vsel %vm2032, %v3979, %v3980
        %v3982 = vrot.slane %v3968, 1
        %v3983 = vrot.slane %v3970, 1
        %v3984 = vsel %vm2032, %v3982, %v3983
        %v3985 = vrot.slane %v3971, 1
        %v3986 = vsel %vm2032, %v3980, %v3985
        %v3987 = vrot.slane %v3972, 1
        %v3988 = vsel %vm2032, %v3983, %v3987
        %v3993 = vadd.f32 %v3963, %v3981
        %v3994 = vadd.f32 %v3964, %v3984
        %v3995 = vadd.f32 %v3965, %v3986
        %v3996 = vadd.f32 %v3966, %v3988
        %v3997 = vmul.f32 %v3953, %v2252
        %v3998 = vmul.f32 %v3954, %v2256
        %v3999 = vmul.f32 %v3955, %v2252
        %v4000 = vmul.f32 %v3956, %v2256
        %v4001 = vmul.f32 %v3957, %v2252
        %v4002 = vmul.f32 %v3958, %v2256
        %v4009 = vrot.slane %v3997, 2
        %v4010 = vrot.slane %v3999, 2
        %v4011 = vsel %vm2071, %v4009, %v4010
        %v4012 = vrot.slane %v3998, 2
        %v4013 = vrot.slane %v4000, 2
        %v4014 = vsel %vm2071, %v4012, %v4013
        %v4015 = vrot.slane %v4001, 2
        %v4016 = vsel %vm2071, %v4010, %v4015
        %v4017 = vrot.slane %v4002, 2
        %v4018 = vsel %vm2071, %v4013, %v4017
        %v4023 = vadd.f32 %v3993, %v4011
        %v4024 = vadd.f32 %v3994, %v4014
        %v4025 = vadd.f32 %v3995, %v4016
        %v4026 = vadd.f32 %v3996, %v4018
        %v4027 = vadd.f32 %v4023, %v2291
        %v4028 = vadd.f32 %v4024, %v2295
        %v4029 = vadd.f32 %v4025, %v2291
        %v4030 = vadd.f32 %v4026, %v2295
        %v4031 = vmul.f32 %v4027, 0.5
        %v4032 = vmul.f32 %v4028, 0.5
        %v4033 = vmul.f32 %v4029, 0.5
        %v4034 = vmul.f32 %v4030, 0.5
        %v4035 = vmul.f32 %v4027, 0.70710677
        %v4036 = vmul.f32 %v4028, 0.70710677
        %v4037 = vmul.f32 %v4029, 0.70710677
        %v4038 = vmul.f32 %v4030, 0.70710677
        %v4039 = vand.u32 2147483647, %v4035
        %v4040 = vand.u32 2147483647, %v4036
        %v4041 = vand.u32 2147483647, %v4037
        %v4042 = vand.u32 2147483647, %v4038
        %v4043 = vmul.f32 %v4039, 0.3275911
        %v4044 = vmul.f32 %v4040, 0.3275911
        %v4045 = vmul.f32 %v4041, 0.3275911
        %v4046 = vmul.f32 %v4042, 0.3275911
        %v4047 = vadd.f32 %v4043, 1.0
        %v4048 = vadd.f32 %v4044, 1.0
        %v4049 = vadd.f32 %v4045, 1.0
        %v4050 = vadd.f32 %v4046, 1.0
        %v4051 = vrcp.pop %v4047
        %v4052 = vrcp.pop %v4048
        %v4053 = vrcp.pop %v4049
        %v4054 = vrcp.pop %v4050
        %v4055 = vmul.f32 %v4051, 1.0614054
        %v4056 = vmul.f32 %v4052, 1.0614054
        %v4057 = vmul.f32 %v4053, 1.0614054
        %v4058 = vmul.f32 %v4054, 1.0614054
        %v4059 = vadd.f32 %v4055, -1.4531521
        %v4060 = vadd.f32 %v4056, -1.4531521
        %v4061 = vadd.f32 %v4057, -1.4531521
        %v4062 = vadd.f32 %v4058, -1.4531521
        %v4063 = vmul.f32 %v4051, %v4059
        %v4064 = vmul.f32 %v4052, %v4060
        %v4065 = vmul.f32 %v4053, %v4061
        %v4066 = vmul.f32 %v4054, %v4062
        %v4067 = vadd.f32 %v4063, 1.4214138
        %v4068 = vadd.f32 %v4064, 1.4214138
        %v4069 = vadd.f32 %v4065, 1.4214138
        %v4070 = vadd.f32 %v4066, 1.4214138
        %v4071 = vmul.f32 %v4051, %v4067
        %v4072 = vmul.f32 %v4052, %v4068
        %v4073 = vmul.f32 %v4053, %v4069
        %v4074 = vmul.f32 %v4054, %v4070
        %v4075 = vadd.f32 %v4071, -0.28449672
        %v4076 = vadd.f32 %v4072, -0.28449672
        %v4077 = vadd.f32 %v4073, -0.28449672
        %v4078 = vadd.f32 %v4074, -0.28449672
        %v4079 = vmul.f32 %v4051, %v4075
        %v4080 = vmul.f32 %v4052, %v4076
        %v4081 = vmul.f32 %v4053, %v4077
        %v4082 = vmul.f32 %v4054, %v4078
        %v4083 = vadd.f32 %v4079, 0.2548296
        %v4084 = vadd.f32 %v4080, 0.2548296
        %v4085 = vadd.f32 %v4081, 0.2548296
        %v4086 = vadd.f32 %v4082, 0.2548296
        %v4087 = vmul.f32 %v4051, %v4083
        %v4088 = vmul.f32 %v4052, %v4084
        %v4089 = vmul.f32 %v4053, %v4085
        %v4090 = vmul.f32 %v4054, %v4086
        %v4091 = vsub.f32 0.0, %v4039
        %v4092 = vsub.f32 0.0, %v4040
        %v4093 = vsub.f32 0.0, %v4041
        %v4094 = vsub.f32 0.0, %v4042
        %v4095 = vmul.f32 %v4091, %v4039
        %v4096 = vmul.f32 %v4092, %v4040
        %v4097 = vmul.f32 %v4093, %v4041
        %v4098 = vmul.f32 %v4094, %v4042
        %v4099 = vmul.f32 %v4095, 1.442695
        %v4100 = vpow.pop %v4099
        %v4101 = vmul.f32 %v4096, 1.442695
        %v4102 = vpow.pop %v4101
        %v4103 = vmul.f32 %v4097, 1.442695
        %v4104 = vpow.pop %v4103
        %v4105 = vmul.f32 %v4098, 1.442695
        %v4106 = vpow.pop %v4105
        %v4107 = vmul.f32 %v4087, %v4100
        %v4108 = vmul.f32 %v4088, %v4102
        %v4109 = vmul.f32 %v4089, %v4104
        %v4110 = vmul.f32 %v4090, %v4106
        %v4111 = vsub.f32 1.0, %v4107
        %v4112 = vsub.f32 1.0, %v4108
        %v4113 = vsub.f32 1.0, %v4109
        %v4114 = vsub.f32 1.0, %v4110
        %vm4115 = vcmp.ge.f32.partialorder %v4035, 0.0
        %vm4116 = vcmp.ge.f32.partialorder %v4036, 0.0
        %vm4117 = vcmp.ge.f32.partialorder %v4037, 0.0
        %vm4118 = vcmp.ge.f32.partialorder %v4038, 0.0
        %v4119 = vsub.f32 0.0, %v4111
        %v4120 = vsub.f32 0.0, %v4112
        %v4121 = vsub.f32 0.0, %v4113
        %v4122 = vsub.f32 0.0, %v4114
        %v4123 = vsel %vm4115, %v4111, %v4119
        %v4124 = vsel %vm4116, %v4112, %v4120
        %v4125 = vsel %vm4117, %v4113, %v4121
        %v4126 = vsel %vm4118, %v4114, %v4122
        %v4127 = vadd.f32 %v4123, 1.0
        %v4128 = vadd.f32 %v4124, 1.0
        %v4129 = vadd.f32 %v4125, 1.0
        %v4130 = vadd.f32 %v4126, 1.0
        %v4131 = vmul.f32 %v4031, %v4127
        %v4132 = vmul.f32 %v4032, %v4128
        %v4133 = vmul.f32 %v4033, %v4129
        %v4134 = vmul.f32 %v4034, %v4130
        %v4135 = vpack.c.bf16 %v4133, %v4131
        %v4136 = vpack.c.bf16 %v4134, %v4132
        %v4139 = vunpack.c.l.b16 %v4135
        %v4140 = vunpack.c.l.b16 %v4136
        %v4141 = vunpack.c.h.b16 %v4135
        %v4142 = vunpack.c.h.b16 %v4136
        %v4143 = vpack.c.b16 %v4140, %v4139
        %v4144 = vpack.c.b16 %v4142, %v4141
        %s4147 = scalar_lea.vmem [#allocation3], 80
        %4148 = vst [vmem:[%s4147] sm:$0xff] %v4143
        %4149 = vst [vmem:[%s4147 + $0x8] sm:$0xff] %v4144
        %v4150 = vld [vmem:[%s3606] sm:$0xff]
        %v4151 = vld [vmem:[%s3606 + $0x8] sm:$0xff]
        %v4152 = vld [vmem:[%s3606 + $0x10] sm:$0xff]
        %v4153 = vld [vmem:[%s3606 + $0x18] sm:$0xff]
        %v4154 = vld [vmem:[%s3606 + $0x20] sm:$0x3]
        %v4155 = vld [vmem:[%s3606 + $0x28] sm:$0x3]
        %v4156 = vmul.f32 %v4150, %v1999
        %v4157 = vmul.f32 %v4151, %v2003
        %v4158 = vmul.f32 %v4152, %v1999
        %v4159 = vmul.f32 %v4153, %v2003
        %v4160 = vadd.f32 %v4156, 0.0
        %v4161 = vadd.f32 %v4157, 0.0
        %v4162 = vadd.f32 %v4158, 0.0
        %v4163 = vadd.f32 %v4159, 0.0
        %v4164 = vmul.f32 %v4150, %v2015
        %v4165 = vmul.f32 %v4151, %v2019
        %v4166 = vmul.f32 %v4152, %v2015
        %v4167 = vmul.f32 %v4153, %v2019
        %v4168 = vmul.f32 %v4154, %v2015
        %v4169 = vmul.f32 %v4155, %v2019
        %v4176 = vrot.slane %v4164, 1
        %v4177 = vrot.slane %v4166, 1
        %v4178 = vsel %vm2032, %v4176, %v4177
        %v4179 = vrot.slane %v4165, 1
        %v4180 = vrot.slane %v4167, 1
        %v4181 = vsel %vm2032, %v4179, %v4180
        %v4182 = vrot.slane %v4168, 1
        %v4183 = vsel %vm2032, %v4177, %v4182
        %v4184 = vrot.slane %v4169, 1
        %v4185 = vsel %vm2032, %v4180, %v4184
        %v4190 = vadd.f32 %v4160, %v4178
        %v4191 = vadd.f32 %v4161, %v4181
        %v4192 = vadd.f32 %v4162, %v4183
        %v4193 = vadd.f32 %v4163, %v4185
        %v4194 = vmul.f32 %v4150, %v2054
        %v4195 = vmul.f32 %v4151, %v2058
        %v4196 = vmul.f32 %v4152, %v2054
        %v4197 = vmul.f32 %v4153, %v2058
        %v4198 = vmul.f32 %v4154, %v2054
        %v4199 = vmul.f32 %v4155, %v2058
        %v4206 = vrot.slane %v4194, 2
        %v4207 = vrot.slane %v4196, 2
        %v4208 = vsel %vm2071, %v4206, %v4207
        %v4209 = vrot.slane %v4195, 2
        %v4210 = vrot.slane %v4197, 2
        %v4211 = vsel %vm2071, %v4209, %v4210
        %v4212 = vrot.slane %v4198, 2
        %v4213 = vsel %vm2071, %v4207, %v4212
        %v4214 = vrot.slane %v4199, 2
        %v4215 = vsel %vm2071, %v4210, %v4214
        %v4220 = vadd.f32 %v4190, %v4208
        %v4221 = vadd.f32 %v4191, %v4211
        %v4222 = vadd.f32 %v4192, %v4213
        %v4223 = vadd.f32 %v4193, %v4215
        %v4224 = vld [vmem:[%s3952] sm:$0xff]
        %v4225 = vld [vmem:[%s3952 + $0x8] sm:$0xff]
        %v4226 = vld [vmem:[%s3952 + $0x10] sm:$0xff]
        %v4227 = vld [vmem:[%s3952 + $0x18] sm:$0xff]
        %v4228 = vld [vmem:[%s3952 + $0x20] sm:$0x3]
        %v4229 = vld [vmem:[%s3952 + $0x28] sm:$0x3]
        %v4230 = vmul.f32 %v4224, %v2099
        %v4231 = vmul.f32 %v4225, %v2103
        %v4232 = vmul.f32 %v4226, %v2099
        %v4233 = vmul.f32 %v4227, %v2103
        %v4234 = vadd.f32 %v4220, %v4230
        %v4235 = vadd.f32 %v4221, %v4231
        %v4236 = vadd.f32 %v4222, %v4232
        %v4237 = vadd.f32 %v4223, %v4233
        %v4238 = vmul.f32 %v4224, %v2115
        %v4239 = vmul.f32 %v4225, %v2119
        %v4240 = vmul.f32 %v4226, %v2115
        %v4241 = vmul.f32 %v4227, %v2119
        %v4242 = vmul.f32 %v4228, %v2115
        %v4243 = vmul.f32 %v4229, %v2119
        %v4250 = vrot.slane %v4238, 1
        %v4251 = vrot.slane %v4240, 1
        %v4252 = vsel %vm2032, %v4250, %v4251
        %v4253 = vrot.slane %v4239, 1
        %v4254 = vrot.slane %v4241, 1
        %v4255 = vsel %vm2032, %v4253, %v4254
        %v4256 = vrot.slane %v4242, 1
        %v4257 = vsel %vm2032, %v4251, %v4256
        %v4258 = vrot.slane %v4243, 1
        %v4259 = vsel %vm2032, %v4254, %v4258
        %v4264 = vadd.f32 %v4234, %v4252
        %v4265 = vadd.f32 %v4235, %v4255
        %v4266 = vadd.f32 %v4236, %v4257
        %v4267 = vadd.f32 %v4237, %v4259
        %v4268 = vmul.f32 %v4224, %v2153
        %v4269 = vmul.f32 %v4225, %v2157
        %v4270 = vmul.f32 %v4226, %v2153
        %v4271 = vmul.f32 %v4227, %v2157
        %v4272 = vmul.f32 %v4228, %v2153
        %v4273 = vmul.f32 %v4229, %v2157
        %v4280 = vrot.slane %v4268, 2
        %v4281 = vrot.slane %v4270, 2
        %v4282 = vsel %vm2071, %v4280, %v4281
        %v4283 = vrot.slane %v4269, 2
        %v4284 = vrot.slane %v4271, 2
        %v4285 = vsel %vm2071, %v4283, %v4284
        %v4286 = vrot.slane %v4272, 2
        %v4287 = vsel %vm2071, %v4281, %v4286
        %v4288 = vrot.slane %v4273, 2
        %v4289 = vsel %vm2071, %v4284, %v4288
        %v4294 = vadd.f32 %v4264, %v4282
        %v4295 = vadd.f32 %v4265, %v4285
        %v4296 = vadd.f32 %v4266, %v4287
        %v4297 = vadd.f32 %v4267, %v4289
        %s4298 = scalar_lea.vmem [#allocation2], 384
        %v4299 = vld [vmem:[%s4298] sm:$0xff]
        %v4300 = vld [vmem:[%s4298 + $0x8] sm:$0xff]
        %v4301 = vld [vmem:[%s4298 + $0x10] sm:$0xff]
        %v4302 = vld [vmem:[%s4298 + $0x18] sm:$0xff]
        %v4303 = vld [vmem:[%s4298 + $0x20] sm:$0x3]
        %v4304 = vld [vmem:[%s4298 + $0x28] sm:$0x3]
        %v4305 = vmul.f32 %v4299, %v2198
        %v4306 = vmul.f32 %v4300, %v2202
        %v4307 = vmul.f32 %v4301, %v2198
        %v4308 = vmul.f32 %v4302, %v2202
        %v4309 = vadd.f32 %v4294, %v4305
        %v4310 = vadd.f32 %v4295, %v4306
        %v4311 = vadd.f32 %v4296, %v4307
        %v4312 = vadd.f32 %v4297, %v4308
        %v4313 = vmul.f32 %v4299, %v2214
        %v4314 = vmul.f32 %v4300, %v2218
        %v4315 = vmul.f32 %v4301, %v2214
        %v4316 = vmul.f32 %v4302, %v2218
        %v4317 = vmul.f32 %v4303, %v2214
        %v4318 = vmul.f32 %v4304, %v2218
        %v4325 = vrot.slane %v4313, 1
        %v4326 = vrot.slane %v4315, 1
        %v4327 = vsel %vm2032, %v4325, %v4326
        %v4328 = vrot.slane %v4314, 1
        %v4329 = vrot.slane %v4316, 1
        %v4330 = vsel %vm2032, %v4328, %v4329
        %v4331 = vrot.slane %v4317, 1
        %v4332 = vsel %vm2032, %v4326, %v4331
        %v4333 = vrot.slane %v4318, 1
        %v4334 = vsel %vm2032, %v4329, %v4333
        %v4339 = vadd.f32 %v4309, %v4327
        %v4340 = vadd.f32 %v4310, %v4330
        %v4341 = vadd.f32 %v4311, %v4332
        %v4342 = vadd.f32 %v4312, %v4334
        %v4343 = vmul.f32 %v4299, %v2252
        %v4344 = vmul.f32 %v4300, %v2256
        %v4345 = vmul.f32 %v4301, %v2252
        %v4346 = vmul.f32 %v4302, %v2256
        %v4347 = vmul.f32 %v4303, %v2252
        %v4348 = vmul.f32 %v4304, %v2256
        %v4355 = vrot.slane %v4343, 2
        %v4356 = vrot.slane %v4345, 2
        %v4357 = vsel %vm2071, %v4355, %v4356
        %v4358 = vrot.slane %v4344, 2
        %v4359 = vrot.slane %v4346, 2
        %v4360 = vsel %vm2071, %v4358, %v4359
        %v4361 = vrot.slane %v4347, 2
        %v4362 = vsel %vm2071, %v4356, %v4361
        %v4363 = vrot.slane %v4348, 2
        %v4364 = vsel %vm2071, %v4359, %v4363
        %v4369 = vadd.f32 %v4339, %v4357
        %v4370 = vadd.f32 %v4340, %v4360
        %v4371 = vadd.f32 %v4341, %v4362
        %v4372 = vadd.f32 %v4342, %v4364
        %v4373 = vadd.f32 %v4369, %v2291
        %v4374 = vadd.f32 %v4370, %v2295
        %v4375 = vadd.f32 %v4371, %v2291
        %v4376 = vadd.f32 %v4372, %v2295
        %v4377 = vmul.f32 %v4373, 0.5
        %v4378 = vmul.f32 %v4374, 0.5
        %v4379 = vmul.f32 %v4375, 0.5
        %v4380 = vmul.f32 %v4376, 0.5
        %v4381 = vmul.f32 %v4373, 0.70710677
        %v4382 = vmul.f32 %v4374, 0.70710677
        %v4383 = vmul.f32 %v4375, 0.70710677
        %v4384 = vmul.f32 %v4376, 0.70710677
        %v4385 = vand.u32 2147483647, %v4381
        %v4386 = vand.u32 2147483647, %v4382
        %v4387 = vand.u32 2147483647, %v4383
        %v4388 = vand.u32 2147483647, %v4384
        %v4389 = vmul.f32 %v4385, 0.3275911
        %v4390 = vmul.f32 %v4386, 0.3275911
        %v4391 = vmul.f32 %v4387, 0.3275911
        %v4392 = vmul.f32 %v4388, 0.3275911
        %v4393 = vadd.f32 %v4389, 1.0
        %v4394 = vadd.f32 %v4390, 1.0
        %v4395 = vadd.f32 %v4391, 1.0
        %v4396 = vadd.f32 %v4392, 1.0
        %v4397 = vrcp.pop %v4393
        %v4398 = vrcp.pop %v4394
        %v4399 = vrcp.pop %v4395
        %v4400 = vrcp.pop %v4396
        %v4401 = vmul.f32 %v4397, 1.0614054
        %v4402 = vmul.f32 %v4398, 1.0614054
        %v4403 = vmul.f32 %v4399, 1.0614054
        %v4404 = vmul.f32 %v4400, 1.0614054
        %v4405 = vadd.f32 %v4401, -1.4531521
        %v4406 = vadd.f32 %v4402, -1.4531521
        %v4407 = vadd.f32 %v4403, -1.4531521
        %v4408 = vadd.f32 %v4404, -1.4531521
        %v4409 = vmul.f32 %v4397, %v4405
        %v4410 = vmul.f32 %v4398, %v4406
        %v4411 = vmul.f32 %v4399, %v4407
        %v4412 = vmul.f32 %v4400, %v4408
        %v4413 = vadd.f32 %v4409, 1.4214138
        %v4414 = vadd.f32 %v4410, 1.4214138
        %v4415 = vadd.f32 %v4411, 1.4214138
        %v4416 = vadd.f32 %v4412, 1.4214138
        %v4417 = vmul.f32 %v4397, %v4413
        %v4418 = vmul.f32 %v4398, %v4414
        %v4419 = vmul.f32 %v4399, %v4415
        %v4420 = vmul.f32 %v4400, %v4416
        %v4421 = vadd.f32 %v4417, -0.28449672
        %v4422 = vadd.f32 %v4418, -0.28449672
        %v4423 = vadd.f32 %v4419, -0.28449672
        %v4424 = vadd.f32 %v4420, -0.28449672
        %v4425 = vmul.f32 %v4397, %v4421
        %v4426 = vmul.f32 %v4398, %v4422
        %v4427 = vmul.f32 %v4399, %v4423
        %v4428 = vmul.f32 %v4400, %v4424
        %v4429 = vadd.f32 %v4425, 0.2548296
        %v4430 = vadd.f32 %v4426, 0.2548296
        %v4431 = vadd.f32 %v4427, 0.2548296
        %v4432 = vadd.f32 %v4428, 0.2548296
        %v4433 = vmul.f32 %v4397, %v4429
        %v4434 = vmul.f32 %v4398, %v4430
        %v4435 = vmul.f32 %v4399, %v4431
        %v4436 = vmul.f32 %v4400, %v4432
        %v4437 = vsub.f32 0.0, %v4385
        %v4438 = vsub.f32 0.0, %v4386
        %v4439 = vsub.f32 0.0, %v4387
        %v4440 = vsub.f32 0.0, %v4388
        %v4441 = vmul.f32 %v4437, %v4385
        %v4442 = vmul.f32 %v4438, %v4386
        %v4443 = vmul.f32 %v4439, %v4387
        %v4444 = vmul.f32 %v4440, %v4388
        %v4445 = vmul.f32 %v4441, 1.442695
        %v4446 = vpow.pop %v4445
        %v4447 = vmul.f32 %v4442, 1.442695
        %v4448 = vpow.pop %v4447
        %v4449 = vmul.f32 %v4443, 1.442695
        %v4450 = vpow.pop %v4449
        %v4451 = vmul.f32 %v4444, 1.442695
        %v4452 = vpow.pop %v4451
        %v4453 = vmul.f32 %v4433, %v4446
        %v4454 = vmul.f32 %v4434, %v4448
        %v4455 = vmul.f32 %v4435, %v4450
        %v4456 = vmul.f32 %v4436, %v4452
        %v4457 = vsub.f32 1.0, %v4453
        %v4458 = vsub.f32 1.0, %v4454
        %v4459 = vsub.f32 1.0, %v4455
        %v4460 = vsub.f32 1.0, %v4456
        %vm4461 = vcmp.ge.f32.partialorder %v4381, 0.0
        %vm4462 = vcmp.ge.f32.partialorder %v4382, 0.0
        %vm4463 = vcmp.ge.f32.partialorder %v4383, 0.0
        %vm4464 = vcmp.ge.f32.partialorder %v4384, 0.0
        %v4465 = vsub.f32 0.0, %v4457
        %v4466 = vsub.f32 0.0, %v4458
        %v4467 = vsub.f32 0.0, %v4459
        %v4468 = vsub.f32 0.0, %v4460
        %v4469 = vsel %vm4461, %v4457, %v4465
        %v4470 = vsel %vm4462, %v4458, %v4466
        %v4471 = vsel %vm4463, %v4459, %v4467
        %v4472 = vsel %vm4464, %v4460, %v4468
        %v4473 = vadd.f32 %v4469, 1.0
        %v4474 = vadd.f32 %v4470, 1.0
        %v4475 = vadd.f32 %v4471, 1.0
        %v4476 = vadd.f32 %v4472, 1.0
        %v4477 = vmul.f32 %v4377, %v4473
        %v4478 = vmul.f32 %v4378, %v4474
        %v4479 = vmul.f32 %v4379, %v4475
        %v4480 = vmul.f32 %v4380, %v4476
        %v4481 = vpack.c.bf16 %v4479, %v4477
        %v4482 = vpack.c.bf16 %v4480, %v4478
        %v4485 = vunpack.c.l.b16 %v4481
        %v4486 = vunpack.c.l.b16 %v4482
        %v4487 = vunpack.c.h.b16 %v4481
        %v4488 = vunpack.c.h.b16 %v4482
        %v4489 = vpack.c.b16 %v4486, %v4485
        %v4490 = vpack.c.b16 %v4488, %v4487
        %s4493 = scalar_lea.vmem [#allocation3], 96
        %4494 = vst [vmem:[%s4493] sm:$0xff] %v4489
        %4495 = vst [vmem:[%s4493 + $0x8] sm:$0xff] %v4490
        %v4496 = vld [vmem:[%s3952] sm:$0xff]
        %v4497 = vld [vmem:[%s3952 + $0x8] sm:$0xff]
        %v4498 = vld [vmem:[%s3952 + $0x10] sm:$0xff]
        %v4499 = vld [vmem:[%s3952 + $0x18] sm:$0xff]
        %v4500 = vld [vmem:[%s3952 + $0x20] sm:$0x3]
        %v4501 = vld [vmem:[%s3952 + $0x28] sm:$0x3]
        %v4502 = vmul.f32 %v4496, %v1999
        %v4503 = vmul.f32 %v4497, %v2003
        %v4504 = vmul.f32 %v4498, %v1999
        %v4505 = vmul.f32 %v4499, %v2003
        %v4506 = vadd.f32 %v4502, 0.0
        %v4507 = vadd.f32 %v4503, 0.0
        %v4508 = vadd.f32 %v4504, 0.0
        %v4509 = vadd.f32 %v4505, 0.0
        %v4510 = vmul.f32 %v4496, %v2015
        %v4511 = vmul.f32 %v4497, %v2019
        %v4512 = vmul.f32 %v4498, %v2015
        %v4513 = vmul.f32 %v4499, %v2019
        %v4514 = vmul.f32 %v4500, %v2015
        %v4515 = vmul.f32 %v4501, %v2019
        %v4522 = vrot.slane %v4510, 1
        %v4523 = vrot.slane %v4512, 1
        %v4524 = vsel %vm2032, %v4522, %v4523
        %v4525 = vrot.slane %v4511, 1
        %v4526 = vrot.slane %v4513, 1
        %v4527 = vsel %vm2032, %v4525, %v4526
        %v4528 = vrot.slane %v4514, 1
        %v4529 = vsel %vm2032, %v4523, %v4528
        %v4530 = vrot.slane %v4515, 1
        %v4531 = vsel %vm2032, %v4526, %v4530
        %v4536 = vadd.f32 %v4506, %v4524
        %v4537 = vadd.f32 %v4507, %v4527
        %v4538 = vadd.f32 %v4508, %v4529
        %v4539 = vadd.f32 %v4509, %v4531
        %v4540 = vmul.f32 %v4496, %v2054
        %v4541 = vmul.f32 %v4497, %v2058
        %v4542 = vmul.f32 %v4498, %v2054
        %v4543 = vmul.f32 %v4499, %v2058
        %v4544 = vmul.f32 %v4500, %v2054
        %v4545 = vmul.f32 %v4501, %v2058
        %v4552 = vrot.slane %v4540, 2
        %v4553 = vrot.slane %v4542, 2
        %v4554 = vsel %vm2071, %v4552, %v4553
        %v4555 = vrot.slane %v4541, 2
        %v4556 = vrot.slane %v4543, 2
        %v4557 = vsel %vm2071, %v4555, %v4556
        %v4558 = vrot.slane %v4544, 2
        %v4559 = vsel %vm2071, %v4553, %v4558
        %v4560 = vrot.slane %v4545, 2
        %v4561 = vsel %vm2071, %v4556, %v4560
        %v4566 = vadd.f32 %v4536, %v4554
        %v4567 = vadd.f32 %v4537, %v4557
        %v4568 = vadd.f32 %v4538, %v4559
        %v4569 = vadd.f32 %v4539, %v4561
        %v4570 = vld [vmem:[%s4298] sm:$0xff]
        %v4571 = vld [vmem:[%s4298 + $0x8] sm:$0xff]
        %v4572 = vld [vmem:[%s4298 + $0x10] sm:$0xff]
        %v4573 = vld [vmem:[%s4298 + $0x18] sm:$0xff]
        %v4574 = vld [vmem:[%s4298 + $0x20] sm:$0x3]
        %v4575 = vld [vmem:[%s4298 + $0x28] sm:$0x3]
        %v4576 = vmul.f32 %v4570, %v2099
        %v4577 = vmul.f32 %v4571, %v2103
        %v4578 = vmul.f32 %v4572, %v2099
        %v4579 = vmul.f32 %v4573, %v2103
        %v4580 = vadd.f32 %v4566, %v4576
        %v4581 = vadd.f32 %v4567, %v4577
        %v4582 = vadd.f32 %v4568, %v4578
        %v4583 = vadd.f32 %v4569, %v4579
        %v4584 = vmul.f32 %v4570, %v2115
        %v4585 = vmul.f32 %v4571, %v2119
        %v4586 = vmul.f32 %v4572, %v2115
        %v4587 = vmul.f32 %v4573, %v2119
        %v4588 = vmul.f32 %v4574, %v2115
        %v4589 = vmul.f32 %v4575, %v2119
        %v4596 = vrot.slane %v4584, 1
        %v4597 = vrot.slane %v4586, 1
        %v4598 = vsel %vm2032, %v4596, %v4597
        %v4599 = vrot.slane %v4585, 1
        %v4600 = vrot.slane %v4587, 1
        %v4601 = vsel %vm2032, %v4599, %v4600
        %v4602 = vrot.slane %v4588, 1
        %v4603 = vsel %vm2032, %v4597, %v4602
        %v4604 = vrot.slane %v4589, 1
        %v4605 = vsel %vm2032, %v4600, %v4604
        %v4610 = vadd.f32 %v4580, %v4598
        %v4611 = vadd.f32 %v4581, %v4601
        %v4612 = vadd.f32 %v4582, %v4603
        %v4613 = vadd.f32 %v4583, %v4605
        %v4614 = vmul.f32 %v4570, %v2153
        %v4615 = vmul.f32 %v4571, %v2157
        %v4616 = vmul.f32 %v4572, %v2153
        %v4617 = vmul.f32 %v4573, %v2157
        %v4618 = vmul.f32 %v4574, %v2153
        %v4619 = vmul.f32 %v4575, %v2157
        %v4626 = vrot.slane %v4614, 2
        %v4627 = vrot.slane %v4616, 2
        %v4628 = vsel %vm2071, %v4626, %v4627
        %v4629 = vrot.slane %v4615, 2
        %v4630 = vrot.slane %v4617, 2
        %v4631 = vsel %vm2071, %v4629, %v4630
        %v4632 = vrot.slane %v4618, 2
        %v4633 = vsel %vm2071, %v4627, %v4632
        %v4634 = vrot.slane %v4619, 2
        %v4635 = vsel %vm2071, %v4630, %v4634
        %v4640 = vadd.f32 %v4610, %v4628
        %v4641 = vadd.f32 %v4611, %v4631
        %v4642 = vadd.f32 %v4612, %v4633
        %v4643 = vadd.f32 %v4613, %v4635
        %v4644 = vld [vmem:[%s300] sm:$0xff]
        %v4645 = vld [vmem:[%s300 + $0x8] sm:$0xff]
        %v4646 = vld [vmem:[%s300 + $0x10] sm:$0xff]
        %v4647 = vld [vmem:[%s300 + $0x18] sm:$0xff]
        %v4648 = vld [vmem:[%s300 + $0x20] sm:$0x3]
        %v4649 = vld [vmem:[%s300 + $0x28] sm:$0x3]
        %v4650 = vmul.f32 %v4644, %v2198
        %v4651 = vmul.f32 %v4645, %v2202
        %v4652 = vmul.f32 %v4646, %v2198
        %v4653 = vmul.f32 %v4647, %v2202
        %v4654 = vadd.f32 %v4640, %v4650
        %v4655 = vadd.f32 %v4641, %v4651
        %v4656 = vadd.f32 %v4642, %v4652
        %v4657 = vadd.f32 %v4643, %v4653
        %v4658 = vmul.f32 %v4644, %v2214
        %v4659 = vmul.f32 %v4645, %v2218
        %v4660 = vmul.f32 %v4646, %v2214
        %v4661 = vmul.f32 %v4647, %v2218
        %v4662 = vmul.f32 %v4648, %v2214
        %v4663 = vmul.f32 %v4649, %v2218
        %v4670 = vrot.slane %v4658, 1
        %v4671 = vrot.slane %v4660, 1
        %v4672 = vsel %vm2032, %v4670, %v4671
        %v4673 = vrot.slane %v4659, 1
        %v4674 = vrot.slane %v4661, 1
        %v4675 = vsel %vm2032, %v4673, %v4674
        %v4676 = vrot.slane %v4662, 1
        %v4677 = vsel %vm2032, %v4671, %v4676
        %v4678 = vrot.slane %v4663, 1
        %v4679 = vsel %vm2032, %v4674, %v4678
        %v4684 = vadd.f32 %v4654, %v4672
        %v4685 = vadd.f32 %v4655, %v4675
        %v4686 = vadd.f32 %v4656, %v4677
        %v4687 = vadd.f32 %v4657, %v4679
        %v4688 = vmul.f32 %v4644, %v2252
        %v4689 = vmul.f32 %v4645, %v2256
        %v4690 = vmul.f32 %v4646, %v2252
        %v4691 = vmul.f32 %v4647, %v2256
        %v4692 = vmul.f32 %v4648, %v2252
        %v4693 = vmul.f32 %v4649, %v2256
        %v4700 = vrot.slane %v4688, 2
        %v4701 = vrot.slane %v4690, 2
        %v4702 = vsel %vm2071, %v4700, %v4701
        %v4703 = vrot.slane %v4689, 2
        %v4704 = vrot.slane %v4691, 2
        %v4705 = vsel %vm2071, %v4703, %v4704
        %v4706 = vrot.slane %v4692, 2
        %v4707 = vsel %vm2071, %v4701, %v4706
        %v4708 = vrot.slane %v4693, 2
        %v4709 = vsel %vm2071, %v4704, %v4708
        %v4714 = vadd.f32 %v4684, %v4702
        %v4715 = vadd.f32 %v4685, %v4705
        %v4716 = vadd.f32 %v4686, %v4707
        %v4717 = vadd.f32 %v4687, %v4709
        %v4718 = vadd.f32 %v4714, %v2291
        %v4719 = vadd.f32 %v4715, %v2295
        %v4720 = vadd.f32 %v4716, %v2291
        %v4721 = vadd.f32 %v4717, %v2295
        %v4722 = vmul.f32 %v4718, 0.5
        %v4723 = vmul.f32 %v4719, 0.5
        %v4724 = vmul.f32 %v4720, 0.5
        %v4725 = vmul.f32 %v4721, 0.5
        %v4726 = vmul.f32 %v4718, 0.70710677
        %v4727 = vmul.f32 %v4719, 0.70710677
        %v4728 = vmul.f32 %v4720, 0.70710677
        %v4729 = vmul.f32 %v4721, 0.70710677
        %v4730 = vand.u32 2147483647, %v4726
        %v4731 = vand.u32 2147483647, %v4727
        %v4732 = vand.u32 2147483647, %v4728
        %v4733 = vand.u32 2147483647, %v4729
        %v4734 = vmul.f32 %v4730, 0.3275911
        %v4735 = vmul.f32 %v4731, 0.3275911
        %v4736 = vmul.f32 %v4732, 0.3275911
        %v4737 = vmul.f32 %v4733, 0.3275911
        %v4738 = vadd.f32 %v4734, 1.0
        %v4739 = vadd.f32 %v4735, 1.0
        %v4740 = vadd.f32 %v4736, 1.0
        %v4741 = vadd.f32 %v4737, 1.0
        %v4742 = vrcp.pop %v4738
        %v4743 = vrcp.pop %v4739
        %v4744 = vrcp.pop %v4740
        %v4745 = vrcp.pop %v4741
        %v4746 = vmul.f32 %v4742, 1.0614054
        %v4747 = vmul.f32 %v4743, 1.0614054
        %v4748 = vmul.f32 %v4744, 1.0614054
        %v4749 = vmul.f32 %v4745, 1.0614054
        %v4750 = vadd.f32 %v4746, -1.4531521
        %v4751 = vadd.f32 %v4747, -1.4531521
        %v4752 = vadd.f32 %v4748, -1.4531521
        %v4753 = vadd.f32 %v4749, -1.4531521
        %v4754 = vmul.f32 %v4742, %v4750
        %v4755 = vmul.f32 %v4743, %v4751
        %v4756 = vmul.f32 %v4744, %v4752
        %v4757 = vmul.f32 %v4745, %v4753
        %v4758 = vadd.f32 %v4754, 1.4214138
        %v4759 = vadd.f32 %v4755, 1.4214138
        %v4760 = vadd.f32 %v4756, 1.4214138
        %v4761 = vadd.f32 %v4757, 1.4214138
        %v4762 = vmul.f32 %v4742, %v4758
        %v4763 = vmul.f32 %v4743, %v4759
        %v4764 = vmul.f32 %v4744, %v4760
        %v4765 = vmul.f32 %v4745, %v4761
        %v4766 = vadd.f32 %v4762, -0.28449672
        %v4767 = vadd.f32 %v4763, -0.28449672
        %v4768 = vadd.f32 %v4764, -0.28449672
        %v4769 = vadd.f32 %v4765, -0.28449672
        %v4770 = vmul.f32 %v4742, %v4766
        %v4771 = vmul.f32 %v4743, %v4767
        %v4772 = vmul.f32 %v4744, %v4768
        %v4773 = vmul.f32 %v4745, %v4769
        %v4774 = vadd.f32 %v4770, 0.2548296
        %v4775 = vadd.f32 %v4771, 0.2548296
        %v4776 = vadd.f32 %v4772, 0.2548296
        %v4777 = vadd.f32 %v4773, 0.2548296
        %v4778 = vmul.f32 %v4742, %v4774
        %v4779 = vmul.f32 %v4743, %v4775
        %v4780 = vmul.f32 %v4744, %v4776
        %v4781 = vmul.f32 %v4745, %v4777
        %v4782 = vsub.f32 0.0, %v4730
        %v4783 = vsub.f32 0.0, %v4731
        %v4784 = vsub.f32 0.0, %v4732
        %v4785 = vsub.f32 0.0, %v4733
        %v4786 = vmul.f32 %v4782, %v4730
        %v4787 = vmul.f32 %v4783, %v4731
        %v4788 = vmul.f32 %v4784, %v4732
        %v4789 = vmul.f32 %v4785, %v4733
        %v4790 = vmul.f32 %v4786, 1.442695
        %v4791 = vpow.pop %v4790
        %v4792 = vmul.f32 %v4787, 1.442695
        %v4793 = vpow.pop %v4792
        %v4794 = vmul.f32 %v4788, 1.442695
        %v4795 = vpow.pop %v4794
        %v4796 = vmul.f32 %v4789, 1.442695
        %v4797 = vpow.pop %v4796
        %v4798 = vmul.f32 %v4778, %v4791
        %v4799 = vmul.f32 %v4779, %v4793
        %v4800 = vmul.f32 %v4780, %v4795
        %v4801 = vmul.f32 %v4781, %v4797
        %v4802 = vsub.f32 1.0, %v4798
        %v4803 = vsub.f32 1.0, %v4799
        %v4804 = vsub.f32 1.0, %v4800
        %v4805 = vsub.f32 1.0, %v4801
        %vm4806 = vcmp.ge.f32.partialorder %v4726, 0.0
        %vm4807 = vcmp.ge.f32.partialorder %v4727, 0.0
        %vm4808 = vcmp.ge.f32.partialorder %v4728, 0.0
        %vm4809 = vcmp.ge.f32.partialorder %v4729, 0.0
        %v4810 = vsub.f32 0.0, %v4802
        %v4811 = vsub.f32 0.0, %v4803
        %v4812 = vsub.f32 0.0, %v4804
        %v4813 = vsub.f32 0.0, %v4805
        %v4814 = vsel %vm4806, %v4802, %v4810
        %v4815 = vsel %vm4807, %v4803, %v4811
        %v4816 = vsel %vm4808, %v4804, %v4812
        %v4817 = vsel %vm4809, %v4805, %v4813
        %v4818 = vadd.f32 %v4814, 1.0
        %v4819 = vadd.f32 %v4815, 1.0
        %v4820 = vadd.f32 %v4816, 1.0
        %v4821 = vadd.f32 %v4817, 1.0
        %v4822 = vmul.f32 %v4722, %v4818
        %v4823 = vmul.f32 %v4723, %v4819
        %v4824 = vmul.f32 %v4724, %v4820
        %v4825 = vmul.f32 %v4725, %v4821
        %v4826 = vpack.c.bf16 %v4824, %v4822
        %v4827 = vpack.c.bf16 %v4825, %v4823
        %v4830 = vunpack.c.l.b16 %v4826
        %v4831 = vunpack.c.l.b16 %v4827
        %v4832 = vunpack.c.h.b16 %v4826
        %v4833 = vunpack.c.h.b16 %v4827
        %v4834 = vpack.c.b16 %v4831, %v4830
        %v4835 = vpack.c.b16 %v4833, %v4832
        %s4838 = scalar_lea.vmem [#allocation3], 112
        %4839 = vst [vmem:[%s4838] sm:$0xff] %v4834
        %4840 = vst [vmem:[%s4838 + $0x8] sm:$0xff] %v4835
        %v4841 = vld [vmem:[#allocation3] sm:$0xff]
        %v4842 = vld [vmem:[#allocation3 + $0x8] sm:$0xff]
        %v4843 = vld [vmem:[#allocation3 + $0x10] sm:$0xff]
        %v4844 = vld [vmem:[#allocation3 + $0x18] sm:$0xff]
        %v4845 = vld [vmem:[#allocation3 + $0x20] sm:$0xff]
        %v4846 = vld [vmem:[#allocation3 + $0x28] sm:$0xff]
        %v4847 = vld [vmem:[#allocation3 + $0x30] sm:$0xff]
        %v4848 = vld [vmem:[#allocation3 + $0x38] sm:$0xff]
        %v4849 = vld [vmem:[#allocation3 + $0x40] sm:$0xff]
        %v4850 = vld [vmem:[#allocation3 + $0x48] sm:$0xff]
        %v4851 = vld [vmem:[#allocation3 + $0x50] sm:$0xff]
        %v4852 = vld [vmem:[#allocation3 + $0x58] sm:$0xff]
        %v4853 = vld [vmem:[#allocation3 + $0x60] sm:$0xff]
        %v4854 = vld [vmem:[#allocation3 + $0x68] sm:$0xff]
        %v4855 = vld [vmem:[#allocation3 + $0x70] sm:$0xff]
        %v4856 = vld [vmem:[#allocation3 + $0x78] sm:$0xff]
        %v4857 = vld [vmem:[%s5] sm:$0xf]
        %v4858 = vld [vmem:[%s5 + $0x4] sm:$0xf]
        %v4859 = vld [vmem:[%s5 + $0x8] sm:$0xf]
        %v4860 = vld [vmem:[%s5 + $0xc] sm:$0xf]
        %v4861 = vld [vmem:[%s5 + $0x10] sm:$0xf]
        %v4862 = vld [vmem:[%s5 + $0x14] sm:$0xf]
        %v4863 = vld [vmem:[%s5 + $0x18] sm:$0xf]
        %v4864 = vld [vmem:[%s5 + $0x1c] sm:$0xf]
        %v4865 = vld [vmem:[%s5 + $0x20] sm:$0xf]
        %v4866 = vld [vmem:[%s5 + $0x24] sm:$0xf]
        %v4867 = vld [vmem:[%s5 + $0x28] sm:$0xf]
        %v4868 = vld [vmem:[%s5 + $0x2c] sm:$0xf]
        %v4869 = vld [vmem:[%s5 + $0x30] sm:$0xf]
        %v4870 = vld [vmem:[%s5 + $0x34] sm:$0xf]
        %v4871 = vld [vmem:[%s5 + $0x38] sm:$0xf]
        %v4872 = vld [vmem:[%s5 + $0x3c] sm:$0xf]
        %v4873 = vld [vmem:[%s5 + $0x40] sm:$0xf]
        %v4874 = vld [vmem:[%s5 + $0x44] sm:$0xf]
        %v4875 = vld [vmem:[%s5 + $0x48] sm:$0xf]
        %v4876 = vld [vmem:[%s5 + $0x4c] sm:$0xf]
        %v4877 = vld [vmem:[%s5 + $0x50] sm:$0xf]
        %v4878 = vld [vmem:[%s5 + $0x54] sm:$0xf]
        %v4879 = vld [vmem:[%s5 + $0x58] sm:$0xf]
        %v4880 = vld [vmem:[%s5 + $0x5c] sm:$0xf]
        %v4881 = vld [vmem:[%s5 + $0x60] sm:$0xf]
        %v4882 = vld [vmem:[%s5 + $0x64] sm:$0xf]
        %v4883 = vld [vmem:[%s5 + $0x68] sm:$0xf]
        %v4884 = vld [vmem:[%s5 + $0x6c] sm:$0xf]
        %v4885 = vld [vmem:[%s5 + $0x70] sm:$0xf]
        %v4886 = vld [vmem:[%s5 + $0x74] sm:$0xf]
        %v4887 = vld [vmem:[%s5 + $0x78] sm:$0xf]
        %v4888 = vld [vmem:[%s5 + $0x7c] sm:$0xf]
        %v4889 = vld [vmem:[%s6] sm:$0x1]
        %v4891 = vlaneseq
        %v4892 = vshrl.u32 %v4891, 7
        %v4893 = vsub.s32 0, %v4892
        %v4894 = vrot.slane %v4889, %v4893
        %v4912 = vunpack.c.l.b16 %v4841
        %v4913 = vunpack.c.h.b16 %v4841
        %v4914 = vunpack.c.l.b16 %v4842
        %v4915 = vunpack.c.h.b16 %v4842
        %v4916 = vunpack.c.l.b16 %v4843
        %v4917 = vunpack.c.h.b16 %v4843
        %v4918 = vunpack.c.l.b16 %v4844
        %v4919 = vunpack.c.h.b16 %v4844
        %v4920 = vunpack.c.l.b16 %v4845
        %v4921 = vunpack.c.h.b16 %v4845
        %v4922 = vunpack.c.l.b16 %v4846
        %v4923 = vunpack.c.h.b16 %v4846
        %v4924 = vunpack.c.l.b16 %v4847
        %v4925 = vunpack.c.h.b16 %v4847
        %v4926 = vunpack.c.l.b16 %v4848
        %v4927 = vunpack.c.h.b16 %v4848
        %v4928 = vunpack.c.l.b16 %v4849
        %v4929 = vunpack.c.h.b16 %v4849
        %v4930 = vunpack.c.l.b16 %v4850
        %v4931 = vunpack.c.h.b16 %v4850
        %v4932 = vunpack.c.l.b16 %v4851
        %v4933 = vunpack.c.h.b16 %v4851
        %v4934 = vunpack.c.l.b16 %v4852
        %v4935 = vunpack.c.h.b16 %v4852
        %v4936 = vunpack.c.l.b16 %v4853
        %v4937 = vunpack.c.h.b16 %v4853
        %v4938 = vunpack.c.l.b16 %v4854
        %v4939 = vunpack.c.h.b16 %v4854
        %v4940 = vunpack.c.l.b16 %v4855
        %v4941 = vunpack.c.h.b16 %v4855
        %v4942 = vunpack.c.l.b16 %v4856
        %v4943 = vunpack.c.h.b16 %v4856
        %v4944 = vpack.c.b16 %v4914, %v4912
        %v4945 = vpack.c.b16 %v4915, %v4913
        %v4946 = vpack.c.b16 %v4918, %v4916
        %v4947 = vpack.c.b16 %v4919, %v4917
        %v4948 = vpack.c.b16 %v4922, %v4920
        %v4949 = vpack.c.b16 %v4923, %v4921
        %v4950 = vpack.c.b16 %v4926, %v4924
        %v4951 = vpack.c.b16 %v4927, %v4925
        %v4952 = vpack.c.b16 %v4930, %v4928
        %v4953 = vpack.c.b16 %v4931, %v4929
        %v4954 = vpack.c.b16 %v4934, %v4932
        %v4955 = vpack.c.b16 %v4935, %v4933
        %v4956 = vpack.c.b16 %v4938, %v4936
        %v4957 = vpack.c.b16 %v4939, %v4937
        %v4958 = vpack.c.b16 %v4942, %v4940
        %v4959 = vpack.c.b16 %v4943, %v4941
        %v5008 = vunpack.c.l.b16 %v4857
        %v5009 = vunpack.c.l.b16 %v4858
        %v5010 = vunpack.c.l.b16 %v4859
        %v5011 = vunpack.c.l.b16 %v4860
        %v5012 = vunpack.c.l.b16 %v4861
        %v5013 = vunpack.c.l.b16 %v4862
        %v5014 = vunpack.c.l.b16 %v4863
        %v5015 = vunpack.c.l.b16 %v4864
        %v5016 = vunpack.c.l.b16 %v4865
        %v5017 = vunpack.c.l.b16 %v4866
        %v5018 = vunpack.c.l.b16 %v4867
        %v5019 = vunpack.c.l.b16 %v4868
        %v5020 = vunpack.c.l.b16 %v4869
        %v5021 = vunpack.c.l.b16 %v4870
        %v5022 = vunpack.c.l.b16 %v4871
        %v5023 = vunpack.c.l.b16 %v4872
        %v5024 = vunpack.c.l.b16 %v4873
        %v5025 = vunpack.c.l.b16 %v4874
        %v5026 = vunpack.c.l.b16 %v4875
        %v5027 = vunpack.c.l.b16 %v4876
        %v5028 = vunpack.c.l.b16 %v4877
        %v5029 = vunpack.c.l.b16 %v4878
        %v5030 = vunpack.c.l.b16 %v4879
        %v5031 = vunpack.c.l.b16 %v4880
        %v5032 = vunpack.c.l.b16 %v4881
        %v5033 = vunpack.c.l.b16 %v4882
        %v5034 = vunpack.c.l.b16 %v4883
        %v5035 = vunpack.c.l.b16 %v4884
        %v5036 = vunpack.c.l.b16 %v4885
        %v5037 = vunpack.c.l.b16 %v4886
        %v5038 = vunpack.c.l.b16 %v4887
        %v5039 = vunpack.c.l.b16 %v4888
        %v5040 = vpack.c.b16 %v5009, %v5008
        %v5041 = vpack.c.b16 %v5011, %v5010
        %v5042 = vpack.c.b16 %v5013, %v5012
        %v5043 = vpack.c.b16 %v5015, %v5014
        %v5044 = vpack.c.b16 %v5017, %v5016
        %v5045 = vpack.c.b16 %v5019, %v5018
        %v5046 = vpack.c.b16 %v5021, %v5020
        %v5047 = vpack.c.b16 %v5023, %v5022
        %v5048 = vpack.c.b16 %v5025, %v5024
        %v5049 = vpack.c.b16 %v5027, %v5026
        %v5050 = vpack.c.b16 %v5029, %v5028
        %v5051 = vpack.c.b16 %v5031, %v5030
        %v5052 = vpack.c.b16 %v5033, %v5032
        %v5053 = vpack.c.b16 %v5035, %v5034
        %v5054 = vpack.c.b16 %v5037, %v5036
        %v5055 = vpack.c.b16 %v5039, %v5038
        %5072 = vmatprep.subr.bf16.mxu0 0
        %5073 = vmatpush1.bf16.msra.mxu0 %v5047
        %5074 = vmatprep.subr.bf16.mxu0 0
        %5075 = vmatpush1.bf16.msra.mxu0 %v5046
        %5076 = vmatprep.subr.bf16.mxu0 0
        %5077 = vmatpush1.bf16.msra.mxu0 %v5045
        %5078 = vmatprep.subr.bf16.mxu0 0
        %5079 = vmatpush1.bf16.msra.mxu0 %v5044
        %5080 = vmatprep.subr.bf16.mxu0 0
        %5081 = vmatpush1.bf16.msra.mxu0 %v5043
        %5082 = vmatprep.subr.bf16.mxu0 0
        %5083 = vmatpush1.bf16.msra.mxu0 %v5042
        %5084 = vmatprep.subr.bf16.mxu0 0
        %5085 = vmatpush1.bf16.msra.mxu0 %v5041
        %5086 = vmatprep.subr.bf16.mxu0 0
        %5087 = vmatpush1.bf16.msra.mxu0 %v5040
        %5088 = vmatprep.subr.bf16.mxu0 0
        %5089 = vmatpush2.bf16.msra.mxu0 %v5055
        %5090 = vmatprep.subr.bf16.mxu0 0
        %5091 = vmatpush2.bf16.msra.mxu0 %v5054
        %5092 = vmatprep.subr.bf16.mxu0 0
        %5093 = vmatpush2.bf16.msra.mxu0 %v5053
        %5094 = vmatprep.subr.bf16.mxu0 0
        %5095 = vmatpush2.bf16.msra.mxu0 %v5052
        %5096 = vmatprep.subr.bf16.mxu0 0
        %5097 = vmatpush2.bf16.msra.mxu0 %v5051
        %5098 = vmatprep.subr.bf16.mxu0 0
        %5099 = vmatpush2.bf16.msra.mxu0 %v5050
        %5100 = vmatprep.subr.bf16.mxu0 0
        %5101 = vmatpush2.bf16.msra.mxu0 %v5049
        %5102 = vmatprep.subr.bf16.mxu0 0
        %5103 = vmatpush2.bf16.msra.mxu0 %v5048
        %5104 = vmatprep.mubr.bf16.mxu0 %v4945
        %5105 = vmatmul.mubr.bf16.gmra.mxu0 %v4944
        %v5106 = vpop.f32.mrf.mxu0
        %v5107 = vadd.f32 %v4894, %v5106
        %v5108 = vpop.f32.mrf.mxu0
        %v5109 = vpop.f32.mrf.mxu0
        %v5110 = vadd.f32 %v4894, %v5109
        %v5111 = vpop.f32.mrf.mxu0
        %5112 = vmatprep.mubr.bf16.mxu0 %v4947
        %5113 = vmatmul.mubr.bf16.gmra.mxu0 %v4946
        %v5114 = vpop.f32.mrf.mxu0
        %v5115 = vadd.f32 %v4894, %v5114
        %v5116 = vpop.f32.mrf.mxu0
        %v5117 = vpop.f32.mrf.mxu0
        %v5118 = vadd.f32 %v4894, %v5117
        %v5119 = vpop.f32.mrf.mxu0
        %5120 = vmatprep.mubr.bf16.mxu0 %v4949
        %5121 = vmatmul.mubr.bf16.gmra.mxu0 %v4948
        %v5122 = vpop.f32.mrf.mxu0
        %v5123 = vadd.f32 %v4894, %v5122
        %v5124 = vpop.f32.mrf.mxu0
        %v5125 = vpop.f32.mrf.mxu0
        %v5126 = vadd.f32 %v4894, %v5125
        %v5127 = vpop.f32.mrf.mxu0
        %5128 = vmatprep.mubr.bf16.mxu0 %v4951
        %5129 = vmatmul.mubr.bf16.gmra.mxu0 %v4950
        %v5130 = vpop.f32.mrf.mxu0
        %v5131 = vadd.f32 %v4894, %v5130
        %v5132 = vpop.f32.mrf.mxu0
        %v5133 = vpop.f32.mrf.mxu0
        %v5134 = vadd.f32 %v4894, %v5133
        %v5135 = vpop.f32.mrf.mxu0
        %5136 = vmatprep.mubr.bf16.mxu0 %v4953
        %5137 = vmatmul.mubr.bf16.gmra.mxu0 %v4952
        %v5138 = vpop.f32.mrf.mxu0
        %v5139 = vadd.f32 %v4894, %v5138
        %v5140 = vpop.f32.mrf.mxu0
        %v5141 = vpop.f32.mrf.mxu0
        %v5142 = vadd.f32 %v4894, %v5141
        %v5143 = vpop.f32.mrf.mxu0
        %5144 = vmatprep.mubr.bf16.mxu0 %v4955
        %5145 = vmatmul.mubr.bf16.gmra.mxu0 %v4954
        %v5146 = vpop.f32.mrf.mxu0
        %v5147 = vadd.f32 %v4894, %v5146
        %v5148 = vpop.f32.mrf.mxu0
        %v5149 = vpop.f32.mrf.mxu0
        %v5150 = vadd.f32 %v4894, %v5149
        %v5151 = vpop.f32.mrf.mxu0
        %5152 = vmatprep.mubr.bf16.mxu0 %v4957
        %5153 = vmatmul.mubr.bf16.gmra.mxu0 %v4956
        %v5154 = vpop.f32.mrf.mxu0
        %v5155 = vadd.f32 %v4894, %v5154
        %v5156 = vpop.f32.mrf.mxu0
        %v5157 = vpop.f32.mrf.mxu0
        %v5158 = vadd.f32 %v4894, %v5157
        %v5159 = vpop.f32.mrf.mxu0
        %5160 = vmatprep.mubr.bf16.mxu0 %v4959
        %5161 = vmatmul.mubr.bf16.gmra.mxu0 %v4958
        %v5162 = vpop.f32.mrf.mxu0
        %v5163 = vadd.f32 %v4894, %v5162
        %v5164 = vpop.f32.mrf.mxu0
        %v5165 = vpop.f32.mrf.mxu0
        %v5166 = vadd.f32 %v4894, %v5165
        %v5167 = vpop.f32.mrf.mxu0
        %5168 = vdwg.mxu0
        %5169 = vst [vmem:[%s285] sm:$0xff] %v5107
        %5170 = vst [vmem:[%s285 + $0x8] sm:$0xff] %v5110
        %5171 = vst [vmem:[%s285 + $0x10] sm:$0xff] %v5115
        %5172 = vst [vmem:[%s285 + $0x18] sm:$0xff] %v5118
        %5173 = vst [vmem:[%s285 + $0x20] sm:$0xff] %v5123
        %5174 = vst [vmem:[%s285 + $0x28] sm:$0xff] %v5126
        %5175 = vst [vmem:[%s285 + $0x30] sm:$0xff] %v5131
        %5176 = vst [vmem:[%s285 + $0x38] sm:$0xff] %v5134
        %5177 = vst [vmem:[%s285 + $0x40] sm:$0xff] %v5139
        %5178 = vst [vmem:[%s285 + $0x48] sm:$0xff] %v5142
        %5179 = vst [vmem:[%s285 + $0x50] sm:$0xff] %v5147
        %5180 = vst [vmem:[%s285 + $0x58] sm:$0xff] %v5150
        %5181 = vst [vmem:[%s285 + $0x60] sm:$0xff] %v5155
        %5182 = vst [vmem:[%s285 + $0x68] sm:$0xff] %v5158
        %5183 = vst [vmem:[%s285 + $0x70] sm:$0xff] %v5163
        %5184 = vst [vmem:[%s285 + $0x78] sm:$0xff] %v5166
        %s5185 = sand.u32 %s195, 1
        %s5186 = scalar_lea.sflag [#allocation5], %s5185
        %s5187 = sand.u32 %s195, 1
        %s5188 = smul.addr %s5187, 128
        %s5189 = scalar_lea.vmem [#allocation4], %s5188
        // Predicated region
        $region57: #{conv_ffn_forward.1} parent=47 // pred_check
          %p5190 = pneg %p205
        $region58: #{conv_ffn_forward.1} parent=47 // pred_check_branch
          %5192 = sbr.rel (%p5190) target = $region60
        $region59: #{conv_ffn_forward.1} parent=47 // pred_region
          %s5193 = smul.u32 8, %s26
          %s5195 = ssub.s32 2048, 2048
          %5196 = vsyncadd %s5186, %s5195
          %s5197 = smul.addr %s5193, 2
          %s5198 = smul.addr %s25, 32
          %s5199 = sadd.s32 %s5197, %s5198
          %s5200 = smul.addr %s5199, 128
          %s5201 = scalar_lea.hbm %s7, %s5200
          %s5202 = sshll.u32 %s5189, 4
          %s5203 = int_to_ptr.vmem [resolvable:$true] %s5202
          %5208 = dma.vmem_to_hbm [thread:$0]  %s5203, 2048, %s5201, %s5186, 128, 128, 8
        $region60: #{conv_ffn_forward.1} parent=47 // pred_fallthru
          _
      $region48: #{conv_ffn_forward.1} parent=5 // pred_fallthru
        _
      %p5209 = scmp.le.s32.totalorder 2, %s16
      // Predicated region
      $region61: #{conv_ffn_forward.1} parent=5 // pred_check
        %p5210 = pneg %p5209
      $region62: #{conv_ffn_forward.1} parent=5 // pred_check_branch
        %5212 = sbr.rel (%p5210) target = $region64
      $region63: #{conv_ffn_forward.1} parent=5 // pred_region
        %s5213 = ssub.s32 %s16, 2
        // Predicated region
        $region65: #{conv_ffn_forward.1} parent=63 // pred_check
          %p5214 = pneg %p211
        $region66: #{conv_ffn_forward.1} parent=63 // pred_check_branch
          %5216 = sbr.rel (%p5214) target = $region68
        $region67: #{conv_ffn_forward.1} parent=63 // pred_region
          %s5217 = sand.u32 %s196, 1
          %s5218 = scalar_lea.sflag [#allocation5], %s5217
          %s5219 = sand.u32 %s196, 1
          %s5220 = smul.addr %s5219, 128
          %s5221 = scalar_lea.vmem [#allocation4], %s5220
          %5222 = dma.done %s5218, 2048
        $region68: #{conv_ffn_forward.1} parent=63 // pred_fallthru
          _
      $region64: #{conv_ffn_forward.1} parent=5 // pred_fallthru
        _
    $region6: #{conv_ffn_forward.1} parent=1 // loop_footer
      %s20 = sadd.s32 1, %s16
    $region7: #{conv_ffn_forward.1} parent=1 // loop_footer_branch
      %15 = sbr.rel target = $region3
    $region8: #{conv_ffn_forward.1} parent=1 // loop_exit
      _
    %5223 = vsyncpa [#allocation5], 1
    %s5224 = scalar_lea.sflag [#allocation5], 1
    %5225 = vsyncpa %s5224, 1

</llo_original>
